<compile_context>
chip_gen: v7x
topology: tpu7x:2x2x1
jax: 0.10.0
libtpu: 0.0.40
codegen_flags: <defaults>
</compile_context>

<pallas_src>
import functools

import jax
import jax.numpy as jnp
from jax import lax
from jax.experimental import pallas as pl
from jax.experimental.pallas import tpu as pltpu
import numpy as np


# ----------------------------------------------------------------------------
# Fused kernel (one grid step = B_tile images concatenated on the lane axis)
# ----------------------------------------------------------------------------
def _head_kernel(x_ref, w1_ref, b1_ref, w2_ref, b2_ref, wl_ref, bl_ref, m_ref,
                 o_ref, y1b, p1b, y2b, xstk, *, W, M, LI, Cmid, Cout, BN):
    f32 = jnp.float32
    taps = [(di, dj) for di in (-1, 0, 1) for dj in (-1, 0, 1)]

    # Precomputed lane masks (f32 0/1), hoisted to the wrapper:
    #   row 0: interior (1 inside an image's HxW region, 0 at inter-image gaps)
    #   rows 1-2: conv1 w-padding for dj=-1/+1, rows 3-4: conv2 (dilated) ones.
    interior = m_ref[0:1, :]
    wm1 = {-1: m_ref[1:2, :], 1: m_ref[2:3, :]}
    wm2 = {-1: m_ref[3:4, :], 1: m_ref[4:5, :]}

    # Zero only the M-lane edges of each scratch band; the [M:M+LI] interior is
    # fully rewritten each step and gap lanes are zeroed via `interior`.
    for band in (y1b, p1b, y2b):
        z = jnp.zeros((band.shape[0], M), f32)
        band[:, :M] = z
        band[:, M + LI:] = z

    # ---- conv1 (3x3, zero-pad 1) + bias + ReLU: 9 shifted-slice MXU matmuls.
    acc1 = jnp.zeros((Cmid, LI), f32)
    for t, (di, dj) in enumerate(taps):
        s = di * W + dj
        xs = x_ref[:, M + s:M + s + LI]                       # (Cin, LI)
        if dj != 0:
            xs = xs * wm1[dj]                                 # w-direction zero pad
        acc1 = acc1 + jnp.dot(w1_ref[t], xs, preferred_element_type=f32)
    y1 = jnp.maximum(acc1 + b1_ref[...], 0.0) * interior      # gaps -> exact 0
    y1b[:, M:M + LI] = y1

    # ---- maxpool 2x2 / stride 2: valid at stride-2 anchor lanes (2i*W + 2j).
    p1 = y1                                                   # in-register base
    for (a, b) in ((0, 1), (1, 0), (1, 1)):
        sh = a * W + b
        p1 = jnp.maximum(p1, y1b[:, M + sh:M + sh + LI])
    p1 = p1 * interior
    p1b[:, M:M + LI] = p1

    # ---- conv2 (3x3, pad 1 on the pooled grid; dilated-by-2 shifts):
    #      stage the 9 taps into one (9*Cmid, LI) operand -> single K=144 matmul.
    for t, (di, dj) in enumerate(taps):
        s = 2 * di * W + 2 * dj
        if s == 0:
            xs = p1                                           # in-register reuse
        else:
            xs = p1b[:, M + s:M + s + LI]
            if dj != 0:
                xs = xs * wm2[dj]
        xstk[t * Cmid:(t + 1) * Cmid, :] = xs
    y2 = jnp.maximum(jnp.dot(w2_ref[...], xstk[...], preferred_element_type=f32)
                     + b2_ref[...], 0.0)                      # (Cout, LI)
    y2b[:, M:M + LI] = y2

    # ---- maxpool 2x2 / stride 2 on the stride-2 grid: stride-4 anchors.
    q = y2                                                    # in-register base
    for (a, b) in ((0, 1), (1, 0), (1, 1)):
        sh = 2 * a * W + 2 * b
        q = jnp.maximum(q, y2b[:, M + sh:M + sh + LI])        # (Cout, LI)

    # ---- flatten (NCHW order baked into wl_ref) + Linear + ReLU, lane-major.
    acc = jnp.zeros((1, BN), f32)
    for c in range(Cout):
        acc = acc + jnp.dot(q[c:c + 1, :], wl_ref[c], preferred_element_type=f32)
    o_ref[...] = jnp.maximum(acc + bl_ref[...], 0.0)          # (1, B_tile*NL)


# ----------------------------------------------------------------------------
# Wrapper: one-time parameter repacking + single pallas_call
# ----------------------------------------------------------------------------
def head_forward(x, params, *, margin=64, max_tile=8):
    """Forward of Head (with_linear=True).  x: (B, Cin, H, W) NCHW."""
    w1, b1, w2, b2, wl, bl = params
    B, Cin, H, W = x.shape
    Cmid = w1.shape[0]
    Cout = w2.shape[0]
    NL = wl.shape[0]
    assert H % 4 == 0 and W % 4 == 0, "spatial size must be divisible by 4"
    S = H * W
    M = margin
    assert M >= 2 * W + 2, "margin must cover the largest (dilated) conv shift"
    SB = S + 2 * M
    H4, W4 = H // 4, W // 4
    assert wl.shape[1] == Cout * H4 * W4

    # Batch tiling: B_tile images per grid step; keep >= 2 grid steps when B>=2
    # (v7x has 2 TensorCores), cap B_tile so the lane-expanded constants stay small.
    bt = max(1, min(max_tile, pl.cdiv(B, 2)))
    nb = pl.cdiv(B, bt)
    Bp = nb * bt
    LB = bt * SB              # band lanes per grid step (incl. per-image margins)
    LI = LB - 2 * M           # computed inner band: all interiors + gaps
    BN = bt * NL

    f32 = jnp.float32
    # Input: per-image channel-major spatial flatten with zero margins; the
    # bt images of a tile are concatenated along the lane axis.
    xf = x.reshape(B, Cin, S).astype(f32)
    if Bp > B:
        xf = jnp.pad(xf, ((0, Bp - B), (0, 0), (0, 0)))
    xf = jnp.pad(xf.reshape(nb, bt, Cin, S), ((0, 0), (0, 0), (0, 0), (M, M)))
    xe = jnp.transpose(xf, (0, 2, 1, 3)).reshape(nb, Cin, LB)

    # conv1 weights tap-major; conv2 weights flattened for the K=144 matmul:
    #   w1t[t, co, ci] = w1[co, ci, ki, kj],  w2s[co, t*Cmid + ci] = w2[co, ci, ki, kj]
    w1t = jnp.transpose(w1, (2, 3, 0, 1)).reshape(9, Cmid, Cin).astype(f32)
    w2s = jnp.transpose(w2, (0, 2, 3, 1)).reshape(Cout, 9 * Cmid).astype(f32)
    b1c = b1.reshape(Cmid, 1).astype(f32)
    b2c = b2.reshape(Cout, 1).astype(f32)

    # Block-diagonal lane-expanded Linear weight (PyTorch NCHW flatten order):
    #   W_lin[c, b*SB + 4u*W + 4v, b*NL + o] = wl[o, c*H4*W4 + u*W4 + v]
    wl_np = np.asarray(wl, np.float32).reshape(NL, Cout, H4, W4)
    w_img = np.zeros((Cout, H, W, NL), np.float32)
    w_img[:, ::4, ::4, :] = np.transpose(wl_np, (1, 2, 3, 0))
    w_img = w_img.reshape(Cout, S, NL)
    w_lin = np.zeros((Cout, bt * SB, BN), np.float32)
    for b in range(bt):
        w_lin[:, b * SB:b * SB + S, b * NL:(b + 1) * NL] = w_img
    w_lin = jnp.asarray(w_lin[:, :LI, :])                    # (Cout, LI, BN)
    bl_row = jnp.tile(bl.astype(f32), bt).reshape(1, BN)

    # Lane-geometry masks, hoisted all the way into the wrapper (f32 0/1).
    lane = np.arange(LI)
    qpos = lane % SB                                         # per-image position
    wcol = qpos % W
    masks = jnp.asarray(np.stack([
        (qpos < S),                                          # interior
        (wcol >= 1), (wcol <= W - 2),                        # conv1 dj=-1 / +1
        (wcol >= 2), (wcol <= W - 4),                        # conv2 dj=-1 / +1
    ]).astype(np.float32))                                   # (5, LI)

    kernel = functools.partial(_head_kernel, W=W, M=M, LI=LI,
                               Cmid=Cmid, Cout=Cout, BN=BN)
    out = pl.pallas_call(
        kernel,
        out_shape=jax.ShapeDtypeStruct((nb, 1, BN), f32),
        grid_spec=pltpu.PrefetchScalarGridSpec(
            num_scalar_prefetch=0,
            grid=(nb,),
            in_specs=[
                pl.BlockSpec((None, Cin, LB), lambda i: (i, 0, 0)),
                pl.BlockSpec((9, Cmid, Cin), lambda i: (0, 0, 0)),
                pl.BlockSpec((Cmid, 1), lambda i: (0, 0)),
                pl.BlockSpec((Cout, 9 * Cmid), lambda i: (0, 0)),
                pl.BlockSpec((Cout, 1), lambda i: (0, 0)),
                pl.BlockSpec((Cout, LI, BN), lambda i: (0, 0, 0)),
                pl.BlockSpec((1, BN), lambda i: (0, 0)),
                pl.BlockSpec((5, LI), lambda i: (0, 0)),
            ],
            out_specs=pl.BlockSpec((None, 1, BN), lambda i: (i, 0, 0)),
            scratch_shapes=[
                pltpu.VMEM((Cmid, LB), f32),        # conv1 band (+ zero edges)
                pltpu.VMEM((Cmid, LB), f32),        # pool1 band (+ zero edges)
                pltpu.VMEM((Cout, LB), f32),        # conv2 band (+ zero edges)
                pltpu.VMEM((9 * Cmid, LI), f32),    # stacked conv2 taps (K=144)
            ],
        ),
        compiler_params=pltpu.CompilerParams(
            dimension_semantics=("parallel",)),
    )(xe, w1t, b1c, w2s, b2c, w_lin, bl_row, masks)
    return out.reshape(Bp, NL)[:B]


# ----------------------------------------------------------------------------
# Plain-JAX reference (independent path: lax.conv / reduce_window)
# ----------------------------------------------------------------------------
def ref_forward(x, params):
    w1, b1, w2, b2, wl, bl = params
    dn = ("NCHW", "OIHW", "NCHW")
    y = lax.conv_general_dilated(x, w1, (1, 1), "SAME", dimension_numbers=dn)
    y = jnp.maximum(y + b1[None, :, None, None], 0.0)
    y = lax.reduce_window(y, -jnp.inf, lax.max, (1, 1, 2, 2), (1, 1, 2, 2), "VALID")
    y = lax.conv_general_dilated(y, w2, (1, 1), "SAME", dimension_numbers=dn)
    y = jnp.maximum(y + b2[None, :, None, None], 0.0)
    y = lax.reduce_window(y, -jnp.inf, lax.max, (1, 1, 2, 2), (1, 1, 2, 2), "VALID")
    f = y.reshape(y.shape[0], -1)
    return jnp.maximum(f @ wl.T + bl[None, :], 0.0)


# ----------------------------------------------------------------------------
if __name__ == "__main__":
    # Head(size=16, in_channels=3, mid_channels=16, out_channels=3, with_linear=True)
    size = 16
    in_channels, mid_channels, out_channels = 3, 16, 3
    feat = out_channels * (size // 4) * (size // 4)          # 48

    key = jax.random.PRNGKey(0)
    k1, k2, k3, k4, k5, k6, kx, kx2 = jax.random.split(key, 8)
    # Deterministic synthetic parameters (shapes match nn.Conv2d / nn.Linear).
    w1 = jax.random.normal(k1, (mid_channels, in_channels, 3, 3), jnp.float32) * 0.2
    b1 = jax.random.normal(k2, (mid_channels,), jnp.float32) * 0.1
    w2 = jax.random.normal(k3, (out_channels, mid_channels, 3, 3), jnp.float32) * 0.1
    b2 = jax.random.normal(k4, (out_channels,), jnp.float32) * 0.1
    wl = jax.random.normal(k5, (out_channels, feat), jnp.float32) * 0.1
    bl = jax.random.normal(k6, (out_channels,), jnp.float32) * 0.1
    params = (w1, b1, w2, b2, wl, bl)

    # Primary test: B=8 -> B_tile=4 images per grid step, grid=(2,)
    x = jax.random.normal(kx, (8, in_channels, size, size), jnp.float32)
    out = jax.block_until_ready(head_forward(x, params))
    ref = jax.block_until_ready(ref_forward(x, params))
    assert out.shape == (8, out_channels)
    np.testing.assert_allclose(np.asarray(out), np.asarray(ref), rtol=1e-3, atol=1e-3)

    # Degenerate-tile path: B=2 -> B_tile=1, grid=(2,)
    x2 = jax.random.normal(kx2, (2, in_channels, size, size), jnp.float32)
    out2 = jax.block_until_ready(head_forward(x2, params))
    ref2 = jax.block_until_ready(ref_forward(x2, params))
    assert out2.shape == (2, out_channels)
    np.testing.assert_allclose(np.asarray(out2), np.asarray(ref2), rtol=1e-3, atol=1e-3)

    print("KERNEL_OK")
</pallas_src>

<mosaic_0001>
module attributes {stable_mosaic.version = 11 : i64} {
  func.func @_head_kernel(%arg0: i32, %arg1: memref<1x3x1536xf32, #tpu.memory_space<vmem>>, %arg2: memref<9x16x3xf32, #tpu.memory_space<vmem>>, %arg3: memref<16x1xf32, #tpu.memory_space<vmem>>, %arg4: memref<3x144xf32, #tpu.memory_space<vmem>>, %arg5: memref<3x1xf32, #tpu.memory_space<vmem>>, %arg6: memref<3x1408x12xf32, #tpu.memory_space<vmem>>, %arg7: memref<1x12xf32, #tpu.memory_space<vmem>>, %arg8: memref<5x1408xf32, #tpu.memory_space<vmem>>, %arg9: memref<1x1x12xf32, #tpu.memory_space<vmem>>, %arg10: memref<16x1536xf32, #tpu.memory_space<vmem>>, %arg11: memref<16x1536xf32, #tpu.memory_space<vmem>>, %arg12: memref<3x1536xf32, #tpu.memory_space<vmem>>, %arg13: memref<144x1408xf32, #tpu.memory_space<vmem>>) attributes {dimension_semantics = [#tpu.dimension_semantics<parallel>], iteration_bounds = array<i64: 2>, scalar_prefetch = 0 : i64, scratch_operands = 4 : i64, tpu.core_type = #tpu.core_type<tc>, window_params = [{transform_indices = @transform_0, window_bounds = array<i64: 1, 3, 1536>}, {pipeline_mode = #tpu.pipeline_mode<synchronous>, transform_indices = @transform_1, window_bounds = array<i64: 9, 16, 3>}, {pipeline_mode = #tpu.pipeline_mode<synchronous>, transform_indices = @transform_2, window_bounds = array<i64: 16, 1>}, {pipeline_mode = #tpu.pipeline_mode<synchronous>, transform_indices = @transform_3, window_bounds = array<i64: 3, 144>}, {pipeline_mode = #tpu.pipeline_mode<synchronous>, transform_indices = @transform_4, window_bounds = array<i64: 3, 1>}, {pipeline_mode = #tpu.pipeline_mode<synchronous>, transform_indices = @transform_5, window_bounds = array<i64: 3, 1408, 12>}, {pipeline_mode = #tpu.pipeline_mode<synchronous>, transform_indices = @transform_6, window_bounds = array<i64: 1, 12>}, {pipeline_mode = #tpu.pipeline_mode<synchronous>, transform_indices = @transform_7, window_bounds = array<i64: 5, 1408>}, {transform_indices = @transform_8, window_bounds = array<i64: 1, 1, 12>}]} {
    %c0 = arith.constant 0 : index
    %c0_0 = arith.constant 0 : index
    %0 = vector.load %arg8[%c0, %c0_0] : memref<5x1408xf32, #tpu.memory_space<vmem>>, vector<1x1408xf32>
    %c1 = arith.constant 1 : index
    %c0_1 = arith.constant 0 : index
    %1 = vector.load %arg8[%c1, %c0_1] : memref<5x1408xf32, #tpu.memory_space<vmem>>, vector<1x1408xf32>
    %c2 = arith.constant 2 : index
    %c0_2 = arith.constant 0 : index
    %2 = vector.load %arg8[%c2, %c0_2] : memref<5x1408xf32, #tpu.memory_space<vmem>>, vector<1x1408xf32>
    %c3 = arith.constant 3 : index
    %c0_3 = arith.constant 0 : index
    %3 = vector.load %arg8[%c3, %c0_3] : memref<5x1408xf32, #tpu.memory_space<vmem>>, vector<1x1408xf32>
    %c4 = arith.constant 4 : index
    %c0_4 = arith.constant 0 : index
    %4 = vector.load %arg8[%c4, %c0_4] : memref<5x1408xf32, #tpu.memory_space<vmem>>, vector<1x1408xf32>
    %cst = arith.constant 0.000000e+00 : f32
    %5 = vector.broadcast %cst : f32 to vector<16x64xf32>
    %c0_5 = arith.constant 0 : index
    %c0_6 = arith.constant 0 : index
    %6 = vector.load %arg10[%c0_5, %c0_6] : memref<16x1536xf32, #tpu.memory_space<vmem>>, vector<16x64xf32>
    tpu.vector_store %arg10[%c0_5, %c0_6], %5 {strides = array<i32>} : memref<16x1536xf32, #tpu.memory_space<vmem>>, vector<16x64xf32>,
    %c0_7 = arith.constant 0 : index
    %c1472 = arith.constant 1472 : index
    %7 = vector.load %arg10[%c0_7, %c1472] : memref<16x1536xf32, #tpu.memory_space<vmem>>, vector<16x64xf32>
    tpu.vector_store %arg10[%c0_7, %c1472], %5 {strides = array<i32>} : memref<16x1536xf32, #tpu.memory_space<vmem>>, vector<16x64xf32>,
    %cst_8 = arith.constant 0.000000e+00 : f32
    %8 = vector.broadcast %cst_8 : f32 to vector<16x64xf32>
    %c0_9 = arith.constant 0 : index
    %c0_10 = arith.constant 0 : index
    %9 = vector.load %arg11[%c0_9, %c0_10] : memref<16x1536xf32, #tpu.memory_space<vmem>>, vector<16x64xf32>
    tpu.vector_store %arg11[%c0_9, %c0_10], %8 {strides = array<i32>} : memref<16x1536xf32, #tpu.memory_space<vmem>>, vector<16x64xf32>,
    %c0_11 = arith.constant 0 : index
    %c1472_12 = arith.constant 1472 : index
    %10 = vector.load %arg11[%c0_11, %c1472_12] : memref<16x1536xf32, #tpu.memory_space<vmem>>, vector<16x64xf32>
    tpu.vector_store %arg11[%c0_11, %c1472_12], %8 {strides = array<i32>} : memref<16x1536xf32, #tpu.memory_space<vmem>>, vector<16x64xf32>,
    %cst_13 = arith.constant 0.000000e+00 : f32
    %11 = vector.broadcast %cst_13 : f32 to vector<3x64xf32>
    %c0_14 = arith.constant 0 : index
    %c0_15 = arith.constant 0 : index
    %12 = vector.load %arg12[%c0_14, %c0_15] : memref<3x1536xf32, #tpu.memory_space<vmem>>, vector<3x64xf32>
    tpu.vector_store %arg12[%c0_14, %c0_15], %11 {strides = array<i32>} : memref<3x1536xf32, #tpu.memory_space<vmem>>, vector<3x64xf32>,
    %c0_16 = arith.constant 0 : index
    %c1472_17 = arith.constant 1472 : index
    %13 = vector.load %arg12[%c0_16, %c1472_17] : memref<3x1536xf32, #tpu.memory_space<vmem>>, vector<3x64xf32>
    tpu.vector_store %arg12[%c0_16, %c1472_17], %11 {strides = array<i32>} : memref<3x1536xf32, #tpu.memory_space<vmem>>, vector<3x64xf32>,
    %cst_18 = arith.constant 0.000000e+00 : f32
    %14 = vector.broadcast %cst_18 : f32 to vector<16x1408xf32>
    %c0_19 = arith.constant 0 : index
    %c0_20 = arith.constant 0 : index
    %c47 = arith.constant 47 : index
    %15 = vector.load %arg1[%c0_19, %c0_20, %c47] : memref<1x3x1536xf32, #tpu.memory_space<vmem>>, vector<1x3x1408xf32>
    %16 = vector.shape_cast %15 : vector<1x3x1408xf32> to vector<3x1408xf32>
    %17 = vector.broadcast %1 : vector<1x1408xf32> to vector<3x1408xf32>
    %18 = arith.mulf %16, %17 : vector<3x1408xf32>
    %c0_21 = arith.constant 0 : index
    %c0_22 = arith.constant 0 : index
    %c0_23 = arith.constant 0 : index
    %19 = vector.load %arg2[%c0_21, %c0_22, %c0_23] : memref<9x16x3xf32, #tpu.memory_space<vmem>>, vector<1x16x3xf32>
    %20 = vector.shape_cast %19 : vector<1x16x3xf32> to vector<16x3xf32>
    %cst_24 = arith.constant dense<0.000000e+00> : vector<16x1408xf32>
    %21 = tpu.matmul %20, %18, %cst_24 {dimension_numbers = #tpu.dot_dimension_numbers<[1], [0], [0], [1], [0, 0, 1, 1], [], []>} : vector<16x3xf32>, vector<3x1408xf32>, vector<16x1408xf32> -> vector<16x1408xf32>
    %22 = arith.addf %14, %21 : vector<16x1408xf32>
    %c0_25 = arith.constant 0 : index
    %c0_26 = arith.constant 0 : index
    %c48 = arith.constant 48 : index
    %23 = vector.load %arg1[%c0_25, %c0_26, %c48] : memref<1x3x1536xf32, #tpu.memory_space<vmem>>, vector<1x3x1408xf32>
    %24 = vector.shape_cast %23 : vector<1x3x1408xf32> to vector<3x1408xf32>
    %c1_27 = arith.constant 1 : index
    %c0_28 = arith.constant 0 : index
    %c0_29 = arith.constant 0 : index
    %25 = vector.load %arg2[%c1_27, %c0_28, %c0_29] : memref<9x16x3xf32, #tpu.memory_space<vmem>>, vector<1x16x3xf32>
    %26 = vector.shape_cast %25 : vector<1x16x3xf32> to vector<16x3xf32>
    %cst_30 = arith.constant dense<0.000000e+00> : vector<16x1408xf32>
    %27 = tpu.matmul %26, %24, %cst_30 {dimension_numbers = #tpu.dot_dimension_numbers<[1], [0], [0], [1], [0, 0, 1, 1], [], []>} : vector<16x3xf32>, vector<3x1408xf32>, vector<16x1408xf32> -> vector<16x1408xf32>
    %28 = arith.addf %22, %27 : vector<16x1408xf32>
    %c0_31 = arith.constant 0 : index
    %c0_32 = arith.constant 0 : index
    %c49 = arith.constant 49 : index
    %29 = vector.load %arg1[%c0_31, %c0_32, %c49] : memref<1x3x1536xf32, #tpu.memory_space<vmem>>, vector<1x3x1408xf32>
    %30 = vector.shape_cast %29 : vector<1x3x1408xf32> to vector<3x1408xf32>
    %31 = vector.broadcast %2 : vector<1x1408xf32> to vector<3x1408xf32>
    %32 = arith.mulf %30, %31 : vector<3x1408xf32>
    %c2_33 = arith.constant 2 : index
    %c0_34 = arith.constant 0 : index
    %c0_35 = arith.constant 0 : index
    %33 = vector.load %arg2[%c2_33, %c0_34, %c0_35] : memref<9x16x3xf32, #tpu.memory_space<vmem>>, vector<1x16x3xf32>
    %34 = vector.shape_cast %33 : vector<1x16x3xf32> to vector<16x3xf32>
    %cst_36 = arith.constant dense<0.000000e+00> : vector<16x1408xf32>
    %35 = tpu.matmul %34, %32, %cst_36 {dimension_numbers = #tpu.dot_dimension_numbers<[1], [0], [0], [1], [0, 0, 1, 1], [], []>} : vector<16x3xf32>, vector<3x1408xf32>, vector<16x1408xf32> -> vector<16x1408xf32>
    %36 = arith.addf %28, %35 : vector<16x1408xf32>
    %c0_37 = arith.constant 0 : index
    %c0_38 = arith.constant 0 : index
    %c63 = arith.constant 63 : index
    %37 = vector.load %arg1[%c0_37, %c0_38, %c63] : memref<1x3x1536xf32, #tpu.memory_space<vmem>>, vector<1x3x1408xf32>
    %38 = vector.shape_cast %37 : vector<1x3x1408xf32> to vector<3x1408xf32>
    %39 = vector.broadcast %1 : vector<1x1408xf32> to vector<3x1408xf32>
    %40 = arith.mulf %38, %39 : vector<3x1408xf32>
    %c3_39 = arith.constant 3 : index
    %c0_40 = arith.constant 0 : index
    %c0_41 = arith.constant 0 : index
    %41 = vector.load %arg2[%c3_39, %c0_40, %c0_41] : memref<9x16x3xf32, #tpu.memory_space<vmem>>, vector<1x16x3xf32>
    %42 = vector.shape_cast %41 : vector<1x16x3xf32> to vector<16x3xf32>
    %cst_42 = arith.constant dense<0.000000e+00> : vector<16x1408xf32>
    %43 = tpu.matmul %42, %40, %cst_42 {dimension_numbers = #tpu.dot_dimension_numbers<[1], [0], [0], [1], [0, 0, 1, 1], [], []>} : vector<16x3xf32>, vector<3x1408xf32>, vector<16x1408xf32> -> vector<16x1408xf32>
    %44 = arith.addf %36, %43 : vector<16x1408xf32>
    %c0_43 = arith.constant 0 : index
    %c0_44 = arith.constant 0 : index
    %c64 = arith.constant 64 : index
    %45 = vector.load %arg1[%c0_43, %c0_44, %c64] : memref<1x3x1536xf32, #tpu.memory_space<vmem>>, vector<1x3x1408xf32>
    %46 = vector.shape_cast %45 : vector<1x3x1408xf32> to vector<3x1408xf32>
    %c4_45 = arith.constant 4 : index
    %c0_46 = arith.constant 0 : index
    %c0_47 = arith.constant 0 : index
    %47 = vector.load %arg2[%c4_45, %c0_46, %c0_47] : memref<9x16x3xf32, #tpu.memory_space<vmem>>, vector<1x16x3xf32>
    %48 = vector.shape_cast %47 : vector<1x16x3xf32> to vector<16x3xf32>
    %cst_48 = arith.constant dense<0.000000e+00> : vector<16x1408xf32>
    %49 = tpu.matmul %48, %46, %cst_48 {dimension_numbers = #tpu.dot_dimension_numbers<[1], [0], [0], [1], [0, 0, 1, 1], [], []>} : vector<16x3xf32>, vector<3x1408xf32>, vector<16x1408xf32> -> vector<16x1408xf32>
    %50 = arith.addf %44, %49 : vector<16x1408xf32>
    %c0_49 = arith.constant 0 : index
    %c0_50 = arith.constant 0 : index
    %c65 = arith.constant 65 : index
    %51 = vector.load %arg1[%c0_49, %c0_50, %c65] : memref<1x3x1536xf32, #tpu.memory_space<vmem>>, vector<1x3x1408xf32>
    %52 = vector.shape_cast %51 : vector<1x3x1408xf32> to vector<3x1408xf32>
    %53 = vector.broadcast %2 : vector<1x1408xf32> to vector<3x1408xf32>
    %54 = arith.mulf %52, %53 : vector<3x1408xf32>
    %c5 = arith.constant 5 : index
    %c0_51 = arith.constant 0 : index
    %c0_52 = arith.constant 0 : index
    %55 = vector.load %arg2[%c5, %c0_51, %c0_52] : memref<9x16x3xf32, #tpu.memory_space<vmem>>, vector<1x16x3xf32>
    %56 = vector.shape_cast %55 : vector<1x16x3xf32> to vector<16x3xf32>
    %cst_53 = arith.constant dense<0.000000e+00> : vector<16x1408xf32>
    %57 = tpu.matmul %56, %54, %cst_53 {dimension_numbers = #tpu.dot_dimension_numbers<[1], [0], [0], [1], [0, 0, 1, 1], [], []>} : vector<16x3xf32>, vector<3x1408xf32>, vector<16x1408xf32> -> vector<16x1408xf32>
    %58 = arith.addf %50, %57 : vector<16x1408xf32>
    %c0_54 = arith.constant 0 : index
    %c0_55 = arith.constant 0 : index
    %c79 = arith.constant 79 : index
    %59 = vector.load %arg1[%c0_54, %c0_55, %c79] : memref<1x3x1536xf32, #tpu.memory_space<vmem>>, vector<1x3x1408xf32>
    %60 = vector.shape_cast %59 : vector<1x3x1408xf32> to vector<3x1408xf32>
    %61 = vector.broadcast %1 : vector<1x1408xf32> to vector<3x1408xf32>
    %62 = arith.mulf %60, %61 : vector<3x1408xf32>
    %c6 = arith.constant 6 : index
    %c0_56 = arith.constant 0 : index
    %c0_57 = arith.constant 0 : index
    %63 = vector.load %arg2[%c6, %c0_56, %c0_57] : memref<9x16x3xf32, #tpu.memory_space<vmem>>, vector<1x16x3xf32>
    %64 = vector.shape_cast %63 : vector<1x16x3xf32> to vector<16x3xf32>
    %cst_58 = arith.constant dense<0.000000e+00> : vector<16x1408xf32>
    %65 = tpu.matmul %64, %62, %cst_58 {dimension_numbers = #tpu.dot_dimension_numbers<[1], [0], [0], [1], [0, 0, 1, 1], [], []>} : vector<16x3xf32>, vector<3x1408xf32>, vector<16x1408xf32> -> vector<16x1408xf32>
    %66 = arith.addf %58, %65 : vector<16x1408xf32>
    %c0_59 = arith.constant 0 : index
    %c0_60 = arith.constant 0 : index
    %c80 = arith.constant 80 : index
    %67 = vector.load %arg1[%c0_59, %c0_60, %c80] : memref<1x3x1536xf32, #tpu.memory_space<vmem>>, vector<1x3x1408xf32>
    %68 = vector.shape_cast %67 : vector<1x3x1408xf32> to vector<3x1408xf32>
    %c7 = arith.constant 7 : index
    %c0_61 = arith.constant 0 : index
    %c0_62 = arith.constant 0 : index
    %69 = vector.load %arg2[%c7, %c0_61, %c0_62] : memref<9x16x3xf32, #tpu.memory_space<vmem>>, vector<1x16x3xf32>
    %70 = vector.shape_cast %69 : vector<1x16x3xf32> to vector<16x3xf32>
    %cst_63 = arith.constant dense<0.000000e+00> : vector<16x1408xf32>
    %71 = tpu.matmul %70, %68, %cst_63 {dimension_numbers = #tpu.dot_dimension_numbers<[1], [0], [0], [1], [0, 0, 1, 1], [], []>} : vector<16x3xf32>, vector<3x1408xf32>, vector<16x1408xf32> -> vector<16x1408xf32>
    %72 = arith.addf %66, %71 : vector<16x1408xf32>
    %c0_64 = arith.constant 0 : index
    %c0_65 = arith.constant 0 : index
    %c81 = arith.constant 81 : index
    %73 = vector.load %arg1[%c0_64, %c0_65, %c81] : memref<1x3x1536xf32, #tpu.memory_space<vmem>>, vector<1x3x1408xf32>
    %74 = vector.shape_cast %73 : vector<1x3x1408xf32> to vector<3x1408xf32>
    %75 = vector.broadcast %2 : vector<1x1408xf32> to vector<3x1408xf32>
    %76 = arith.mulf %74, %75 : vector<3x1408xf32>
    %c8 = arith.constant 8 : index
    %c0_66 = arith.constant 0 : index
    %c0_67 = arith.constant 0 : index
    %77 = vector.load %arg2[%c8, %c0_66, %c0_67] : memref<9x16x3xf32, #tpu.memory_space<vmem>>, vector<1x16x3xf32>
    %78 = vector.shape_cast %77 : vector<1x16x3xf32> to vector<16x3xf32>
    %cst_68 = arith.constant dense<0.000000e+00> : vector<16x1408xf32>
    %79 = tpu.matmul %78, %76, %cst_68 {dimension_numbers = #tpu.dot_dimension_numbers<[1], [0], [0], [1], [0, 0, 1, 1], [], []>} : vector<16x3xf32>, vector<3x1408xf32>, vector<16x1408xf32> -> vector<16x1408xf32>
    %80 = arith.addf %72, %79 : vector<16x1408xf32>
    %c0_69 = arith.constant 0 : index
    %c0_70 = arith.constant 0 : index
    %81 = vector.load %arg3[%c0_69, %c0_70] : memref<16x1xf32, #tpu.memory_space<vmem>>, vector<16x1xf32>
    %82 = vector.broadcast %81 : vector<16x1xf32> to vector<16x1408xf32>
    %83 = arith.addf %80, %82 : vector<16x1408xf32>
    %cst_71 = arith.constant 0.000000e+00 : f32
    %84 = vector.broadcast %cst_71 : f32 to vector<16x1408xf32>
    %85 = arith.maximumf %83, %84 : vector<16x1408xf32>
    %86 = vector.broadcast %0 : vector<1x1408xf32> to vector<16x1408xf32>
    %87 = arith.mulf %85, %86 : vector<16x1408xf32>
    %c0_72 = arith.constant 0 : index
    %c64_73 = arith.constant 64 : index
    %88 = vector.load %arg10[%c0_72, %c64_73] : memref<16x1536xf32, #tpu.memory_space<vmem>>, vector<16x1408xf32>
    tpu.vector_store %arg10[%c0_72, %c64_73], %87 {strides = array<i32>} : memref<16x1536xf32, #tpu.memory_space<vmem>>, vector<16x1408xf32>,
    %c0_74 = arith.constant 0 : index
    %c65_75 = arith.constant 65 : index
    %89 = vector.load %arg10[%c0_74, %c65_75] : memref<16x1536xf32, #tpu.memory_space<vmem>>, vector<16x1408xf32>
    %90 = arith.maximumf %87, %89 : vector<16x1408xf32>
    %c0_76 = arith.constant 0 : index
    %c80_77 = arith.constant 80 : index
    %91 = vector.load %arg10[%c0_76, %c80_77] : memref<16x1536xf32, #tpu.memory_space<vmem>>, vector<16x1408xf32>
    %92 = arith.maximumf %90, %91 : vector<16x1408xf32>
    %c0_78 = arith.constant 0 : index
    %c81_79 = arith.constant 81 : index
    %93 = vector.load %arg10[%c0_78, %c81_79] : memref<16x1536xf32, #tpu.memory_space<vmem>>, vector<16x1408xf32>
    %94 = arith.maximumf %92, %93 : vector<16x1408xf32>
    %95 = vector.broadcast %0 : vector<1x1408xf32> to vector<16x1408xf32>
    %96 = arith.mulf %94, %95 : vector<16x1408xf32>
    %c0_80 = arith.constant 0 : index
    %c64_81 = arith.constant 64 : index
    %97 = vector.load %arg11[%c0_80, %c64_81] : memref<16x1536xf32, #tpu.memory_space<vmem>>, vector<16x1408xf32>
    tpu.vector_store %arg11[%c0_80, %c64_81], %96 {strides = array<i32>} : memref<16x1536xf32, #tpu.memory_space<vmem>>, vector<16x1408xf32>,
    %c0_82 = arith.constant 0 : index
    %c30 = arith.constant 30 : index
    %98 = vector.load %arg11[%c0_82, %c30] : memref<16x1536xf32, #tpu.memory_space<vmem>>, vector<16x1408xf32>
    %99 = vector.broadcast %3 : vector<1x1408xf32> to vector<16x1408xf32>
    %100 = arith.mulf %98, %99 : vector<16x1408xf32>
    %c0_83 = arith.constant 0 : index
    %c0_84 = arith.constant 0 : index
    %101 = vector.load %arg13[%c0_83, %c0_84] : memref<144x1408xf32, #tpu.memory_space<vmem>>, vector<16x1408xf32>
    tpu.vector_store %arg13[%c0_83, %c0_84], %100 {strides = array<i32>} : memref<144x1408xf32, #tpu.memory_space<vmem>>, vector<16x1408xf32>,
    %c0_85 = arith.constant 0 : index
    %c32 = arith.constant 32 : index
    %102 = vector.load %arg11[%c0_85, %c32] : memref<16x1536xf32, #tpu.memory_space<vmem>>, vector<16x1408xf32>
    %c16 = arith.constant 16 : index
    %c0_86 = arith.constant 0 : index
    %103 = vector.load %arg13[%c16, %c0_86] : memref<144x1408xf32, #tpu.memory_space<vmem>>, vector<16x1408xf32>
    tpu.vector_store %arg13[%c16, %c0_86], %102 {strides = array<i32>} : memref<144x1408xf32, #tpu.memory_space<vmem>>, vector<16x1408xf32>,
    %c0_87 = arith.constant 0 : index
    %c34 = arith.constant 34 : index
    %104 = vector.load %arg11[%c0_87, %c34] : memref<16x1536xf32, #tpu.memory_space<vmem>>, vector<16x1408xf32>
    %105 = vector.broadcast %4 : vector<1x1408xf32> to vector<16x1408xf32>
    %106 = arith.mulf %104, %105 : vector<16x1408xf32>
    %c32_88 = arith.constant 32 : index
    %c0_89 = arith.constant 0 : index
    %107 = vector.load %arg13[%c32_88, %c0_89] : memref<144x1408xf32, #tpu.memory_space<vmem>>, vector<16x1408xf32>
    tpu.vector_store %arg13[%c32_88, %c0_89], %106 {strides = array<i32>} : memref<144x1408xf32, #tpu.memory_space<vmem>>, vector<16x1408xf32>,
    %c0_90 = arith.constant 0 : index
    %c62 = arith.constant 62 : index
    %108 = vector.load %arg11[%c0_90, %c62] : memref<16x1536xf32, #tpu.memory_space<vmem>>, vector<16x1408xf32>
    %109 = vector.broadcast %3 : vector<1x1408xf32> to vector<16x1408xf32>
    %110 = arith.mulf %108, %109 : vector<16x1408xf32>
    %c48_91 = arith.constant 48 : index
    %c0_92 = arith.constant 0 : index
    %111 = vector.load %arg13[%c48_91, %c0_92] : memref<144x1408xf32, #tpu.memory_space<vmem>>, vector<16x1408xf32>
    tpu.vector_store %arg13[%c48_91, %c0_92], %110 {strides = array<i32>} : memref<144x1408xf32, #tpu.memory_space<vmem>>, vector<16x1408xf32>,
    %c64_93 = arith.constant 64 : index
    %c0_94 = arith.constant 0 : index
    %112 = vector.load %arg13[%c64_93, %c0_94] : memref<144x1408xf32, #tpu.memory_space<vmem>>, vector<16x1408xf32>
    tpu.vector_store %arg13[%c64_93, %c0_94], %96 {strides = array<i32>} : memref<144x1408xf32, #tpu.memory_space<vmem>>, vector<16x1408xf32>,
    %c0_95 = arith.constant 0 : index
    %c66 = arith.constant 66 : index
    %113 = vector.load %arg11[%c0_95, %c66] : memref<16x1536xf32, #tpu.memory_space<vmem>>, vector<16x1408xf32>
    %114 = vector.broadcast %4 : vector<1x1408xf32> to vector<16x1408xf32>
    %115 = arith.mulf %113, %114 : vector<16x1408xf32>
    %c80_96 = arith.constant 80 : index
    %c0_97 = arith.constant 0 : index
    %116 = vector.load %arg13[%c80_96, %c0_97] : memref<144x1408xf32, #tpu.memory_space<vmem>>, vector<16x1408xf32>
    tpu.vector_store %arg13[%c80_96, %c0_97], %115 {strides = array<i32>} : memref<144x1408xf32, #tpu.memory_space<vmem>>, vector<16x1408xf32>,
    %c0_98 = arith.constant 0 : index
    %c94 = arith.constant 94 : index
    %117 = vector.load %arg11[%c0_98, %c94] : memref<16x1536xf32, #tpu.memory_space<vmem>>, vector<16x1408xf32>
    %118 = vector.broadcast %3 : vector<1x1408xf32> to vector<16x1408xf32>
    %119 = arith.mulf %117, %118 : vector<16x1408xf32>
    %c96 = arith.constant 96 : index
    %c0_99 = arith.constant 0 : index
    %120 = vector.load %arg13[%c96, %c0_99] : memref<144x1408xf32, #tpu.memory_space<vmem>>, vector<16x1408xf32>
    tpu.vector_store %arg13[%c96, %c0_99], %119 {strides = array<i32>} : memref<144x1408xf32, #tpu.memory_space<vmem>>, vector<16x1408xf32>,
    %c0_100 = arith.constant 0 : index
    %c96_101 = arith.constant 96 : index
    %121 = vector.load %arg11[%c0_100, %c96_101] : memref<16x1536xf32, #tpu.memory_space<vmem>>, vector<16x1408xf32>
    %c112 = arith.constant 112 : index
    %c0_102 = arith.constant 0 : index
    %122 = vector.load %arg13[%c112, %c0_102] : memref<144x1408xf32, #tpu.memory_space<vmem>>, vector<16x1408xf32>
    tpu.vector_store %arg13[%c112, %c0_102], %121 {strides = array<i32>} : memref<144x1408xf32, #tpu.memory_space<vmem>>, vector<16x1408xf32>,
    %c0_103 = arith.constant 0 : index
    %c98 = arith.constant 98 : index
    %123 = vector.load %arg11[%c0_103, %c98] : memref<16x1536xf32, #tpu.memory_space<vmem>>, vector<16x1408xf32>
    %124 = vector.broadcast %4 : vector<1x1408xf32> to vector<16x1408xf32>
    %125 = arith.mulf %123, %124 : vector<16x1408xf32>
    %c128 = arith.constant 128 : index
    %c0_104 = arith.constant 0 : index
    %126 = vector.load %arg13[%c128, %c0_104] : memref<144x1408xf32, #tpu.memory_space<vmem>>, vector<16x1408xf32>
    tpu.vector_store %arg13[%c128, %c0_104], %125 {strides = array<i32>} : memref<144x1408xf32, #tpu.memory_space<vmem>>, vector<16x1408xf32>,
    %c0_105 = arith.constant 0 : index
    %c0_106 = arith.constant 0 : index
    %127 = vector.load %arg4[%c0_105, %c0_106] : memref<3x144xf32, #tpu.memory_space<vmem>>, vector<3x144xf32>
    %c0_107 = arith.constant 0 : index
    %c0_108 = arith.constant 0 : index
    %128 = vector.load %arg13[%c0_107, %c0_108] : memref<144x1408xf32, #tpu.memory_space<vmem>>, vector<144x1408xf32>
    %cst_109 = arith.constant dense<0.000000e+00> : vector<3x1408xf32>
    %129 = tpu.matmul %127, %128, %cst_109 {dimension_numbers = #tpu.dot_dimension_numbers<[1], [0], [0], [1], [0, 0, 1, 1], [], []>} : vector<3x144xf32>, vector<144x1408xf32>, vector<3x1408xf32> -> vector<3x1408xf32>
    %c0_110 = arith.constant 0 : index
    %c0_111 = arith.constant 0 : index
    %130 = vector.load %arg5[%c0_110, %c0_111] : memref<3x1xf32, #tpu.memory_space<vmem>>, vector<3x1xf32>
    %131 = vector.broadcast %130 : vector<3x1xf32> to vector<3x1408xf32>
    %132 = arith.addf %129, %131 : vector<3x1408xf32>
    %cst_112 = arith.constant 0.000000e+00 : f32
    %133 = vector.broadcast %cst_112 : f32 to vector<3x1408xf32>
    %134 = arith.maximumf %132, %133 : vector<3x1408xf32>
    %c0_113 = arith.constant 0 : index
    %c64_114 = arith.constant 64 : index
    %135 = vector.load %arg12[%c0_113, %c64_114] : memref<3x1536xf32, #tpu.memory_space<vmem>>, vector<3x1408xf32>
    tpu.vector_store %arg12[%c0_113, %c64_114], %134 {strides = array<i32>} : memref<3x1536xf32, #tpu.memory_space<vmem>>, vector<3x1408xf32>,
    %c0_115 = arith.constant 0 : index
    %c66_116 = arith.constant 66 : index
    %136 = vector.load %arg12[%c0_115, %c66_116] : memref<3x1536xf32, #tpu.memory_space<vmem>>, vector<3x1408xf32>
    %137 = arith.maximumf %134, %136 : vector<3x1408xf32>
    %c0_117 = arith.constant 0 : index
    %c96_118 = arith.constant 96 : index
    %138 = vector.load %arg12[%c0_117, %c96_118] : memref<3x1536xf32, #tpu.memory_space<vmem>>, vector<3x1408xf32>
    %139 = arith.maximumf %137, %138 : vector<3x1408xf32>
    %c0_119 = arith.constant 0 : index
    %c98_120 = arith.constant 98 : index
    %140 = vector.load %arg12[%c0_119, %c98_120] : memref<3x1536xf32, #tpu.memory_space<vmem>>, vector<3x1408xf32>
    %141 = arith.maximumf %139, %140 : vector<3x1408xf32>
    %cst_121 = arith.constant 0.000000e+00 : f32
    %142 = vector.broadcast %cst_121 : f32 to vector<1x12xf32>
    %143 = vector.extract_strided_slice %141 {offsets = [0, 0], sizes = [1, 1408], strides = [1, 1]} : vector<3x1408xf32> to vector<1x1408xf32>
    %c0_122 = arith.constant 0 : index
    %c0_123 = arith.constant 0 : index
    %c0_124 = arith.constant 0 : index
    %144 = vector.load %arg6[%c0_122, %c0_123, %c0_124] : memref<3x1408x12xf32, #tpu.memory_space<vmem>>, vector<1x1408x12xf32>
    %145 = vector.shape_cast %144 : vector<1x1408x12xf32> to vector<1408x12xf32>
    %cst_125 = arith.constant dense<0.000000e+00> : vector<1x12xf32>
    %146 = tpu.matmul %143, %145, %cst_125 {dimension_numbers = #tpu.dot_dimension_numbers<[1], [0], [0], [1], [0, 0, 1, 1], [], []>} : vector<1x1408xf32>, vector<1408x12xf32>, vector<1x12xf32> -> vector<1x12xf32>
    %147 = arith.addf %142, %146 : vector<1x12xf32>
    %148 = vector.extract_strided_slice %141 {offsets = [1, 0], sizes = [1, 1408], strides = [1, 1]} : vector<3x1408xf32> to vector<1x1408xf32>
    %c1_126 = arith.constant 1 : index
    %c0_127 = arith.constant 0 : index
    %c0_128 = arith.constant 0 : index
    %149 = vector.load %arg6[%c1_126, %c0_127, %c0_128] : memref<3x1408x12xf32, #tpu.memory_space<vmem>>, vector<1x1408x12xf32>
    %150 = vector.shape_cast %149 : vector<1x1408x12xf32> to vector<1408x12xf32>
    %cst_129 = arith.constant dense<0.000000e+00> : vector<1x12xf32>
    %151 = tpu.matmul %148, %150, %cst_129 {dimension_numbers = #tpu.dot_dimension_numbers<[1], [0], [0], [1], [0, 0, 1, 1], [], []>} : vector<1x1408xf32>, vector<1408x12xf32>, vector<1x12xf32> -> vector<1x12xf32>
    %152 = arith.addf %147, %151 : vector<1x12xf32>
    %153 = vector.extract_strided_slice %141 {offsets = [2, 0], sizes = [1, 1408], strides = [1, 1]} : vector<3x1408xf32> to vector<1x1408xf32>
    %c2_130 = arith.constant 2 : index
    %c0_131 = arith.constant 0 : index
    %c0_132 = arith.constant 0 : index
    %154 = vector.load %arg6[%c2_130, %c0_131, %c0_132] : memref<3x1408x12xf32, #tpu.memory_space<vmem>>, vector<1x1408x12xf32>
    %155 = vector.shape_cast %154 : vector<1x1408x12xf32> to vector<1408x12xf32>
    %cst_133 = arith.constant dense<0.000000e+00> : vector<1x12xf32>
    %156 = tpu.matmul %153, %155, %cst_133 {dimension_numbers = #tpu.dot_dimension_numbers<[1], [0], [0], [1], [0, 0, 1, 1], [], []>} : vector<1x1408xf32>, vector<1408x12xf32>, vector<1x12xf32> -> vector<1x12xf32>
    %157 = arith.addf %152, %156 : vector<1x12xf32>
    %c0_134 = arith.constant 0 : index
    %c0_135 = arith.constant 0 : index
    %158 = vector.load %arg7[%c0_134, %c0_135] : memref<1x12xf32, #tpu.memory_space<vmem>>, vector<1x12xf32>
    %159 = arith.addf %157, %158 : vector<1x12xf32>
    %cst_136 = arith.constant 0.000000e+00 : f32
    %160 = vector.broadcast %cst_136 : f32 to vector<1x12xf32>
    %161 = arith.maximumf %159, %160 : vector<1x12xf32>
    %c0_137 = arith.constant 0 : index
    %c0_138 = arith.constant 0 : index
    %c0_139 = arith.constant 0 : index
    %162 = vector.load %arg9[%c0_137, %c0_138, %c0_139] : memref<1x1x12xf32, #tpu.memory_space<vmem>>, vector<1x1x12xf32>
    %163 = vector.shape_cast %162 : vector<1x1x12xf32> to vector<1x12xf32>
    %164 = vector.shape_cast %161 : vector<1x12xf32> to vector<1x1x12xf32>
    tpu.vector_store %arg9[%c0_137, %c0_138, %c0_139], %164 {strides = array<i32>} : memref<1x1x12xf32, #tpu.memory_space<vmem>>, vector<1x1x12xf32>,
    return
  }
  func.func @transform_0(%arg0: i32) -> (i32, i32, i32) {
    %c0_i32 = arith.constant 0 : i32
    %c0_i32_0 = arith.constant 0 : i32
    %c0_i32_1 = arith.constant 0 : i32
    return %arg0, %c0_i32, %c0_i32_0 : i32, i32, i32
  }
  func.func @transform_1(%arg0: i32) -> (i32, i32, i32) {
    %c0_i32 = arith.constant 0 : i32
    %c0_i32_0 = arith.constant 0 : i32
    %c0_i32_1 = arith.constant 0 : i32
    %c0_i32_2 = arith.constant 0 : i32
    return %c0_i32, %c0_i32_0, %c0_i32_1 : i32, i32, i32
  }
  func.func @transform_2(%arg0: i32) -> (i32, i32) {
    %c0_i32 = arith.constant 0 : i32
    %c0_i32_0 = arith.constant 0 : i32
    %c0_i32_1 = arith.constant 0 : i32
    return %c0_i32, %c0_i32_0 : i32, i32
  }
  func.func @transform_3(%arg0: i32) -> (i32, i32) {
    %c0_i32 = arith.constant 0 : i32
    %c0_i32_0 = arith.constant 0 : i32
    %c0_i32_1 = arith.constant 0 : i32
    return %c0_i32, %c0_i32_0 : i32, i32
  }
  func.func @transform_4(%arg0: i32) -> (i32, i32) {
    %c0_i32 = arith.constant 0 : i32
    %c0_i32_0 = arith.constant 0 : i32
    %c0_i32_1 = arith.constant 0 : i32
    return %c0_i32, %c0_i32_0 : i32, i32
  }
  func.func @transform_5(%arg0: i32) -> (i32, i32, i32) {
    %c0_i32 = arith.constant 0 : i32
    %c0_i32_0 = arith.constant 0 : i32
    %c0_i32_1 = arith.constant 0 : i32
    %c0_i32_2 = arith.constant 0 : i32
    return %c0_i32, %c0_i32_0, %c0_i32_1 : i32, i32, i32
  }
  func.func @transform_6(%arg0: i32) -> (i32, i32) {
    %c0_i32 = arith.constant 0 : i32
    %c0_i32_0 = arith.constant 0 : i32
    %c0_i32_1 = arith.constant 0 : i32
    return %c0_i32, %c0_i32_0 : i32, i32
  }
  func.func @transform_7(%arg0: i32) -> (i32, i32) {
    %c0_i32 = arith.constant 0 : i32
    %c0_i32_0 = arith.constant 0 : i32
    %c0_i32_1 = arith.constant 0 : i32
    return %c0_i32, %c0_i32_0 : i32, i32
  }
  func.func @transform_8(%arg0: i32) -> (i32, i32, i32) {
    %c0_i32 = arith.constant 0 : i32
    %c0_i32_0 = arith.constant 0 : i32
    %c0_i32_1 = arith.constant 0 : i32
    return %arg0, %c0_i32, %c0_i32_0 : i32, i32, i32
  }
}

</mosaic_0001>

<llo_original>
// kernel: tpu_custom_call.1
$region0: #{tpu_custom_call.1}
  #allocation0 [shape = 'u32[]', space=smem, size = 0x4, offset = 0x4, fixed_abs, tag = 'smem constant byte address 0x4 - core index']
  #allocation1 [shape = 'u32[144,128]{1,0:T(1,128)}', space=vmem, size = 0x12000, scoped, tag = 'internal scratch']
  #allocation2 [shape = 'f32[16,1536]{1,0:T(8,128)}', space=vmem, size = 0x18000, scoped, tag = 'scratch operand']
  #allocation3 [shape = 'f32[16,1536]{1,0:T(8,128)}', space=vmem, size = 0x18000, scoped, tag = 'scratch operand']
  #allocation4 [shape = 'f32[3,1536]{1,0:T(4,128)}', space=vmem, size = 0x6000, scoped, tag = 'scratch operand']
  #allocation5 [shape = 'f32[144,1408]{1,0:T(8,128)}', space=vmem, size = 0xc6000, scoped, tag = 'scratch operand']
  %s0 = inlined_call_operand.vmem [shape: f32[2,3,1536], index: 0, kind: input, shape index: {}]
  %s1 = inlined_call_operand.vmem [shape: f32[9,16,3], index: 1, kind: input, shape index: {}]
  %s2 = inlined_call_operand.vmem [shape: f32[16,1], index: 2, kind: input, shape index: {}]
  %s3 = inlined_call_operand.vmem [shape: f32[3,144], index: 3, kind: input, shape index: {}]
  %s4 = inlined_call_operand.vmem [shape: f32[3,1], index: 4, kind: input, shape index: {}]
  %s5 = inlined_call_operand.vmem [shape: f32[3,1408,12], index: 5, kind: input, shape index: {}]
  %s6 = inlined_call_operand.vmem [shape: f32[1,12], index: 6, kind: input, shape index: {}]
  %s7 = inlined_call_operand.vmem [shape: f32[5,1408], index: 7, kind: input, shape index: {}]
  %s8 = inlined_call_operand.hbm [shape: f32[2,1,12], index: 8, kind: output, shape index: {}]
  %s9 = sld [smem:[#allocation0]]
  $region65: #{tpu_custom_call.1} parent=0
    _
  %s11 = ssub.s32 1, %s9
  %s12 = scalar_select 0, %s11, %s9
  $region1: #{tpu_custom_call.1} parent=0
    #allocation6 [shape = 'u8[1024]{0}', space=vmem, size = 0x400, scoped, tag = 'output window, operand 0']
    #allocation7 [shape = 's32[2]{0}', space=sflag, size = 0x8, scoped, tag = 'scoped memory for tpu_custom_call.1']
    %13 = vsyncpa [#allocation7], 0
    %s14 = scalar_lea.sflag [#allocation7], 1
    %15 = vsyncpa %s14, 0
    loop: start=0, step=1, limit=4
    $region2: #{tpu_custom_call.1} parent=1 // loop_pre_header
      _
    $region3: #{tpu_custom_call.1} parent=1 // loop_header
      %s17 = sphi 0, %s21
      %p18 = scmp.ge.s32.totalorder %s17, 4
      %s27 = sphi 0, %s29
      %s30 = sphi 0, %s27
      %s31 = sphi 0, %s30
      %s47 = sphi 0, %s31
      %s51 = sphi 0, %s51
      %s53 = sphi 0, %s51
      %s54 = sphi 0, %s53
      %s68 = sphi 0, %s54
      %s72 = sphi 0, %s72
      %s74 = sphi 0, %s72
      %s75 = sphi 0, %s74
      %s89 = sphi 0, %s75
      %s93 = sphi 0, %s93
      %s95 = sphi 0, %s93
      %s96 = sphi 0, %s95
      %s110 = sphi 0, %s96
      %s114 = sphi 0, %s114
      %s116 = sphi 0, %s114
      %s117 = sphi 0, %s116
      %s131 = sphi 0, %s117
      %s135 = sphi 0, %s135
      %s137 = sphi 0, %s135
      %s138 = sphi 0, %s137
      %s152 = sphi 0, %s138
      %s156 = sphi 0, %s156
      %s158 = sphi 0, %s156
      %s159 = sphi 0, %s158
      %s173 = sphi 0, %s159
      %s177 = sphi 0, %s177
      %s179 = sphi 0, %s177
      %s180 = sphi 0, %s179
      %s194 = sphi 0, %s180
      %s200 = sphi 0, %s202
      %s203 = sphi 0, %s200
      %s204 = sphi 0, %s203
      %s220 = sphi 0, %s204
    $region4: #{tpu_custom_call.1} parent=1 // loop_header_branch
      %20 = sbr.rel (%p18) target = $region8
    $region5: #{tpu_custom_call.1} parent=1 // loop_body
      %s22 = ssub.s32 %s17, 1
      %s23 = ssub.s32 %s17, 2
      %s24 = sadd.s32 %s17, 1
      %s25 = ssub.s32 %s17, %s24
      %p26 = scmp.eq.s32.totalorder %s25, 0
      %s28 = sadd.s32 %s27, 1
      %s29 = scalar_select %p26, %s27, %s28
      %p32 = pneg %p26
      %p33 = scmp.eq.s32.totalorder %s17, 1
      %p34 = por %p32, %p33
      %p35 = scmp.ne.s32.totalorder %s27, %s30
      %p36 = scmp.eq.s32.totalorder %s17, 0
      %p37 = por %p35, %p36
      %p38 = scmp.ne.s32.totalorder %s27, %s30
      %p39 = scmp.eq.s32.totalorder %s22, 1
      %p40 = por %p38, %p39
      %p41 = scmp.ne.s32.totalorder %s30, %s31
      %p42 = scmp.eq.s32.totalorder %s22, 0
      %p43 = por %p41, %p42
      %p44 = scmp.ne.s32.totalorder %s30, %s31
      %p45 = scmp.eq.s32.totalorder %s23, 1
      %p46 = por %p44, %p45
      %p48 = scmp.ne.s32.totalorder %s31, %s47
      %p49 = scmp.eq.s32.totalorder %s23, 0
      %p50 = por %p48, %p49
      %s52 = sadd.s32 %s51, 1
      %p55 = scmp.eq.s32.totalorder %s17, 1
      %p56 = scmp.ne.s32.totalorder %s51, %s53
      %p57 = scmp.eq.s32.totalorder %s17, 0
      %p58 = por %p56, %p57
      %p59 = scmp.ne.s32.totalorder %s51, %s53
      %p60 = scmp.eq.s32.totalorder %s22, 1
      %p61 = por %p59, %p60
      %p62 = scmp.ne.s32.totalorder %s53, %s54
      %p63 = scmp.eq.s32.totalorder %s22, 0
      %p64 = por %p62, %p63
      %p65 = scmp.ne.s32.totalorder %s53, %s54
      %p66 = scmp.eq.s32.totalorder %s23, 1
      %p67 = por %p65, %p66
      %p69 = scmp.ne.s32.totalorder %s54, %s68
      %p70 = scmp.eq.s32.totalorder %s23, 0
      %p71 = por %p69, %p70
      %s73 = sadd.s32 %s72, 1
      %p76 = scmp.eq.s32.totalorder %s17, 1
      %p77 = scmp.ne.s32.totalorder %s72, %s74
      %p78 = scmp.eq.s32.totalorder %s17, 0
      %p79 = por %p77, %p78
      %p80 = scmp.ne.s32.totalorder %s72, %s74
      %p81 = scmp.eq.s32.totalorder %s22, 1
      %p82 = por %p80, %p81
      %p83 = scmp.ne.s32.totalorder %s74, %s75
      %p84 = scmp.eq.s32.totalorder %s22, 0
      %p85 = por %p83, %p84
      %p86 = scmp.ne.s32.totalorder %s74, %s75
      %p87 = scmp.eq.s32.totalorder %s23, 1
      %p88 = por %p86, %p87
      %p90 = scmp.ne.s32.totalorder %s75, %s89
      %p91 = scmp.eq.s32.totalorder %s23, 0
      %p92 = por %p90, %p91
      %s94 = sadd.s32 %s93, 1
      %p97 = scmp.eq.s32.totalorder %s17, 1
      %p98 = scmp.ne.s32.totalorder %s93, %s95
      %p99 = scmp.eq.s32.totalorder %s17, 0
      %p100 = por %p98, %p99
      %p101 = scmp.ne.s32.totalorder %s93, %s95
      %p102 = scmp.eq.s32.totalorder %s22, 1
      %p103 = por %p101, %p102
      %p104 = scmp.ne.s32.totalorder %s95, %s96
      %p105 = scmp.eq.s32.totalorder %s22, 0
      %p106 = por %p104, %p105
      %p107 = scmp.ne.s32.totalorder %s95, %s96
      %p108 = scmp.eq.s32.totalorder %s23, 1
      %p109 = por %p107, %p108
      %p111 = scmp.ne.s32.totalorder %s96, %s110
      %p112 = scmp.eq.s32.totalorder %s23, 0
      %p113 = por %p111, %p112
      %s115 = sadd.s32 %s114, 1
      %p118 = scmp.eq.s32.totalorder %s17, 1
      %p119 = scmp.ne.s32.totalorder %s114, %s116
      %p120 = scmp.eq.s32.totalorder %s17, 0
      %p121 = por %p119, %p120
      %p122 = scmp.ne.s32.totalorder %s114, %s116
      %p123 = scmp.eq.s32.totalorder %s22, 1
      %p124 = por %p122, %p123
      %p125 = scmp.ne.s32.totalorder %s116, %s117
      %p126 = scmp.eq.s32.totalorder %s22, 0
      %p127 = por %p125, %p126
      %p128 = scmp.ne.s32.totalorder %s116, %s117
      %p129 = scmp.eq.s32.totalorder %s23, 1
      %p130 = por %p128, %p129
      %p132 = scmp.ne.s32.totalorder %s117, %s131
      %p133 = scmp.eq.s32.totalorder %s23, 0
      %p134 = por %p132, %p133
      %s136 = sadd.s32 %s135, 1
      %p139 = scmp.eq.s32.totalorder %s17, 1
      %p140 = scmp.ne.s32.totalorder %s135, %s137
      %p141 = scmp.eq.s32.totalorder %s17, 0
      %p142 = por %p140, %p141
      %p143 = scmp.ne.s32.totalorder %s135, %s137
      %p144 = scmp.eq.s32.totalorder %s22, 1
      %p145 = por %p143, %p144
      %p146 = scmp.ne.s32.totalorder %s137, %s138
      %p147 = scmp.eq.s32.totalorder %s22, 0
      %p148 = por %p146, %p147
      %p149 = scmp.ne.s32.totalorder %s137, %s138
      %p150 = scmp.eq.s32.totalorder %s23, 1
      %p151 = por %p149, %p150
      %p153 = scmp.ne.s32.totalorder %s138, %s152
      %p154 = scmp.eq.s32.totalorder %s23, 0
      %p155 = por %p153, %p154
      %s157 = sadd.s32 %s156, 1
      %p160 = scmp.eq.s32.totalorder %s17, 1
      %p161 = scmp.ne.s32.totalorder %s156, %s158
      %p162 = scmp.eq.s32.totalorder %s17, 0
      %p163 = por %p161, %p162
      %p164 = scmp.ne.s32.totalorder %s156, %s158
      %p165 = scmp.eq.s32.totalorder %s22, 1
      %p166 = por %p164, %p165
      %p167 = scmp.ne.s32.totalorder %s158, %s159
      %p168 = scmp.eq.s32.totalorder %s22, 0
      %p169 = por %p167, %p168
      %p170 = scmp.ne.s32.totalorder %s158, %s159
      %p171 = scmp.eq.s32.totalorder %s23, 1
      %p172 = por %p170, %p171
      %p174 = scmp.ne.s32.totalorder %s159, %s173
      %p175 = scmp.eq.s32.totalorder %s23, 0
      %p176 = por %p174, %p175
      %s178 = sadd.s32 %s177, 1
      %p181 = scmp.eq.s32.totalorder %s17, 1
      %p182 = scmp.ne.s32.totalorder %s177, %s179
      %p183 = scmp.eq.s32.totalorder %s17, 0
      %p184 = por %p182, %p183
      %p185 = scmp.ne.s32.totalorder %s177, %s179
      %p186 = scmp.eq.s32.totalorder %s22, 1
      %p187 = por %p185, %p186
      %p188 = scmp.ne.s32.totalorder %s179, %s180
      %p189 = scmp.eq.s32.totalorder %s22, 0
      %p190 = por %p188, %p189
      %p191 = scmp.ne.s32.totalorder %s179, %s180
      %p192 = scmp.eq.s32.totalorder %s23, 1
      %p193 = por %p191, %p192
      %p195 = scmp.ne.s32.totalorder %s180, %s194
      %p196 = scmp.eq.s32.totalorder %s23, 0
      %p197 = por %p195, %p196
      %s198 = ssub.s32 %s17, %s24
      %p199 = scmp.eq.s32.totalorder %s198, 0
      %s201 = sadd.s32 %s200, 1
      %s202 = scalar_select %p199, %s200, %s201
      %p205 = pneg %p199
      %p206 = scmp.eq.s32.totalorder %s17, 1
      %p207 = por %p205, %p206
      %p208 = scmp.ne.s32.totalorder %s200, %s203
      %p209 = scmp.eq.s32.totalorder %s17, 0
      %p210 = por %p208, %p209
      %p211 = scmp.ne.s32.totalorder %s200, %s203
      %p212 = scmp.eq.s32.totalorder %s22, 1
      %p213 = por %p211, %p212
      %p214 = scmp.ne.s32.totalorder %s203, %s204
      %p215 = scmp.eq.s32.totalorder %s22, 0
      %p216 = por %p214, %p215
      %p217 = scmp.ne.s32.totalorder %s203, %s204
      %p218 = scmp.eq.s32.totalorder %s23, 1
      %p219 = por %p217, %p218
      %p221 = scmp.ne.s32.totalorder %s204, %s220
      %p222 = scmp.eq.s32.totalorder %s23, 0
      %p223 = por %p221, %p222
      %p224 = scmp.le.s32.totalorder 1, %s17
      %p225 = scmp.lt.s32.totalorder %s17, 3
      %p226 = pnand %p224, %p225
      %p227 = pneg %p226
      // Predicated region
      $region9: #{tpu_custom_call.1} parent=5 // pred_check
        _
      $region10: #{tpu_custom_call.1} parent=5 // pred_check_branch
        %229 = sbr.rel (%p226) target = $region12
      $region11: #{tpu_custom_call.1} parent=5 // pred_region
        %s230 = ssub.s32 %s17, 1
        // Predicated region
        $region13: #{tpu_custom_call.1} parent=11 // pred_check
          %p231 = pneg %p64
        $region14: #{tpu_custom_call.1} parent=11 // pred_check_branch
          %233 = sbr.rel (%p231) target = $region16
        $region15: #{tpu_custom_call.1} parent=11 // pred_region
          _
        $region16: #{tpu_custom_call.1} parent=11 // pred_fallthru
          _
        // Predicated region
        $region17: #{tpu_custom_call.1} parent=11 // pred_check
          %p234 = pneg %p85
        $region18: #{tpu_custom_call.1} parent=11 // pred_check_branch
          %236 = sbr.rel (%p234) target = $region20
        $region19: #{tpu_custom_call.1} parent=11 // pred_region
          _
        $region20: #{tpu_custom_call.1} parent=11 // pred_fallthru
          _
        // Predicated region
        $region21: #{tpu_custom_call.1} parent=11 // pred_check
          %p237 = pneg %p106
        $region22: #{tpu_custom_call.1} parent=11 // pred_check_branch
          %239 = sbr.rel (%p237) target = $region24
        $region23: #{tpu_custom_call.1} parent=11 // pred_region
          _
        $region24: #{tpu_custom_call.1} parent=11 // pred_fallthru
          _
        // Predicated region
        $region25: #{tpu_custom_call.1} parent=11 // pred_check
          %p240 = pneg %p127
        $region26: #{tpu_custom_call.1} parent=11 // pred_check_branch
          %242 = sbr.rel (%p240) target = $region28
        $region27: #{tpu_custom_call.1} parent=11 // pred_region
          _
        $region28: #{tpu_custom_call.1} parent=11 // pred_fallthru
          _
        // Predicated region
        $region29: #{tpu_custom_call.1} parent=11 // pred_check
          %p243 = pneg %p148
        $region30: #{tpu_custom_call.1} parent=11 // pred_check_branch
          %245 = sbr.rel (%p243) target = $region32
        $region31: #{tpu_custom_call.1} parent=11 // pred_region
          _
        $region32: #{tpu_custom_call.1} parent=11 // pred_fallthru
          _
        // Predicated region
        $region33: #{tpu_custom_call.1} parent=11 // pred_check
          %p246 = pneg %p169
        $region34: #{tpu_custom_call.1} parent=11 // pred_check_branch
          %248 = sbr.rel (%p246) target = $region36
        $region35: #{tpu_custom_call.1} parent=11 // pred_region
          _
        $region36: #{tpu_custom_call.1} parent=11 // pred_fallthru
          _
        // Predicated region
        $region37: #{tpu_custom_call.1} parent=11 // pred_check
          %p249 = pneg %p190
        $region38: #{tpu_custom_call.1} parent=11 // pred_check_branch
          %251 = sbr.rel (%p249) target = $region40
        $region39: #{tpu_custom_call.1} parent=11 // pred_region
          _
        $region40: #{tpu_custom_call.1} parent=11 // pred_fallthru
          _
      $region12: #{tpu_custom_call.1} parent=5 // pred_fallthru
        _
      %p252 = scmp.lt.s32.totalorder %s17, 2
      // Predicated region
      $region41: #{tpu_custom_call.1} parent=5 // pred_check
        %p253 = pneg %p252
      $region42: #{tpu_custom_call.1} parent=5 // pred_check_branch
        %255 = sbr.rel (%p253) target = $region44
      $region43: #{tpu_custom_call.1} parent=5 // pred_region
        // Predicated region
        $region45: #{tpu_custom_call.1} parent=43 // pred_check
          %p256 = pneg %p37
        $region46: #{tpu_custom_call.1} parent=43 // pred_check_branch
          %258 = sbr.rel (%p256) target = $region48
        $region47: #{tpu_custom_call.1} parent=43 // pred_region
          %p259 = scmp.lt.s32.totalorder %s17, 1
          %s260 = scalar_select %p259, %s17, 1
          %s261 = smul.addr %s260, 12
          %s262 = smul.addr %s261, 4
          %s263 = scalar_lea.vmem %s0, %s262
        $region48: #{tpu_custom_call.1} parent=43 // pred_fallthru
          _
      $region44: #{tpu_custom_call.1} parent=5 // pred_fallthru
        _
      %p264 = scmp.le.s32.totalorder 1, %s17
      %p265 = scmp.lt.s32.totalorder %s17, 3
      %p266 = pnand %p264, %p265
      %p267 = pneg %p266
      // Predicated region
      $region49: #{tpu_custom_call.1} parent=5 // pred_check
        _
      $region50: #{tpu_custom_call.1} parent=5 // pred_check_branch
        %269 = sbr.rel (%p266) target = $region52
      $region51: #{tpu_custom_call.1} parent=5 // pred_region
        %s270 = ssub.s32 %s17, 1
        %p271 = scmp.lt.s32.totalorder %s22, 1
        %s272 = scalar_select %p271, %s22, 1
        %s273 = smul.addr %s272, 12
        %s274 = smul.addr %s273, 4
        %s275 = scalar_lea.vmem %s0, %s274
        %p276 = pneg %p43
        %p277 = pneg %p40
        %p278 = pneg %p64
        %p279 = pneg %p61
        %p280 = pneg %p85
        %p281 = pneg %p82
        %p282 = pneg %p106
        %p283 = pneg %p103
        %p284 = pneg %p127
        %p285 = pneg %p124
        %p286 = pneg %p148
        %p287 = pneg %p145
        %p288 = pneg %p169
        %p289 = pneg %p166
        %p290 = pneg %p190
        %p291 = pneg %p187
        %p292 = pneg %p216
        %p293 = pneg %p213
        %s294 = sand.u32 %s203, 1
        %s295 = scalar_lea.sflag [#allocation7], %s294
        %s296 = sand.u32 %s203, 1
        %s297 = scalar_lea.vmem [#allocation6], %s296
        %p298 = scmp.lt.s32.totalorder %s22, 1
        %s299 = scalar_select %p298, %s22, 1
        %s300 = smul.addr %s299, 12
        %s301 = smul.addr %s300, 4
        %s302 = scalar_lea.vmem %s0, %s301
        %v303 = vld [vmem:[%s7] ss:$8 sm:$0xf]
        %v304 = vld [vmem:[%s7] ss:$8 sm:$0xf0]
        %v305 = vor.u32 %v303, %v304
        %s306 = scalar_lea.vmem %s7, 64
        %v307 = vld [vmem:[%s306] ss:$8 sm:$0x7]
        %s308 = scalar_lea.vmem %s7, 1
        %v309 = vld [vmem:[%s308] ss:$8 sm:$0xf]
        %v310 = vld [vmem:[%s308] ss:$8 sm:$0xf0]
        %v311 = vor.u32 %v309, %v310
        %s312 = scalar_lea.vmem %s7, 65
        %v313 = vld [vmem:[%s312] ss:$8 sm:$0x7]
        %s314 = scalar_lea.vmem %s7, 2
        %v315 = vld [vmem:[%s314] ss:$8 sm:$0xf]
        %v316 = vld [vmem:[%s314] ss:$8 sm:$0xf0]
        %v317 = vor.u32 %v315, %v316
        %s318 = scalar_lea.vmem %s7, 66
        %v319 = vld [vmem:[%s318] ss:$8 sm:$0x7]
        %s320 = scalar_lea.vmem %s7, 3
        %v321 = vld [vmem:[%s320] ss:$8 sm:$0xf]
        %v322 = vld [vmem:[%s320] ss:$8 sm:$0xf0]
        %v323 = vor.u32 %v321, %v322
        %s324 = scalar_lea.vmem %s7, 67
        %v325 = vld [vmem:[%s324] ss:$8 sm:$0x7]
        %s326 = scalar_lea.vmem %s7, 4
        %v327 = vld [vmem:[%s326] ss:$8 sm:$0xf]
        %v328 = vld [vmem:[%s326] ss:$8 sm:$0xf0]
        %v329 = vor.u32 %v327, %v328
        %s330 = scalar_lea.vmem %s7, 68
        %v331 = vld [vmem:[%s330] ss:$8 sm:$0x7]
        %vm332 = vcmask 523264
        %333 = vst.msk [vmem:[#allocation2] sm:$0xff] %vm332, 0.0
        %334 = vst.msk [vmem:[#allocation2 + $0x60] sm:$0xff] %vm332, 0.0
        %vm335 = vcmask 1048064
        %336 = vst.msk [vmem:[#allocation2 + $0x58] sm:$0xff] %vm335, 0.0
        %337 = vst.msk [vmem:[#allocation2 + $0xb8] sm:$0xff] %vm335, 0.0
        %338 = vst.msk [vmem:[#allocation3] sm:$0xff] %vm332, 0.0
        %339 = vst.msk [vmem:[#allocation3 + $0x60] sm:$0xff] %vm332, 0.0
        %340 = vst.msk [vmem:[#allocation3 + $0x58] sm:$0xff] %vm335, 0.0
        %341 = vst.msk [vmem:[#allocation3 + $0xb8] sm:$0xff] %vm335, 0.0
        %vm342 = vcmask 518144
        %343 = vst.msk [vmem:[#allocation4] sm:$0x7] %vm342, 0.0
        %vm344 = vcmask 1042944
        %345 = vst.msk [vmem:[#allocation4 + $0x2c] sm:$0x7] %vm344, 0.0
        %v346 = vld [vmem:[%s302] sm:$0x77]
        %v347 = vld [vmem:[%s302 + $0x8] sm:$0x77]
        %v348 = vld [vmem:[%s302 + $0x10] sm:$0x77]
        %v349 = vld [vmem:[%s302 + $0x18] sm:$0x77]
        %v350 = vld [vmem:[%s302 + $0x20] sm:$0x77]
        %v351 = vld [vmem:[%s302 + $0x28] sm:$0x77]
        %v354 = vlaneseq
        %v355 = vshrl.u32 %v354, 7
        %v356 = vsub.s32 0, %v355
        %v357 = vrot.slane %v311, %v356
        %v358 = vlaneseq
        %v359 = vshrl.u32 %v358, 7
        %v360 = vsub.s32 1, %v359
        %v361 = vrot.slane %v311, %v360
        %v362 = vlaneseq
        %v363 = vshrl.u32 %v362, 7
        %v364 = vsub.s32 2, %v363
        %v365 = vrot.slane %v311, %v364
        %v366 = vlaneseq
        %v367 = vshrl.u32 %v366, 7
        %v368 = vsub.s32 3, %v367
        %v369 = vrot.slane %v311, %v368
        %v370 = vlaneseq
        %v371 = vshrl.u32 %v370, 7
        %v372 = vsub.s32 4, %v371
        %v373 = vrot.slane %v311, %v372
        %v374 = vlaneseq
        %v375 = vshrl.u32 %v374, 7
        %v376 = vsub.s32 5, %v375
        %v377 = vrot.slane %v311, %v376
        %v378 = vlaneseq
        %v379 = vshrl.u32 %v378, 7
        %v380 = vsub.s32 6, %v379
        %v381 = vrot.slane %v311, %v380
        %v382 = vlaneseq
        %v383 = vshrl.u32 %v382, 7
        %v384 = vsub.s32 7, %v383
        %v385 = vrot.slane %v311, %v384
        %v386 = vlaneseq
        %v387 = vshrl.u32 %v386, 7
        %v388 = vsub.s32 0, %v387
        %v389 = vrot.slane %v313, %v388
        %v390 = vlaneseq
        %v391 = vshrl.u32 %v390, 7
        %v392 = vsub.s32 1, %v391
        %v393 = vrot.slane %v313, %v392
        %v394 = vlaneseq
        %v395 = vshrl.u32 %v394, 7
        %v396 = vsub.s32 2, %v395
        %v397 = vrot.slane %v313, %v396
        %v398 = vcombine.low %v357, %v361
        %v399 = vcombine.low %v365, %v369
        %v400 = vcombine.low %v373, %v377
        %v401 = vcombine.low %v381, %v385
        %v402 = vcombine.low %v389, %v393
        %403 = vrot.lane.b32.xlu0 %v398, 47
        %v404 = vpop.permute.xlu0 %403
        %405 = vrot.lane.b32.xlu0 %v399, 47
        %v406 = vpop.permute.xlu0 %405
        %407 = vrot.lane.b32.xlu0 %v400, 47
        %v408 = vpop.permute.xlu0 %407
        %409 = vrot.lane.b32.xlu0 %v401, 47
        %v410 = vpop.permute.xlu0 %409
        %411 = vrot.lane.b32.xlu0 %v402, 47
        %v412 = vpop.permute.xlu0 %411
        %413 = vrot.lane.b32.xlu0 %v397, 47
        %v414 = vpop.permute.xlu0 %413
        %v415 = vrot.slane %v404, 4
        %v416 = vrot.slane %v406, 4
        %v417 = vrot.slane %v408, 4
        %v418 = vrot.slane %v410, 4
        %v419 = vrot.slane %v412, 4
        %v420 = vrot.slane %v414, 4
        %vm421 = vcmask 384000
        %v422 = vsel %vm421, %v415, %v404
        %vm423 = vcmask 1043456
        %v424 = vsel %vm423, %v415, %v416
        %v425 = vsel %vm421, %v424, %v406
        %v426 = vsel %vm423, %v416, %v417
        %v427 = vsel %vm421, %v426, %v408
        %v428 = vsel %vm423, %v417, %v418
        %v429 = vsel %vm421, %v428, %v410
        %v430 = vsel %vm423, %v418, %v419
        %v431 = vsel %vm421, %v430, %v412
        %v432 = vsel %vm423, %v419, %v420
        %v433 = vsel %vm421, %v432, %v414
        %v440 = vmul.f32 %v346, %v422
        %v441 = vmul.f32 %v347, %v425
        %v442 = vmul.f32 %v348, %v427
        %v443 = vmul.f32 %v349, %v429
        %v444 = vmul.f32 %v350, %v431
        %v445 = vmul.f32 %v351, %v433
        %v446 = vld [vmem:[%s1] sm:$0xff]
        %v447 = vld [vmem:[%s1 + $0x8] sm:$0xff]
        %s448 = scalar_lea.vmem %s1, 16
        %v449 = vld [vmem:[%s448] sm:$0xff]
        %v450 = vld [vmem:[%s448 + $0x8] sm:$0xff]
        %v457 = vcombine.high %v346, %v346
        %v458 = vcombine.high %v347, %v347
        %v459 = vcombine.high %v348, %v348
        %v460 = vcombine.high %v349, %v349
        %v461 = vcombine.high %v350, %v350
        %v462 = vcombine.high %v351, %v351
        %463 = vrot.lane.b32.xlu0 %v346, 80
        %v464 = vpop.permute.xlu0 %463
        %465 = vrot.lane.b32.xlu0 %v457, 80
        %v466 = vpop.permute.xlu0 %465
        %467 = vrot.lane.b32.xlu0 %v347, 80
        %v468 = vpop.permute.xlu0 %467
        %469 = vrot.lane.b32.xlu0 %v458, 80
        %v470 = vpop.permute.xlu0 %469
        %471 = vrot.lane.b32.xlu0 %v348, 80
        %v472 = vpop.permute.xlu0 %471
        %473 = vrot.lane.b32.xlu0 %v459, 80
        %v474 = vpop.permute.xlu0 %473
        %475 = vrot.lane.b32.xlu0 %v349, 80
        %v476 = vpop.permute.xlu0 %475
        %477 = vrot.lane.b32.xlu0 %v460, 80
        %v478 = vpop.permute.xlu0 %477
        %479 = vrot.lane.b32.xlu0 %v350, 80
        %v480 = vpop.permute.xlu0 %479
        %481 = vrot.lane.b32.xlu0 %v461, 80
        %v482 = vpop.permute.xlu0 %481
        %483 = vrot.lane.b32.xlu0 %v351, 80
        %v484 = vpop.permute.xlu0 %483
        %485 = vrot.lane.b32.xlu0 %v462, 80
        %v486 = vpop.permute.xlu0 %485
        %vm487 = vcmask 654336
        %v488 = vsel %vm487, %v464, %v466
        %v489 = vsel %vm487, %v466, %v468
        %v490 = vsel %vm487, %v468, %v470
        %v491 = vsel %vm487, %v470, %v472
        %v492 = vsel %vm487, %v472, %v474
        %v493 = vsel %vm487, %v474, %v476
        %v494 = vsel %vm487, %v476, %v478
        %v495 = vsel %vm487, %v478, %v480
        %v496 = vsel %vm487, %v480, %v482
        %v497 = vsel %vm487, %v482, %v484
        %v498 = vsel %vm487, %v484, %v486
        %vm499 = vcmask 23552
        %v501 = vsel %vm499, %v449, 0
        %v504 = vsel %vm499, %v450, 0
        %vm506 = vcmask 1042432
        %v507 = vsel %vm506, %v488, 0
        %v509 = vsel %vm506, %v489, 0
        %v511 = vsel %vm506, %v490, 0
        %v513 = vsel %vm506, %v491, 0
        %v515 = vsel %vm506, %v492, 0
        %v517 = vsel %vm506, %v493, 0
        %v519 = vsel %vm506, %v494, 0
        %v521 = vsel %vm506, %v495, 0
        %v523 = vsel %vm506, %v496, 0
        %v525 = vsel %vm506, %v497, 0
        %v527 = vsel %vm506, %v498, 0
        %529 = vmatprep.subr.mxu0 %v509
        %530 = vmatpush1.msra.mxu0 %v507
        %531 = vmatprep.subr.mxu0 0.0
        %532 = vmatpush1.msra.mxu0 0.0
        %533 = vmatprep.subr.mxu0 0.0
        %534 = vmatpush1.msra.mxu0 0.0
        %535 = vmatprep.subr.mxu0 0.0
        %536 = vmatpush1.msra.mxu0 0.0
        %537 = vmatprep.subr.mxu0 0.0
        %538 = vmatpush1.msra.mxu0 0.0
        %539 = vmatprep.subr.mxu0 0.0
        %540 = vmatpush1.msra.mxu0 0.0
        %541 = vmatprep.subr.mxu0 0.0
        %542 = vmatpush1.msra.mxu0 0.0
        %543 = vmatprep.subr.mxu0 0.0
        %544 = vmatpush1.msra.mxu0 0.0
        %545 = vmatprep.subr.mxu0 0.0
        %546 = vmatpush1.msra.mxu0 0.0
        %547 = vmatprep.subr.mxu0 0.0
        %548 = vmatpush1.msra.mxu0 0.0
        %549 = vmatprep.subr.mxu0 0.0
        %550 = vmatpush1.msra.mxu0 0.0
        %551 = vmatprep.subr.mxu0 0.0
        %552 = vmatpush1.msra.mxu0 0.0
        %553 = vmatprep.subr.mxu0 0.0
        %554 = vmatpush1.msra.mxu0 0.0
        %555 = vmatprep.subr.mxu0 0.0
        %556 = vmatpush1.msra.mxu0 0.0
        %557 = vmatprep.subr.mxu0 0.0
        %558 = vmatpush1.msra.mxu0 0.0
        %559 = vmatprep.subr.mxu0 0.0
        %560 = vmatpush1.msra.mxu0 0.0
        %561 = vmatprep.subr.mxu0 0.0
        %562 = vmatpush1.msra.mxu0 0.0
        %563 = vmatprep.subr.mxu0 0.0
        %564 = vmatpush1.msra.mxu0 0.0
        %565 = vmatprep.subr.mxu0 0.0
        %566 = vmatpush1.msra.mxu0 0.0
        %567 = vmatprep.subr.mxu0 0.0
        %568 = vmatpush1.msra.mxu0 0.0
        %569 = vmatprep.subr.mxu0 0.0
        %570 = vmatpush1.msra.mxu0 0.0
        %571 = vmatprep.subr.mxu0 0.0
        %572 = vmatpush1.msra.mxu0 0.0
        %573 = vmatprep.subr.mxu0 0.0
        %574 = vmatpush1.msra.mxu0 0.0
        %575 = vmatprep.subr.mxu0 0.0
        %576 = vmatpush1.msra.mxu0 0.0
        %577 = vmatprep.subr.mxu0 0.0
        %578 = vmatpush1.msra.mxu0 0.0
        %579 = vmatprep.subr.mxu0 0.0
        %580 = vmatpush1.msra.mxu0 0.0
        %581 = vmatprep.subr.mxu0 0.0
        %582 = vmatpush1.msra.mxu0 0.0
        %583 = vmatprep.subr.mxu0 0.0
        %584 = vmatpush1.msra.mxu0 0.0
        %585 = vmatprep.subr.mxu0 0.0
        %586 = vmatpush1.msra.mxu0 0.0
        %587 = vmatprep.subr.mxu0 0.0
        %588 = vmatpush1.msra.mxu0 0.0
        %589 = vmatprep.subr.mxu0 0.0
        %590 = vmatpush1.msra.mxu0 0.0
        %591 = vmatprep.subr.mxu0 0.0
        %592 = vmatpush1.msra.mxu0 0.0
        %593 = vmatprep.mubr.f32.mxu0 0.0
        %594 = vmatmul.mubr.f32.gmra.mrb[0].mxu0 %v501
        %v595 = vpop.f32.mrb[0].mxu0
        %v596 = vadd.f32 0.0, %v595
        %v597 = vpop.f32.mrb[0].mxu0
        %v598 = vadd.f32 0.0, %v597
        %599 = vmatprep.mubr.f32.mxu0 0.0
        %600 = vmatmul.mubr.f32.gmra.mrb[0].mxu0 %v504
        %v601 = vpop.f32.mrb[0].mxu0
        %v602 = vadd.f32 0.0, %v601
        %v603 = vpop.f32.mrb[0].mxu0
        %v604 = vadd.f32 0.0, %v603
        %605 = vdwg.mxu0
        %606 = vmatprep.subr.mxu0 %v513
        %607 = vmatpush1.msra.mxu0 %v511
        %608 = vmatprep.subr.mxu0 0.0
        %609 = vmatpush1.msra.mxu0 0.0
        %610 = vmatprep.subr.mxu0 0.0
        %611 = vmatpush1.msra.mxu0 0.0
        %612 = vmatprep.subr.mxu0 0.0
        %613 = vmatpush1.msra.mxu0 0.0
        %614 = vmatprep.subr.mxu0 0.0
        %615 = vmatpush1.msra.mxu0 0.0
        %616 = vmatprep.subr.mxu0 0.0
        %617 = vmatpush1.msra.mxu0 0.0
        %618 = vmatprep.subr.mxu0 0.0
        %619 = vmatpush1.msra.mxu0 0.0
        %620 = vmatprep.subr.mxu0 0.0
        %621 = vmatpush1.msra.mxu0 0.0
        %622 = vmatprep.subr.mxu0 0.0
        %623 = vmatpush1.msra.mxu0 0.0
        %624 = vmatprep.subr.mxu0 0.0
        %625 = vmatpush1.msra.mxu0 0.0
        %626 = vmatprep.subr.mxu0 0.0
        %627 = vmatpush1.msra.mxu0 0.0
        %628 = vmatprep.subr.mxu0 0.0
        %629 = vmatpush1.msra.mxu0 0.0
        %630 = vmatprep.subr.mxu0 0.0
        %631 = vmatpush1.msra.mxu0 0.0
        %632 = vmatprep.subr.mxu0 0.0
        %633 = vmatpush1.msra.mxu0 0.0
        %634 = vmatprep.subr.mxu0 0.0
        %635 = vmatpush1.msra.mxu0 0.0
        %636 = vmatprep.subr.mxu0 0.0
        %637 = vmatpush1.msra.mxu0 0.0
        %638 = vmatprep.subr.mxu0 0.0
        %639 = vmatpush1.msra.mxu0 0.0
        %640 = vmatprep.subr.mxu0 0.0
        %641 = vmatpush1.msra.mxu0 0.0
        %642 = vmatprep.subr.mxu0 0.0
        %643 = vmatpush1.msra.mxu0 0.0
        %644 = vmatprep.subr.mxu0 0.0
        %645 = vmatpush1.msra.mxu0 0.0
        %646 = vmatprep.subr.mxu0 0.0
        %647 = vmatpush1.msra.mxu0 0.0
        %648 = vmatprep.subr.mxu0 0.0
        %649 = vmatpush1.msra.mxu0 0.0
        %650 = vmatprep.subr.mxu0 0.0
        %651 = vmatpush1.msra.mxu0 0.0
        %652 = vmatprep.subr.mxu0 0.0
        %653 = vmatpush1.msra.mxu0 0.0
        %654 = vmatprep.subr.mxu0 0.0
        %655 = vmatpush1.msra.mxu0 0.0
        %656 = vmatprep.subr.mxu0 0.0
        %657 = vmatpush1.msra.mxu0 0.0
        %658 = vmatprep.subr.mxu0 0.0
        %659 = vmatpush1.msra.mxu0 0.0
        %660 = vmatprep.subr.mxu0 0.0
        %661 = vmatpush1.msra.mxu0 0.0
        %662 = vmatprep.subr.mxu0 0.0
        %663 = vmatpush1.msra.mxu0 0.0
        %664 = vmatprep.subr.mxu0 0.0
        %665 = vmatpush1.msra.mxu0 0.0
        %666 = vmatprep.subr.mxu0 0.0
        %667 = vmatpush1.msra.mxu0 0.0
        %668 = vmatprep.subr.mxu0 0.0
        %669 = vmatpush1.msra.mxu0 0.0
        %670 = vmatprep.mubr.f32.mxu0 0.0
        %671 = vmatmul.mubr.f32.gmra.mrb[0].mxu0 %v501
        %v672 = vpop.f32.mrb[0].mxu0
        %v673 = vadd.f32 0.0, %v672
        %v674 = vpop.f32.mrb[0].mxu0
        %v675 = vadd.f32 0.0, %v674
        %676 = vmatprep.mubr.f32.mxu0 0.0
        %677 = vmatmul.mubr.f32.gmra.mrb[0].mxu0 %v504
        %v678 = vpop.f32.mrb[0].mxu0
        %v679 = vadd.f32 0.0, %v678
        %v680 = vpop.f32.mrb[0].mxu0
        %v681 = vadd.f32 0.0, %v680
        %682 = vdwg.mxu0
        %683 = vmatprep.subr.mxu0 %v517
        %684 = vmatpush1.msra.mxu0 %v515
        %685 = vmatprep.subr.mxu0 0.0
        %686 = vmatpush1.msra.mxu0 0.0
        %687 = vmatprep.subr.mxu0 0.0
        %688 = vmatpush1.msra.mxu0 0.0
        %689 = vmatprep.subr.mxu0 0.0
        %690 = vmatpush1.msra.mxu0 0.0
        %691 = vmatprep.subr.mxu0 0.0
        %692 = vmatpush1.msra.mxu0 0.0
        %693 = vmatprep.subr.mxu0 0.0
        %694 = vmatpush1.msra.mxu0 0.0
        %695 = vmatprep.subr.mxu0 0.0
        %696 = vmatpush1.msra.mxu0 0.0
        %697 = vmatprep.subr.mxu0 0.0
        %698 = vmatpush1.msra.mxu0 0.0
        %699 = vmatprep.subr.mxu0 0.0
        %700 = vmatpush1.msra.mxu0 0.0
        %701 = vmatprep.subr.mxu0 0.0
        %702 = vmatpush1.msra.mxu0 0.0
        %703 = vmatprep.subr.mxu0 0.0
        %704 = vmatpush1.msra.mxu0 0.0
        %705 = vmatprep.subr.mxu0 0.0
        %706 = vmatpush1.msra.mxu0 0.0
        %707 = vmatprep.subr.mxu0 0.0
        %708 = vmatpush1.msra.mxu0 0.0
        %709 = vmatprep.subr.mxu0 0.0
        %710 = vmatpush1.msra.mxu0 0.0
        %711 = vmatprep.subr.mxu0 0.0
        %712 = vmatpush1.msra.mxu0 0.0
        %713 = vmatprep.subr.mxu0 0.0
        %714 = vmatpush1.msra.mxu0 0.0
        %715 = vmatprep.subr.mxu0 0.0
        %716 = vmatpush1.msra.mxu0 0.0
        %717 = vmatprep.subr.mxu0 0.0
        %718 = vmatpush1.msra.mxu0 0.0
        %719 = vmatprep.subr.mxu0 0.0
        %720 = vmatpush1.msra.mxu0 0.0
        %721 = vmatprep.subr.mxu0 0.0
        %722 = vmatpush1.msra.mxu0 0.0
        %723 = vmatprep.subr.mxu0 0.0
        %724 = vmatpush1.msra.mxu0 0.0
        %725 = vmatprep.subr.mxu0 0.0
        %726 = vmatpush1.msra.mxu0 0.0
        %727 = vmatprep.subr.mxu0 0.0
        %728 = vmatpush1.msra.mxu0 0.0
        %729 = vmatprep.subr.mxu0 0.0
        %730 = vmatpush1.msra.mxu0 0.0
        %731 = vmatprep.subr.mxu0 0.0
        %732 = vmatpush1.msra.mxu0 0.0
        %733 = vmatprep.subr.mxu0 0.0
        %734 = vmatpush1.msra.mxu0 0.0
        %735 = vmatprep.subr.mxu0 0.0
        %736 = vmatpush1.msra.mxu0 0.0
        %737 = vmatprep.subr.mxu0 0.0
        %738 = vmatpush1.msra.mxu0 0.0
        %739 = vmatprep.subr.mxu0 0.0
        %740 = vmatpush1.msra.mxu0 0.0
        %741 = vmatprep.subr.mxu0 0.0
        %742 = vmatpush1.msra.mxu0 0.0
        %743 = vmatprep.subr.mxu0 0.0
        %744 = vmatpush1.msra.mxu0 0.0
        %745 = vmatprep.subr.mxu0 0.0
        %746 = vmatpush1.msra.mxu0 0.0
        %747 = vmatprep.mubr.f32.mxu0 0.0
        %748 = vmatmul.mubr.f32.gmra.mrb[0].mxu0 %v501
        %v749 = vpop.f32.mrb[0].mxu0
        %v750 = vadd.f32 0.0, %v749
        %v751 = vpop.f32.mrb[0].mxu0
        %v752 = vadd.f32 0.0, %v751
        %753 = vmatprep.mubr.f32.mxu0 0.0
        %754 = vmatmul.mubr.f32.gmra.mrb[0].mxu0 %v504
        %v755 = vpop.f32.mrb[0].mxu0
        %v756 = vadd.f32 0.0, %v755
        %v757 = vpop.f32.mrb[0].mxu0
        %v758 = vadd.f32 0.0, %v757
        %759 = vdwg.mxu0
        %760 = vmatprep.subr.mxu0 %v521
        %761 = vmatpush1.msra.mxu0 %v519
        %762 = vmatprep.subr.mxu0 0.0
        %763 = vmatpush1.msra.mxu0 0.0
        %764 = vmatprep.subr.mxu0 0.0
        %765 = vmatpush1.msra.mxu0 0.0
        %766 = vmatprep.subr.mxu0 0.0
        %767 = vmatpush1.msra.mxu0 0.0
        %768 = vmatprep.subr.mxu0 0.0
        %769 = vmatpush1.msra.mxu0 0.0
        %770 = vmatprep.subr.mxu0 0.0
        %771 = vmatpush1.msra.mxu0 0.0
        %772 = vmatprep.subr.mxu0 0.0
        %773 = vmatpush1.msra.mxu0 0.0
        %774 = vmatprep.subr.mxu0 0.0
        %775 = vmatpush1.msra.mxu0 0.0
        %776 = vmatprep.subr.mxu0 0.0
        %777 = vmatpush1.msra.mxu0 0.0
        %778 = vmatprep.subr.mxu0 0.0
        %779 = vmatpush1.msra.mxu0 0.0
        %780 = vmatprep.subr.mxu0 0.0
        %781 = vmatpush1.msra.mxu0 0.0
        %782 = vmatprep.subr.mxu0 0.0
        %783 = vmatpush1.msra.mxu0 0.0
        %784 = vmatprep.subr.mxu0 0.0
        %785 = vmatpush1.msra.mxu0 0.0
        %786 = vmatprep.subr.mxu0 0.0
        %787 = vmatpush1.msra.mxu0 0.0
        %788 = vmatprep.subr.mxu0 0.0
        %789 = vmatpush1.msra.mxu0 0.0
        %790 = vmatprep.subr.mxu0 0.0
        %791 = vmatpush1.msra.mxu0 0.0
        %792 = vmatprep.subr.mxu0 0.0
        %793 = vmatpush1.msra.mxu0 0.0
        %794 = vmatprep.subr.mxu0 0.0
        %795 = vmatpush1.msra.mxu0 0.0
        %796 = vmatprep.subr.mxu0 0.0
        %797 = vmatpush1.msra.mxu0 0.0
        %798 = vmatprep.subr.mxu0 0.0
        %799 = vmatpush1.msra.mxu0 0.0
        %800 = vmatprep.subr.mxu0 0.0
        %801 = vmatpush1.msra.mxu0 0.0
        %802 = vmatprep.subr.mxu0 0.0
        %803 = vmatpush1.msra.mxu0 0.0
        %804 = vmatprep.subr.mxu0 0.0
        %805 = vmatpush1.msra.mxu0 0.0
        %806 = vmatprep.subr.mxu0 0.0
        %807 = vmatpush1.msra.mxu0 0.0
        %808 = vmatprep.subr.mxu0 0.0
        %809 = vmatpush1.msra.mxu0 0.0
        %810 = vmatprep.subr.mxu0 0.0
        %811 = vmatpush1.msra.mxu0 0.0
        %812 = vmatprep.subr.mxu0 0.0
        %813 = vmatpush1.msra.mxu0 0.0
        %814 = vmatprep.subr.mxu0 0.0
        %815 = vmatpush1.msra.mxu0 0.0
        %816 = vmatprep.subr.mxu0 0.0
        %817 = vmatpush1.msra.mxu0 0.0
        %818 = vmatprep.subr.mxu0 0.0
        %819 = vmatpush1.msra.mxu0 0.0
        %820 = vmatprep.subr.mxu0 0.0
        %821 = vmatpush1.msra.mxu0 0.0
        %822 = vmatprep.subr.mxu0 0.0
        %823 = vmatpush1.msra.mxu0 0.0
        %824 = vmatprep.mubr.f32.mxu0 0.0
        %825 = vmatmul.mubr.f32.gmra.mrb[0].mxu0 %v501
        %v826 = vpop.f32.mrb[0].mxu0
        %v827 = vadd.f32 0.0, %v826
        %v828 = vpop.f32.mrb[0].mxu0
        %v829 = vadd.f32 0.0, %v828
        %830 = vmatprep.mubr.f32.mxu0 0.0
        %831 = vmatmul.mubr.f32.gmra.mrb[0].mxu0 %v504
        %v832 = vpop.f32.mrb[0].mxu0
        %v833 = vadd.f32 0.0, %v832
        %v834 = vpop.f32.mrb[0].mxu0
        %v835 = vadd.f32 0.0, %v834
        %836 = vdwg.mxu0
        %837 = vmatprep.subr.mxu0 %v525
        %838 = vmatpush1.msra.mxu0 %v523
        %839 = vmatprep.subr.mxu0 0.0
        %840 = vmatpush1.msra.mxu0 0.0
        %841 = vmatprep.subr.mxu0 0.0
        %842 = vmatpush1.msra.mxu0 0.0
        %843 = vmatprep.subr.mxu0 0.0
        %844 = vmatpush1.msra.mxu0 0.0
        %845 = vmatprep.subr.mxu0 0.0
        %846 = vmatpush1.msra.mxu0 0.0
        %847 = vmatprep.subr.mxu0 0.0
        %848 = vmatpush1.msra.mxu0 0.0
        %849 = vmatprep.subr.mxu0 0.0
        %850 = vmatpush1.msra.mxu0 0.0
        %851 = vmatprep.subr.mxu0 0.0
        %852 = vmatpush1.msra.mxu0 0.0
        %853 = vmatprep.subr.mxu0 0.0
        %854 = vmatpush1.msra.mxu0 0.0
        %855 = vmatprep.subr.mxu0 0.0
        %856 = vmatpush1.msra.mxu0 0.0
        %857 = vmatprep.subr.mxu0 0.0
        %858 = vmatpush1.msra.mxu0 0.0
        %859 = vmatprep.subr.mxu0 0.0
        %860 = vmatpush1.msra.mxu0 0.0
        %861 = vmatprep.subr.mxu0 0.0
        %862 = vmatpush1.msra.mxu0 0.0
        %863 = vmatprep.subr.mxu0 0.0
        %864 = vmatpush1.msra.mxu0 0.0
        %865 = vmatprep.subr.mxu0 0.0
        %866 = vmatpush1.msra.mxu0 0.0
        %867 = vmatprep.subr.mxu0 0.0
        %868 = vmatpush1.msra.mxu0 0.0
        %869 = vmatprep.subr.mxu0 0.0
        %870 = vmatpush1.msra.mxu0 0.0
        %871 = vmatprep.subr.mxu0 0.0
        %872 = vmatpush1.msra.mxu0 0.0
        %873 = vmatprep.subr.mxu0 0.0
        %874 = vmatpush1.msra.mxu0 0.0
        %875 = vmatprep.subr.mxu0 0.0
        %876 = vmatpush1.msra.mxu0 0.0
        %877 = vmatprep.subr.mxu0 0.0
        %878 = vmatpush1.msra.mxu0 0.0
        %879 = vmatprep.subr.mxu0 0.0
        %880 = vmatpush1.msra.mxu0 0.0
        %881 = vmatprep.subr.mxu0 0.0
        %882 = vmatpush1.msra.mxu0 0.0
        %883 = vmatprep.subr.mxu0 0.0
        %884 = vmatpush1.msra.mxu0 0.0
        %885 = vmatprep.subr.mxu0 0.0
        %886 = vmatpush1.msra.mxu0 0.0
        %887 = vmatprep.subr.mxu0 0.0
        %888 = vmatpush1.msra.mxu0 0.0
        %889 = vmatprep.subr.mxu0 0.0
        %890 = vmatpush1.msra.mxu0 0.0
        %891 = vmatprep.subr.mxu0 0.0
        %892 = vmatpush1.msra.mxu0 0.0
        %893 = vmatprep.subr.mxu0 0.0
        %894 = vmatpush1.msra.mxu0 0.0
        %895 = vmatprep.subr.mxu0 0.0
        %896 = vmatpush1.msra.mxu0 0.0
        %897 = vmatprep.subr.mxu0 0.0
        %898 = vmatpush1.msra.mxu0 0.0
        %899 = vmatprep.subr.mxu0 0.0
        %900 = vmatpush1.msra.mxu0 0.0
        %901 = vmatprep.mubr.f32.mxu0 0.0
        %902 = vmatmul.mubr.f32.gmra.mrb[0].mxu0 %v501
        %v903 = vpop.f32.mrb[0].mxu0
        %v904 = vadd.f32 0.0, %v903
        %v905 = vpop.f32.mrb[0].mxu0
        %v906 = vadd.f32 0.0, %v905
        %907 = vmatprep.mubr.f32.mxu0 0.0
        %908 = vmatmul.mubr.f32.gmra.mrb[0].mxu0 %v504
        %v909 = vpop.f32.mrb[0].mxu0
        %v910 = vadd.f32 0.0, %v909
        %v911 = vpop.f32.mrb[0].mxu0
        %v912 = vadd.f32 0.0, %v911
        %913 = vdwg.mxu0
        %914 = vmatprep.subr.mxu0 0.0
        %915 = vmatpush1.msra.mxu0 %v527
        %916 = vmatprep.subr.mxu0 0.0
        %917 = vmatpush1.msra.mxu0 0.0
        %918 = vmatprep.subr.mxu0 0.0
        %919 = vmatpush1.msra.mxu0 0.0
        %920 = vmatprep.subr.mxu0 0.0
        %921 = vmatpush1.msra.mxu0 0.0
        %922 = vmatprep.subr.mxu0 0.0
        %923 = vmatpush1.msra.mxu0 0.0
        %924 = vmatprep.subr.mxu0 0.0
        %925 = vmatpush1.msra.mxu0 0.0
        %926 = vmatprep.subr.mxu0 0.0
        %927 = vmatpush1.msra.mxu0 0.0
        %928 = vmatprep.subr.mxu0 0.0
        %929 = vmatpush1.msra.mxu0 0.0
        %930 = vmatprep.subr.mxu0 0.0
        %931 = vmatpush1.msra.mxu0 0.0
        %932 = vmatprep.subr.mxu0 0.0
        %933 = vmatpush1.msra.mxu0 0.0
        %934 = vmatprep.subr.mxu0 0.0
        %935 = vmatpush1.msra.mxu0 0.0
        %936 = vmatprep.subr.mxu0 0.0
        %937 = vmatpush1.msra.mxu0 0.0
        %938 = vmatprep.subr.mxu0 0.0
        %939 = vmatpush1.msra.mxu0 0.0
        %940 = vmatprep.subr.mxu0 0.0
        %941 = vmatpush1.msra.mxu0 0.0
        %942 = vmatprep.subr.mxu0 0.0
        %943 = vmatpush1.msra.mxu0 0.0
        %944 = vmatprep.subr.mxu0 0.0
        %945 = vmatpush1.msra.mxu0 0.0
        %946 = vmatprep.subr.mxu0 0.0
        %947 = vmatpush1.msra.mxu0 0.0
        %948 = vmatprep.subr.mxu0 0.0
        %949 = vmatpush1.msra.mxu0 0.0
        %950 = vmatprep.subr.mxu0 0.0
        %951 = vmatpush1.msra.mxu0 0.0
        %952 = vmatprep.subr.mxu0 0.0
        %953 = vmatpush1.msra.mxu0 0.0
        %954 = vmatprep.subr.mxu0 0.0
        %955 = vmatpush1.msra.mxu0 0.0
        %956 = vmatprep.subr.mxu0 0.0
        %957 = vmatpush1.msra.mxu0 0.0
        %958 = vmatprep.subr.mxu0 0.0
        %959 = vmatpush1.msra.mxu0 0.0
        %960 = vmatprep.subr.mxu0 0.0
        %961 = vmatpush1.msra.mxu0 0.0
        %962 = vmatprep.subr.mxu0 0.0
        %963 = vmatpush1.msra.mxu0 0.0
        %964 = vmatprep.subr.mxu0 0.0
        %965 = vmatpush1.msra.mxu0 0.0
        %966 = vmatprep.subr.mxu0 0.0
        %967 = vmatpush1.msra.mxu0 0.0
        %968 = vmatprep.subr.mxu0 0.0
        %969 = vmatpush1.msra.mxu0 0.0
        %970 = vmatprep.subr.mxu0 0.0
        %971 = vmatpush1.msra.mxu0 0.0
        %972 = vmatprep.subr.mxu0 0.0
        %973 = vmatpush1.msra.mxu0 0.0
        %974 = vmatprep.subr.mxu0 0.0
        %975 = vmatpush1.msra.mxu0 0.0
        %976 = vmatprep.subr.mxu0 0.0
        %977 = vmatpush1.msra.mxu0 0.0
        %978 = vmatprep.mubr.f32.mxu0 0.0
        %979 = vmatmul.mubr.f32.gmra.mrb[0].mxu0 %v501
        %v980 = vpop.f32.mrb[0].mxu0
        %v981 = vadd.f32 0.0, %v980
        %v982 = vpop.f32.mrb[0].mxu0
        %983 = vmatprep.mubr.f32.mxu0 0.0
        %984 = vmatmul.mubr.f32.gmra.mrb[0].mxu0 %v504
        %v985 = vpop.f32.mrb[0].mxu0
        %v986 = vadd.f32 0.0, %v985
        %v987 = vpop.f32.mrb[0].mxu0
        %988 = vdwg.mxu0
        %v995 = vcombine.high %v440, %v440
        %v996 = vcombine.high %v441, %v441
        %v997 = vcombine.high %v442, %v442
        %v998 = vcombine.high %v443, %v443
        %v999 = vcombine.high %v444, %v444
        %v1000 = vcombine.high %v445, %v445
        %1001 = vrot.lane.b32.xlu0 %v440, 81
        %v1002 = vpop.permute.xlu0 %1001
        %1003 = vrot.lane.b32.xlu0 %v995, 81
        %v1004 = vpop.permute.xlu0 %1003
        %1005 = vrot.lane.b32.xlu0 %v441, 81
        %v1006 = vpop.permute.xlu0 %1005
        %1007 = vrot.lane.b32.xlu0 %v996, 81
        %v1008 = vpop.permute.xlu0 %1007
        %1009 = vrot.lane.b32.xlu0 %v442, 81
        %v1010 = vpop.permute.xlu0 %1009
        %1011 = vrot.lane.b32.xlu0 %v997, 81
        %v1012 = vpop.permute.xlu0 %1011
        %1013 = vrot.lane.b32.xlu0 %v443, 81
        %v1014 = vpop.permute.xlu0 %1013
        %1015 = vrot.lane.b32.xlu0 %v998, 81
        %v1016 = vpop.permute.xlu0 %1015
        %1017 = vrot.lane.b32.xlu0 %v444, 81
        %v1018 = vpop.permute.xlu0 %1017
        %1019 = vrot.lane.b32.xlu0 %v999, 81
        %v1020 = vpop.permute.xlu0 %1019
        %1021 = vrot.lane.b32.xlu0 %v445, 81
        %v1022 = vpop.permute.xlu0 %1021
        %1023 = vrot.lane.b32.xlu0 %v1000, 81
        %v1024 = vpop.permute.xlu0 %1023
        %vm1025 = vcmask 662528
        %v1026 = vsel %vm1025, %v1002, %v1004
        %v1027 = vsel %vm1025, %v1004, %v1006
        %v1028 = vsel %vm1025, %v1006, %v1008
        %v1029 = vsel %vm1025, %v1008, %v1010
        %v1030 = vsel %vm1025, %v1010, %v1012
        %v1031 = vsel %vm1025, %v1012, %v1014
        %v1032 = vsel %vm1025, %v1014, %v1016
        %v1033 = vsel %vm1025, %v1016, %v1018
        %v1034 = vsel %vm1025, %v1018, %v1020
        %v1035 = vsel %vm1025, %v1020, %v1022
        %v1036 = vsel %vm1025, %v1022, %v1024
        %v1038 = vsel %vm499, %v446, 0
        %v1041 = vsel %vm499, %v447, 0
        %v1043 = vsel %vm506, %v1026, 0
        %v1045 = vsel %vm506, %v1027, 0
        %v1047 = vsel %vm506, %v1028, 0
        %v1049 = vsel %vm506, %v1029, 0
        %v1051 = vsel %vm506, %v1030, 0
        %v1053 = vsel %vm506, %v1031, 0
        %v1055 = vsel %vm506, %v1032, 0
        %v1057 = vsel %vm506, %v1033, 0
        %v1059 = vsel %vm506, %v1034, 0
        %v1061 = vsel %vm506, %v1035, 0
        %v1063 = vsel %vm506, %v1036, 0
        %1065 = vmatprep.subr.mxu0 %v1045
        %1066 = vmatpush1.msra.mxu0 %v1043
        %1067 = vmatprep.subr.mxu0 0.0
        %1068 = vmatpush1.msra.mxu0 0.0
        %1069 = vmatprep.subr.mxu0 0.0
        %1070 = vmatpush1.msra.mxu0 0.0
        %1071 = vmatprep.subr.mxu0 0.0
        %1072 = vmatpush1.msra.mxu0 0.0
        %1073 = vmatprep.subr.mxu0 0.0
        %1074 = vmatpush1.msra.mxu0 0.0
        %1075 = vmatprep.subr.mxu0 0.0
        %1076 = vmatpush1.msra.mxu0 0.0
        %1077 = vmatprep.subr.mxu0 0.0
        %1078 = vmatpush1.msra.mxu0 0.0
        %1079 = vmatprep.subr.mxu0 0.0
        %1080 = vmatpush1.msra.mxu0 0.0
        %1081 = vmatprep.subr.mxu0 0.0
        %1082 = vmatpush1.msra.mxu0 0.0
        %1083 = vmatprep.subr.mxu0 0.0
        %1084 = vmatpush1.msra.mxu0 0.0
        %1085 = vmatprep.subr.mxu0 0.0
        %1086 = vmatpush1.msra.mxu0 0.0
        %1087 = vmatprep.subr.mxu0 0.0
        %1088 = vmatpush1.msra.mxu0 0.0
        %1089 = vmatprep.subr.mxu0 0.0
        %1090 = vmatpush1.msra.mxu0 0.0
        %1091 = vmatprep.subr.mxu0 0.0
        %1092 = vmatpush1.msra.mxu0 0.0
        %1093 = vmatprep.subr.mxu0 0.0
        %1094 = vmatpush1.msra.mxu0 0.0
        %1095 = vmatprep.subr.mxu0 0.0
        %1096 = vmatpush1.msra.mxu0 0.0
        %1097 = vmatprep.subr.mxu0 0.0
        %1098 = vmatpush1.msra.mxu0 0.0
        %1099 = vmatprep.subr.mxu0 0.0
        %1100 = vmatpush1.msra.mxu0 0.0
        %1101 = vmatprep.subr.mxu0 0.0
        %1102 = vmatpush1.msra.mxu0 0.0
        %1103 = vmatprep.subr.mxu0 0.0
        %1104 = vmatpush1.msra.mxu0 0.0
        %1105 = vmatprep.subr.mxu0 0.0
        %1106 = vmatpush1.msra.mxu0 0.0
        %1107 = vmatprep.subr.mxu0 0.0
        %1108 = vmatpush1.msra.mxu0 0.0
        %1109 = vmatprep.subr.mxu0 0.0
        %1110 = vmatpush1.msra.mxu0 0.0
        %1111 = vmatprep.subr.mxu0 0.0
        %1112 = vmatpush1.msra.mxu0 0.0
        %1113 = vmatprep.subr.mxu0 0.0
        %1114 = vmatpush1.msra.mxu0 0.0
        %1115 = vmatprep.subr.mxu0 0.0
        %1116 = vmatpush1.msra.mxu0 0.0
        %1117 = vmatprep.subr.mxu0 0.0
        %1118 = vmatpush1.msra.mxu0 0.0
        %1119 = vmatprep.subr.mxu0 0.0
        %1120 = vmatpush1.msra.mxu0 0.0
        %1121 = vmatprep.subr.mxu0 0.0
        %1122 = vmatpush1.msra.mxu0 0.0
        %1123 = vmatprep.subr.mxu0 0.0
        %1124 = vmatpush1.msra.mxu0 0.0
        %1125 = vmatprep.subr.mxu0 0.0
        %1126 = vmatpush1.msra.mxu0 0.0
        %1127 = vmatprep.subr.mxu0 0.0
        %1128 = vmatpush1.msra.mxu0 0.0
        %1129 = vmatprep.mubr.f32.mxu0 0.0
        %1130 = vmatmul.mubr.f32.gmra.mrb[0].mxu0 %v1038
        %v1131 = vpop.f32.mrb[0].mxu0
        %v1132 = vadd.f32 %v596, %v1131
        %v1133 = vpop.f32.mrb[0].mxu0
        %v1134 = vadd.f32 %v598, %v1133
        %1135 = vmatprep.mubr.f32.mxu0 0.0
        %1136 = vmatmul.mubr.f32.gmra.mrb[0].mxu0 %v1041
        %v1137 = vpop.f32.mrb[0].mxu0
        %v1138 = vadd.f32 %v602, %v1137
        %v1139 = vpop.f32.mrb[0].mxu0
        %v1140 = vadd.f32 %v604, %v1139
        %1141 = vdwg.mxu0
        %1142 = vmatprep.subr.mxu0 %v1049
        %1143 = vmatpush1.msra.mxu0 %v1047
        %1144 = vmatprep.subr.mxu0 0.0
        %1145 = vmatpush1.msra.mxu0 0.0
        %1146 = vmatprep.subr.mxu0 0.0
        %1147 = vmatpush1.msra.mxu0 0.0
        %1148 = vmatprep.subr.mxu0 0.0
        %1149 = vmatpush1.msra.mxu0 0.0
        %1150 = vmatprep.subr.mxu0 0.0
        %1151 = vmatpush1.msra.mxu0 0.0
        %1152 = vmatprep.subr.mxu0 0.0
        %1153 = vmatpush1.msra.mxu0 0.0
        %1154 = vmatprep.subr.mxu0 0.0
        %1155 = vmatpush1.msra.mxu0 0.0
        %1156 = vmatprep.subr.mxu0 0.0
        %1157 = vmatpush1.msra.mxu0 0.0
        %1158 = vmatprep.subr.mxu0 0.0
        %1159 = vmatpush1.msra.mxu0 0.0
        %1160 = vmatprep.subr.mxu0 0.0
        %1161 = vmatpush1.msra.mxu0 0.0
        %1162 = vmatprep.subr.mxu0 0.0
        %1163 = vmatpush1.msra.mxu0 0.0
        %1164 = vmatprep.subr.mxu0 0.0
        %1165 = vmatpush1.msra.mxu0 0.0
        %1166 = vmatprep.subr.mxu0 0.0
        %1167 = vmatpush1.msra.mxu0 0.0
        %1168 = vmatprep.subr.mxu0 0.0
        %1169 = vmatpush1.msra.mxu0 0.0
        %1170 = vmatprep.subr.mxu0 0.0
        %1171 = vmatpush1.msra.mxu0 0.0
        %1172 = vmatprep.subr.mxu0 0.0
        %1173 = vmatpush1.msra.mxu0 0.0
        %1174 = vmatprep.subr.mxu0 0.0
        %1175 = vmatpush1.msra.mxu0 0.0
        %1176 = vmatprep.subr.mxu0 0.0
        %1177 = vmatpush1.msra.mxu0 0.0
        %1178 = vmatprep.subr.mxu0 0.0
        %1179 = vmatpush1.msra.mxu0 0.0
        %1180 = vmatprep.subr.mxu0 0.0
        %1181 = vmatpush1.msra.mxu0 0.0
        %1182 = vmatprep.subr.mxu0 0.0
        %1183 = vmatpush1.msra.mxu0 0.0
        %1184 = vmatprep.subr.mxu0 0.0
        %1185 = vmatpush1.msra.mxu0 0.0
        %1186 = vmatprep.subr.mxu0 0.0
        %1187 = vmatpush1.msra.mxu0 0.0
        %1188 = vmatprep.subr.mxu0 0.0
        %1189 = vmatpush1.msra.mxu0 0.0
        %1190 = vmatprep.subr.mxu0 0.0
        %1191 = vmatpush1.msra.mxu0 0.0
        %1192 = vmatprep.subr.mxu0 0.0
        %1193 = vmatpush1.msra.mxu0 0.0
        %1194 = vmatprep.subr.mxu0 0.0
        %1195 = vmatpush1.msra.mxu0 0.0
        %1196 = vmatprep.subr.mxu0 0.0
        %1197 = vmatpush1.msra.mxu0 0.0
        %1198 = vmatprep.subr.mxu0 0.0
        %1199 = vmatpush1.msra.mxu0 0.0
        %1200 = vmatprep.subr.mxu0 0.0
        %1201 = vmatpush1.msra.mxu0 0.0
        %1202 = vmatprep.subr.mxu0 0.0
        %1203 = vmatpush1.msra.mxu0 0.0
        %1204 = vmatprep.subr.mxu0 0.0
        %1205 = vmatpush1.msra.mxu0 0.0
        %1206 = vmatprep.mubr.f32.mxu0 0.0
        %1207 = vmatmul.mubr.f32.gmra.mrb[0].mxu0 %v1038
        %v1208 = vpop.f32.mrb[0].mxu0
        %v1209 = vadd.f32 %v673, %v1208
        %v1210 = vpop.f32.mrb[0].mxu0
        %v1211 = vadd.f32 %v675, %v1210
        %1212 = vmatprep.mubr.f32.mxu0 0.0
        %1213 = vmatmul.mubr.f32.gmra.mrb[0].mxu0 %v1041
        %v1214 = vpop.f32.mrb[0].mxu0
        %v1215 = vadd.f32 %v679, %v1214
        %v1216 = vpop.f32.mrb[0].mxu0
        %v1217 = vadd.f32 %v681, %v1216
        %1218 = vdwg.mxu0
        %1219 = vmatprep.subr.mxu0 %v1053
        %1220 = vmatpush1.msra.mxu0 %v1051
        %1221 = vmatprep.subr.mxu0 0.0
        %1222 = vmatpush1.msra.mxu0 0.0
        %1223 = vmatprep.subr.mxu0 0.0
        %1224 = vmatpush1.msra.mxu0 0.0
        %1225 = vmatprep.subr.mxu0 0.0
        %1226 = vmatpush1.msra.mxu0 0.0
        %1227 = vmatprep.subr.mxu0 0.0
        %1228 = vmatpush1.msra.mxu0 0.0
        %1229 = vmatprep.subr.mxu0 0.0
        %1230 = vmatpush1.msra.mxu0 0.0
        %1231 = vmatprep.subr.mxu0 0.0
        %1232 = vmatpush1.msra.mxu0 0.0
        %1233 = vmatprep.subr.mxu0 0.0
        %1234 = vmatpush1.msra.mxu0 0.0
        %1235 = vmatprep.subr.mxu0 0.0
        %1236 = vmatpush1.msra.mxu0 0.0
        %1237 = vmatprep.subr.mxu0 0.0
        %1238 = vmatpush1.msra.mxu0 0.0
        %1239 = vmatprep.subr.mxu0 0.0
        %1240 = vmatpush1.msra.mxu0 0.0
        %1241 = vmatprep.subr.mxu0 0.0
        %1242 = vmatpush1.msra.mxu0 0.0
        %1243 = vmatprep.subr.mxu0 0.0
        %1244 = vmatpush1.msra.mxu0 0.0
        %1245 = vmatprep.subr.mxu0 0.0
        %1246 = vmatpush1.msra.mxu0 0.0
        %1247 = vmatprep.subr.mxu0 0.0
        %1248 = vmatpush1.msra.mxu0 0.0
        %1249 = vmatprep.subr.mxu0 0.0
        %1250 = vmatpush1.msra.mxu0 0.0
        %1251 = vmatprep.subr.mxu0 0.0
        %1252 = vmatpush1.msra.mxu0 0.0
        %1253 = vmatprep.subr.mxu0 0.0
        %1254 = vmatpush1.msra.mxu0 0.0
        %1255 = vmatprep.subr.mxu0 0.0
        %1256 = vmatpush1.msra.mxu0 0.0
        %1257 = vmatprep.subr.mxu0 0.0
        %1258 = vmatpush1.msra.mxu0 0.0
        %1259 = vmatprep.subr.mxu0 0.0
        %1260 = vmatpush1.msra.mxu0 0.0
        %1261 = vmatprep.subr.mxu0 0.0
        %1262 = vmatpush1.msra.mxu0 0.0
        %1263 = vmatprep.subr.mxu0 0.0
        %1264 = vmatpush1.msra.mxu0 0.0
        %1265 = vmatprep.subr.mxu0 0.0
        %1266 = vmatpush1.msra.mxu0 0.0
        %1267 = vmatprep.subr.mxu0 0.0
        %1268 = vmatpush1.msra.mxu0 0.0
        %1269 = vmatprep.subr.mxu0 0.0
        %1270 = vmatpush1.msra.mxu0 0.0
        %1271 = vmatprep.subr.mxu0 0.0
        %1272 = vmatpush1.msra.mxu0 0.0
        %1273 = vmatprep.subr.mxu0 0.0
        %1274 = vmatpush1.msra.mxu0 0.0
        %1275 = vmatprep.subr.mxu0 0.0
        %1276 = vmatpush1.msra.mxu0 0.0
        %1277 = vmatprep.subr.mxu0 0.0
        %1278 = vmatpush1.msra.mxu0 0.0
        %1279 = vmatprep.subr.mxu0 0.0
        %1280 = vmatpush1.msra.mxu0 0.0
        %1281 = vmatprep.subr.mxu0 0.0
        %1282 = vmatpush1.msra.mxu0 0.0
        %1283 = vmatprep.mubr.f32.mxu0 0.0
        %1284 = vmatmul.mubr.f32.gmra.mrb[0].mxu0 %v1038
        %v1285 = vpop.f32.mrb[0].mxu0
        %v1286 = vadd.f32 %v750, %v1285
        %v1287 = vpop.f32.mrb[0].mxu0
        %v1288 = vadd.f32 %v752, %v1287
        %1289 = vmatprep.mubr.f32.mxu0 0.0
        %1290 = vmatmul.mubr.f32.gmra.mrb[0].mxu0 %v1041
        %v1291 = vpop.f32.mrb[0].mxu0
        %v1292 = vadd.f32 %v756, %v1291
        %v1293 = vpop.f32.mrb[0].mxu0
        %v1294 = vadd.f32 %v758, %v1293
        %1295 = vdwg.mxu0
        %1296 = vmatprep.subr.mxu0 %v1057
        %1297 = vmatpush1.msra.mxu0 %v1055
        %1298 = vmatprep.subr.mxu0 0.0
        %1299 = vmatpush1.msra.mxu0 0.0
        %1300 = vmatprep.subr.mxu0 0.0
        %1301 = vmatpush1.msra.mxu0 0.0
        %1302 = vmatprep.subr.mxu0 0.0
        %1303 = vmatpush1.msra.mxu0 0.0
        %1304 = vmatprep.subr.mxu0 0.0
        %1305 = vmatpush1.msra.mxu0 0.0
        %1306 = vmatprep.subr.mxu0 0.0
        %1307 = vmatpush1.msra.mxu0 0.0
        %1308 = vmatprep.subr.mxu0 0.0
        %1309 = vmatpush1.msra.mxu0 0.0
        %1310 = vmatprep.subr.mxu0 0.0
        %1311 = vmatpush1.msra.mxu0 0.0
        %1312 = vmatprep.subr.mxu0 0.0
        %1313 = vmatpush1.msra.mxu0 0.0
        %1314 = vmatprep.subr.mxu0 0.0
        %1315 = vmatpush1.msra.mxu0 0.0
        %1316 = vmatprep.subr.mxu0 0.0
        %1317 = vmatpush1.msra.mxu0 0.0
        %1318 = vmatprep.subr.mxu0 0.0
        %1319 = vmatpush1.msra.mxu0 0.0
        %1320 = vmatprep.subr.mxu0 0.0
        %1321 = vmatpush1.msra.mxu0 0.0
        %1322 = vmatprep.subr.mxu0 0.0
        %1323 = vmatpush1.msra.mxu0 0.0
        %1324 = vmatprep.subr.mxu0 0.0
        %1325 = vmatpush1.msra.mxu0 0.0
        %1326 = vmatprep.subr.mxu0 0.0
        %1327 = vmatpush1.msra.mxu0 0.0
        %1328 = vmatprep.subr.mxu0 0.0
        %1329 = vmatpush1.msra.mxu0 0.0
        %1330 = vmatprep.subr.mxu0 0.0
        %1331 = vmatpush1.msra.mxu0 0.0
        %1332 = vmatprep.subr.mxu0 0.0
        %1333 = vmatpush1.msra.mxu0 0.0
        %1334 = vmatprep.subr.mxu0 0.0
        %1335 = vmatpush1.msra.mxu0 0.0
        %1336 = vmatprep.subr.mxu0 0.0
        %1337 = vmatpush1.msra.mxu0 0.0
        %1338 = vmatprep.subr.mxu0 0.0
        %1339 = vmatpush1.msra.mxu0 0.0
        %1340 = vmatprep.subr.mxu0 0.0
        %1341 = vmatpush1.msra.mxu0 0.0
        %1342 = vmatprep.subr.mxu0 0.0
        %1343 = vmatpush1.msra.mxu0 0.0
        %1344 = vmatprep.subr.mxu0 0.0
        %1345 = vmatpush1.msra.mxu0 0.0
        %1346 = vmatprep.subr.mxu0 0.0
        %1347 = vmatpush1.msra.mxu0 0.0
        %1348 = vmatprep.subr.mxu0 0.0
        %1349 = vmatpush1.msra.mxu0 0.0
        %1350 = vmatprep.subr.mxu0 0.0
        %1351 = vmatpush1.msra.mxu0 0.0
        %1352 = vmatprep.subr.mxu0 0.0
        %1353 = vmatpush1.msra.mxu0 0.0
        %1354 = vmatprep.subr.mxu0 0.0
        %1355 = vmatpush1.msra.mxu0 0.0
        %1356 = vmatprep.subr.mxu0 0.0
        %1357 = vmatpush1.msra.mxu0 0.0
        %1358 = vmatprep.subr.mxu0 0.0
        %1359 = vmatpush1.msra.mxu0 0.0
        %1360 = vmatprep.mubr.f32.mxu0 0.0
        %1361 = vmatmul.mubr.f32.gmra.mrb[0].mxu0 %v1038
        %v1362 = vpop.f32.mrb[0].mxu0
        %v1363 = vadd.f32 %v827, %v1362
        %v1364 = vpop.f32.mrb[0].mxu0
        %v1365 = vadd.f32 %v829, %v1364
        %1366 = vmatprep.mubr.f32.mxu0 0.0
        %1367 = vmatmul.mubr.f32.gmra.mrb[0].mxu0 %v1041
        %v1368 = vpop.f32.mrb[0].mxu0
        %v1369 = vadd.f32 %v833, %v1368
        %v1370 = vpop.f32.mrb[0].mxu0
        %v1371 = vadd.f32 %v835, %v1370
        %1372 = vdwg.mxu0
        %1373 = vmatprep.subr.mxu0 %v1061
        %1374 = vmatpush1.msra.mxu0 %v1059
        %1375 = vmatprep.subr.mxu0 0.0
        %1376 = vmatpush1.msra.mxu0 0.0
        %1377 = vmatprep.subr.mxu0 0.0
        %1378 = vmatpush1.msra.mxu0 0.0
        %1379 = vmatprep.subr.mxu0 0.0
        %1380 = vmatpush1.msra.mxu0 0.0
        %1381 = vmatprep.subr.mxu0 0.0
        %1382 = vmatpush1.msra.mxu0 0.0
        %1383 = vmatprep.subr.mxu0 0.0
        %1384 = vmatpush1.msra.mxu0 0.0
        %1385 = vmatprep.subr.mxu0 0.0
        %1386 = vmatpush1.msra.mxu0 0.0
        %1387 = vmatprep.subr.mxu0 0.0
        %1388 = vmatpush1.msra.mxu0 0.0
        %1389 = vmatprep.subr.mxu0 0.0
        %1390 = vmatpush1.msra.mxu0 0.0
        %1391 = vmatprep.subr.mxu0 0.0
        %1392 = vmatpush1.msra.mxu0 0.0
        %1393 = vmatprep.subr.mxu0 0.0
        %1394 = vmatpush1.msra.mxu0 0.0
        %1395 = vmatprep.subr.mxu0 0.0
        %1396 = vmatpush1.msra.mxu0 0.0
        %1397 = vmatprep.subr.mxu0 0.0
        %1398 = vmatpush1.msra.mxu0 0.0
        %1399 = vmatprep.subr.mxu0 0.0
        %1400 = vmatpush1.msra.mxu0 0.0
        %1401 = vmatprep.subr.mxu0 0.0
        %1402 = vmatpush1.msra.mxu0 0.0
        %1403 = vmatprep.subr.mxu0 0.0
        %1404 = vmatpush1.msra.mxu0 0.0
        %1405 = vmatprep.subr.mxu0 0.0
        %1406 = vmatpush1.msra.mxu0 0.0
        %1407 = vmatprep.subr.mxu0 0.0
        %1408 = vmatpush1.msra.mxu0 0.0
        %1409 = vmatprep.subr.mxu0 0.0
        %1410 = vmatpush1.msra.mxu0 0.0
        %1411 = vmatprep.subr.mxu0 0.0
        %1412 = vmatpush1.msra.mxu0 0.0
        %1413 = vmatprep.subr.mxu0 0.0
        %1414 = vmatpush1.msra.mxu0 0.0
        %1415 = vmatprep.subr.mxu0 0.0
        %1416 = vmatpush1.msra.mxu0 0.0
        %1417 = vmatprep.subr.mxu0 0.0
        %1418 = vmatpush1.msra.mxu0 0.0
        %1419 = vmatprep.subr.mxu0 0.0
        %1420 = vmatpush1.msra.mxu0 0.0
        %1421 = vmatprep.subr.mxu0 0.0
        %1422 = vmatpush1.msra.mxu0 0.0
        %1423 = vmatprep.subr.mxu0 0.0
        %1424 = vmatpush1.msra.mxu0 0.0
        %1425 = vmatprep.subr.mxu0 0.0
        %1426 = vmatpush1.msra.mxu0 0.0
        %1427 = vmatprep.subr.mxu0 0.0
        %1428 = vmatpush1.msra.mxu0 0.0
        %1429 = vmatprep.subr.mxu0 0.0
        %1430 = vmatpush1.msra.mxu0 0.0
        %1431 = vmatprep.subr.mxu0 0.0
        %1432 = vmatpush1.msra.mxu0 0.0
        %1433 = vmatprep.subr.mxu0 0.0
        %1434 = vmatpush1.msra.mxu0 0.0
        %1435 = vmatprep.subr.mxu0 0.0
        %1436 = vmatpush1.msra.mxu0 0.0
        %1437 = vmatprep.mubr.f32.mxu0 0.0
        %1438 = vmatmul.mubr.f32.gmra.mrb[0].mxu0 %v1038
        %v1439 = vpop.f32.mrb[0].mxu0
        %v1440 = vadd.f32 %v904, %v1439
        %v1441 = vpop.f32.mrb[0].mxu0
        %v1442 = vadd.f32 %v906, %v1441
        %1443 = vmatprep.mubr.f32.mxu0 0.0
        %1444 = vmatmul.mubr.f32.gmra.mrb[0].mxu0 %v1041
        %v1445 = vpop.f32.mrb[0].mxu0
        %v1446 = vadd.f32 %v910, %v1445
        %v1447 = vpop.f32.mrb[0].mxu0
        %v1448 = vadd.f32 %v912, %v1447
        %1449 = vdwg.mxu0
        %1450 = vmatprep.subr.mxu0 0.0
        %1451 = vmatpush1.msra.mxu0 %v1063
        %1452 = vmatprep.subr.mxu0 0.0
        %1453 = vmatpush1.msra.mxu0 0.0
        %1454 = vmatprep.subr.mxu0 0.0
        %1455 = vmatpush1.msra.mxu0 0.0
        %1456 = vmatprep.subr.mxu0 0.0
        %1457 = vmatpush1.msra.mxu0 0.0
        %1458 = vmatprep.subr.mxu0 0.0
        %1459 = vmatpush1.msra.mxu0 0.0
        %1460 = vmatprep.subr.mxu0 0.0
        %1461 = vmatpush1.msra.mxu0 0.0
        %1462 = vmatprep.subr.mxu0 0.0
        %1463 = vmatpush1.msra.mxu0 0.0
        %1464 = vmatprep.subr.mxu0 0.0
        %1465 = vmatpush1.msra.mxu0 0.0
        %1466 = vmatprep.subr.mxu0 0.0
        %1467 = vmatpush1.msra.mxu0 0.0
        %1468 = vmatprep.subr.mxu0 0.0
        %1469 = vmatpush1.msra.mxu0 0.0
        %1470 = vmatprep.subr.mxu0 0.0
        %1471 = vmatpush1.msra.mxu0 0.0
        %1472 = vmatprep.subr.mxu0 0.0
        %1473 = vmatpush1.msra.mxu0 0.0
        %1474 = vmatprep.subr.mxu0 0.0
        %1475 = vmatpush1.msra.mxu0 0.0
        %1476 = vmatprep.subr.mxu0 0.0
        %1477 = vmatpush1.msra.mxu0 0.0
        %1478 = vmatprep.subr.mxu0 0.0
        %1479 = vmatpush1.msra.mxu0 0.0
        %1480 = vmatprep.subr.mxu0 0.0
        %1481 = vmatpush1.msra.mxu0 0.0
        %1482 = vmatprep.subr.mxu0 0.0
        %1483 = vmatpush1.msra.mxu0 0.0
        %1484 = vmatprep.subr.mxu0 0.0
        %1485 = vmatpush1.msra.mxu0 0.0
        %1486 = vmatprep.subr.mxu0 0.0
        %1487 = vmatpush1.msra.mxu0 0.0
        %1488 = vmatprep.subr.mxu0 0.0
        %1489 = vmatpush1.msra.mxu0 0.0
        %1490 = vmatprep.subr.mxu0 0.0
        %1491 = vmatpush1.msra.mxu0 0.0
        %1492 = vmatprep.subr.mxu0 0.0
        %1493 = vmatpush1.msra.mxu0 0.0
        %1494 = vmatprep.subr.mxu0 0.0
        %1495 = vmatpush1.msra.mxu0 0.0
        %1496 = vmatprep.subr.mxu0 0.0
        %1497 = vmatpush1.msra.mxu0 0.0
        %1498 = vmatprep.subr.mxu0 0.0
        %1499 = vmatpush1.msra.mxu0 0.0
        %1500 = vmatprep.subr.mxu0 0.0
        %1501 = vmatpush1.msra.mxu0 0.0
        %1502 = vmatprep.subr.mxu0 0.0
        %1503 = vmatpush1.msra.mxu0 0.0
        %1504 = vmatprep.subr.mxu0 0.0
        %1505 = vmatpush1.msra.mxu0 0.0
        %1506 = vmatprep.subr.mxu0 0.0
        %1507 = vmatpush1.msra.mxu0 0.0
        %1508 = vmatprep.subr.mxu0 0.0
        %1509 = vmatpush1.msra.mxu0 0.0
        %1510 = vmatprep.subr.mxu0 0.0
        %1511 = vmatpush1.msra.mxu0 0.0
        %1512 = vmatprep.subr.mxu0 0.0
        %1513 = vmatpush1.msra.mxu0 0.0
        %1514 = vmatprep.mubr.f32.mxu0 0.0
        %1515 = vmatmul.mubr.f32.gmra.mrb[0].mxu0 %v1038
        %v1516 = vpop.f32.mrb[0].mxu0
        %v1517 = vadd.f32 %v981, %v1516
        %v1518 = vpop.f32.mrb[0].mxu0
        %1519 = vmatprep.mubr.f32.mxu0 0.0
        %1520 = vmatmul.mubr.f32.gmra.mrb[0].mxu0 %v1041
        %v1521 = vpop.f32.mrb[0].mxu0
        %v1522 = vadd.f32 %v986, %v1521
        %v1523 = vpop.f32.mrb[0].mxu0
        %1524 = vdwg.mxu0
        %v1525 = vld [vmem:[%s302] sm:$0x77]
        %v1526 = vld [vmem:[%s302 + $0x8] sm:$0x77]
        %v1527 = vld [vmem:[%s302 + $0x10] sm:$0x77]
        %v1528 = vld [vmem:[%s302 + $0x18] sm:$0x77]
        %v1529 = vld [vmem:[%s302 + $0x20] sm:$0x77]
        %v1530 = vld [vmem:[%s302 + $0x28] sm:$0x77]
        %v1533 = vlaneseq
        %v1534 = vshrl.u32 %v1533, 7
        %v1535 = vsub.s32 0, %v1534
        %v1536 = vrot.slane %v317, %v1535
        %v1537 = vlaneseq
        %v1538 = vshrl.u32 %v1537, 7
        %v1539 = vsub.s32 1, %v1538
        %v1540 = vrot.slane %v317, %v1539
        %v1541 = vlaneseq
        %v1542 = vshrl.u32 %v1541, 7
        %v1543 = vsub.s32 2, %v1542
        %v1544 = vrot.slane %v317, %v1543
        %v1545 = vlaneseq
        %v1546 = vshrl.u32 %v1545, 7
        %v1547 = vsub.s32 3, %v1546
        %v1548 = vrot.slane %v317, %v1547
        %v1549 = vlaneseq
        %v1550 = vshrl.u32 %v1549, 7
        %v1551 = vsub.s32 4, %v1550
        %v1552 = vrot.slane %v317, %v1551
        %v1553 = vlaneseq
        %v1554 = vshrl.u32 %v1553, 7
        %v1555 = vsub.s32 5, %v1554
        %v1556 = vrot.slane %v317, %v1555
        %v1557 = vlaneseq
        %v1558 = vshrl.u32 %v1557, 7
        %v1559 = vsub.s32 6, %v1558
        %v1560 = vrot.slane %v317, %v1559
        %v1561 = vlaneseq
        %v1562 = vshrl.u32 %v1561, 7
        %v1563 = vsub.s32 7, %v1562
        %v1564 = vrot.slane %v317, %v1563
        %v1565 = vlaneseq
        %v1566 = vshrl.u32 %v1565, 7
        %v1567 = vsub.s32 0, %v1566
        %v1568 = vrot.slane %v319, %v1567
        %v1569 = vlaneseq
        %v1570 = vshrl.u32 %v1569, 7
        %v1571 = vsub.s32 1, %v1570
        %v1572 = vrot.slane %v319, %v1571
        %v1573 = vlaneseq
        %v1574 = vshrl.u32 %v1573, 7
        %v1575 = vsub.s32 2, %v1574
        %v1576 = vrot.slane %v319, %v1575
        %v1577 = vcombine.low %v1536, %v1540
        %v1578 = vcombine.low %v1544, %v1548
        %v1579 = vcombine.low %v1552, %v1556
        %v1580 = vcombine.low %v1560, %v1564
        %v1581 = vcombine.low %v1568, %v1572
        %1582 = vrot.lane.b32.xlu0 %v1577, 49
        %v1583 = vpop.permute.xlu0 %1582
        %1584 = vrot.lane.b32.xlu0 %v1578, 49
        %v1585 = vpop.permute.xlu0 %1584
        %1586 = vrot.lane.b32.xlu0 %v1579, 49
        %v1587 = vpop.permute.xlu0 %1586
        %1588 = vrot.lane.b32.xlu0 %v1580, 49
        %v1589 = vpop.permute.xlu0 %1588
        %1590 = vrot.lane.b32.xlu0 %v1581, 49
        %v1591 = vpop.permute.xlu0 %1590
        %1592 = vrot.lane.b32.xlu0 %v1576, 49
        %v1593 = vpop.permute.xlu0 %1592
        %v1594 = vrot.slane %v1583, 4
        %v1595 = vrot.slane %v1585, 4
        %v1596 = vrot.slane %v1587, 4
        %v1597 = vrot.slane %v1589, 4
        %v1598 = vrot.slane %v1591, 4
        %v1599 = vrot.slane %v1593, 4
        %vm1600 = vcmask 400384
        %v1601 = vsel %vm1600, %v1594, %v1583
        %v1602 = vsel %vm423, %v1594, %v1595
        %v1603 = vsel %vm1600, %v1602, %v1585
        %v1604 = vsel %vm423, %v1595, %v1596
        %v1605 = vsel %vm1600, %v1604, %v1587
        %v1606 = vsel %vm423, %v1596, %v1597
        %v1607 = vsel %vm1600, %v1606, %v1589
        %v1608 = vsel %vm423, %v1597, %v1598
        %v1609 = vsel %vm1600, %v1608, %v1591
        %v1610 = vsel %vm423, %v1598, %v1599
        %v1611 = vsel %vm1600, %v1610, %v1593
        %v1618 = vmul.f32 %v1525, %v1601
        %v1619 = vmul.f32 %v1526, %v1603
        %v1620 = vmul.f32 %v1527, %v1605
        %v1621 = vmul.f32 %v1528, %v1607
        %v1622 = vmul.f32 %v1529, %v1609
        %v1623 = vmul.f32 %v1530, %v1611
        %s1624 = scalar_lea.vmem %s1, 32
        %v1625 = vld [vmem:[%s1624] sm:$0xff]
        %v1626 = vld [vmem:[%s1624 + $0x8] sm:$0xff]
        %v1633 = vcombine.high %v1618, %v1618
        %v1634 = vcombine.high %v1619, %v1619
        %v1635 = vcombine.high %v1620, %v1620
        %v1636 = vcombine.high %v1621, %v1621
        %v1637 = vcombine.high %v1622, %v1622
        %v1638 = vcombine.high %v1623, %v1623
        %1639 = vrot.lane.b32.xlu0 %v1618, 79
        %v1640 = vpop.permute.xlu0 %1639
        %1641 = vrot.lane.b32.xlu0 %v1633, 79
        %v1642 = vpop.permute.xlu0 %1641
        %1643 = vrot.lane.b32.xlu0 %v1619, 79
        %v1644 = vpop.permute.xlu0 %1643
        %1645 = vrot.lane.b32.xlu0 %v1634, 79
        %v1646 = vpop.permute.xlu0 %1645
        %1647 = vrot.lane.b32.xlu0 %v1620, 79
        %v1648 = vpop.permute.xlu0 %1647
        %1649 = vrot.lane.b32.xlu0 %v1635, 79
        %v1650 = vpop.permute.xlu0 %1649
        %1651 = vrot.lane.b32.xlu0 %v1621, 79
        %v1652 = vpop.permute.xlu0 %1651
        %1653 = vrot.lane.b32.xlu0 %v1636, 79
        %v1654 = vpop.permute.xlu0 %1653
        %1655 = vrot.lane.b32.xlu0 %v1622, 79
        %v1656 = vpop.permute.xlu0 %1655
        %1657 = vrot.lane.b32.xlu0 %v1637, 79
        %v1658 = vpop.permute.xlu0 %1657
        %1659 = vrot.lane.b32.xlu0 %v1623, 79
        %v1660 = vpop.permute.xlu0 %1659
        %1661 = vrot.lane.b32.xlu0 %v1638, 79
        %v1662 = vpop.permute.xlu0 %1661
        %vm1663 = vcmask 646144
        %v1664 = vsel %vm1663, %v1640, %v1642
        %v1665 = vsel %vm1663, %v1642, %v1644
        %v1666 = vsel %vm1663, %v1644, %v1646
        %v1667 = vsel %vm1663, %v1646, %v1648
        %v1668 = vsel %vm1663, %v1648, %v1650
        %v1669 = vsel %vm1663, %v1650, %v1652
        %v1670 = vsel %vm1663, %v1652, %v1654
        %v1671 = vsel %vm1663, %v1654, %v1656
        %v1672 = vsel %vm1663, %v1656, %v1658
        %v1673 = vsel %vm1663, %v1658, %v1660
        %v1674 = vsel %vm1663, %v1660, %v1662
        %v1676 = vsel %vm499, %v1625, 0
        %v1679 = vsel %vm499, %v1626, 0
        %v1681 = vsel %vm506, %v1664, 0
        %v1683 = vsel %vm506, %v1665, 0
        %v1685 = vsel %vm506, %v1666, 0
        %v1687 = vsel %vm506, %v1667, 0
        %v1689 = vsel %vm506, %v1668, 0
        %v1691 = vsel %vm506, %v1669, 0
        %v1693 = vsel %vm506, %v1670, 0
        %v1695 = vsel %vm506, %v1671, 0
        %v1697 = vsel %vm506, %v1672, 0
        %v1699 = vsel %vm506, %v1673, 0
        %v1701 = vsel %vm506, %v1674, 0
        %1703 = vmatprep.subr.mxu0 %v1683
        %1704 = vmatpush1.msra.mxu0 %v1681
        %1705 = vmatprep.subr.mxu0 0.0
        %1706 = vmatpush1.msra.mxu0 0.0
        %1707 = vmatprep.subr.mxu0 0.0
        %1708 = vmatpush1.msra.mxu0 0.0
        %1709 = vmatprep.subr.mxu0 0.0
        %1710 = vmatpush1.msra.mxu0 0.0
        %1711 = vmatprep.subr.mxu0 0.0
        %1712 = vmatpush1.msra.mxu0 0.0
        %1713 = vmatprep.subr.mxu0 0.0
        %1714 = vmatpush1.msra.mxu0 0.0
        %1715 = vmatprep.subr.mxu0 0.0
        %1716 = vmatpush1.msra.mxu0 0.0
        %1717 = vmatprep.subr.mxu0 0.0
        %1718 = vmatpush1.msra.mxu0 0.0
        %1719 = vmatprep.subr.mxu0 0.0
        %1720 = vmatpush1.msra.mxu0 0.0
        %1721 = vmatprep.subr.mxu0 0.0
        %1722 = vmatpush1.msra.mxu0 0.0
        %1723 = vmatprep.subr.mxu0 0.0
        %1724 = vmatpush1.msra.mxu0 0.0
        %1725 = vmatprep.subr.mxu0 0.0
        %1726 = vmatpush1.msra.mxu0 0.0
        %1727 = vmatprep.subr.mxu0 0.0
        %1728 = vmatpush1.msra.mxu0 0.0
        %1729 = vmatprep.subr.mxu0 0.0
        %1730 = vmatpush1.msra.mxu0 0.0
        %1731 = vmatprep.subr.mxu0 0.0
        %1732 = vmatpush1.msra.mxu0 0.0
        %1733 = vmatprep.subr.mxu0 0.0
        %1734 = vmatpush1.msra.mxu0 0.0
        %1735 = vmatprep.subr.mxu0 0.0
        %1736 = vmatpush1.msra.mxu0 0.0
        %1737 = vmatprep.subr.mxu0 0.0
        %1738 = vmatpush1.msra.mxu0 0.0
        %1739 = vmatprep.subr.mxu0 0.0
        %1740 = vmatpush1.msra.mxu0 0.0
        %1741 = vmatprep.subr.mxu0 0.0
        %1742 = vmatpush1.msra.mxu0 0.0
        %1743 = vmatprep.subr.mxu0 0.0
        %1744 = vmatpush1.msra.mxu0 0.0
        %1745 = vmatprep.subr.mxu0 0.0
        %1746 = vmatpush1.msra.mxu0 0.0
        %1747 = vmatprep.subr.mxu0 0.0
        %1748 = vmatpush1.msra.mxu0 0.0
        %1749 = vmatprep.subr.mxu0 0.0
        %1750 = vmatpush1.msra.mxu0 0.0
        %1751 = vmatprep.subr.mxu0 0.0
        %1752 = vmatpush1.msra.mxu0 0.0
        %1753 = vmatprep.subr.mxu0 0.0
        %1754 = vmatpush1.msra.mxu0 0.0
        %1755 = vmatprep.subr.mxu0 0.0
        %1756 = vmatpush1.msra.mxu0 0.0
        %1757 = vmatprep.subr.mxu0 0.0
        %1758 = vmatpush1.msra.mxu0 0.0
        %1759 = vmatprep.subr.mxu0 0.0
        %1760 = vmatpush1.msra.mxu0 0.0
        %1761 = vmatprep.subr.mxu0 0.0
        %1762 = vmatpush1.msra.mxu0 0.0
        %1763 = vmatprep.subr.mxu0 0.0
        %1764 = vmatpush1.msra.mxu0 0.0
        %1765 = vmatprep.subr.mxu0 0.0
        %1766 = vmatpush1.msra.mxu0 0.0
        %1767 = vmatprep.mubr.f32.mxu0 0.0
        %1768 = vmatmul.mubr.f32.gmra.mrb[0].mxu0 %v1676
        %v1769 = vpop.f32.mrb[0].mxu0
        %v1770 = vadd.f32 0.0, %v1769
        %v1771 = vpop.f32.mrb[0].mxu0
        %v1772 = vadd.f32 0.0, %v1771
        %1773 = vmatprep.mubr.f32.mxu0 0.0
        %1774 = vmatmul.mubr.f32.gmra.mrb[0].mxu0 %v1679
        %v1775 = vpop.f32.mrb[0].mxu0
        %v1776 = vadd.f32 0.0, %v1775
        %v1777 = vpop.f32.mrb[0].mxu0
        %v1778 = vadd.f32 0.0, %v1777
        %1779 = vdwg.mxu0
        %1780 = vmatprep.subr.mxu0 %v1687
        %1781 = vmatpush1.msra.mxu0 %v1685
        %1782 = vmatprep.subr.mxu0 0.0
        %1783 = vmatpush1.msra.mxu0 0.0
        %1784 = vmatprep.subr.mxu0 0.0
        %1785 = vmatpush1.msra.mxu0 0.0
        %1786 = vmatprep.subr.mxu0 0.0
        %1787 = vmatpush1.msra.mxu0 0.0
        %1788 = vmatprep.subr.mxu0 0.0
        %1789 = vmatpush1.msra.mxu0 0.0
        %1790 = vmatprep.subr.mxu0 0.0
        %1791 = vmatpush1.msra.mxu0 0.0
        %1792 = vmatprep.subr.mxu0 0.0
        %1793 = vmatpush1.msra.mxu0 0.0
        %1794 = vmatprep.subr.mxu0 0.0
        %1795 = vmatpush1.msra.mxu0 0.0
        %1796 = vmatprep.subr.mxu0 0.0
        %1797 = vmatpush1.msra.mxu0 0.0
        %1798 = vmatprep.subr.mxu0 0.0
        %1799 = vmatpush1.msra.mxu0 0.0
        %1800 = vmatprep.subr.mxu0 0.0
        %1801 = vmatpush1.msra.mxu0 0.0
        %1802 = vmatprep.subr.mxu0 0.0
        %1803 = vmatpush1.msra.mxu0 0.0
        %1804 = vmatprep.subr.mxu0 0.0
        %1805 = vmatpush1.msra.mxu0 0.0
        %1806 = vmatprep.subr.mxu0 0.0
        %1807 = vmatpush1.msra.mxu0 0.0
        %1808 = vmatprep.subr.mxu0 0.0
        %1809 = vmatpush1.msra.mxu0 0.0
        %1810 = vmatprep.subr.mxu0 0.0
        %1811 = vmatpush1.msra.mxu0 0.0
        %1812 = vmatprep.subr.mxu0 0.0
        %1813 = vmatpush1.msra.mxu0 0.0
        %1814 = vmatprep.subr.mxu0 0.0
        %1815 = vmatpush1.msra.mxu0 0.0
        %1816 = vmatprep.subr.mxu0 0.0
        %1817 = vmatpush1.msra.mxu0 0.0
        %1818 = vmatprep.subr.mxu0 0.0
        %1819 = vmatpush1.msra.mxu0 0.0
        %1820 = vmatprep.subr.mxu0 0.0
        %1821 = vmatpush1.msra.mxu0 0.0
        %1822 = vmatprep.subr.mxu0 0.0
        %1823 = vmatpush1.msra.mxu0 0.0
        %1824 = vmatprep.subr.mxu0 0.0
        %1825 = vmatpush1.msra.mxu0 0.0
        %1826 = vmatprep.subr.mxu0 0.0
        %1827 = vmatpush1.msra.mxu0 0.0
        %1828 = vmatprep.subr.mxu0 0.0
        %1829 = vmatpush1.msra.mxu0 0.0
        %1830 = vmatprep.subr.mxu0 0.0
        %1831 = vmatpush1.msra.mxu0 0.0
        %1832 = vmatprep.subr.mxu0 0.0
        %1833 = vmatpush1.msra.mxu0 0.0
        %1834 = vmatprep.subr.mxu0 0.0
        %1835 = vmatpush1.msra.mxu0 0.0
        %1836 = vmatprep.subr.mxu0 0.0
        %1837 = vmatpush1.msra.mxu0 0.0
        %1838 = vmatprep.subr.mxu0 0.0
        %1839 = vmatpush1.msra.mxu0 0.0
        %1840 = vmatprep.subr.mxu0 0.0
        %1841 = vmatpush1.msra.mxu0 0.0
        %1842 = vmatprep.subr.mxu0 0.0
        %1843 = vmatpush1.msra.mxu0 0.0
        %1844 = vmatprep.mubr.f32.mxu0 0.0
        %1845 = vmatmul.mubr.f32.gmra.mrb[0].mxu0 %v1676
        %v1846 = vpop.f32.mrb[0].mxu0
        %v1847 = vadd.f32 0.0, %v1846
        %v1848 = vpop.f32.mrb[0].mxu0
        %v1849 = vadd.f32 0.0, %v1848
        %1850 = vmatprep.mubr.f32.mxu0 0.0
        %1851 = vmatmul.mubr.f32.gmra.mrb[0].mxu0 %v1679
        %v1852 = vpop.f32.mrb[0].mxu0
        %v1853 = vadd.f32 0.0, %v1852
        %v1854 = vpop.f32.mrb[0].mxu0
        %v1855 = vadd.f32 0.0, %v1854
        %1856 = vdwg.mxu0
        %1857 = vmatprep.subr.mxu0 %v1691
        %1858 = vmatpush1.msra.mxu0 %v1689
        %1859 = vmatprep.subr.mxu0 0.0
        %1860 = vmatpush1.msra.mxu0 0.0
        %1861 = vmatprep.subr.mxu0 0.0
        %1862 = vmatpush1.msra.mxu0 0.0
        %1863 = vmatprep.subr.mxu0 0.0
        %1864 = vmatpush1.msra.mxu0 0.0
        %1865 = vmatprep.subr.mxu0 0.0
        %1866 = vmatpush1.msra.mxu0 0.0
        %1867 = vmatprep.subr.mxu0 0.0
        %1868 = vmatpush1.msra.mxu0 0.0
        %1869 = vmatprep.subr.mxu0 0.0
        %1870 = vmatpush1.msra.mxu0 0.0
        %1871 = vmatprep.subr.mxu0 0.0
        %1872 = vmatpush1.msra.mxu0 0.0
        %1873 = vmatprep.subr.mxu0 0.0
        %1874 = vmatpush1.msra.mxu0 0.0
        %1875 = vmatprep.subr.mxu0 0.0
        %1876 = vmatpush1.msra.mxu0 0.0
        %1877 = vmatprep.subr.mxu0 0.0
        %1878 = vmatpush1.msra.mxu0 0.0
        %1879 = vmatprep.subr.mxu0 0.0
        %1880 = vmatpush1.msra.mxu0 0.0
        %1881 = vmatprep.subr.mxu0 0.0
        %1882 = vmatpush1.msra.mxu0 0.0
        %1883 = vmatprep.subr.mxu0 0.0
        %1884 = vmatpush1.msra.mxu0 0.0
        %1885 = vmatprep.subr.mxu0 0.0
        %1886 = vmatpush1.msra.mxu0 0.0
        %1887 = vmatprep.subr.mxu0 0.0
        %1888 = vmatpush1.msra.mxu0 0.0
        %1889 = vmatprep.subr.mxu0 0.0
        %1890 = vmatpush1.msra.mxu0 0.0
        %1891 = vmatprep.subr.mxu0 0.0
        %1892 = vmatpush1.msra.mxu0 0.0
        %1893 = vmatprep.subr.mxu0 0.0
        %1894 = vmatpush1.msra.mxu0 0.0
        %1895 = vmatprep.subr.mxu0 0.0
        %1896 = vmatpush1.msra.mxu0 0.0
        %1897 = vmatprep.subr.mxu0 0.0
        %1898 = vmatpush1.msra.mxu0 0.0
        %1899 = vmatprep.subr.mxu0 0.0
        %1900 = vmatpush1.msra.mxu0 0.0
        %1901 = vmatprep.subr.mxu0 0.0
        %1902 = vmatpush1.msra.mxu0 0.0
        %1903 = vmatprep.subr.mxu0 0.0
        %1904 = vmatpush1.msra.mxu0 0.0
        %1905 = vmatprep.subr.mxu0 0.0
        %1906 = vmatpush1.msra.mxu0 0.0
        %1907 = vmatprep.subr.mxu0 0.0
        %1908 = vmatpush1.msra.mxu0 0.0
        %1909 = vmatprep.subr.mxu0 0.0
        %1910 = vmatpush1.msra.mxu0 0.0
        %1911 = vmatprep.subr.mxu0 0.0
        %1912 = vmatpush1.msra.mxu0 0.0
        %1913 = vmatprep.subr.mxu0 0.0
        %1914 = vmatpush1.msra.mxu0 0.0
        %1915 = vmatprep.subr.mxu0 0.0
        %1916 = vmatpush1.msra.mxu0 0.0
        %1917 = vmatprep.subr.mxu0 0.0
        %1918 = vmatpush1.msra.mxu0 0.0
        %1919 = vmatprep.subr.mxu0 0.0
        %1920 = vmatpush1.msra.mxu0 0.0
        %1921 = vmatprep.mubr.f32.mxu0 0.0
        %1922 = vmatmul.mubr.f32.gmra.mrb[0].mxu0 %v1676
        %v1923 = vpop.f32.mrb[0].mxu0
        %v1924 = vadd.f32 0.0, %v1923
        %v1925 = vpop.f32.mrb[0].mxu0
        %v1926 = vadd.f32 0.0, %v1925
        %1927 = vmatprep.mubr.f32.mxu0 0.0
        %1928 = vmatmul.mubr.f32.gmra.mrb[0].mxu0 %v1679
        %v1929 = vpop.f32.mrb[0].mxu0
        %v1930 = vadd.f32 0.0, %v1929
        %v1931 = vpop.f32.mrb[0].mxu0
        %v1932 = vadd.f32 0.0, %v1931
        %1933 = vdwg.mxu0
        %1934 = vmatprep.subr.mxu0 %v1695
        %1935 = vmatpush1.msra.mxu0 %v1693
        %1936 = vmatprep.subr.mxu0 0.0
        %1937 = vmatpush1.msra.mxu0 0.0
        %1938 = vmatprep.subr.mxu0 0.0
        %1939 = vmatpush1.msra.mxu0 0.0
        %1940 = vmatprep.subr.mxu0 0.0
        %1941 = vmatpush1.msra.mxu0 0.0
        %1942 = vmatprep.subr.mxu0 0.0
        %1943 = vmatpush1.msra.mxu0 0.0
        %1944 = vmatprep.subr.mxu0 0.0
        %1945 = vmatpush1.msra.mxu0 0.0
        %1946 = vmatprep.subr.mxu0 0.0
        %1947 = vmatpush1.msra.mxu0 0.0
        %1948 = vmatprep.subr.mxu0 0.0
        %1949 = vmatpush1.msra.mxu0 0.0
        %1950 = vmatprep.subr.mxu0 0.0
        %1951 = vmatpush1.msra.mxu0 0.0
        %1952 = vmatprep.subr.mxu0 0.0
        %1953 = vmatpush1.msra.mxu0 0.0
        %1954 = vmatprep.subr.mxu0 0.0
        %1955 = vmatpush1.msra.mxu0 0.0
        %1956 = vmatprep.subr.mxu0 0.0
        %1957 = vmatpush1.msra.mxu0 0.0
        %1958 = vmatprep.subr.mxu0 0.0
        %1959 = vmatpush1.msra.mxu0 0.0
        %1960 = vmatprep.subr.mxu0 0.0
        %1961 = vmatpush1.msra.mxu0 0.0
        %1962 = vmatprep.subr.mxu0 0.0
        %1963 = vmatpush1.msra.mxu0 0.0
        %1964 = vmatprep.subr.mxu0 0.0
        %1965 = vmatpush1.msra.mxu0 0.0
        %1966 = vmatprep.subr.mxu0 0.0
        %1967 = vmatpush1.msra.mxu0 0.0
        %1968 = vmatprep.subr.mxu0 0.0
        %1969 = vmatpush1.msra.mxu0 0.0
        %1970 = vmatprep.subr.mxu0 0.0
        %1971 = vmatpush1.msra.mxu0 0.0
        %1972 = vmatprep.subr.mxu0 0.0
        %1973 = vmatpush1.msra.mxu0 0.0
        %1974 = vmatprep.subr.mxu0 0.0
        %1975 = vmatpush1.msra.mxu0 0.0
        %1976 = vmatprep.subr.mxu0 0.0
        %1977 = vmatpush1.msra.mxu0 0.0
        %1978 = vmatprep.subr.mxu0 0.0
        %1979 = vmatpush1.msra.mxu0 0.0
        %1980 = vmatprep.subr.mxu0 0.0
        %1981 = vmatpush1.msra.mxu0 0.0
        %1982 = vmatprep.subr.mxu0 0.0
        %1983 = vmatpush1.msra.mxu0 0.0
        %1984 = vmatprep.subr.mxu0 0.0
        %1985 = vmatpush1.msra.mxu0 0.0
        %1986 = vmatprep.subr.mxu0 0.0
        %1987 = vmatpush1.msra.mxu0 0.0
        %1988 = vmatprep.subr.mxu0 0.0
        %1989 = vmatpush1.msra.mxu0 0.0
        %1990 = vmatprep.subr.mxu0 0.0
        %1991 = vmatpush1.msra.mxu0 0.0
        %1992 = vmatprep.subr.mxu0 0.0
        %1993 = vmatpush1.msra.mxu0 0.0
        %1994 = vmatprep.subr.mxu0 0.0
        %1995 = vmatpush1.msra.mxu0 0.0
        %1996 = vmatprep.subr.mxu0 0.0
        %1997 = vmatpush1.msra.mxu0 0.0
        %1998 = vmatprep.mubr.f32.mxu0 0.0
        %1999 = vmatmul.mubr.f32.gmra.mrb[0].mxu0 %v1676
        %v2000 = vpop.f32.mrb[0].mxu0
        %v2001 = vadd.f32 0.0, %v2000
        %v2002 = vpop.f32.mrb[0].mxu0
        %v2003 = vadd.f32 0.0, %v2002
        %2004 = vmatprep.mubr.f32.mxu0 0.0
        %2005 = vmatmul.mubr.f32.gmra.mrb[0].mxu0 %v1679
        %v2006 = vpop.f32.mrb[0].mxu0
        %v2007 = vadd.f32 0.0, %v2006
        %v2008 = vpop.f32.mrb[0].mxu0
        %v2009 = vadd.f32 0.0, %v2008
        %2010 = vdwg.mxu0
        %2011 = vmatprep.subr.mxu0 %v1699
        %2012 = vmatpush1.msra.mxu0 %v1697
        %2013 = vmatprep.subr.mxu0 0.0
        %2014 = vmatpush1.msra.mxu0 0.0
        %2015 = vmatprep.subr.mxu0 0.0
        %2016 = vmatpush1.msra.mxu0 0.0
        %2017 = vmatprep.subr.mxu0 0.0
        %2018 = vmatpush1.msra.mxu0 0.0
        %2019 = vmatprep.subr.mxu0 0.0
        %2020 = vmatpush1.msra.mxu0 0.0
        %2021 = vmatprep.subr.mxu0 0.0
        %2022 = vmatpush1.msra.mxu0 0.0
        %2023 = vmatprep.subr.mxu0 0.0
        %2024 = vmatpush1.msra.mxu0 0.0
        %2025 = vmatprep.subr.mxu0 0.0
        %2026 = vmatpush1.msra.mxu0 0.0
        %2027 = vmatprep.subr.mxu0 0.0
        %2028 = vmatpush1.msra.mxu0 0.0
        %2029 = vmatprep.subr.mxu0 0.0
        %2030 = vmatpush1.msra.mxu0 0.0
        %2031 = vmatprep.subr.mxu0 0.0
        %2032 = vmatpush1.msra.mxu0 0.0
        %2033 = vmatprep.subr.mxu0 0.0
        %2034 = vmatpush1.msra.mxu0 0.0
        %2035 = vmatprep.subr.mxu0 0.0
        %2036 = vmatpush1.msra.mxu0 0.0
        %2037 = vmatprep.subr.mxu0 0.0
        %2038 = vmatpush1.msra.mxu0 0.0
        %2039 = vmatprep.subr.mxu0 0.0
        %2040 = vmatpush1.msra.mxu0 0.0
        %2041 = vmatprep.subr.mxu0 0.0
        %2042 = vmatpush1.msra.mxu0 0.0
        %2043 = vmatprep.subr.mxu0 0.0
        %2044 = vmatpush1.msra.mxu0 0.0
        %2045 = vmatprep.subr.mxu0 0.0
        %2046 = vmatpush1.msra.mxu0 0.0
        %2047 = vmatprep.subr.mxu0 0.0
        %2048 = vmatpush1.msra.mxu0 0.0
        %2049 = vmatprep.subr.mxu0 0.0
        %2050 = vmatpush1.msra.mxu0 0.0
        %2051 = vmatprep.subr.mxu0 0.0
        %2052 = vmatpush1.msra.mxu0 0.0
        %2053 = vmatprep.subr.mxu0 0.0
        %2054 = vmatpush1.msra.mxu0 0.0
        %2055 = vmatprep.subr.mxu0 0.0
        %2056 = vmatpush1.msra.mxu0 0.0
        %2057 = vmatprep.subr.mxu0 0.0
        %2058 = vmatpush1.msra.mxu0 0.0
        %2059 = vmatprep.subr.mxu0 0.0
        %2060 = vmatpush1.msra.mxu0 0.0
        %2061 = vmatprep.subr.mxu0 0.0
        %2062 = vmatpush1.msra.mxu0 0.0
        %2063 = vmatprep.subr.mxu0 0.0
        %2064 = vmatpush1.msra.mxu0 0.0
        %2065 = vmatprep.subr.mxu0 0.0
        %2066 = vmatpush1.msra.mxu0 0.0
        %2067 = vmatprep.subr.mxu0 0.0
        %2068 = vmatpush1.msra.mxu0 0.0
        %2069 = vmatprep.subr.mxu0 0.0
        %2070 = vmatpush1.msra.mxu0 0.0
        %2071 = vmatprep.subr.mxu0 0.0
        %2072 = vmatpush1.msra.mxu0 0.0
        %2073 = vmatprep.subr.mxu0 0.0
        %2074 = vmatpush1.msra.mxu0 0.0
        %2075 = vmatprep.mubr.f32.mxu0 0.0
        %2076 = vmatmul.mubr.f32.gmra.mrb[0].mxu0 %v1676
        %v2077 = vpop.f32.mrb[0].mxu0
        %v2078 = vadd.f32 0.0, %v2077
        %v2079 = vpop.f32.mrb[0].mxu0
        %v2080 = vadd.f32 0.0, %v2079
        %2081 = vmatprep.mubr.f32.mxu0 0.0
        %2082 = vmatmul.mubr.f32.gmra.mrb[0].mxu0 %v1679
        %v2083 = vpop.f32.mrb[0].mxu0
        %v2084 = vadd.f32 0.0, %v2083
        %v2085 = vpop.f32.mrb[0].mxu0
        %v2086 = vadd.f32 0.0, %v2085
        %2087 = vdwg.mxu0
        %2088 = vmatprep.subr.mxu0 0.0
        %2089 = vmatpush1.msra.mxu0 %v1701
        %2090 = vmatprep.subr.mxu0 0.0
        %2091 = vmatpush1.msra.mxu0 0.0
        %2092 = vmatprep.subr.mxu0 0.0
        %2093 = vmatpush1.msra.mxu0 0.0
        %2094 = vmatprep.subr.mxu0 0.0
        %2095 = vmatpush1.msra.mxu0 0.0
        %2096 = vmatprep.subr.mxu0 0.0
        %2097 = vmatpush1.msra.mxu0 0.0
        %2098 = vmatprep.subr.mxu0 0.0
        %2099 = vmatpush1.msra.mxu0 0.0
        %2100 = vmatprep.subr.mxu0 0.0
        %2101 = vmatpush1.msra.mxu0 0.0
        %2102 = vmatprep.subr.mxu0 0.0
        %2103 = vmatpush1.msra.mxu0 0.0
        %2104 = vmatprep.subr.mxu0 0.0
        %2105 = vmatpush1.msra.mxu0 0.0
        %2106 = vmatprep.subr.mxu0 0.0
        %2107 = vmatpush1.msra.mxu0 0.0
        %2108 = vmatprep.subr.mxu0 0.0
        %2109 = vmatpush1.msra.mxu0 0.0
        %2110 = vmatprep.subr.mxu0 0.0
        %2111 = vmatpush1.msra.mxu0 0.0
        %2112 = vmatprep.subr.mxu0 0.0
        %2113 = vmatpush1.msra.mxu0 0.0
        %2114 = vmatprep.subr.mxu0 0.0
        %2115 = vmatpush1.msra.mxu0 0.0
        %2116 = vmatprep.subr.mxu0 0.0
        %2117 = vmatpush1.msra.mxu0 0.0
        %2118 = vmatprep.subr.mxu0 0.0
        %2119 = vmatpush1.msra.mxu0 0.0
        %2120 = vmatprep.subr.mxu0 0.0
        %2121 = vmatpush1.msra.mxu0 0.0
        %2122 = vmatprep.subr.mxu0 0.0
        %2123 = vmatpush1.msra.mxu0 0.0
        %2124 = vmatprep.subr.mxu0 0.0
        %2125 = vmatpush1.msra.mxu0 0.0
        %2126 = vmatprep.subr.mxu0 0.0
        %2127 = vmatpush1.msra.mxu0 0.0
        %2128 = vmatprep.subr.mxu0 0.0
        %2129 = vmatpush1.msra.mxu0 0.0
        %2130 = vmatprep.subr.mxu0 0.0
        %2131 = vmatpush1.msra.mxu0 0.0
        %2132 = vmatprep.subr.mxu0 0.0
        %2133 = vmatpush1.msra.mxu0 0.0
        %2134 = vmatprep.subr.mxu0 0.0
        %2135 = vmatpush1.msra.mxu0 0.0
        %2136 = vmatprep.subr.mxu0 0.0
        %2137 = vmatpush1.msra.mxu0 0.0
        %2138 = vmatprep.subr.mxu0 0.0
        %2139 = vmatpush1.msra.mxu0 0.0
        %2140 = vmatprep.subr.mxu0 0.0
        %2141 = vmatpush1.msra.mxu0 0.0
        %2142 = vmatprep.subr.mxu0 0.0
        %2143 = vmatpush1.msra.mxu0 0.0
        %2144 = vmatprep.subr.mxu0 0.0
        %2145 = vmatpush1.msra.mxu0 0.0
        %2146 = vmatprep.subr.mxu0 0.0
        %2147 = vmatpush1.msra.mxu0 0.0
        %2148 = vmatprep.subr.mxu0 0.0
        %2149 = vmatpush1.msra.mxu0 0.0
        %2150 = vmatprep.subr.mxu0 0.0
        %2151 = vmatpush1.msra.mxu0 0.0
        %2152 = vmatprep.mubr.f32.mxu0 0.0
        %2153 = vmatmul.mubr.f32.gmra.mrb[0].mxu0 %v1676
        %v2154 = vpop.f32.mrb[0].mxu0
        %v2155 = vadd.f32 0.0, %v2154
        %v2156 = vpop.f32.mrb[0].mxu0
        %2157 = vmatprep.mubr.f32.mxu0 0.0
        %2158 = vmatmul.mubr.f32.gmra.mrb[0].mxu0 %v1679
        %v2159 = vpop.f32.mrb[0].mxu0
        %v2160 = vadd.f32 0.0, %v2159
        %v2161 = vpop.f32.mrb[0].mxu0
        %2162 = vdwg.mxu0
        %v2163 = vadd.f32 %v1132, %v1770
        %v2164 = vadd.f32 %v1134, %v1772
        %v2165 = vadd.f32 %v1209, %v1847
        %v2166 = vadd.f32 %v1211, %v1849
        %v2167 = vadd.f32 %v1286, %v1924
        %v2168 = vadd.f32 %v1288, %v1926
        %v2169 = vadd.f32 %v1363, %v2001
        %v2170 = vadd.f32 %v1365, %v2003
        %v2171 = vadd.f32 %v1440, %v2078
        %v2172 = vadd.f32 %v1442, %v2080
        %v2173 = vadd.f32 %v1517, %v2155
        %v2174 = vadd.f32 %v1138, %v1776
        %v2175 = vadd.f32 %v1140, %v1778
        %v2176 = vadd.f32 %v1215, %v1853
        %v2177 = vadd.f32 %v1217, %v1855
        %v2178 = vadd.f32 %v1292, %v1930
        %v2179 = vadd.f32 %v1294, %v1932
        %v2180 = vadd.f32 %v1369, %v2007
        %v2181 = vadd.f32 %v1371, %v2009
        %v2182 = vadd.f32 %v1446, %v2084
        %v2183 = vadd.f32 %v1448, %v2086
        %v2184 = vadd.f32 %v1522, %v2160
        %v2185 = vld [vmem:[%s302] sm:$0x77]
        %v2186 = vld [vmem:[%s302 + $0x8] sm:$0x77]
        %v2187 = vld [vmem:[%s302 + $0x10] sm:$0x77]
        %v2188 = vld [vmem:[%s302 + $0x18] sm:$0x77]
        %v2189 = vld [vmem:[%s302 + $0x20] sm:$0x77]
        %v2190 = vld [vmem:[%s302 + $0x28] sm:$0x77]
        %2191 = vrot.lane.b32.xlu0 %v398, 63
        %v2192 = vpop.permute.xlu0 %2191
        %2193 = vrot.lane.b32.xlu0 %v399, 63
        %v2194 = vpop.permute.xlu0 %2193
        %2195 = vrot.lane.b32.xlu0 %v400, 63
        %v2196 = vpop.permute.xlu0 %2195
        %2197 = vrot.lane.b32.xlu0 %v401, 63
        %v2198 = vpop.permute.xlu0 %2197
        %2199 = vrot.lane.b32.xlu0 %v402, 63
        %v2200 = vpop.permute.xlu0 %2199
        %2201 = vrot.lane.b32.xlu0 %v397, 63
        %v2202 = vpop.permute.xlu0 %2201
        %v2203 = vrot.slane %v2192, 4
        %v2204 = vrot.slane %v2194, 4
        %v2205 = vrot.slane %v2196, 4
        %v2206 = vrot.slane %v2198, 4
        %v2207 = vrot.slane %v2200, 4
        %v2208 = vrot.slane %v2202, 4
        %vm2209 = vcmask 515072
        %v2210 = vsel %vm2209, %v2203, %v2192
        %v2211 = vsel %vm423, %v2203, %v2204
        %v2212 = vsel %vm2209, %v2211, %v2194
        %v2213 = vsel %vm423, %v2204, %v2205
        %v2214 = vsel %vm2209, %v2213, %v2196
        %v2215 = vsel %vm423, %v2205, %v2206
        %v2216 = vsel %vm2209, %v2215, %v2198
        %v2217 = vsel %vm423, %v2206, %v2207
        %v2218 = vsel %vm2209, %v2217, %v2200
        %v2219 = vsel %vm423, %v2207, %v2208
        %v2220 = vsel %vm2209, %v2219, %v2202
        %v2227 = vmul.f32 %v2185, %v2210
        %v2228 = vmul.f32 %v2186, %v2212
        %v2229 = vmul.f32 %v2187, %v2214
        %v2230 = vmul.f32 %v2188, %v2216
        %v2231 = vmul.f32 %v2189, %v2218
        %v2232 = vmul.f32 %v2190, %v2220
        %s2233 = scalar_lea.vmem %s1, 48
        %v2234 = vld [vmem:[%s2233] sm:$0xff]
        %v2235 = vld [vmem:[%s2233 + $0x8] sm:$0xff]
        %v2242 = vcombine.high %v2227, %v2227
        %v2243 = vcombine.high %v2228, %v2228
        %v2244 = vcombine.high %v2229, %v2229
        %v2245 = vcombine.high %v2230, %v2230
        %v2246 = vcombine.high %v2231, %v2231
        %v2247 = vcombine.high %v2232, %v2232
        %2248 = vrot.lane.b32.xlu0 %v2227, 65
        %v2249 = vpop.permute.xlu0 %2248
        %2250 = vrot.lane.b32.xlu0 %v2242, 65
        %v2251 = vpop.permute.xlu0 %2250
        %2252 = vrot.lane.b32.xlu0 %v2228, 65
        %v2253 = vpop.permute.xlu0 %2252
        %2254 = vrot.lane.b32.xlu0 %v2243, 65
        %v2255 = vpop.permute.xlu0 %2254
        %2256 = vrot.lane.b32.xlu0 %v2229, 65
        %v2257 = vpop.permute.xlu0 %2256
        %2258 = vrot.lane.b32.xlu0 %v2244, 65
        %v2259 = vpop.permute.xlu0 %2258
        %2260 = vrot.lane.b32.xlu0 %v2230, 65
        %v2261 = vpop.permute.xlu0 %2260
        %2262 = vrot.lane.b32.xlu0 %v2245, 65
        %v2263 = vpop.permute.xlu0 %2262
        %2264 = vrot.lane.b32.xlu0 %v2231, 65
        %v2265 = vpop.permute.xlu0 %2264
        %2266 = vrot.lane.b32.xlu0 %v2246, 65
        %v2267 = vpop.permute.xlu0 %2266
        %2268 = vrot.lane.b32.xlu0 %v2232, 65
        %v2269 = vpop.permute.xlu0 %2268
        %2270 = vrot.lane.b32.xlu0 %v2247, 65
        %v2271 = vpop.permute.xlu0 %2270
        %vm2272 = vcmask 531456
        %v2273 = vsel %vm2272, %v2249, %v2251
        %v2274 = vsel %vm2272, %v2251, %v2253
        %v2275 = vsel %vm2272, %v2253, %v2255
        %v2276 = vsel %vm2272, %v2255, %v2257
        %v2277 = vsel %vm2272, %v2257, %v2259
        %v2278 = vsel %vm2272, %v2259, %v2261
        %v2279 = vsel %vm2272, %v2261, %v2263
        %v2280 = vsel %vm2272, %v2263, %v2265
        %v2281 = vsel %vm2272, %v2265, %v2267
        %v2282 = vsel %vm2272, %v2267, %v2269
        %v2283 = vsel %vm2272, %v2269, %v2271
        %v2285 = vsel %vm499, %v2234, 0
        %v2288 = vsel %vm499, %v2235, 0
        %v2290 = vsel %vm506, %v2273, 0
        %v2292 = vsel %vm506, %v2274, 0
        %v2294 = vsel %vm506, %v2275, 0
        %v2296 = vsel %vm506, %v2276, 0
        %v2298 = vsel %vm506, %v2277, 0
        %v2300 = vsel %vm506, %v2278, 0
        %v2302 = vsel %vm506, %v2279, 0
        %v2304 = vsel %vm506, %v2280, 0
        %v2306 = vsel %vm506, %v2281, 0
        %v2308 = vsel %vm506, %v2282, 0
        %v2310 = vsel %vm506, %v2283, 0
        %2312 = vmatprep.subr.mxu0 %v2292
        %2313 = vmatpush1.msra.mxu0 %v2290
        %2314 = vmatprep.subr.mxu0 0.0
        %2315 = vmatpush1.msra.mxu0 0.0
        %2316 = vmatprep.subr.mxu0 0.0
        %2317 = vmatpush1.msra.mxu0 0.0
        %2318 = vmatprep.subr.mxu0 0.0
        %2319 = vmatpush1.msra.mxu0 0.0
        %2320 = vmatprep.subr.mxu0 0.0
        %2321 = vmatpush1.msra.mxu0 0.0
        %2322 = vmatprep.subr.mxu0 0.0
        %2323 = vmatpush1.msra.mxu0 0.0
        %2324 = vmatprep.subr.mxu0 0.0
        %2325 = vmatpush1.msra.mxu0 0.0
        %2326 = vmatprep.subr.mxu0 0.0
        %2327 = vmatpush1.msra.mxu0 0.0
        %2328 = vmatprep.subr.mxu0 0.0
        %2329 = vmatpush1.msra.mxu0 0.0
        %2330 = vmatprep.subr.mxu0 0.0
        %2331 = vmatpush1.msra.mxu0 0.0
        %2332 = vmatprep.subr.mxu0 0.0
        %2333 = vmatpush1.msra.mxu0 0.0
        %2334 = vmatprep.subr.mxu0 0.0
        %2335 = vmatpush1.msra.mxu0 0.0
        %2336 = vmatprep.subr.mxu0 0.0
        %2337 = vmatpush1.msra.mxu0 0.0
        %2338 = vmatprep.subr.mxu0 0.0
        %2339 = vmatpush1.msra.mxu0 0.0
        %2340 = vmatprep.subr.mxu0 0.0
        %2341 = vmatpush1.msra.mxu0 0.0
        %2342 = vmatprep.subr.mxu0 0.0
        %2343 = vmatpush1.msra.mxu0 0.0
        %2344 = vmatprep.subr.mxu0 0.0
        %2345 = vmatpush1.msra.mxu0 0.0
        %2346 = vmatprep.subr.mxu0 0.0
        %2347 = vmatpush1.msra.mxu0 0.0
        %2348 = vmatprep.subr.mxu0 0.0
        %2349 = vmatpush1.msra.mxu0 0.0
        %2350 = vmatprep.subr.mxu0 0.0
        %2351 = vmatpush1.msra.mxu0 0.0
        %2352 = vmatprep.subr.mxu0 0.0
        %2353 = vmatpush1.msra.mxu0 0.0
        %2354 = vmatprep.subr.mxu0 0.0
        %2355 = vmatpush1.msra.mxu0 0.0
        %2356 = vmatprep.subr.mxu0 0.0
        %2357 = vmatpush1.msra.mxu0 0.0
        %2358 = vmatprep.subr.mxu0 0.0
        %2359 = vmatpush1.msra.mxu0 0.0
        %2360 = vmatprep.subr.mxu0 0.0
        %2361 = vmatpush1.msra.mxu0 0.0
        %2362 = vmatprep.subr.mxu0 0.0
        %2363 = vmatpush1.msra.mxu0 0.0
        %2364 = vmatprep.subr.mxu0 0.0
        %2365 = vmatpush1.msra.mxu0 0.0
        %2366 = vmatprep.subr.mxu0 0.0
        %2367 = vmatpush1.msra.mxu0 0.0
        %2368 = vmatprep.subr.mxu0 0.0
        %2369 = vmatpush1.msra.mxu0 0.0
        %2370 = vmatprep.subr.mxu0 0.0
        %2371 = vmatpush1.msra.mxu0 0.0
        %2372 = vmatprep.subr.mxu0 0.0
        %2373 = vmatpush1.msra.mxu0 0.0
        %2374 = vmatprep.subr.mxu0 0.0
        %2375 = vmatpush1.msra.mxu0 0.0
        %2376 = vmatprep.mubr.f32.mxu0 0.0
        %2377 = vmatmul.mubr.f32.gmra.mrb[0].mxu0 %v2285
        %v2378 = vpop.f32.mrb[0].mxu0
        %v2379 = vadd.f32 0.0, %v2378
        %v2380 = vpop.f32.mrb[0].mxu0
        %v2381 = vadd.f32 0.0, %v2380
        %2382 = vmatprep.mubr.f32.mxu0 0.0
        %2383 = vmatmul.mubr.f32.gmra.mrb[0].mxu0 %v2288
        %v2384 = vpop.f32.mrb[0].mxu0
        %v2385 = vadd.f32 0.0, %v2384
        %v2386 = vpop.f32.mrb[0].mxu0
        %v2387 = vadd.f32 0.0, %v2386
        %2388 = vdwg.mxu0
        %2389 = vmatprep.subr.mxu0 %v2296
        %2390 = vmatpush1.msra.mxu0 %v2294
        %2391 = vmatprep.subr.mxu0 0.0
        %2392 = vmatpush1.msra.mxu0 0.0
        %2393 = vmatprep.subr.mxu0 0.0
        %2394 = vmatpush1.msra.mxu0 0.0
        %2395 = vmatprep.subr.mxu0 0.0
        %2396 = vmatpush1.msra.mxu0 0.0
        %2397 = vmatprep.subr.mxu0 0.0
        %2398 = vmatpush1.msra.mxu0 0.0
        %2399 = vmatprep.subr.mxu0 0.0
        %2400 = vmatpush1.msra.mxu0 0.0
        %2401 = vmatprep.subr.mxu0 0.0
        %2402 = vmatpush1.msra.mxu0 0.0
        %2403 = vmatprep.subr.mxu0 0.0
        %2404 = vmatpush1.msra.mxu0 0.0
        %2405 = vmatprep.subr.mxu0 0.0
        %2406 = vmatpush1.msra.mxu0 0.0
        %2407 = vmatprep.subr.mxu0 0.0
        %2408 = vmatpush1.msra.mxu0 0.0
        %2409 = vmatprep.subr.mxu0 0.0
        %2410 = vmatpush1.msra.mxu0 0.0
        %2411 = vmatprep.subr.mxu0 0.0
        %2412 = vmatpush1.msra.mxu0 0.0
        %2413 = vmatprep.subr.mxu0 0.0
        %2414 = vmatpush1.msra.mxu0 0.0
        %2415 = vmatprep.subr.mxu0 0.0
        %2416 = vmatpush1.msra.mxu0 0.0
        %2417 = vmatprep.subr.mxu0 0.0
        %2418 = vmatpush1.msra.mxu0 0.0
        %2419 = vmatprep.subr.mxu0 0.0
        %2420 = vmatpush1.msra.mxu0 0.0
        %2421 = vmatprep.subr.mxu0 0.0
        %2422 = vmatpush1.msra.mxu0 0.0
        %2423 = vmatprep.subr.mxu0 0.0
        %2424 = vmatpush1.msra.mxu0 0.0
        %2425 = vmatprep.subr.mxu0 0.0
        %2426 = vmatpush1.msra.mxu0 0.0
        %2427 = vmatprep.subr.mxu0 0.0
        %2428 = vmatpush1.msra.mxu0 0.0
        %2429 = vmatprep.subr.mxu0 0.0
        %2430 = vmatpush1.msra.mxu0 0.0
        %2431 = vmatprep.subr.mxu0 0.0
        %2432 = vmatpush1.msra.mxu0 0.0
        %2433 = vmatprep.subr.mxu0 0.0
        %2434 = vmatpush1.msra.mxu0 0.0
        %2435 = vmatprep.subr.mxu0 0.0
        %2436 = vmatpush1.msra.mxu0 0.0
        %2437 = vmatprep.subr.mxu0 0.0
        %2438 = vmatpush1.msra.mxu0 0.0
        %2439 = vmatprep.subr.mxu0 0.0
        %2440 = vmatpush1.msra.mxu0 0.0
        %2441 = vmatprep.subr.mxu0 0.0
        %2442 = vmatpush1.msra.mxu0 0.0
        %2443 = vmatprep.subr.mxu0 0.0
        %2444 = vmatpush1.msra.mxu0 0.0
        %2445 = vmatprep.subr.mxu0 0.0
        %2446 = vmatpush1.msra.mxu0 0.0
        %2447 = vmatprep.subr.mxu0 0.0
        %2448 = vmatpush1.msra.mxu0 0.0
        %2449 = vmatprep.subr.mxu0 0.0
        %2450 = vmatpush1.msra.mxu0 0.0
        %2451 = vmatprep.subr.mxu0 0.0
        %2452 = vmatpush1.msra.mxu0 0.0
        %2453 = vmatprep.mubr.f32.mxu0 0.0
        %2454 = vmatmul.mubr.f32.gmra.mrb[0].mxu0 %v2285
        %v2455 = vpop.f32.mrb[0].mxu0
        %v2456 = vadd.f32 0.0, %v2455
        %v2457 = vpop.f32.mrb[0].mxu0
        %v2458 = vadd.f32 0.0, %v2457
        %2459 = vmatprep.mubr.f32.mxu0 0.0
        %2460 = vmatmul.mubr.f32.gmra.mrb[0].mxu0 %v2288
        %v2461 = vpop.f32.mrb[0].mxu0
        %v2462 = vadd.f32 0.0, %v2461
        %v2463 = vpop.f32.mrb[0].mxu0
        %v2464 = vadd.f32 0.0, %v2463
        %2465 = vdwg.mxu0
        %2466 = vmatprep.subr.mxu0 %v2300
        %2467 = vmatpush1.msra.mxu0 %v2298
        %2468 = vmatprep.subr.mxu0 0.0
        %2469 = vmatpush1.msra.mxu0 0.0
        %2470 = vmatprep.subr.mxu0 0.0
        %2471 = vmatpush1.msra.mxu0 0.0
        %2472 = vmatprep.subr.mxu0 0.0
        %2473 = vmatpush1.msra.mxu0 0.0
        %2474 = vmatprep.subr.mxu0 0.0
        %2475 = vmatpush1.msra.mxu0 0.0
        %2476 = vmatprep.subr.mxu0 0.0
        %2477 = vmatpush1.msra.mxu0 0.0
        %2478 = vmatprep.subr.mxu0 0.0
        %2479 = vmatpush1.msra.mxu0 0.0
        %2480 = vmatprep.subr.mxu0 0.0
        %2481 = vmatpush1.msra.mxu0 0.0
        %2482 = vmatprep.subr.mxu0 0.0
        %2483 = vmatpush1.msra.mxu0 0.0
        %2484 = vmatprep.subr.mxu0 0.0
        %2485 = vmatpush1.msra.mxu0 0.0
        %2486 = vmatprep.subr.mxu0 0.0
        %2487 = vmatpush1.msra.mxu0 0.0
        %2488 = vmatprep.subr.mxu0 0.0
        %2489 = vmatpush1.msra.mxu0 0.0
        %2490 = vmatprep.subr.mxu0 0.0
        %2491 = vmatpush1.msra.mxu0 0.0
        %2492 = vmatprep.subr.mxu0 0.0
        %2493 = vmatpush1.msra.mxu0 0.0
        %2494 = vmatprep.subr.mxu0 0.0
        %2495 = vmatpush1.msra.mxu0 0.0
        %2496 = vmatprep.subr.mxu0 0.0
        %2497 = vmatpush1.msra.mxu0 0.0
        %2498 = vmatprep.subr.mxu0 0.0
        %2499 = vmatpush1.msra.mxu0 0.0
        %2500 = vmatprep.subr.mxu0 0.0
        %2501 = vmatpush1.msra.mxu0 0.0
        %2502 = vmatprep.subr.mxu0 0.0
        %2503 = vmatpush1.msra.mxu0 0.0
        %2504 = vmatprep.subr.mxu0 0.0
        %2505 = vmatpush1.msra.mxu0 0.0
        %2506 = vmatprep.subr.mxu0 0.0
        %2507 = vmatpush1.msra.mxu0 0.0
        %2508 = vmatprep.subr.mxu0 0.0
        %2509 = vmatpush1.msra.mxu0 0.0
        %2510 = vmatprep.subr.mxu0 0.0
        %2511 = vmatpush1.msra.mxu0 0.0
        %2512 = vmatprep.subr.mxu0 0.0
        %2513 = vmatpush1.msra.mxu0 0.0
        %2514 = vmatprep.subr.mxu0 0.0
        %2515 = vmatpush1.msra.mxu0 0.0
        %2516 = vmatprep.subr.mxu0 0.0
        %2517 = vmatpush1.msra.mxu0 0.0
        %2518 = vmatprep.subr.mxu0 0.0
        %2519 = vmatpush1.msra.mxu0 0.0
        %2520 = vmatprep.subr.mxu0 0.0
        %2521 = vmatpush1.msra.mxu0 0.0
        %2522 = vmatprep.subr.mxu0 0.0
        %2523 = vmatpush1.msra.mxu0 0.0
        %2524 = vmatprep.subr.mxu0 0.0
        %2525 = vmatpush1.msra.mxu0 0.0
        %2526 = vmatprep.subr.mxu0 0.0
        %2527 = vmatpush1.msra.mxu0 0.0
        %2528 = vmatprep.subr.mxu0 0.0
        %2529 = vmatpush1.msra.mxu0 0.0
        %2530 = vmatprep.mubr.f32.mxu0 0.0
        %2531 = vmatmul.mubr.f32.gmra.mrb[0].mxu0 %v2285
        %v2532 = vpop.f32.mrb[0].mxu0
        %v2533 = vadd.f32 0.0, %v2532
        %v2534 = vpop.f32.mrb[0].mxu0
        %v2535 = vadd.f32 0.0, %v2534
        %2536 = vmatprep.mubr.f32.mxu0 0.0
        %2537 = vmatmul.mubr.f32.gmra.mrb[0].mxu0 %v2288
        %v2538 = vpop.f32.mrb[0].mxu0
        %v2539 = vadd.f32 0.0, %v2538
        %v2540 = vpop.f32.mrb[0].mxu0
        %v2541 = vadd.f32 0.0, %v2540
        %2542 = vdwg.mxu0
        %2543 = vmatprep.subr.mxu0 %v2304
        %2544 = vmatpush1.msra.mxu0 %v2302
        %2545 = vmatprep.subr.mxu0 0.0
        %2546 = vmatpush1.msra.mxu0 0.0
        %2547 = vmatprep.subr.mxu0 0.0
        %2548 = vmatpush1.msra.mxu0 0.0
        %2549 = vmatprep.subr.mxu0 0.0
        %2550 = vmatpush1.msra.mxu0 0.0
        %2551 = vmatprep.subr.mxu0 0.0
        %2552 = vmatpush1.msra.mxu0 0.0
        %2553 = vmatprep.subr.mxu0 0.0
        %2554 = vmatpush1.msra.mxu0 0.0
        %2555 = vmatprep.subr.mxu0 0.0
        %2556 = vmatpush1.msra.mxu0 0.0
        %2557 = vmatprep.subr.mxu0 0.0
        %2558 = vmatpush1.msra.mxu0 0.0
        %2559 = vmatprep.subr.mxu0 0.0
        %2560 = vmatpush1.msra.mxu0 0.0
        %2561 = vmatprep.subr.mxu0 0.0
        %2562 = vmatpush1.msra.mxu0 0.0
        %2563 = vmatprep.subr.mxu0 0.0
        %2564 = vmatpush1.msra.mxu0 0.0
        %2565 = vmatprep.subr.mxu0 0.0
        %2566 = vmatpush1.msra.mxu0 0.0
        %2567 = vmatprep.subr.mxu0 0.0
        %2568 = vmatpush1.msra.mxu0 0.0
        %2569 = vmatprep.subr.mxu0 0.0
        %2570 = vmatpush1.msra.mxu0 0.0
        %2571 = vmatprep.subr.mxu0 0.0
        %2572 = vmatpush1.msra.mxu0 0.0
        %2573 = vmatprep.subr.mxu0 0.0
        %2574 = vmatpush1.msra.mxu0 0.0
        %2575 = vmatprep.subr.mxu0 0.0
        %2576 = vmatpush1.msra.mxu0 0.0
        %2577 = vmatprep.subr.mxu0 0.0
        %2578 = vmatpush1.msra.mxu0 0.0
        %2579 = vmatprep.subr.mxu0 0.0
        %2580 = vmatpush1.msra.mxu0 0.0
        %2581 = vmatprep.subr.mxu0 0.0
        %2582 = vmatpush1.msra.mxu0 0.0
        %2583 = vmatprep.subr.mxu0 0.0
        %2584 = vmatpush1.msra.mxu0 0.0
        %2585 = vmatprep.subr.mxu0 0.0
        %2586 = vmatpush1.msra.mxu0 0.0
        %2587 = vmatprep.subr.mxu0 0.0
        %2588 = vmatpush1.msra.mxu0 0.0
        %2589 = vmatprep.subr.mxu0 0.0
        %2590 = vmatpush1.msra.mxu0 0.0
        %2591 = vmatprep.subr.mxu0 0.0
        %2592 = vmatpush1.msra.mxu0 0.0
        %2593 = vmatprep.subr.mxu0 0.0
        %2594 = vmatpush1.msra.mxu0 0.0
        %2595 = vmatprep.subr.mxu0 0.0
        %2596 = vmatpush1.msra.mxu0 0.0
        %2597 = vmatprep.subr.mxu0 0.0
        %2598 = vmatpush1.msra.mxu0 0.0
        %2599 = vmatprep.subr.mxu0 0.0
        %2600 = vmatpush1.msra.mxu0 0.0
        %2601 = vmatprep.subr.mxu0 0.0
        %2602 = vmatpush1.msra.mxu0 0.0
        %2603 = vmatprep.subr.mxu0 0.0
        %2604 = vmatpush1.msra.mxu0 0.0
        %2605 = vmatprep.subr.mxu0 0.0
        %2606 = vmatpush1.msra.mxu0 0.0
        %2607 = vmatprep.mubr.f32.mxu0 0.0
        %2608 = vmatmul.mubr.f32.gmra.mrb[0].mxu0 %v2285
        %v2609 = vpop.f32.mrb[0].mxu0
        %v2610 = vadd.f32 0.0, %v2609
        %v2611 = vpop.f32.mrb[0].mxu0
        %v2612 = vadd.f32 0.0, %v2611
        %2613 = vmatprep.mubr.f32.mxu0 0.0
        %2614 = vmatmul.mubr.f32.gmra.mrb[0].mxu0 %v2288
        %v2615 = vpop.f32.mrb[0].mxu0
        %v2616 = vadd.f32 0.0, %v2615
        %v2617 = vpop.f32.mrb[0].mxu0
        %v2618 = vadd.f32 0.0, %v2617
        %2619 = vdwg.mxu0
        %2620 = vmatprep.subr.mxu0 %v2308
        %2621 = vmatpush1.msra.mxu0 %v2306
        %2622 = vmatprep.subr.mxu0 0.0
        %2623 = vmatpush1.msra.mxu0 0.0
        %2624 = vmatprep.subr.mxu0 0.0
        %2625 = vmatpush1.msra.mxu0 0.0
        %2626 = vmatprep.subr.mxu0 0.0
        %2627 = vmatpush1.msra.mxu0 0.0
        %2628 = vmatprep.subr.mxu0 0.0
        %2629 = vmatpush1.msra.mxu0 0.0
        %2630 = vmatprep.subr.mxu0 0.0
        %2631 = vmatpush1.msra.mxu0 0.0
        %2632 = vmatprep.subr.mxu0 0.0
        %2633 = vmatpush1.msra.mxu0 0.0
        %2634 = vmatprep.subr.mxu0 0.0
        %2635 = vmatpush1.msra.mxu0 0.0
        %2636 = vmatprep.subr.mxu0 0.0
        %2637 = vmatpush1.msra.mxu0 0.0
        %2638 = vmatprep.subr.mxu0 0.0
        %2639 = vmatpush1.msra.mxu0 0.0
        %2640 = vmatprep.subr.mxu0 0.0
        %2641 = vmatpush1.msra.mxu0 0.0
        %2642 = vmatprep.subr.mxu0 0.0
        %2643 = vmatpush1.msra.mxu0 0.0
        %2644 = vmatprep.subr.mxu0 0.0
        %2645 = vmatpush1.msra.mxu0 0.0
        %2646 = vmatprep.subr.mxu0 0.0
        %2647 = vmatpush1.msra.mxu0 0.0
        %2648 = vmatprep.subr.mxu0 0.0
        %2649 = vmatpush1.msra.mxu0 0.0
        %2650 = vmatprep.subr.mxu0 0.0
        %2651 = vmatpush1.msra.mxu0 0.0
        %2652 = vmatprep.subr.mxu0 0.0
        %2653 = vmatpush1.msra.mxu0 0.0
        %2654 = vmatprep.subr.mxu0 0.0
        %2655 = vmatpush1.msra.mxu0 0.0
        %2656 = vmatprep.subr.mxu0 0.0
        %2657 = vmatpush1.msra.mxu0 0.0
        %2658 = vmatprep.subr.mxu0 0.0
        %2659 = vmatpush1.msra.mxu0 0.0
        %2660 = vmatprep.subr.mxu0 0.0
        %2661 = vmatpush1.msra.mxu0 0.0
        %2662 = vmatprep.subr.mxu0 0.0
        %2663 = vmatpush1.msra.mxu0 0.0
        %2664 = vmatprep.subr.mxu0 0.0
        %2665 = vmatpush1.msra.mxu0 0.0
        %2666 = vmatprep.subr.mxu0 0.0
        %2667 = vmatpush1.msra.mxu0 0.0
        %2668 = vmatprep.subr.mxu0 0.0
        %2669 = vmatpush1.msra.mxu0 0.0
        %2670 = vmatprep.subr.mxu0 0.0
        %2671 = vmatpush1.msra.mxu0 0.0
        %2672 = vmatprep.subr.mxu0 0.0
        %2673 = vmatpush1.msra.mxu0 0.0
        %2674 = vmatprep.subr.mxu0 0.0
        %2675 = vmatpush1.msra.mxu0 0.0
        %2676 = vmatprep.subr.mxu0 0.0
        %2677 = vmatpush1.msra.mxu0 0.0
        %2678 = vmatprep.subr.mxu0 0.0
        %2679 = vmatpush1.msra.mxu0 0.0
        %2680 = vmatprep.subr.mxu0 0.0
        %2681 = vmatpush1.msra.mxu0 0.0
        %2682 = vmatprep.subr.mxu0 0.0
        %2683 = vmatpush1.msra.mxu0 0.0
        %2684 = vmatprep.mubr.f32.mxu0 0.0
        %2685 = vmatmul.mubr.f32.gmra.mrb[0].mxu0 %v2285
        %v2686 = vpop.f32.mrb[0].mxu0
        %v2687 = vadd.f32 0.0, %v2686
        %v2688 = vpop.f32.mrb[0].mxu0
        %v2689 = vadd.f32 0.0, %v2688
        %2690 = vmatprep.mubr.f32.mxu0 0.0
        %2691 = vmatmul.mubr.f32.gmra.mrb[0].mxu0 %v2288
        %v2692 = vpop.f32.mrb[0].mxu0
        %v2693 = vadd.f32 0.0, %v2692
        %v2694 = vpop.f32.mrb[0].mxu0
        %v2695 = vadd.f32 0.0, %v2694
        %2696 = vdwg.mxu0
        %2697 = vmatprep.subr.mxu0 0.0
        %2698 = vmatpush1.msra.mxu0 %v2310
        %2699 = vmatprep.subr.mxu0 0.0
        %2700 = vmatpush1.msra.mxu0 0.0
        %2701 = vmatprep.subr.mxu0 0.0
        %2702 = vmatpush1.msra.mxu0 0.0
        %2703 = vmatprep.subr.mxu0 0.0
        %2704 = vmatpush1.msra.mxu0 0.0
        %2705 = vmatprep.subr.mxu0 0.0
        %2706 = vmatpush1.msra.mxu0 0.0
        %2707 = vmatprep.subr.mxu0 0.0
        %2708 = vmatpush1.msra.mxu0 0.0
        %2709 = vmatprep.subr.mxu0 0.0
        %2710 = vmatpush1.msra.mxu0 0.0
        %2711 = vmatprep.subr.mxu0 0.0
        %2712 = vmatpush1.msra.mxu0 0.0
        %2713 = vmatprep.subr.mxu0 0.0
        %2714 = vmatpush1.msra.mxu0 0.0
        %2715 = vmatprep.subr.mxu0 0.0
        %2716 = vmatpush1.msra.mxu0 0.0
        %2717 = vmatprep.subr.mxu0 0.0
        %2718 = vmatpush1.msra.mxu0 0.0
        %2719 = vmatprep.subr.mxu0 0.0
        %2720 = vmatpush1.msra.mxu0 0.0
        %2721 = vmatprep.subr.mxu0 0.0
        %2722 = vmatpush1.msra.mxu0 0.0
        %2723 = vmatprep.subr.mxu0 0.0
        %2724 = vmatpush1.msra.mxu0 0.0
        %2725 = vmatprep.subr.mxu0 0.0
        %2726 = vmatpush1.msra.mxu0 0.0
        %2727 = vmatprep.subr.mxu0 0.0
        %2728 = vmatpush1.msra.mxu0 0.0
        %2729 = vmatprep.subr.mxu0 0.0
        %2730 = vmatpush1.msra.mxu0 0.0
        %2731 = vmatprep.subr.mxu0 0.0
        %2732 = vmatpush1.msra.mxu0 0.0
        %2733 = vmatprep.subr.mxu0 0.0
        %2734 = vmatpush1.msra.mxu0 0.0
        %2735 = vmatprep.subr.mxu0 0.0
        %2736 = vmatpush1.msra.mxu0 0.0
        %2737 = vmatprep.subr.mxu0 0.0
        %2738 = vmatpush1.msra.mxu0 0.0
        %2739 = vmatprep.subr.mxu0 0.0
        %2740 = vmatpush1.msra.mxu0 0.0
        %2741 = vmatprep.subr.mxu0 0.0
        %2742 = vmatpush1.msra.mxu0 0.0
        %2743 = vmatprep.subr.mxu0 0.0
        %2744 = vmatpush1.msra.mxu0 0.0
        %2745 = vmatprep.subr.mxu0 0.0
        %2746 = vmatpush1.msra.mxu0 0.0
        %2747 = vmatprep.subr.mxu0 0.0
        %2748 = vmatpush1.msra.mxu0 0.0
        %2749 = vmatprep.subr.mxu0 0.0
        %2750 = vmatpush1.msra.mxu0 0.0
        %2751 = vmatprep.subr.mxu0 0.0
        %2752 = vmatpush1.msra.mxu0 0.0
        %2753 = vmatprep.subr.mxu0 0.0
        %2754 = vmatpush1.msra.mxu0 0.0
        %2755 = vmatprep.subr.mxu0 0.0
        %2756 = vmatpush1.msra.mxu0 0.0
        %2757 = vmatprep.subr.mxu0 0.0
        %2758 = vmatpush1.msra.mxu0 0.0
        %2759 = vmatprep.subr.mxu0 0.0
        %2760 = vmatpush1.msra.mxu0 0.0
        %2761 = vmatprep.mubr.f32.mxu0 0.0
        %2762 = vmatmul.mubr.f32.gmra.mrb[0].mxu0 %v2285
        %v2763 = vpop.f32.mrb[0].mxu0
        %v2764 = vadd.f32 0.0, %v2763
        %v2765 = vpop.f32.mrb[0].mxu0
        %2766 = vmatprep.mubr.f32.mxu0 0.0
        %2767 = vmatmul.mubr.f32.gmra.mrb[0].mxu0 %v2288
        %v2768 = vpop.f32.mrb[0].mxu0
        %v2769 = vadd.f32 0.0, %v2768
        %v2770 = vpop.f32.mrb[0].mxu0
        %2771 = vdwg.mxu0
        %v2772 = vadd.f32 %v2163, %v2379
        %v2773 = vadd.f32 %v2164, %v2381
        %v2774 = vadd.f32 %v2165, %v2456
        %v2775 = vadd.f32 %v2166, %v2458
        %v2776 = vadd.f32 %v2167, %v2533
        %v2777 = vadd.f32 %v2168, %v2535
        %v2778 = vadd.f32 %v2169, %v2610
        %v2779 = vadd.f32 %v2170, %v2612
        %v2780 = vadd.f32 %v2171, %v2687
        %v2781 = vadd.f32 %v2172, %v2689
        %v2782 = vadd.f32 %v2173, %v2764
        %v2783 = vadd.f32 %v2174, %v2385
        %v2784 = vadd.f32 %v2175, %v2387
        %v2785 = vadd.f32 %v2176, %v2462
        %v2786 = vadd.f32 %v2177, %v2464
        %v2787 = vadd.f32 %v2178, %v2539
        %v2788 = vadd.f32 %v2179, %v2541
        %v2789 = vadd.f32 %v2180, %v2616
        %v2790 = vadd.f32 %v2181, %v2618
        %v2791 = vadd.f32 %v2182, %v2693
        %v2792 = vadd.f32 %v2183, %v2695
        %v2793 = vadd.f32 %v2184, %v2769
        %v2794 = vld [vmem:[%s302] sm:$0x77]
        %v2795 = vld [vmem:[%s302 + $0x8] sm:$0x77]
        %v2796 = vld [vmem:[%s302 + $0x10] sm:$0x77]
        %v2797 = vld [vmem:[%s302 + $0x18] sm:$0x77]
        %v2798 = vld [vmem:[%s302 + $0x20] sm:$0x77]
        %v2799 = vld [vmem:[%s302 + $0x28] sm:$0x77]
        %s2800 = scalar_lea.vmem %s1, 64
        %v2801 = vld [vmem:[%s2800] sm:$0xff]
        %v2802 = vld [vmem:[%s2800 + $0x8] sm:$0xff]
        %v2809 = vcombine.high %v2794, %v2794
        %v2810 = vcombine.high %v2795, %v2795
        %v2811 = vcombine.high %v2796, %v2796
        %v2812 = vcombine.high %v2797, %v2797
        %v2813 = vcombine.high %v2798, %v2798
        %v2814 = vcombine.high %v2799, %v2799
        %2815 = vrot.lane.b32.xlu0 %v2794, 64
        %v2816 = vpop.permute.xlu0 %2815
        %2817 = vrot.lane.b32.xlu0 %v2809, 64
        %v2818 = vpop.permute.xlu0 %2817
        %2819 = vrot.lane.b32.xlu0 %v2795, 64
        %v2820 = vpop.permute.xlu0 %2819
        %2821 = vrot.lane.b32.xlu0 %v2810, 64
        %v2822 = vpop.permute.xlu0 %2821
        %2823 = vrot.lane.b32.xlu0 %v2796, 64
        %v2824 = vpop.permute.xlu0 %2823
        %2825 = vrot.lane.b32.xlu0 %v2811, 64
        %v2826 = vpop.permute.xlu0 %2825
        %2827 = vrot.lane.b32.xlu0 %v2797, 64
        %v2828 = vpop.permute.xlu0 %2827
        %2829 = vrot.lane.b32.xlu0 %v2812, 64
        %v2830 = vpop.permute.xlu0 %2829
        %2831 = vrot.lane.b32.xlu0 %v2798, 64
        %v2832 = vpop.permute.xlu0 %2831
        %2833 = vrot.lane.b32.xlu0 %v2813, 64
        %v2834 = vpop.permute.xlu0 %2833
        %2835 = vrot.lane.b32.xlu0 %v2799, 64
        %v2836 = vpop.permute.xlu0 %2835
        %2837 = vrot.lane.b32.xlu0 %v2814, 64
        %v2838 = vpop.permute.xlu0 %2837
        %v2839 = vsel %vm332, %v2816, %v2818
        %v2840 = vsel %vm332, %v2818, %v2820
        %v2841 = vsel %vm332, %v2820, %v2822
        %v2842 = vsel %vm332, %v2822, %v2824
        %v2843 = vsel %vm332, %v2824, %v2826
        %v2844 = vsel %vm332, %v2826, %v2828
        %v2845 = vsel %vm332, %v2828, %v2830
        %v2846 = vsel %vm332, %v2830, %v2832
        %v2847 = vsel %vm332, %v2832, %v2834
        %v2848 = vsel %vm332, %v2834, %v2836
        %v2849 = vsel %vm332, %v2836, %v2838
        %v2851 = vsel %vm499, %v2801, 0
        %v2854 = vsel %vm499, %v2802, 0
        %v2856 = vsel %vm506, %v2839, 0
        %v2858 = vsel %vm506, %v2840, 0
        %v2860 = vsel %vm506, %v2841, 0
        %v2862 = vsel %vm506, %v2842, 0
        %v2864 = vsel %vm506, %v2843, 0
        %v2866 = vsel %vm506, %v2844, 0
        %v2868 = vsel %vm506, %v2845, 0
        %v2870 = vsel %vm506, %v2846, 0
        %v2872 = vsel %vm506, %v2847, 0
        %v2874 = vsel %vm506, %v2848, 0
        %v2876 = vsel %vm506, %v2849, 0
        %2878 = vmatprep.subr.mxu0 %v2858
        %2879 = vmatpush1.msra.mxu0 %v2856
        %2880 = vmatprep.subr.mxu0 0.0
        %2881 = vmatpush1.msra.mxu0 0.0
        %2882 = vmatprep.subr.mxu0 0.0
        %2883 = vmatpush1.msra.mxu0 0.0
        %2884 = vmatprep.subr.mxu0 0.0
        %2885 = vmatpush1.msra.mxu0 0.0
        %2886 = vmatprep.subr.mxu0 0.0
        %2887 = vmatpush1.msra.mxu0 0.0
        %2888 = vmatprep.subr.mxu0 0.0
        %2889 = vmatpush1.msra.mxu0 0.0
        %2890 = vmatprep.subr.mxu0 0.0
        %2891 = vmatpush1.msra.mxu0 0.0
        %2892 = vmatprep.subr.mxu0 0.0
        %2893 = vmatpush1.msra.mxu0 0.0
        %2894 = vmatprep.subr.mxu0 0.0
        %2895 = vmatpush1.msra.mxu0 0.0
        %2896 = vmatprep.subr.mxu0 0.0
        %2897 = vmatpush1.msra.mxu0 0.0
        %2898 = vmatprep.subr.mxu0 0.0
        %2899 = vmatpush1.msra.mxu0 0.0
        %2900 = vmatprep.subr.mxu0 0.0
        %2901 = vmatpush1.msra.mxu0 0.0
        %2902 = vmatprep.subr.mxu0 0.0
        %2903 = vmatpush1.msra.mxu0 0.0
        %2904 = vmatprep.subr.mxu0 0.0
        %2905 = vmatpush1.msra.mxu0 0.0
        %2906 = vmatprep.subr.mxu0 0.0
        %2907 = vmatpush1.msra.mxu0 0.0
        %2908 = vmatprep.subr.mxu0 0.0
        %2909 = vmatpush1.msra.mxu0 0.0
        %2910 = vmatprep.subr.mxu0 0.0
        %2911 = vmatpush1.msra.mxu0 0.0
        %2912 = vmatprep.subr.mxu0 0.0
        %2913 = vmatpush1.msra.mxu0 0.0
        %2914 = vmatprep.subr.mxu0 0.0
        %2915 = vmatpush1.msra.mxu0 0.0
        %2916 = vmatprep.subr.mxu0 0.0
        %2917 = vmatpush1.msra.mxu0 0.0
        %2918 = vmatprep.subr.mxu0 0.0
        %2919 = vmatpush1.msra.mxu0 0.0
        %2920 = vmatprep.subr.mxu0 0.0
        %2921 = vmatpush1.msra.mxu0 0.0
        %2922 = vmatprep.subr.mxu0 0.0
        %2923 = vmatpush1.msra.mxu0 0.0
        %2924 = vmatprep.subr.mxu0 0.0
        %2925 = vmatpush1.msra.mxu0 0.0
        %2926 = vmatprep.subr.mxu0 0.0
        %2927 = vmatpush1.msra.mxu0 0.0
        %2928 = vmatprep.subr.mxu0 0.0
        %2929 = vmatpush1.msra.mxu0 0.0
        %2930 = vmatprep.subr.mxu0 0.0
        %2931 = vmatpush1.msra.mxu0 0.0
        %2932 = vmatprep.subr.mxu0 0.0
        %2933 = vmatpush1.msra.mxu0 0.0
        %2934 = vmatprep.subr.mxu0 0.0
        %2935 = vmatpush1.msra.mxu0 0.0
        %2936 = vmatprep.subr.mxu0 0.0
        %2937 = vmatpush1.msra.mxu0 0.0
        %2938 = vmatprep.subr.mxu0 0.0
        %2939 = vmatpush1.msra.mxu0 0.0
        %2940 = vmatprep.subr.mxu0 0.0
        %2941 = vmatpush1.msra.mxu0 0.0
        %2942 = vmatprep.mubr.f32.mxu0 0.0
        %2943 = vmatmul.mubr.f32.gmra.mrb[0].mxu0 %v2851
        %v2944 = vpop.f32.mrb[0].mxu0
        %v2945 = vadd.f32 0.0, %v2944
        %v2946 = vpop.f32.mrb[0].mxu0
        %v2947 = vadd.f32 0.0, %v2946
        %2948 = vmatprep.mubr.f32.mxu0 0.0
        %2949 = vmatmul.mubr.f32.gmra.mrb[0].mxu0 %v2854
        %v2950 = vpop.f32.mrb[0].mxu0
        %v2951 = vadd.f32 0.0, %v2950
        %v2952 = vpop.f32.mrb[0].mxu0
        %v2953 = vadd.f32 0.0, %v2952
        %2954 = vdwg.mxu0
        %2955 = vmatprep.subr.mxu0 %v2862
        %2956 = vmatpush1.msra.mxu0 %v2860
        %2957 = vmatprep.subr.mxu0 0.0
        %2958 = vmatpush1.msra.mxu0 0.0
        %2959 = vmatprep.subr.mxu0 0.0
        %2960 = vmatpush1.msra.mxu0 0.0
        %2961 = vmatprep.subr.mxu0 0.0
        %2962 = vmatpush1.msra.mxu0 0.0
        %2963 = vmatprep.subr.mxu0 0.0
        %2964 = vmatpush1.msra.mxu0 0.0
        %2965 = vmatprep.subr.mxu0 0.0
        %2966 = vmatpush1.msra.mxu0 0.0
        %2967 = vmatprep.subr.mxu0 0.0
        %2968 = vmatpush1.msra.mxu0 0.0
        %2969 = vmatprep.subr.mxu0 0.0
        %2970 = vmatpush1.msra.mxu0 0.0
        %2971 = vmatprep.subr.mxu0 0.0
        %2972 = vmatpush1.msra.mxu0 0.0
        %2973 = vmatprep.subr.mxu0 0.0
        %2974 = vmatpush1.msra.mxu0 0.0
        %2975 = vmatprep.subr.mxu0 0.0
        %2976 = vmatpush1.msra.mxu0 0.0
        %2977 = vmatprep.subr.mxu0 0.0
        %2978 = vmatpush1.msra.mxu0 0.0
        %2979 = vmatprep.subr.mxu0 0.0
        %2980 = vmatpush1.msra.mxu0 0.0
        %2981 = vmatprep.subr.mxu0 0.0
        %2982 = vmatpush1.msra.mxu0 0.0
        %2983 = vmatprep.subr.mxu0 0.0
        %2984 = vmatpush1.msra.mxu0 0.0
        %2985 = vmatprep.subr.mxu0 0.0
        %2986 = vmatpush1.msra.mxu0 0.0
        %2987 = vmatprep.subr.mxu0 0.0
        %2988 = vmatpush1.msra.mxu0 0.0
        %2989 = vmatprep.subr.mxu0 0.0
        %2990 = vmatpush1.msra.mxu0 0.0
        %2991 = vmatprep.subr.mxu0 0.0
        %2992 = vmatpush1.msra.mxu0 0.0
        %2993 = vmatprep.subr.mxu0 0.0
        %2994 = vmatpush1.msra.mxu0 0.0
        %2995 = vmatprep.subr.mxu0 0.0
        %2996 = vmatpush1.msra.mxu0 0.0
        %2997 = vmatprep.subr.mxu0 0.0
        %2998 = vmatpush1.msra.mxu0 0.0
        %2999 = vmatprep.subr.mxu0 0.0
        %3000 = vmatpush1.msra.mxu0 0.0
        %3001 = vmatprep.subr.mxu0 0.0
        %3002 = vmatpush1.msra.mxu0 0.0
        %3003 = vmatprep.subr.mxu0 0.0
        %3004 = vmatpush1.msra.mxu0 0.0
        %3005 = vmatprep.subr.mxu0 0.0
        %3006 = vmatpush1.msra.mxu0 0.0
        %3007 = vmatprep.subr.mxu0 0.0
        %3008 = vmatpush1.msra.mxu0 0.0
        %3009 = vmatprep.subr.mxu0 0.0
        %3010 = vmatpush1.msra.mxu0 0.0
        %3011 = vmatprep.subr.mxu0 0.0
        %3012 = vmatpush1.msra.mxu0 0.0
        %3013 = vmatprep.subr.mxu0 0.0
        %3014 = vmatpush1.msra.mxu0 0.0
        %3015 = vmatprep.subr.mxu0 0.0
        %3016 = vmatpush1.msra.mxu0 0.0
        %3017 = vmatprep.subr.mxu0 0.0
        %3018 = vmatpush1.msra.mxu0 0.0
        %3019 = vmatprep.mubr.f32.mxu0 0.0
        %3020 = vmatmul.mubr.f32.gmra.mrb[0].mxu0 %v2851
        %v3021 = vpop.f32.mrb[0].mxu0
        %v3022 = vadd.f32 0.0, %v3021
        %v3023 = vpop.f32.mrb[0].mxu0
        %v3024 = vadd.f32 0.0, %v3023
        %3025 = vmatprep.mubr.f32.mxu0 0.0
        %3026 = vmatmul.mubr.f32.gmra.mrb[0].mxu0 %v2854
        %v3027 = vpop.f32.mrb[0].mxu0
        %v3028 = vadd.f32 0.0, %v3027
        %v3029 = vpop.f32.mrb[0].mxu0
        %v3030 = vadd.f32 0.0, %v3029
        %3031 = vdwg.mxu0
        %3032 = vmatprep.subr.mxu0 %v2866
        %3033 = vmatpush1.msra.mxu0 %v2864
        %3034 = vmatprep.subr.mxu0 0.0
        %3035 = vmatpush1.msra.mxu0 0.0
        %3036 = vmatprep.subr.mxu0 0.0
        %3037 = vmatpush1.msra.mxu0 0.0
        %3038 = vmatprep.subr.mxu0 0.0
        %3039 = vmatpush1.msra.mxu0 0.0
        %3040 = vmatprep.subr.mxu0 0.0
        %3041 = vmatpush1.msra.mxu0 0.0
        %3042 = vmatprep.subr.mxu0 0.0
        %3043 = vmatpush1.msra.mxu0 0.0
        %3044 = vmatprep.subr.mxu0 0.0
        %3045 = vmatpush1.msra.mxu0 0.0
        %3046 = vmatprep.subr.mxu0 0.0
        %3047 = vmatpush1.msra.mxu0 0.0
        %3048 = vmatprep.subr.mxu0 0.0
        %3049 = vmatpush1.msra.mxu0 0.0
        %3050 = vmatprep.subr.mxu0 0.0
        %3051 = vmatpush1.msra.mxu0 0.0
        %3052 = vmatprep.subr.mxu0 0.0
        %3053 = vmatpush1.msra.mxu0 0.0
        %3054 = vmatprep.subr.mxu0 0.0
        %3055 = vmatpush1.msra.mxu0 0.0
        %3056 = vmatprep.subr.mxu0 0.0
        %3057 = vmatpush1.msra.mxu0 0.0
        %3058 = vmatprep.subr.mxu0 0.0
        %3059 = vmatpush1.msra.mxu0 0.0
        %3060 = vmatprep.subr.mxu0 0.0
        %3061 = vmatpush1.msra.mxu0 0.0
        %3062 = vmatprep.subr.mxu0 0.0
        %3063 = vmatpush1.msra.mxu0 0.0
        %3064 = vmatprep.subr.mxu0 0.0
        %3065 = vmatpush1.msra.mxu0 0.0
        %3066 = vmatprep.subr.mxu0 0.0
        %3067 = vmatpush1.msra.mxu0 0.0
        %3068 = vmatprep.subr.mxu0 0.0
        %3069 = vmatpush1.msra.mxu0 0.0
        %3070 = vmatprep.subr.mxu0 0.0
        %3071 = vmatpush1.msra.mxu0 0.0
        %3072 = vmatprep.subr.mxu0 0.0
        %3073 = vmatpush1.msra.mxu0 0.0
        %3074 = vmatprep.subr.mxu0 0.0
        %3075 = vmatpush1.msra.mxu0 0.0
        %3076 = vmatprep.subr.mxu0 0.0
        %3077 = vmatpush1.msra.mxu0 0.0
        %3078 = vmatprep.subr.mxu0 0.0
        %3079 = vmatpush1.msra.mxu0 0.0
        %3080 = vmatprep.subr.mxu0 0.0
        %3081 = vmatpush1.msra.mxu0 0.0
        %3082 = vmatprep.subr.mxu0 0.0
        %3083 = vmatpush1.msra.mxu0 0.0
        %3084 = vmatprep.subr.mxu0 0.0
        %3085 = vmatpush1.msra.mxu0 0.0
        %3086 = vmatprep.subr.mxu0 0.0
        %3087 = vmatpush1.msra.mxu0 0.0
        %3088 = vmatprep.subr.mxu0 0.0
        %3089 = vmatpush1.msra.mxu0 0.0
        %3090 = vmatprep.subr.mxu0 0.0
        %3091 = vmatpush1.msra.mxu0 0.0
        %3092 = vmatprep.subr.mxu0 0.0
        %3093 = vmatpush1.msra.mxu0 0.0
        %3094 = vmatprep.subr.mxu0 0.0
        %3095 = vmatpush1.msra.mxu0 0.0
        %3096 = vmatprep.mubr.f32.mxu0 0.0
        %3097 = vmatmul.mubr.f32.gmra.mrb[0].mxu0 %v2851
        %v3098 = vpop.f32.mrb[0].mxu0
        %v3099 = vadd.f32 0.0, %v3098
        %v3100 = vpop.f32.mrb[0].mxu0
        %v3101 = vadd.f32 0.0, %v3100
        %3102 = vmatprep.mubr.f32.mxu0 0.0
        %3103 = vmatmul.mubr.f32.gmra.mrb[0].mxu0 %v2854
        %v3104 = vpop.f32.mrb[0].mxu0
        %v3105 = vadd.f32 0.0, %v3104
        %v3106 = vpop.f32.mrb[0].mxu0
        %v3107 = vadd.f32 0.0, %v3106
        %3108 = vdwg.mxu0
        %3109 = vmatprep.subr.mxu0 %v2870
        %3110 = vmatpush1.msra.mxu0 %v2868
        %3111 = vmatprep.subr.mxu0 0.0
        %3112 = vmatpush1.msra.mxu0 0.0
        %3113 = vmatprep.subr.mxu0 0.0
        %3114 = vmatpush1.msra.mxu0 0.0
        %3115 = vmatprep.subr.mxu0 0.0
        %3116 = vmatpush1.msra.mxu0 0.0
        %3117 = vmatprep.subr.mxu0 0.0
        %3118 = vmatpush1.msra.mxu0 0.0
        %3119 = vmatprep.subr.mxu0 0.0
        %3120 = vmatpush1.msra.mxu0 0.0
        %3121 = vmatprep.subr.mxu0 0.0
        %3122 = vmatpush1.msra.mxu0 0.0
        %3123 = vmatprep.subr.mxu0 0.0
        %3124 = vmatpush1.msra.mxu0 0.0
        %3125 = vmatprep.subr.mxu0 0.0
        %3126 = vmatpush1.msra.mxu0 0.0
        %3127 = vmatprep.subr.mxu0 0.0
        %3128 = vmatpush1.msra.mxu0 0.0
        %3129 = vmatprep.subr.mxu0 0.0
        %3130 = vmatpush1.msra.mxu0 0.0
        %3131 = vmatprep.subr.mxu0 0.0
        %3132 = vmatpush1.msra.mxu0 0.0
        %3133 = vmatprep.subr.mxu0 0.0
        %3134 = vmatpush1.msra.mxu0 0.0
        %3135 = vmatprep.subr.mxu0 0.0
        %3136 = vmatpush1.msra.mxu0 0.0
        %3137 = vmatprep.subr.mxu0 0.0
        %3138 = vmatpush1.msra.mxu0 0.0
        %3139 = vmatprep.subr.mxu0 0.0
        %3140 = vmatpush1.msra.mxu0 0.0
        %3141 = vmatprep.subr.mxu0 0.0
        %3142 = vmatpush1.msra.mxu0 0.0
        %3143 = vmatprep.subr.mxu0 0.0
        %3144 = vmatpush1.msra.mxu0 0.0
        %3145 = vmatprep.subr.mxu0 0.0
        %3146 = vmatpush1.msra.mxu0 0.0
        %3147 = vmatprep.subr.mxu0 0.0
        %3148 = vmatpush1.msra.mxu0 0.0
        %3149 = vmatprep.subr.mxu0 0.0
        %3150 = vmatpush1.msra.mxu0 0.0
        %3151 = vmatprep.subr.mxu0 0.0
        %3152 = vmatpush1.msra.mxu0 0.0
        %3153 = vmatprep.subr.mxu0 0.0
        %3154 = vmatpush1.msra.mxu0 0.0
        %3155 = vmatprep.subr.mxu0 0.0
        %3156 = vmatpush1.msra.mxu0 0.0
        %3157 = vmatprep.subr.mxu0 0.0
        %3158 = vmatpush1.msra.mxu0 0.0
        %3159 = vmatprep.subr.mxu0 0.0
        %3160 = vmatpush1.msra.mxu0 0.0
        %3161 = vmatprep.subr.mxu0 0.0
        %3162 = vmatpush1.msra.mxu0 0.0
        %3163 = vmatprep.subr.mxu0 0.0
        %3164 = vmatpush1.msra.mxu0 0.0
        %3165 = vmatprep.subr.mxu0 0.0
        %3166 = vmatpush1.msra.mxu0 0.0
        %3167 = vmatprep.subr.mxu0 0.0
        %3168 = vmatpush1.msra.mxu0 0.0
        %3169 = vmatprep.subr.mxu0 0.0
        %3170 = vmatpush1.msra.mxu0 0.0
        %3171 = vmatprep.subr.mxu0 0.0
        %3172 = vmatpush1.msra.mxu0 0.0
        %3173 = vmatprep.mubr.f32.mxu0 0.0
        %3174 = vmatmul.mubr.f32.gmra.mrb[0].mxu0 %v2851
        %v3175 = vpop.f32.mrb[0].mxu0
        %v3176 = vadd.f32 0.0, %v3175
        %v3177 = vpop.f32.mrb[0].mxu0
        %v3178 = vadd.f32 0.0, %v3177
        %3179 = vmatprep.mubr.f32.mxu0 0.0
        %3180 = vmatmul.mubr.f32.gmra.mrb[0].mxu0 %v2854
        %v3181 = vpop.f32.mrb[0].mxu0
        %v3182 = vadd.f32 0.0, %v3181
        %v3183 = vpop.f32.mrb[0].mxu0
        %v3184 = vadd.f32 0.0, %v3183
        %3185 = vdwg.mxu0
        %3186 = vmatprep.subr.mxu0 %v2874
        %3187 = vmatpush1.msra.mxu0 %v2872
        %3188 = vmatprep.subr.mxu0 0.0
        %3189 = vmatpush1.msra.mxu0 0.0
        %3190 = vmatprep.subr.mxu0 0.0
        %3191 = vmatpush1.msra.mxu0 0.0
        %3192 = vmatprep.subr.mxu0 0.0
        %3193 = vmatpush1.msra.mxu0 0.0
        %3194 = vmatprep.subr.mxu0 0.0
        %3195 = vmatpush1.msra.mxu0 0.0
        %3196 = vmatprep.subr.mxu0 0.0
        %3197 = vmatpush1.msra.mxu0 0.0
        %3198 = vmatprep.subr.mxu0 0.0
        %3199 = vmatpush1.msra.mxu0 0.0
        %3200 = vmatprep.subr.mxu0 0.0
        %3201 = vmatpush1.msra.mxu0 0.0
        %3202 = vmatprep.subr.mxu0 0.0
        %3203 = vmatpush1.msra.mxu0 0.0
        %3204 = vmatprep.subr.mxu0 0.0
        %3205 = vmatpush1.msra.mxu0 0.0
        %3206 = vmatprep.subr.mxu0 0.0
        %3207 = vmatpush1.msra.mxu0 0.0
        %3208 = vmatprep.subr.mxu0 0.0
        %3209 = vmatpush1.msra.mxu0 0.0
        %3210 = vmatprep.subr.mxu0 0.0
        %3211 = vmatpush1.msra.mxu0 0.0
        %3212 = vmatprep.subr.mxu0 0.0
        %3213 = vmatpush1.msra.mxu0 0.0
        %3214 = vmatprep.subr.mxu0 0.0
        %3215 = vmatpush1.msra.mxu0 0.0
        %3216 = vmatprep.subr.mxu0 0.0
        %3217 = vmatpush1.msra.mxu0 0.0
        %3218 = vmatprep.subr.mxu0 0.0
        %3219 = vmatpush1.msra.mxu0 0.0
        %3220 = vmatprep.subr.mxu0 0.0
        %3221 = vmatpush1.msra.mxu0 0.0
        %3222 = vmatprep.subr.mxu0 0.0
        %3223 = vmatpush1.msra.mxu0 0.0
        %3224 = vmatprep.subr.mxu0 0.0
        %3225 = vmatpush1.msra.mxu0 0.0
        %3226 = vmatprep.subr.mxu0 0.0
        %3227 = vmatpush1.msra.mxu0 0.0
        %3228 = vmatprep.subr.mxu0 0.0
        %3229 = vmatpush1.msra.mxu0 0.0
        %3230 = vmatprep.subr.mxu0 0.0
        %3231 = vmatpush1.msra.mxu0 0.0
        %3232 = vmatprep.subr.mxu0 0.0
        %3233 = vmatpush1.msra.mxu0 0.0
        %3234 = vmatprep.subr.mxu0 0.0
        %3235 = vmatpush1.msra.mxu0 0.0
        %3236 = vmatprep.subr.mxu0 0.0
        %3237 = vmatpush1.msra.mxu0 0.0
        %3238 = vmatprep.subr.mxu0 0.0
        %3239 = vmatpush1.msra.mxu0 0.0
        %3240 = vmatprep.subr.mxu0 0.0
        %3241 = vmatpush1.msra.mxu0 0.0
        %3242 = vmatprep.subr.mxu0 0.0
        %3243 = vmatpush1.msra.mxu0 0.0
        %3244 = vmatprep.subr.mxu0 0.0
        %3245 = vmatpush1.msra.mxu0 0.0
        %3246 = vmatprep.subr.mxu0 0.0
        %3247 = vmatpush1.msra.mxu0 0.0
        %3248 = vmatprep.subr.mxu0 0.0
        %3249 = vmatpush1.msra.mxu0 0.0
        %3250 = vmatprep.mubr.f32.mxu0 0.0
        %3251 = vmatmul.mubr.f32.gmra.mrb[0].mxu0 %v2851
        %v3252 = vpop.f32.mrb[0].mxu0
        %v3253 = vadd.f32 0.0, %v3252
        %v3254 = vpop.f32.mrb[0].mxu0
        %v3255 = vadd.f32 0.0, %v3254
        %3256 = vmatprep.mubr.f32.mxu0 0.0
        %3257 = vmatmul.mubr.f32.gmra.mrb[0].mxu0 %v2854
        %v3258 = vpop.f32.mrb[0].mxu0
        %v3259 = vadd.f32 0.0, %v3258
        %v3260 = vpop.f32.mrb[0].mxu0
        %v3261 = vadd.f32 0.0, %v3260
        %3262 = vdwg.mxu0
        %3263 = vmatprep.subr.mxu0 0.0
        %3264 = vmatpush1.msra.mxu0 %v2876
        %3265 = vmatprep.subr.mxu0 0.0
        %3266 = vmatpush1.msra.mxu0 0.0
        %3267 = vmatprep.subr.mxu0 0.0
        %3268 = vmatpush1.msra.mxu0 0.0
        %3269 = vmatprep.subr.mxu0 0.0
        %3270 = vmatpush1.msra.mxu0 0.0
        %3271 = vmatprep.subr.mxu0 0.0
        %3272 = vmatpush1.msra.mxu0 0.0
        %3273 = vmatprep.subr.mxu0 0.0
        %3274 = vmatpush1.msra.mxu0 0.0
        %3275 = vmatprep.subr.mxu0 0.0
        %3276 = vmatpush1.msra.mxu0 0.0
        %3277 = vmatprep.subr.mxu0 0.0
        %3278 = vmatpush1.msra.mxu0 0.0
        %3279 = vmatprep.subr.mxu0 0.0
        %3280 = vmatpush1.msra.mxu0 0.0
        %3281 = vmatprep.subr.mxu0 0.0
        %3282 = vmatpush1.msra.mxu0 0.0
        %3283 = vmatprep.subr.mxu0 0.0
        %3284 = vmatpush1.msra.mxu0 0.0
        %3285 = vmatprep.subr.mxu0 0.0
        %3286 = vmatpush1.msra.mxu0 0.0
        %3287 = vmatprep.subr.mxu0 0.0
        %3288 = vmatpush1.msra.mxu0 0.0
        %3289 = vmatprep.subr.mxu0 0.0
        %3290 = vmatpush1.msra.mxu0 0.0
        %3291 = vmatprep.subr.mxu0 0.0
        %3292 = vmatpush1.msra.mxu0 0.0
        %3293 = vmatprep.subr.mxu0 0.0
        %3294 = vmatpush1.msra.mxu0 0.0
        %3295 = vmatprep.subr.mxu0 0.0
        %3296 = vmatpush1.msra.mxu0 0.0
        %3297 = vmatprep.subr.mxu0 0.0
        %3298 = vmatpush1.msra.mxu0 0.0
        %3299 = vmatprep.subr.mxu0 0.0
        %3300 = vmatpush1.msra.mxu0 0.0
        %3301 = vmatprep.subr.mxu0 0.0
        %3302 = vmatpush1.msra.mxu0 0.0
        %3303 = vmatprep.subr.mxu0 0.0
        %3304 = vmatpush1.msra.mxu0 0.0
        %3305 = vmatprep.subr.mxu0 0.0
        %3306 = vmatpush1.msra.mxu0 0.0
        %3307 = vmatprep.subr.mxu0 0.0
        %3308 = vmatpush1.msra.mxu0 0.0
        %3309 = vmatprep.subr.mxu0 0.0
        %3310 = vmatpush1.msra.mxu0 0.0
        %3311 = vmatprep.subr.mxu0 0.0
        %3312 = vmatpush1.msra.mxu0 0.0
        %3313 = vmatprep.subr.mxu0 0.0
        %3314 = vmatpush1.msra.mxu0 0.0
        %3315 = vmatprep.subr.mxu0 0.0
        %3316 = vmatpush1.msra.mxu0 0.0
        %3317 = vmatprep.subr.mxu0 0.0
        %3318 = vmatpush1.msra.mxu0 0.0
        %3319 = vmatprep.subr.mxu0 0.0
        %3320 = vmatpush1.msra.mxu0 0.0
        %3321 = vmatprep.subr.mxu0 0.0
        %3322 = vmatpush1.msra.mxu0 0.0
        %3323 = vmatprep.subr.mxu0 0.0
        %3324 = vmatpush1.msra.mxu0 0.0
        %3325 = vmatprep.subr.mxu0 0.0
        %3326 = vmatpush1.msra.mxu0 0.0
        %3327 = vmatprep.mubr.f32.mxu0 0.0
        %3328 = vmatmul.mubr.f32.gmra.mrb[0].mxu0 %v2851
        %v3329 = vpop.f32.mrb[0].mxu0
        %v3330 = vadd.f32 0.0, %v3329
        %v3331 = vpop.f32.mrb[0].mxu0
        %3332 = vmatprep.mubr.f32.mxu0 0.0
        %3333 = vmatmul.mubr.f32.gmra.mrb[0].mxu0 %v2854
        %v3334 = vpop.f32.mrb[0].mxu0
        %v3335 = vadd.f32 0.0, %v3334
        %v3336 = vpop.f32.mrb[0].mxu0
        %3337 = vdwg.mxu0
        %v3338 = vadd.f32 %v2772, %v2945
        %v3339 = vadd.f32 %v2773, %v2947
        %v3340 = vadd.f32 %v2774, %v3022
        %v3341 = vadd.f32 %v2775, %v3024
        %v3342 = vadd.f32 %v2776, %v3099
        %v3343 = vadd.f32 %v2777, %v3101
        %v3344 = vadd.f32 %v2778, %v3176
        %v3345 = vadd.f32 %v2779, %v3178
        %v3346 = vadd.f32 %v2780, %v3253
        %v3347 = vadd.f32 %v2781, %v3255
        %v3348 = vadd.f32 %v2782, %v3330
        %v3349 = vadd.f32 %v2783, %v2951
        %v3350 = vadd.f32 %v2784, %v2953
        %v3351 = vadd.f32 %v2785, %v3028
        %v3352 = vadd.f32 %v2786, %v3030
        %v3353 = vadd.f32 %v2787, %v3105
        %v3354 = vadd.f32 %v2788, %v3107
        %v3355 = vadd.f32 %v2789, %v3182
        %v3356 = vadd.f32 %v2790, %v3184
        %v3357 = vadd.f32 %v2791, %v3259
        %v3358 = vadd.f32 %v2792, %v3261
        %v3359 = vadd.f32 %v2793, %v3335
        %v3360 = vld [vmem:[%s302] sm:$0x77]
        %v3361 = vld [vmem:[%s302 + $0x8] sm:$0x77]
        %v3362 = vld [vmem:[%s302 + $0x10] sm:$0x77]
        %v3363 = vld [vmem:[%s302 + $0x18] sm:$0x77]
        %v3364 = vld [vmem:[%s302 + $0x20] sm:$0x77]
        %v3365 = vld [vmem:[%s302 + $0x28] sm:$0x77]
        %3366 = vrot.lane.b32.xlu0 %v1577, 65
        %v3367 = vpop.permute.xlu0 %3366
        %3368 = vrot.lane.b32.xlu0 %v1578, 65
        %v3369 = vpop.permute.xlu0 %3368
        %3370 = vrot.lane.b32.xlu0 %v1579, 65
        %v3371 = vpop.permute.xlu0 %3370
        %3372 = vrot.lane.b32.xlu0 %v1580, 65
        %v3373 = vpop.permute.xlu0 %3372
        %3374 = vrot.lane.b32.xlu0 %v1581, 65
        %v3375 = vpop.permute.xlu0 %3374
        %3376 = vrot.lane.b32.xlu0 %v1576, 65
        %v3377 = vpop.permute.xlu0 %3376
        %v3378 = vrot.slane %v3367, 4
        %v3379 = vrot.slane %v3369, 4
        %v3380 = vrot.slane %v3371, 4
        %v3381 = vrot.slane %v3373, 4
        %v3382 = vrot.slane %v3375, 4
        %v3383 = vrot.slane %v3377, 4
        %v3384 = vsel %vm2272, %v3378, %v3367
        %v3385 = vsel %vm423, %v3378, %v3379
        %v3386 = vsel %vm2272, %v3385, %v3369
        %v3387 = vsel %vm423, %v3379, %v3380
        %v3388 = vsel %vm2272, %v3387, %v3371
        %v3389 = vsel %vm423, %v3380, %v3381
        %v3390 = vsel %vm2272, %v3389, %v3373
        %v3391 = vsel %vm423, %v3381, %v3382
        %v3392 = vsel %vm2272, %v3391, %v3375
        %v3393 = vsel %vm423, %v3382, %v3383
        %v3394 = vsel %vm2272, %v3393, %v3377
        %v3401 = vmul.f32 %v3360, %v3384
        %v3402 = vmul.f32 %v3361, %v3386
        %v3403 = vmul.f32 %v3362, %v3388
        %v3404 = vmul.f32 %v3363, %v3390
        %v3405 = vmul.f32 %v3364, %v3392
        %v3406 = vmul.f32 %v3365, %v3394
        %s3407 = scalar_lea.vmem %s1, 80
        %v3408 = vld [vmem:[%s3407] sm:$0xff]
        %v3409 = vld [vmem:[%s3407 + $0x8] sm:$0xff]
        %v3416 = vcombine.high %v3401, %v3401
        %v3417 = vcombine.high %v3402, %v3402
        %v3418 = vcombine.high %v3403, %v3403
        %v3419 = vcombine.high %v3404, %v3404
        %v3420 = vcombine.high %v3405, %v3405
        %v3421 = vcombine.high %v3406, %v3406
        %3422 = vrot.lane.b32.xlu0 %v3401, 63
        %v3423 = vpop.permute.xlu0 %3422
        %3424 = vrot.lane.b32.xlu0 %v3416, 63
        %v3425 = vpop.permute.xlu0 %3424
        %3426 = vrot.lane.b32.xlu0 %v3402, 63
        %v3427 = vpop.permute.xlu0 %3426
        %3428 = vrot.lane.b32.xlu0 %v3417, 63
        %v3429 = vpop.permute.xlu0 %3428
        %3430 = vrot.lane.b32.xlu0 %v3403, 63
        %v3431 = vpop.permute.xlu0 %3430
        %3432 = vrot.lane.b32.xlu0 %v3418, 63
        %v3433 = vpop.permute.xlu0 %3432
        %3434 = vrot.lane.b32.xlu0 %v3404, 63
        %v3435 = vpop.permute.xlu0 %3434
        %3436 = vrot.lane.b32.xlu0 %v3419, 63
        %v3437 = vpop.permute.xlu0 %3436
        %3438 = vrot.lane.b32.xlu0 %v3405, 63
        %v3439 = vpop.permute.xlu0 %3438
        %3440 = vrot.lane.b32.xlu0 %v3420, 63
        %v3441 = vpop.permute.xlu0 %3440
        %3442 = vrot.lane.b32.xlu0 %v3406, 63
        %v3443 = vpop.permute.xlu0 %3442
        %3444 = vrot.lane.b32.xlu0 %v3421, 63
        %v3445 = vpop.permute.xlu0 %3444
        %v3446 = vsel %vm2209, %v3423, %v3425
        %v3447 = vsel %vm2209, %v3425, %v3427
        %v3448 = vsel %vm2209, %v3427, %v3429
        %v3449 = vsel %vm2209, %v3429, %v3431
        %v3450 = vsel %vm2209, %v3431, %v3433
        %v3451 = vsel %vm2209, %v3433, %v3435
        %v3452 = vsel %vm2209, %v3435, %v3437
        %v3453 = vsel %vm2209, %v3437, %v3439
        %v3454 = vsel %vm2209, %v3439, %v3441
        %v3455 = vsel %vm2209, %v3441, %v3443
        %v3456 = vsel %vm2209, %v3443, %v3445
        %v3458 = vsel %vm499, %v3408, 0
        %v3461 = vsel %vm499, %v3409, 0
        %v3463 = vsel %vm506, %v3446, 0
        %v3465 = vsel %vm506, %v3447, 0
        %v3467 = vsel %vm506, %v3448, 0
        %v3469 = vsel %vm506, %v3449, 0
        %v3471 = vsel %vm506, %v3450, 0
        %v3473 = vsel %vm506, %v3451, 0
        %v3475 = vsel %vm506, %v3452, 0
        %v3477 = vsel %vm506, %v3453, 0
        %v3479 = vsel %vm506, %v3454, 0
        %v3481 = vsel %vm506, %v3455, 0
        %v3483 = vsel %vm506, %v3456, 0
        %3485 = vmatprep.subr.mxu0 %v3465
        %3486 = vmatpush1.msra.mxu0 %v3463
        %3487 = vmatprep.subr.mxu0 0.0
        %3488 = vmatpush1.msra.mxu0 0.0
        %3489 = vmatprep.subr.mxu0 0.0
        %3490 = vmatpush1.msra.mxu0 0.0
        %3491 = vmatprep.subr.mxu0 0.0
        %3492 = vmatpush1.msra.mxu0 0.0
        %3493 = vmatprep.subr.mxu0 0.0
        %3494 = vmatpush1.msra.mxu0 0.0
        %3495 = vmatprep.subr.mxu0 0.0
        %3496 = vmatpush1.msra.mxu0 0.0
        %3497 = vmatprep.subr.mxu0 0.0
        %3498 = vmatpush1.msra.mxu0 0.0
        %3499 = vmatprep.subr.mxu0 0.0
        %3500 = vmatpush1.msra.mxu0 0.0
        %3501 = vmatprep.subr.mxu0 0.0
        %3502 = vmatpush1.msra.mxu0 0.0
        %3503 = vmatprep.subr.mxu0 0.0
        %3504 = vmatpush1.msra.mxu0 0.0
        %3505 = vmatprep.subr.mxu0 0.0
        %3506 = vmatpush1.msra.mxu0 0.0
        %3507 = vmatprep.subr.mxu0 0.0
        %3508 = vmatpush1.msra.mxu0 0.0
        %3509 = vmatprep.subr.mxu0 0.0
        %3510 = vmatpush1.msra.mxu0 0.0
        %3511 = vmatprep.subr.mxu0 0.0
        %3512 = vmatpush1.msra.mxu0 0.0
        %3513 = vmatprep.subr.mxu0 0.0
        %3514 = vmatpush1.msra.mxu0 0.0
        %3515 = vmatprep.subr.mxu0 0.0
        %3516 = vmatpush1.msra.mxu0 0.0
        %3517 = vmatprep.subr.mxu0 0.0
        %3518 = vmatpush1.msra.mxu0 0.0
        %3519 = vmatprep.subr.mxu0 0.0
        %3520 = vmatpush1.msra.mxu0 0.0
        %3521 = vmatprep.subr.mxu0 0.0
        %3522 = vmatpush1.msra.mxu0 0.0
        %3523 = vmatprep.subr.mxu0 0.0
        %3524 = vmatpush1.msra.mxu0 0.0
        %3525 = vmatprep.subr.mxu0 0.0
        %3526 = vmatpush1.msra.mxu0 0.0
        %3527 = vmatprep.subr.mxu0 0.0
        %3528 = vmatpush1.msra.mxu0 0.0
        %3529 = vmatprep.subr.mxu0 0.0
        %3530 = vmatpush1.msra.mxu0 0.0
        %3531 = vmatprep.subr.mxu0 0.0
        %3532 = vmatpush1.msra.mxu0 0.0
        %3533 = vmatprep.subr.mxu0 0.0
        %3534 = vmatpush1.msra.mxu0 0.0
        %3535 = vmatprep.subr.mxu0 0.0
        %3536 = vmatpush1.msra.mxu0 0.0
        %3537 = vmatprep.subr.mxu0 0.0
        %3538 = vmatpush1.msra.mxu0 0.0
        %3539 = vmatprep.subr.mxu0 0.0
        %3540 = vmatpush1.msra.mxu0 0.0
        %3541 = vmatprep.subr.mxu0 0.0
        %3542 = vmatpush1.msra.mxu0 0.0
        %3543 = vmatprep.subr.mxu0 0.0
        %3544 = vmatpush1.msra.mxu0 0.0
        %3545 = vmatprep.subr.mxu0 0.0
        %3546 = vmatpush1.msra.mxu0 0.0
        %3547 = vmatprep.subr.mxu0 0.0
        %3548 = vmatpush1.msra.mxu0 0.0
        %3549 = vmatprep.mubr.f32.mxu0 0.0
        %3550 = vmatmul.mubr.f32.gmra.mrb[0].mxu0 %v3458
        %v3551 = vpop.f32.mrb[0].mxu0
        %v3552 = vadd.f32 0.0, %v3551
        %v3553 = vpop.f32.mrb[0].mxu0
        %v3554 = vadd.f32 0.0, %v3553
        %3555 = vmatprep.mubr.f32.mxu0 0.0
        %3556 = vmatmul.mubr.f32.gmra.mrb[0].mxu0 %v3461
        %v3557 = vpop.f32.mrb[0].mxu0
        %v3558 = vadd.f32 0.0, %v3557
        %v3559 = vpop.f32.mrb[0].mxu0
        %v3560 = vadd.f32 0.0, %v3559
        %3561 = vdwg.mxu0
        %3562 = vmatprep.subr.mxu0 %v3469
        %3563 = vmatpush1.msra.mxu0 %v3467
        %3564 = vmatprep.subr.mxu0 0.0
        %3565 = vmatpush1.msra.mxu0 0.0
        %3566 = vmatprep.subr.mxu0 0.0
        %3567 = vmatpush1.msra.mxu0 0.0
        %3568 = vmatprep.subr.mxu0 0.0
        %3569 = vmatpush1.msra.mxu0 0.0
        %3570 = vmatprep.subr.mxu0 0.0
        %3571 = vmatpush1.msra.mxu0 0.0
        %3572 = vmatprep.subr.mxu0 0.0
        %3573 = vmatpush1.msra.mxu0 0.0
        %3574 = vmatprep.subr.mxu0 0.0
        %3575 = vmatpush1.msra.mxu0 0.0
        %3576 = vmatprep.subr.mxu0 0.0
        %3577 = vmatpush1.msra.mxu0 0.0
        %3578 = vmatprep.subr.mxu0 0.0
        %3579 = vmatpush1.msra.mxu0 0.0
        %3580 = vmatprep.subr.mxu0 0.0
        %3581 = vmatpush1.msra.mxu0 0.0
        %3582 = vmatprep.subr.mxu0 0.0
        %3583 = vmatpush1.msra.mxu0 0.0
        %3584 = vmatprep.subr.mxu0 0.0
        %3585 = vmatpush1.msra.mxu0 0.0
        %3586 = vmatprep.subr.mxu0 0.0
        %3587 = vmatpush1.msra.mxu0 0.0
        %3588 = vmatprep.subr.mxu0 0.0
        %3589 = vmatpush1.msra.mxu0 0.0
        %3590 = vmatprep.subr.mxu0 0.0
        %3591 = vmatpush1.msra.mxu0 0.0
        %3592 = vmatprep.subr.mxu0 0.0
        %3593 = vmatpush1.msra.mxu0 0.0
        %3594 = vmatprep.subr.mxu0 0.0
        %3595 = vmatpush1.msra.mxu0 0.0
        %3596 = vmatprep.subr.mxu0 0.0
        %3597 = vmatpush1.msra.mxu0 0.0
        %3598 = vmatprep.subr.mxu0 0.0
        %3599 = vmatpush1.msra.mxu0 0.0
        %3600 = vmatprep.subr.mxu0 0.0
        %3601 = vmatpush1.msra.mxu0 0.0
        %3602 = vmatprep.subr.mxu0 0.0
        %3603 = vmatpush1.msra.mxu0 0.0
        %3604 = vmatprep.subr.mxu0 0.0
        %3605 = vmatpush1.msra.mxu0 0.0
        %3606 = vmatprep.subr.mxu0 0.0
        %3607 = vmatpush1.msra.mxu0 0.0
        %3608 = vmatprep.subr.mxu0 0.0
        %3609 = vmatpush1.msra.mxu0 0.0
        %3610 = vmatprep.subr.mxu0 0.0
        %3611 = vmatpush1.msra.mxu0 0.0
        %3612 = vmatprep.subr.mxu0 0.0
        %3613 = vmatpush1.msra.mxu0 0.0
        %3614 = vmatprep.subr.mxu0 0.0
        %3615 = vmatpush1.msra.mxu0 0.0
        %3616 = vmatprep.subr.mxu0 0.0
        %3617 = vmatpush1.msra.mxu0 0.0
        %3618 = vmatprep.subr.mxu0 0.0
        %3619 = vmatpush1.msra.mxu0 0.0
        %3620 = vmatprep.subr.mxu0 0.0
        %3621 = vmatpush1.msra.mxu0 0.0
        %3622 = vmatprep.subr.mxu0 0.0
        %3623 = vmatpush1.msra.mxu0 0.0
        %3624 = vmatprep.subr.mxu0 0.0
        %3625 = vmatpush1.msra.mxu0 0.0
        %3626 = vmatprep.mubr.f32.mxu0 0.0
        %3627 = vmatmul.mubr.f32.gmra.mrb[0].mxu0 %v3458
        %v3628 = vpop.f32.mrb[0].mxu0
        %v3629 = vadd.f32 0.0, %v3628
        %v3630 = vpop.f32.mrb[0].mxu0
        %v3631 = vadd.f32 0.0, %v3630
        %3632 = vmatprep.mubr.f32.mxu0 0.0
        %3633 = vmatmul.mubr.f32.gmra.mrb[0].mxu0 %v3461
        %v3634 = vpop.f32.mrb[0].mxu0
        %v3635 = vadd.f32 0.0, %v3634
        %v3636 = vpop.f32.mrb[0].mxu0
        %v3637 = vadd.f32 0.0, %v3636
        %3638 = vdwg.mxu0
        %3639 = vmatprep.subr.mxu0 %v3473
        %3640 = vmatpush1.msra.mxu0 %v3471
        %3641 = vmatprep.subr.mxu0 0.0
        %3642 = vmatpush1.msra.mxu0 0.0
        %3643 = vmatprep.subr.mxu0 0.0
        %3644 = vmatpush1.msra.mxu0 0.0
        %3645 = vmatprep.subr.mxu0 0.0
        %3646 = vmatpush1.msra.mxu0 0.0
        %3647 = vmatprep.subr.mxu0 0.0
        %3648 = vmatpush1.msra.mxu0 0.0
        %3649 = vmatprep.subr.mxu0 0.0
        %3650 = vmatpush1.msra.mxu0 0.0
        %3651 = vmatprep.subr.mxu0 0.0
        %3652 = vmatpush1.msra.mxu0 0.0
        %3653 = vmatprep.subr.mxu0 0.0
        %3654 = vmatpush1.msra.mxu0 0.0
        %3655 = vmatprep.subr.mxu0 0.0
        %3656 = vmatpush1.msra.mxu0 0.0
        %3657 = vmatprep.subr.mxu0 0.0
        %3658 = vmatpush1.msra.mxu0 0.0
        %3659 = vmatprep.subr.mxu0 0.0
        %3660 = vmatpush1.msra.mxu0 0.0
        %3661 = vmatprep.subr.mxu0 0.0
        %3662 = vmatpush1.msra.mxu0 0.0
        %3663 = vmatprep.subr.mxu0 0.0
        %3664 = vmatpush1.msra.mxu0 0.0
        %3665 = vmatprep.subr.mxu0 0.0
        %3666 = vmatpush1.msra.mxu0 0.0
        %3667 = vmatprep.subr.mxu0 0.0
        %3668 = vmatpush1.msra.mxu0 0.0
        %3669 = vmatprep.subr.mxu0 0.0
        %3670 = vmatpush1.msra.mxu0 0.0
        %3671 = vmatprep.subr.mxu0 0.0
        %3672 = vmatpush1.msra.mxu0 0.0
        %3673 = vmatprep.subr.mxu0 0.0
        %3674 = vmatpush1.msra.mxu0 0.0
        %3675 = vmatprep.subr.mxu0 0.0
        %3676 = vmatpush1.msra.mxu0 0.0
        %3677 = vmatprep.subr.mxu0 0.0
        %3678 = vmatpush1.msra.mxu0 0.0
        %3679 = vmatprep.subr.mxu0 0.0
        %3680 = vmatpush1.msra.mxu0 0.0
        %3681 = vmatprep.subr.mxu0 0.0
        %3682 = vmatpush1.msra.mxu0 0.0
        %3683 = vmatprep.subr.mxu0 0.0
        %3684 = vmatpush1.msra.mxu0 0.0
        %3685 = vmatprep.subr.mxu0 0.0
        %3686 = vmatpush1.msra.mxu0 0.0
        %3687 = vmatprep.subr.mxu0 0.0
        %3688 = vmatpush1.msra.mxu0 0.0
        %3689 = vmatprep.subr.mxu0 0.0
        %3690 = vmatpush1.msra.mxu0 0.0
        %3691 = vmatprep.subr.mxu0 0.0
        %3692 = vmatpush1.msra.mxu0 0.0
        %3693 = vmatprep.subr.mxu0 0.0
        %3694 = vmatpush1.msra.mxu0 0.0
        %3695 = vmatprep.subr.mxu0 0.0
        %3696 = vmatpush1.msra.mxu0 0.0
        %3697 = vmatprep.subr.mxu0 0.0
        %3698 = vmatpush1.msra.mxu0 0.0
        %3699 = vmatprep.subr.mxu0 0.0
        %3700 = vmatpush1.msra.mxu0 0.0
        %3701 = vmatprep.subr.mxu0 0.0
        %3702 = vmatpush1.msra.mxu0 0.0
        %3703 = vmatprep.mubr.f32.mxu0 0.0
        %3704 = vmatmul.mubr.f32.gmra.mrb[0].mxu0 %v3458
        %v3705 = vpop.f32.mrb[0].mxu0
        %v3706 = vadd.f32 0.0, %v3705
        %v3707 = vpop.f32.mrb[0].mxu0
        %v3708 = vadd.f32 0.0, %v3707
        %3709 = vmatprep.mubr.f32.mxu0 0.0
        %3710 = vmatmul.mubr.f32.gmra.mrb[0].mxu0 %v3461
        %v3711 = vpop.f32.mrb[0].mxu0
        %v3712 = vadd.f32 0.0, %v3711
        %v3713 = vpop.f32.mrb[0].mxu0
        %v3714 = vadd.f32 0.0, %v3713
        %3715 = vdwg.mxu0
        %3716 = vmatprep.subr.mxu0 %v3477
        %3717 = vmatpush1.msra.mxu0 %v3475
        %3718 = vmatprep.subr.mxu0 0.0
        %3719 = vmatpush1.msra.mxu0 0.0
        %3720 = vmatprep.subr.mxu0 0.0
        %3721 = vmatpush1.msra.mxu0 0.0
        %3722 = vmatprep.subr.mxu0 0.0
        %3723 = vmatpush1.msra.mxu0 0.0
        %3724 = vmatprep.subr.mxu0 0.0
        %3725 = vmatpush1.msra.mxu0 0.0
        %3726 = vmatprep.subr.mxu0 0.0
        %3727 = vmatpush1.msra.mxu0 0.0
        %3728 = vmatprep.subr.mxu0 0.0
        %3729 = vmatpush1.msra.mxu0 0.0
        %3730 = vmatprep.subr.mxu0 0.0
        %3731 = vmatpush1.msra.mxu0 0.0
        %3732 = vmatprep.subr.mxu0 0.0
        %3733 = vmatpush1.msra.mxu0 0.0
        %3734 = vmatprep.subr.mxu0 0.0
        %3735 = vmatpush1.msra.mxu0 0.0
        %3736 = vmatprep.subr.mxu0 0.0
        %3737 = vmatpush1.msra.mxu0 0.0
        %3738 = vmatprep.subr.mxu0 0.0
        %3739 = vmatpush1.msra.mxu0 0.0
        %3740 = vmatprep.subr.mxu0 0.0
        %3741 = vmatpush1.msra.mxu0 0.0
        %3742 = vmatprep.subr.mxu0 0.0
        %3743 = vmatpush1.msra.mxu0 0.0
        %3744 = vmatprep.subr.mxu0 0.0
        %3745 = vmatpush1.msra.mxu0 0.0
        %3746 = vmatprep.subr.mxu0 0.0
        %3747 = vmatpush1.msra.mxu0 0.0
        %3748 = vmatprep.subr.mxu0 0.0
        %3749 = vmatpush1.msra.mxu0 0.0
        %3750 = vmatprep.subr.mxu0 0.0
        %3751 = vmatpush1.msra.mxu0 0.0
        %3752 = vmatprep.subr.mxu0 0.0
        %3753 = vmatpush1.msra.mxu0 0.0
        %3754 = vmatprep.subr.mxu0 0.0
        %3755 = vmatpush1.msra.mxu0 0.0
        %3756 = vmatprep.subr.mxu0 0.0
        %3757 = vmatpush1.msra.mxu0 0.0
        %3758 = vmatprep.subr.mxu0 0.0
        %3759 = vmatpush1.msra.mxu0 0.0
        %3760 = vmatprep.subr.mxu0 0.0
        %3761 = vmatpush1.msra.mxu0 0.0
        %3762 = vmatprep.subr.mxu0 0.0
        %3763 = vmatpush1.msra.mxu0 0.0
        %3764 = vmatprep.subr.mxu0 0.0
        %3765 = vmatpush1.msra.mxu0 0.0
        %3766 = vmatprep.subr.mxu0 0.0
        %3767 = vmatpush1.msra.mxu0 0.0
        %3768 = vmatprep.subr.mxu0 0.0
        %3769 = vmatpush1.msra.mxu0 0.0
        %3770 = vmatprep.subr.mxu0 0.0
        %3771 = vmatpush1.msra.mxu0 0.0
        %3772 = vmatprep.subr.mxu0 0.0
        %3773 = vmatpush1.msra.mxu0 0.0
        %3774 = vmatprep.subr.mxu0 0.0
        %3775 = vmatpush1.msra.mxu0 0.0
        %3776 = vmatprep.subr.mxu0 0.0
        %3777 = vmatpush1.msra.mxu0 0.0
        %3778 = vmatprep.subr.mxu0 0.0
        %3779 = vmatpush1.msra.mxu0 0.0
        %3780 = vmatprep.mubr.f32.mxu0 0.0
        %3781 = vmatmul.mubr.f32.gmra.mrb[0].mxu0 %v3458
        %v3782 = vpop.f32.mrb[0].mxu0
        %v3783 = vadd.f32 0.0, %v3782
        %v3784 = vpop.f32.mrb[0].mxu0
        %v3785 = vadd.f32 0.0, %v3784
        %3786 = vmatprep.mubr.f32.mxu0 0.0
        %3787 = vmatmul.mubr.f32.gmra.mrb[0].mxu0 %v3461
        %v3788 = vpop.f32.mrb[0].mxu0
        %v3789 = vadd.f32 0.0, %v3788
        %v3790 = vpop.f32.mrb[0].mxu0
        %v3791 = vadd.f32 0.0, %v3790
        %3792 = vdwg.mxu0
        %3793 = vmatprep.subr.mxu0 %v3481
        %3794 = vmatpush1.msra.mxu0 %v3479
        %3795 = vmatprep.subr.mxu0 0.0
        %3796 = vmatpush1.msra.mxu0 0.0
        %3797 = vmatprep.subr.mxu0 0.0
        %3798 = vmatpush1.msra.mxu0 0.0
        %3799 = vmatprep.subr.mxu0 0.0
        %3800 = vmatpush1.msra.mxu0 0.0
        %3801 = vmatprep.subr.mxu0 0.0
        %3802 = vmatpush1.msra.mxu0 0.0
        %3803 = vmatprep.subr.mxu0 0.0
        %3804 = vmatpush1.msra.mxu0 0.0
        %3805 = vmatprep.subr.mxu0 0.0
        %3806 = vmatpush1.msra.mxu0 0.0
        %3807 = vmatprep.subr.mxu0 0.0
        %3808 = vmatpush1.msra.mxu0 0.0
        %3809 = vmatprep.subr.mxu0 0.0
        %3810 = vmatpush1.msra.mxu0 0.0
        %3811 = vmatprep.subr.mxu0 0.0
        %3812 = vmatpush1.msra.mxu0 0.0
        %3813 = vmatprep.subr.mxu0 0.0
        %3814 = vmatpush1.msra.mxu0 0.0
        %3815 = vmatprep.subr.mxu0 0.0
        %3816 = vmatpush1.msra.mxu0 0.0
        %3817 = vmatprep.subr.mxu0 0.0
        %3818 = vmatpush1.msra.mxu0 0.0
        %3819 = vmatprep.subr.mxu0 0.0
        %3820 = vmatpush1.msra.mxu0 0.0
        %3821 = vmatprep.subr.mxu0 0.0
        %3822 = vmatpush1.msra.mxu0 0.0
        %3823 = vmatprep.subr.mxu0 0.0
        %3824 = vmatpush1.msra.mxu0 0.0
        %3825 = vmatprep.subr.mxu0 0.0
        %3826 = vmatpush1.msra.mxu0 0.0
        %3827 = vmatprep.subr.mxu0 0.0
        %3828 = vmatpush1.msra.mxu0 0.0
        %3829 = vmatprep.subr.mxu0 0.0
        %3830 = vmatpush1.msra.mxu0 0.0
        %3831 = vmatprep.subr.mxu0 0.0
        %3832 = vmatpush1.msra.mxu0 0.0
        %3833 = vmatprep.subr.mxu0 0.0
        %3834 = vmatpush1.msra.mxu0 0.0
        %3835 = vmatprep.subr.mxu0 0.0
        %3836 = vmatpush1.msra.mxu0 0.0
        %3837 = vmatprep.subr.mxu0 0.0
        %3838 = vmatpush1.msra.mxu0 0.0
        %3839 = vmatprep.subr.mxu0 0.0
        %3840 = vmatpush1.msra.mxu0 0.0
        %3841 = vmatprep.subr.mxu0 0.0
        %3842 = vmatpush1.msra.mxu0 0.0
        %3843 = vmatprep.subr.mxu0 0.0
        %3844 = vmatpush1.msra.mxu0 0.0
        %3845 = vmatprep.subr.mxu0 0.0
        %3846 = vmatpush1.msra.mxu0 0.0
        %3847 = vmatprep.subr.mxu0 0.0
        %3848 = vmatpush1.msra.mxu0 0.0
        %3849 = vmatprep.subr.mxu0 0.0
        %3850 = vmatpush1.msra.mxu0 0.0
        %3851 = vmatprep.subr.mxu0 0.0
        %3852 = vmatpush1.msra.mxu0 0.0
        %3853 = vmatprep.subr.mxu0 0.0
        %3854 = vmatpush1.msra.mxu0 0.0
        %3855 = vmatprep.subr.mxu0 0.0
        %3856 = vmatpush1.msra.mxu0 0.0
        %3857 = vmatprep.mubr.f32.mxu0 0.0
        %3858 = vmatmul.mubr.f32.gmra.mrb[0].mxu0 %v3458
        %v3859 = vpop.f32.mrb[0].mxu0
        %v3860 = vadd.f32 0.0, %v3859
        %v3861 = vpop.f32.mrb[0].mxu0
        %v3862 = vadd.f32 0.0, %v3861
        %3863 = vmatprep.mubr.f32.mxu0 0.0
        %3864 = vmatmul.mubr.f32.gmra.mrb[0].mxu0 %v3461
        %v3865 = vpop.f32.mrb[0].mxu0
        %v3866 = vadd.f32 0.0, %v3865
        %v3867 = vpop.f32.mrb[0].mxu0
        %v3868 = vadd.f32 0.0, %v3867
        %3869 = vdwg.mxu0
        %3870 = vmatprep.subr.mxu0 0.0
        %3871 = vmatpush1.msra.mxu0 %v3483
        %3872 = vmatprep.subr.mxu0 0.0
        %3873 = vmatpush1.msra.mxu0 0.0
        %3874 = vmatprep.subr.mxu0 0.0
        %3875 = vmatpush1.msra.mxu0 0.0
        %3876 = vmatprep.subr.mxu0 0.0
        %3877 = vmatpush1.msra.mxu0 0.0
        %3878 = vmatprep.subr.mxu0 0.0
        %3879 = vmatpush1.msra.mxu0 0.0
        %3880 = vmatprep.subr.mxu0 0.0
        %3881 = vmatpush1.msra.mxu0 0.0
        %3882 = vmatprep.subr.mxu0 0.0
        %3883 = vmatpush1.msra.mxu0 0.0
        %3884 = vmatprep.subr.mxu0 0.0
        %3885 = vmatpush1.msra.mxu0 0.0
        %3886 = vmatprep.subr.mxu0 0.0
        %3887 = vmatpush1.msra.mxu0 0.0
        %3888 = vmatprep.subr.mxu0 0.0
        %3889 = vmatpush1.msra.mxu0 0.0
        %3890 = vmatprep.subr.mxu0 0.0
        %3891 = vmatpush1.msra.mxu0 0.0
        %3892 = vmatprep.subr.mxu0 0.0
        %3893 = vmatpush1.msra.mxu0 0.0
        %3894 = vmatprep.subr.mxu0 0.0
        %3895 = vmatpush1.msra.mxu0 0.0
        %3896 = vmatprep.subr.mxu0 0.0
        %3897 = vmatpush1.msra.mxu0 0.0
        %3898 = vmatprep.subr.mxu0 0.0
        %3899 = vmatpush1.msra.mxu0 0.0
        %3900 = vmatprep.subr.mxu0 0.0
        %3901 = vmatpush1.msra.mxu0 0.0
        %3902 = vmatprep.subr.mxu0 0.0
        %3903 = vmatpush1.msra.mxu0 0.0
        %3904 = vmatprep.subr.mxu0 0.0
        %3905 = vmatpush1.msra.mxu0 0.0
        %3906 = vmatprep.subr.mxu0 0.0
        %3907 = vmatpush1.msra.mxu0 0.0
        %3908 = vmatprep.subr.mxu0 0.0
        %3909 = vmatpush1.msra.mxu0 0.0
        %3910 = vmatprep.subr.mxu0 0.0
        %3911 = vmatpush1.msra.mxu0 0.0
        %3912 = vmatprep.subr.mxu0 0.0
        %3913 = vmatpush1.msra.mxu0 0.0
        %3914 = vmatprep.subr.mxu0 0.0
        %3915 = vmatpush1.msra.mxu0 0.0
        %3916 = vmatprep.subr.mxu0 0.0
        %3917 = vmatpush1.msra.mxu0 0.0
        %3918 = vmatprep.subr.mxu0 0.0
        %3919 = vmatpush1.msra.mxu0 0.0
        %3920 = vmatprep.subr.mxu0 0.0
        %3921 = vmatpush1.msra.mxu0 0.0
        %3922 = vmatprep.subr.mxu0 0.0
        %3923 = vmatpush1.msra.mxu0 0.0
        %3924 = vmatprep.subr.mxu0 0.0
        %3925 = vmatpush1.msra.mxu0 0.0
        %3926 = vmatprep.subr.mxu0 0.0
        %3927 = vmatpush1.msra.mxu0 0.0
        %3928 = vmatprep.subr.mxu0 0.0
        %3929 = vmatpush1.msra.mxu0 0.0
        %3930 = vmatprep.subr.mxu0 0.0
        %3931 = vmatpush1.msra.mxu0 0.0
        %3932 = vmatprep.subr.mxu0 0.0
        %3933 = vmatpush1.msra.mxu0 0.0
        %3934 = vmatprep.mubr.f32.mxu0 0.0
        %3935 = vmatmul.mubr.f32.gmra.mrb[0].mxu0 %v3458
        %v3936 = vpop.f32.mrb[0].mxu0
        %v3937 = vadd.f32 0.0, %v3936
        %v3938 = vpop.f32.mrb[0].mxu0
        %3939 = vmatprep.mubr.f32.mxu0 0.0
        %3940 = vmatmul.mubr.f32.gmra.mrb[0].mxu0 %v3461
        %v3941 = vpop.f32.mrb[0].mxu0
        %v3942 = vadd.f32 0.0, %v3941
        %v3943 = vpop.f32.mrb[0].mxu0
        %3944 = vdwg.mxu0
        %v3945 = vadd.f32 %v3338, %v3552
        %v3946 = vadd.f32 %v3339, %v3554
        %v3947 = vadd.f32 %v3340, %v3629
        %v3948 = vadd.f32 %v3341, %v3631
        %v3949 = vadd.f32 %v3342, %v3706
        %v3950 = vadd.f32 %v3343, %v3708
        %v3951 = vadd.f32 %v3344, %v3783
        %v3952 = vadd.f32 %v3345, %v3785
        %v3953 = vadd.f32 %v3346, %v3860
        %v3954 = vadd.f32 %v3347, %v3862
        %v3955 = vadd.f32 %v3348, %v3937
        %v3956 = vadd.f32 %v3349, %v3558
        %v3957 = vadd.f32 %v3350, %v3560
        %v3958 = vadd.f32 %v3351, %v3635
        %v3959 = vadd.f32 %v3352, %v3637
        %v3960 = vadd.f32 %v3353, %v3712
        %v3961 = vadd.f32 %v3354, %v3714
        %v3962 = vadd.f32 %v3355, %v3789
        %v3963 = vadd.f32 %v3356, %v3791
        %v3964 = vadd.f32 %v3357, %v3866
        %v3965 = vadd.f32 %v3358, %v3868
        %v3966 = vadd.f32 %v3359, %v3942
        %v3967 = vld [vmem:[%s302] sm:$0x77]
        %v3968 = vld [vmem:[%s302 + $0x8] sm:$0x77]
        %v3969 = vld [vmem:[%s302 + $0x10] sm:$0x77]
        %v3970 = vld [vmem:[%s302 + $0x18] sm:$0x77]
        %v3971 = vld [vmem:[%s302 + $0x20] sm:$0x77]
        %v3972 = vld [vmem:[%s302 + $0x28] sm:$0x77]
        %3973 = vrot.lane.b32.xlu0 %v398, 79
        %v3974 = vpop.permute.xlu0 %3973
        %3975 = vrot.lane.b32.xlu0 %v399, 79
        %v3976 = vpop.permute.xlu0 %3975
        %3977 = vrot.lane.b32.xlu0 %v400, 79
        %v3978 = vpop.permute.xlu0 %3977
        %3979 = vrot.lane.b32.xlu0 %v401, 79
        %v3980 = vpop.permute.xlu0 %3979
        %3981 = vrot.lane.b32.xlu0 %v402, 79
        %v3982 = vpop.permute.xlu0 %3981
        %3983 = vrot.lane.b32.xlu0 %v397, 79
        %v3984 = vpop.permute.xlu0 %3983
        %v3985 = vrot.slane %v3974, 4
        %v3986 = vrot.slane %v3976, 4
        %v3987 = vrot.slane %v3978, 4
        %v3988 = vrot.slane %v3980, 4
        %v3989 = vrot.slane %v3982, 4
        %v3990 = vrot.slane %v3984, 4
        %v3991 = vsel %vm1663, %v3985, %v3974
        %v3992 = vsel %vm423, %v3985, %v3986
        %v3993 = vsel %vm1663, %v3992, %v3976
        %v3994 = vsel %vm423, %v3986, %v3987
        %v3995 = vsel %vm1663, %v3994, %v3978
        %v3996 = vsel %vm423, %v3987, %v3988
        %v3997 = vsel %vm1663, %v3996, %v3980
        %v3998 = vsel %vm423, %v3988, %v3989
        %v3999 = vsel %vm1663, %v3998, %v3982
        %v4000 = vsel %vm423, %v3989, %v3990
        %v4001 = vsel %vm1663, %v4000, %v3984
        %v4008 = vmul.f32 %v3967, %v3991
        %v4009 = vmul.f32 %v3968, %v3993
        %v4010 = vmul.f32 %v3969, %v3995
        %v4011 = vmul.f32 %v3970, %v3997
        %v4012 = vmul.f32 %v3971, %v3999
        %v4013 = vmul.f32 %v3972, %v4001
        %s4014 = scalar_lea.vmem %s1, 96
        %v4015 = vld [vmem:[%s4014] sm:$0xff]
        %v4016 = vld [vmem:[%s4014 + $0x8] sm:$0xff]
        %v4023 = vcombine.high %v4008, %v4008
        %v4024 = vcombine.high %v4009, %v4009
        %v4025 = vcombine.high %v4010, %v4010
        %v4026 = vcombine.high %v4011, %v4011
        %v4027 = vcombine.high %v4012, %v4012
        %v4028 = vcombine.high %v4013, %v4013
        %4029 = vrot.lane.b32.xlu0 %v4008, 49
        %v4030 = vpop.permute.xlu0 %4029
        %4031 = vrot.lane.b32.xlu0 %v4023, 49
        %v4032 = vpop.permute.xlu0 %4031
        %4033 = vrot.lane.b32.xlu0 %v4009, 49
        %v4034 = vpop.permute.xlu0 %4033
        %4035 = vrot.lane.b32.xlu0 %v4024, 49
        %v4036 = vpop.permute.xlu0 %4035
        %4037 = vrot.lane.b32.xlu0 %v4010, 49
        %v4038 = vpop.permute.xlu0 %4037
        %4039 = vrot.lane.b32.xlu0 %v4025, 49
        %v4040 = vpop.permute.xlu0 %4039
        %4041 = vrot.lane.b32.xlu0 %v4011, 49
        %v4042 = vpop.permute.xlu0 %4041
        %4043 = vrot.lane.b32.xlu0 %v4026, 49
        %v4044 = vpop.permute.xlu0 %4043
        %4045 = vrot.lane.b32.xlu0 %v4012, 49
        %v4046 = vpop.permute.xlu0 %4045
        %4047 = vrot.lane.b32.xlu0 %v4027, 49
        %v4048 = vpop.permute.xlu0 %4047
        %4049 = vrot.lane.b32.xlu0 %v4013, 49
        %v4050 = vpop.permute.xlu0 %4049
        %4051 = vrot.lane.b32.xlu0 %v4028, 49
        %v4052 = vpop.permute.xlu0 %4051
        %v4053 = vsel %vm1600, %v4030, %v4032
        %v4054 = vsel %vm1600, %v4032, %v4034
        %v4055 = vsel %vm1600, %v4034, %v4036
        %v4056 = vsel %vm1600, %v4036, %v4038
        %v4057 = vsel %vm1600, %v4038, %v4040
        %v4058 = vsel %vm1600, %v4040, %v4042
        %v4059 = vsel %vm1600, %v4042, %v4044
        %v4060 = vsel %vm1600, %v4044, %v4046
        %v4061 = vsel %vm1600, %v4046, %v4048
        %v4062 = vsel %vm1600, %v4048, %v4050
        %v4063 = vsel %vm1600, %v4050, %v4052
        %v4065 = vsel %vm499, %v4015, 0
        %v4068 = vsel %vm499, %v4016, 0
        %v4070 = vsel %vm506, %v4053, 0
        %v4072 = vsel %vm506, %v4054, 0
        %v4074 = vsel %vm506, %v4055, 0
        %v4076 = vsel %vm506, %v4056, 0
        %v4078 = vsel %vm506, %v4057, 0
        %v4080 = vsel %vm506, %v4058, 0
        %v4082 = vsel %vm506, %v4059, 0
        %v4084 = vsel %vm506, %v4060, 0
        %v4086 = vsel %vm506, %v4061, 0
        %v4088 = vsel %vm506, %v4062, 0
        %v4090 = vsel %vm506, %v4063, 0
        %4092 = vmatprep.subr.mxu0 %v4072
        %4093 = vmatpush1.msra.mxu0 %v4070
        %4094 = vmatprep.subr.mxu0 0.0
        %4095 = vmatpush1.msra.mxu0 0.0
        %4096 = vmatprep.subr.mxu0 0.0
        %4097 = vmatpush1.msra.mxu0 0.0
        %4098 = vmatprep.subr.mxu0 0.0
        %4099 = vmatpush1.msra.mxu0 0.0
        %4100 = vmatprep.subr.mxu0 0.0
        %4101 = vmatpush1.msra.mxu0 0.0
        %4102 = vmatprep.subr.mxu0 0.0
        %4103 = vmatpush1.msra.mxu0 0.0
        %4104 = vmatprep.subr.mxu0 0.0
        %4105 = vmatpush1.msra.mxu0 0.0
        %4106 = vmatprep.subr.mxu0 0.0
        %4107 = vmatpush1.msra.mxu0 0.0
        %4108 = vmatprep.subr.mxu0 0.0
        %4109 = vmatpush1.msra.mxu0 0.0
        %4110 = vmatprep.subr.mxu0 0.0
        %4111 = vmatpush1.msra.mxu0 0.0
        %4112 = vmatprep.subr.mxu0 0.0
        %4113 = vmatpush1.msra.mxu0 0.0
        %4114 = vmatprep.subr.mxu0 0.0
        %4115 = vmatpush1.msra.mxu0 0.0
        %4116 = vmatprep.subr.mxu0 0.0
        %4117 = vmatpush1.msra.mxu0 0.0
        %4118 = vmatprep.subr.mxu0 0.0
        %4119 = vmatpush1.msra.mxu0 0.0
        %4120 = vmatprep.subr.mxu0 0.0
        %4121 = vmatpush1.msra.mxu0 0.0
        %4122 = vmatprep.subr.mxu0 0.0
        %4123 = vmatpush1.msra.mxu0 0.0
        %4124 = vmatprep.subr.mxu0 0.0
        %4125 = vmatpush1.msra.mxu0 0.0
        %4126 = vmatprep.subr.mxu0 0.0
        %4127 = vmatpush1.msra.mxu0 0.0
        %4128 = vmatprep.subr.mxu0 0.0
        %4129 = vmatpush1.msra.mxu0 0.0
        %4130 = vmatprep.subr.mxu0 0.0
        %4131 = vmatpush1.msra.mxu0 0.0
        %4132 = vmatprep.subr.mxu0 0.0
        %4133 = vmatpush1.msra.mxu0 0.0
        %4134 = vmatprep.subr.mxu0 0.0
        %4135 = vmatpush1.msra.mxu0 0.0
        %4136 = vmatprep.subr.mxu0 0.0
        %4137 = vmatpush1.msra.mxu0 0.0
        %4138 = vmatprep.subr.mxu0 0.0
        %4139 = vmatpush1.msra.mxu0 0.0
        %4140 = vmatprep.subr.mxu0 0.0
        %4141 = vmatpush1.msra.mxu0 0.0
        %4142 = vmatprep.subr.mxu0 0.0
        %4143 = vmatpush1.msra.mxu0 0.0
        %4144 = vmatprep.subr.mxu0 0.0
        %4145 = vmatpush1.msra.mxu0 0.0
        %4146 = vmatprep.subr.mxu0 0.0
        %4147 = vmatpush1.msra.mxu0 0.0
        %4148 = vmatprep.subr.mxu0 0.0
        %4149 = vmatpush1.msra.mxu0 0.0
        %4150 = vmatprep.subr.mxu0 0.0
        %4151 = vmatpush1.msra.mxu0 0.0
        %4152 = vmatprep.subr.mxu0 0.0
        %4153 = vmatpush1.msra.mxu0 0.0
        %4154 = vmatprep.subr.mxu0 0.0
        %4155 = vmatpush1.msra.mxu0 0.0
        %4156 = vmatprep.mubr.f32.mxu0 0.0
        %4157 = vmatmul.mubr.f32.gmra.mrb[0].mxu0 %v4065
        %v4158 = vpop.f32.mrb[0].mxu0
        %v4159 = vadd.f32 0.0, %v4158
        %v4160 = vpop.f32.mrb[0].mxu0
        %v4161 = vadd.f32 0.0, %v4160
        %4162 = vmatprep.mubr.f32.mxu0 0.0
        %4163 = vmatmul.mubr.f32.gmra.mrb[0].mxu0 %v4068
        %v4164 = vpop.f32.mrb[0].mxu0
        %v4165 = vadd.f32 0.0, %v4164
        %v4166 = vpop.f32.mrb[0].mxu0
        %v4167 = vadd.f32 0.0, %v4166
        %4168 = vdwg.mxu0
        %4169 = vmatprep.subr.mxu0 %v4076
        %4170 = vmatpush1.msra.mxu0 %v4074
        %4171 = vmatprep.subr.mxu0 0.0
        %4172 = vmatpush1.msra.mxu0 0.0
        %4173 = vmatprep.subr.mxu0 0.0
        %4174 = vmatpush1.msra.mxu0 0.0
        %4175 = vmatprep.subr.mxu0 0.0
        %4176 = vmatpush1.msra.mxu0 0.0
        %4177 = vmatprep.subr.mxu0 0.0
        %4178 = vmatpush1.msra.mxu0 0.0
        %4179 = vmatprep.subr.mxu0 0.0
        %4180 = vmatpush1.msra.mxu0 0.0
        %4181 = vmatprep.subr.mxu0 0.0
        %4182 = vmatpush1.msra.mxu0 0.0
        %4183 = vmatprep.subr.mxu0 0.0
        %4184 = vmatpush1.msra.mxu0 0.0
        %4185 = vmatprep.subr.mxu0 0.0
        %4186 = vmatpush1.msra.mxu0 0.0
        %4187 = vmatprep.subr.mxu0 0.0
        %4188 = vmatpush1.msra.mxu0 0.0
        %4189 = vmatprep.subr.mxu0 0.0
        %4190 = vmatpush1.msra.mxu0 0.0
        %4191 = vmatprep.subr.mxu0 0.0
        %4192 = vmatpush1.msra.mxu0 0.0
        %4193 = vmatprep.subr.mxu0 0.0
        %4194 = vmatpush1.msra.mxu0 0.0
        %4195 = vmatprep.subr.mxu0 0.0
        %4196 = vmatpush1.msra.mxu0 0.0
        %4197 = vmatprep.subr.mxu0 0.0
        %4198 = vmatpush1.msra.mxu0 0.0
        %4199 = vmatprep.subr.mxu0 0.0
        %4200 = vmatpush1.msra.mxu0 0.0
        %4201 = vmatprep.subr.mxu0 0.0
        %4202 = vmatpush1.msra.mxu0 0.0
        %4203 = vmatprep.subr.mxu0 0.0
        %4204 = vmatpush1.msra.mxu0 0.0
        %4205 = vmatprep.subr.mxu0 0.0
        %4206 = vmatpush1.msra.mxu0 0.0
        %4207 = vmatprep.subr.mxu0 0.0
        %4208 = vmatpush1.msra.mxu0 0.0
        %4209 = vmatprep.subr.mxu0 0.0
        %4210 = vmatpush1.msra.mxu0 0.0
        %4211 = vmatprep.subr.mxu0 0.0
        %4212 = vmatpush1.msra.mxu0 0.0
        %4213 = vmatprep.subr.mxu0 0.0
        %4214 = vmatpush1.msra.mxu0 0.0
        %4215 = vmatprep.subr.mxu0 0.0
        %4216 = vmatpush1.msra.mxu0 0.0
        %4217 = vmatprep.subr.mxu0 0.0
        %4218 = vmatpush1.msra.mxu0 0.0
        %4219 = vmatprep.subr.mxu0 0.0
        %4220 = vmatpush1.msra.mxu0 0.0
        %4221 = vmatprep.subr.mxu0 0.0
        %4222 = vmatpush1.msra.mxu0 0.0
        %4223 = vmatprep.subr.mxu0 0.0
        %4224 = vmatpush1.msra.mxu0 0.0
        %4225 = vmatprep.subr.mxu0 0.0
        %4226 = vmatpush1.msra.mxu0 0.0
        %4227 = vmatprep.subr.mxu0 0.0
        %4228 = vmatpush1.msra.mxu0 0.0
        %4229 = vmatprep.subr.mxu0 0.0
        %4230 = vmatpush1.msra.mxu0 0.0
        %4231 = vmatprep.subr.mxu0 0.0
        %4232 = vmatpush1.msra.mxu0 0.0
        %4233 = vmatprep.mubr.f32.mxu0 0.0
        %4234 = vmatmul.mubr.f32.gmra.mrb[0].mxu0 %v4065
        %v4235 = vpop.f32.mrb[0].mxu0
        %v4236 = vadd.f32 0.0, %v4235
        %v4237 = vpop.f32.mrb[0].mxu0
        %v4238 = vadd.f32 0.0, %v4237
        %4239 = vmatprep.mubr.f32.mxu0 0.0
        %4240 = vmatmul.mubr.f32.gmra.mrb[0].mxu0 %v4068
        %v4241 = vpop.f32.mrb[0].mxu0
        %v4242 = vadd.f32 0.0, %v4241
        %v4243 = vpop.f32.mrb[0].mxu0
        %v4244 = vadd.f32 0.0, %v4243
        %4245 = vdwg.mxu0
        %4246 = vmatprep.subr.mxu0 %v4080
        %4247 = vmatpush1.msra.mxu0 %v4078
        %4248 = vmatprep.subr.mxu0 0.0
        %4249 = vmatpush1.msra.mxu0 0.0
        %4250 = vmatprep.subr.mxu0 0.0
        %4251 = vmatpush1.msra.mxu0 0.0
        %4252 = vmatprep.subr.mxu0 0.0
        %4253 = vmatpush1.msra.mxu0 0.0
        %4254 = vmatprep.subr.mxu0 0.0
        %4255 = vmatpush1.msra.mxu0 0.0
        %4256 = vmatprep.subr.mxu0 0.0
        %4257 = vmatpush1.msra.mxu0 0.0
        %4258 = vmatprep.subr.mxu0 0.0
        %4259 = vmatpush1.msra.mxu0 0.0
        %4260 = vmatprep.subr.mxu0 0.0
        %4261 = vmatpush1.msra.mxu0 0.0
        %4262 = vmatprep.subr.mxu0 0.0
        %4263 = vmatpush1.msra.mxu0 0.0
        %4264 = vmatprep.subr.mxu0 0.0
        %4265 = vmatpush1.msra.mxu0 0.0
        %4266 = vmatprep.subr.mxu0 0.0
        %4267 = vmatpush1.msra.mxu0 0.0
        %4268 = vmatprep.subr.mxu0 0.0
        %4269 = vmatpush1.msra.mxu0 0.0
        %4270 = vmatprep.subr.mxu0 0.0
        %4271 = vmatpush1.msra.mxu0 0.0
        %4272 = vmatprep.subr.mxu0 0.0
        %4273 = vmatpush1.msra.mxu0 0.0
        %4274 = vmatprep.subr.mxu0 0.0
        %4275 = vmatpush1.msra.mxu0 0.0
        %4276 = vmatprep.subr.mxu0 0.0
        %4277 = vmatpush1.msra.mxu0 0.0
        %4278 = vmatprep.subr.mxu0 0.0
        %4279 = vmatpush1.msra.mxu0 0.0
        %4280 = vmatprep.subr.mxu0 0.0
        %4281 = vmatpush1.msra.mxu0 0.0
        %4282 = vmatprep.subr.mxu0 0.0
        %4283 = vmatpush1.msra.mxu0 0.0
        %4284 = vmatprep.subr.mxu0 0.0
        %4285 = vmatpush1.msra.mxu0 0.0
        %4286 = vmatprep.subr.mxu0 0.0
        %4287 = vmatpush1.msra.mxu0 0.0
        %4288 = vmatprep.subr.mxu0 0.0
        %4289 = vmatpush1.msra.mxu0 0.0
        %4290 = vmatprep.subr.mxu0 0.0
        %4291 = vmatpush1.msra.mxu0 0.0
        %4292 = vmatprep.subr.mxu0 0.0
        %4293 = vmatpush1.msra.mxu0 0.0
        %4294 = vmatprep.subr.mxu0 0.0
        %4295 = vmatpush1.msra.mxu0 0.0
        %4296 = vmatprep.subr.mxu0 0.0
        %4297 = vmatpush1.msra.mxu0 0.0
        %4298 = vmatprep.subr.mxu0 0.0
        %4299 = vmatpush1.msra.mxu0 0.0
        %4300 = vmatprep.subr.mxu0 0.0
        %4301 = vmatpush1.msra.mxu0 0.0
        %4302 = vmatprep.subr.mxu0 0.0
        %4303 = vmatpush1.msra.mxu0 0.0
        %4304 = vmatprep.subr.mxu0 0.0
        %4305 = vmatpush1.msra.mxu0 0.0
        %4306 = vmatprep.subr.mxu0 0.0
        %4307 = vmatpush1.msra.mxu0 0.0
        %4308 = vmatprep.subr.mxu0 0.0
        %4309 = vmatpush1.msra.mxu0 0.0
        %4310 = vmatprep.mubr.f32.mxu0 0.0
        %4311 = vmatmul.mubr.f32.gmra.mrb[0].mxu0 %v4065
        %v4312 = vpop.f32.mrb[0].mxu0
        %v4313 = vadd.f32 0.0, %v4312
        %v4314 = vpop.f32.mrb[0].mxu0
        %v4315 = vadd.f32 0.0, %v4314
        %4316 = vmatprep.mubr.f32.mxu0 0.0
        %4317 = vmatmul.mubr.f32.gmra.mrb[0].mxu0 %v4068
        %v4318 = vpop.f32.mrb[0].mxu0
        %v4319 = vadd.f32 0.0, %v4318
        %v4320 = vpop.f32.mrb[0].mxu0
        %v4321 = vadd.f32 0.0, %v4320
        %4322 = vdwg.mxu0
        %4323 = vmatprep.subr.mxu0 %v4084
        %4324 = vmatpush1.msra.mxu0 %v4082
        %4325 = vmatprep.subr.mxu0 0.0
        %4326 = vmatpush1.msra.mxu0 0.0
        %4327 = vmatprep.subr.mxu0 0.0
        %4328 = vmatpush1.msra.mxu0 0.0
        %4329 = vmatprep.subr.mxu0 0.0
        %4330 = vmatpush1.msra.mxu0 0.0
        %4331 = vmatprep.subr.mxu0 0.0
        %4332 = vmatpush1.msra.mxu0 0.0
        %4333 = vmatprep.subr.mxu0 0.0
        %4334 = vmatpush1.msra.mxu0 0.0
        %4335 = vmatprep.subr.mxu0 0.0
        %4336 = vmatpush1.msra.mxu0 0.0
        %4337 = vmatprep.subr.mxu0 0.0
        %4338 = vmatpush1.msra.mxu0 0.0
        %4339 = vmatprep.subr.mxu0 0.0
        %4340 = vmatpush1.msra.mxu0 0.0
        %4341 = vmatprep.subr.mxu0 0.0
        %4342 = vmatpush1.msra.mxu0 0.0
        %4343 = vmatprep.subr.mxu0 0.0
        %4344 = vmatpush1.msra.mxu0 0.0
        %4345 = vmatprep.subr.mxu0 0.0
        %4346 = vmatpush1.msra.mxu0 0.0
        %4347 = vmatprep.subr.mxu0 0.0
        %4348 = vmatpush1.msra.mxu0 0.0
        %4349 = vmatprep.subr.mxu0 0.0
        %4350 = vmatpush1.msra.mxu0 0.0
        %4351 = vmatprep.subr.mxu0 0.0
        %4352 = vmatpush1.msra.mxu0 0.0
        %4353 = vmatprep.subr.mxu0 0.0
        %4354 = vmatpush1.msra.mxu0 0.0
        %4355 = vmatprep.subr.mxu0 0.0
        %4356 = vmatpush1.msra.mxu0 0.0
        %4357 = vmatprep.subr.mxu0 0.0
        %4358 = vmatpush1.msra.mxu0 0.0
        %4359 = vmatprep.subr.mxu0 0.0
        %4360 = vmatpush1.msra.mxu0 0.0
        %4361 = vmatprep.subr.mxu0 0.0
        %4362 = vmatpush1.msra.mxu0 0.0
        %4363 = vmatprep.subr.mxu0 0.0
        %4364 = vmatpush1.msra.mxu0 0.0
        %4365 = vmatprep.subr.mxu0 0.0
        %4366 = vmatpush1.msra.mxu0 0.0
        %4367 = vmatprep.subr.mxu0 0.0
        %4368 = vmatpush1.msra.mxu0 0.0
        %4369 = vmatprep.subr.mxu0 0.0
        %4370 = vmatpush1.msra.mxu0 0.0
        %4371 = vmatprep.subr.mxu0 0.0
        %4372 = vmatpush1.msra.mxu0 0.0
        %4373 = vmatprep.subr.mxu0 0.0
        %4374 = vmatpush1.msra.mxu0 0.0
        %4375 = vmatprep.subr.mxu0 0.0
        %4376 = vmatpush1.msra.mxu0 0.0
        %4377 = vmatprep.subr.mxu0 0.0
        %4378 = vmatpush1.msra.mxu0 0.0
        %4379 = vmatprep.subr.mxu0 0.0
        %4380 = vmatpush1.msra.mxu0 0.0
        %4381 = vmatprep.subr.mxu0 0.0
        %4382 = vmatpush1.msra.mxu0 0.0
        %4383 = vmatprep.subr.mxu0 0.0
        %4384 = vmatpush1.msra.mxu0 0.0
        %4385 = vmatprep.subr.mxu0 0.0
        %4386 = vmatpush1.msra.mxu0 0.0
        %4387 = vmatprep.mubr.f32.mxu0 0.0
        %4388 = vmatmul.mubr.f32.gmra.mrb[0].mxu0 %v4065
        %v4389 = vpop.f32.mrb[0].mxu0
        %v4390 = vadd.f32 0.0, %v4389
        %v4391 = vpop.f32.mrb[0].mxu0
        %v4392 = vadd.f32 0.0, %v4391
        %4393 = vmatprep.mubr.f32.mxu0 0.0
        %4394 = vmatmul.mubr.f32.gmra.mrb[0].mxu0 %v4068
        %v4395 = vpop.f32.mrb[0].mxu0
        %v4396 = vadd.f32 0.0, %v4395
        %v4397 = vpop.f32.mrb[0].mxu0
        %v4398 = vadd.f32 0.0, %v4397
        %4399 = vdwg.mxu0
        %4400 = vmatprep.subr.mxu0 %v4088
        %4401 = vmatpush1.msra.mxu0 %v4086
        %4402 = vmatprep.subr.mxu0 0.0
        %4403 = vmatpush1.msra.mxu0 0.0
        %4404 = vmatprep.subr.mxu0 0.0
        %4405 = vmatpush1.msra.mxu0 0.0
        %4406 = vmatprep.subr.mxu0 0.0
        %4407 = vmatpush1.msra.mxu0 0.0
        %4408 = vmatprep.subr.mxu0 0.0
        %4409 = vmatpush1.msra.mxu0 0.0
        %4410 = vmatprep.subr.mxu0 0.0
        %4411 = vmatpush1.msra.mxu0 0.0
        %4412 = vmatprep.subr.mxu0 0.0
        %4413 = vmatpush1.msra.mxu0 0.0
        %4414 = vmatprep.subr.mxu0 0.0
        %4415 = vmatpush1.msra.mxu0 0.0
        %4416 = vmatprep.subr.mxu0 0.0
        %4417 = vmatpush1.msra.mxu0 0.0
        %4418 = vmatprep.subr.mxu0 0.0
        %4419 = vmatpush1.msra.mxu0 0.0
        %4420 = vmatprep.subr.mxu0 0.0
        %4421 = vmatpush1.msra.mxu0 0.0
        %4422 = vmatprep.subr.mxu0 0.0
        %4423 = vmatpush1.msra.mxu0 0.0
        %4424 = vmatprep.subr.mxu0 0.0
        %4425 = vmatpush1.msra.mxu0 0.0
        %4426 = vmatprep.subr.mxu0 0.0
        %4427 = vmatpush1.msra.mxu0 0.0
        %4428 = vmatprep.subr.mxu0 0.0
        %4429 = vmatpush1.msra.mxu0 0.0
        %4430 = vmatprep.subr.mxu0 0.0
        %4431 = vmatpush1.msra.mxu0 0.0
        %4432 = vmatprep.subr.mxu0 0.0
        %4433 = vmatpush1.msra.mxu0 0.0
        %4434 = vmatprep.subr.mxu0 0.0
        %4435 = vmatpush1.msra.mxu0 0.0
        %4436 = vmatprep.subr.mxu0 0.0
        %4437 = vmatpush1.msra.mxu0 0.0
        %4438 = vmatprep.subr.mxu0 0.0
        %4439 = vmatpush1.msra.mxu0 0.0
        %4440 = vmatprep.subr.mxu0 0.0
        %4441 = vmatpush1.msra.mxu0 0.0
        %4442 = vmatprep.subr.mxu0 0.0
        %4443 = vmatpush1.msra.mxu0 0.0
        %4444 = vmatprep.subr.mxu0 0.0
        %4445 = vmatpush1.msra.mxu0 0.0
        %4446 = vmatprep.subr.mxu0 0.0
        %4447 = vmatpush1.msra.mxu0 0.0
        %4448 = vmatprep.subr.mxu0 0.0
        %4449 = vmatpush1.msra.mxu0 0.0
        %4450 = vmatprep.subr.mxu0 0.0
        %4451 = vmatpush1.msra.mxu0 0.0
        %4452 = vmatprep.subr.mxu0 0.0
        %4453 = vmatpush1.msra.mxu0 0.0
        %4454 = vmatprep.subr.mxu0 0.0
        %4455 = vmatpush1.msra.mxu0 0.0
        %4456 = vmatprep.subr.mxu0 0.0
        %4457 = vmatpush1.msra.mxu0 0.0
        %4458 = vmatprep.subr.mxu0 0.0
        %4459 = vmatpush1.msra.mxu0 0.0
        %4460 = vmatprep.subr.mxu0 0.0
        %4461 = vmatpush1.msra.mxu0 0.0
        %4462 = vmatprep.subr.mxu0 0.0
        %4463 = vmatpush1.msra.mxu0 0.0
        %4464 = vmatprep.mubr.f32.mxu0 0.0
        %4465 = vmatmul.mubr.f32.gmra.mrb[0].mxu0 %v4065
        %v4466 = vpop.f32.mrb[0].mxu0
        %v4467 = vadd.f32 0.0, %v4466
        %v4468 = vpop.f32.mrb[0].mxu0
        %v4469 = vadd.f32 0.0, %v4468
        %4470 = vmatprep.mubr.f32.mxu0 0.0
        %4471 = vmatmul.mubr.f32.gmra.mrb[0].mxu0 %v4068
        %v4472 = vpop.f32.mrb[0].mxu0
        %v4473 = vadd.f32 0.0, %v4472
        %v4474 = vpop.f32.mrb[0].mxu0
        %v4475 = vadd.f32 0.0, %v4474
        %4476 = vdwg.mxu0
        %4477 = vmatprep.subr.mxu0 0.0
        %4478 = vmatpush1.msra.mxu0 %v4090
        %4479 = vmatprep.subr.mxu0 0.0
        %4480 = vmatpush1.msra.mxu0 0.0
        %4481 = vmatprep.subr.mxu0 0.0
        %4482 = vmatpush1.msra.mxu0 0.0
        %4483 = vmatprep.subr.mxu0 0.0
        %4484 = vmatpush1.msra.mxu0 0.0
        %4485 = vmatprep.subr.mxu0 0.0
        %4486 = vmatpush1.msra.mxu0 0.0
        %4487 = vmatprep.subr.mxu0 0.0
        %4488 = vmatpush1.msra.mxu0 0.0
        %4489 = vmatprep.subr.mxu0 0.0
        %4490 = vmatpush1.msra.mxu0 0.0
        %4491 = vmatprep.subr.mxu0 0.0
        %4492 = vmatpush1.msra.mxu0 0.0
        %4493 = vmatprep.subr.mxu0 0.0
        %4494 = vmatpush1.msra.mxu0 0.0
        %4495 = vmatprep.subr.mxu0 0.0
        %4496 = vmatpush1.msra.mxu0 0.0
        %4497 = vmatprep.subr.mxu0 0.0
        %4498 = vmatpush1.msra.mxu0 0.0
        %4499 = vmatprep.subr.mxu0 0.0
        %4500 = vmatpush1.msra.mxu0 0.0
        %4501 = vmatprep.subr.mxu0 0.0
        %4502 = vmatpush1.msra.mxu0 0.0
        %4503 = vmatprep.subr.mxu0 0.0
        %4504 = vmatpush1.msra.mxu0 0.0
        %4505 = vmatprep.subr.mxu0 0.0
        %4506 = vmatpush1.msra.mxu0 0.0
        %4507 = vmatprep.subr.mxu0 0.0
        %4508 = vmatpush1.msra.mxu0 0.0
        %4509 = vmatprep.subr.mxu0 0.0
        %4510 = vmatpush1.msra.mxu0 0.0
        %4511 = vmatprep.subr.mxu0 0.0
        %4512 = vmatpush1.msra.mxu0 0.0
        %4513 = vmatprep.subr.mxu0 0.0
        %4514 = vmatpush1.msra.mxu0 0.0
        %4515 = vmatprep.subr.mxu0 0.0
        %4516 = vmatpush1.msra.mxu0 0.0
        %4517 = vmatprep.subr.mxu0 0.0
        %4518 = vmatpush1.msra.mxu0 0.0
        %4519 = vmatprep.subr.mxu0 0.0
        %4520 = vmatpush1.msra.mxu0 0.0
        %4521 = vmatprep.subr.mxu0 0.0
        %4522 = vmatpush1.msra.mxu0 0.0
        %4523 = vmatprep.subr.mxu0 0.0
        %4524 = vmatpush1.msra.mxu0 0.0
        %4525 = vmatprep.subr.mxu0 0.0
        %4526 = vmatpush1.msra.mxu0 0.0
        %4527 = vmatprep.subr.mxu0 0.0
        %4528 = vmatpush1.msra.mxu0 0.0
        %4529 = vmatprep.subr.mxu0 0.0
        %4530 = vmatpush1.msra.mxu0 0.0
        %4531 = vmatprep.subr.mxu0 0.0
        %4532 = vmatpush1.msra.mxu0 0.0
        %4533 = vmatprep.subr.mxu0 0.0
        %4534 = vmatpush1.msra.mxu0 0.0
        %4535 = vmatprep.subr.mxu0 0.0
        %4536 = vmatpush1.msra.mxu0 0.0
        %4537 = vmatprep.subr.mxu0 0.0
        %4538 = vmatpush1.msra.mxu0 0.0
        %4539 = vmatprep.subr.mxu0 0.0
        %4540 = vmatpush1.msra.mxu0 0.0
        %4541 = vmatprep.mubr.f32.mxu0 0.0
        %4542 = vmatmul.mubr.f32.gmra.mrb[0].mxu0 %v4065
        %v4543 = vpop.f32.mrb[0].mxu0
        %v4544 = vadd.f32 0.0, %v4543
        %v4545 = vpop.f32.mrb[0].mxu0
        %4546 = vmatprep.mubr.f32.mxu0 0.0
        %4547 = vmatmul.mubr.f32.gmra.mrb[0].mxu0 %v4068
        %v4548 = vpop.f32.mrb[0].mxu0
        %v4549 = vadd.f32 0.0, %v4548
        %v4550 = vpop.f32.mrb[0].mxu0
        %4551 = vdwg.mxu0
        %v4552 = vadd.f32 %v3945, %v4159
        %v4553 = vadd.f32 %v3946, %v4161
        %v4554 = vadd.f32 %v3947, %v4236
        %v4555 = vadd.f32 %v3948, %v4238
        %v4556 = vadd.f32 %v3949, %v4313
        %v4557 = vadd.f32 %v3950, %v4315
        %v4558 = vadd.f32 %v3951, %v4390
        %v4559 = vadd.f32 %v3952, %v4392
        %v4560 = vadd.f32 %v3953, %v4467
        %v4561 = vadd.f32 %v3954, %v4469
        %v4562 = vadd.f32 %v3955, %v4544
        %v4563 = vadd.f32 %v3956, %v4165
        %v4564 = vadd.f32 %v3957, %v4167
        %v4565 = vadd.f32 %v3958, %v4242
        %v4566 = vadd.f32 %v3959, %v4244
        %v4567 = vadd.f32 %v3960, %v4319
        %v4568 = vadd.f32 %v3961, %v4321
        %v4569 = vadd.f32 %v3962, %v4396
        %v4570 = vadd.f32 %v3963, %v4398
        %v4571 = vadd.f32 %v3964, %v4473
        %v4572 = vadd.f32 %v3965, %v4475
        %v4573 = vadd.f32 %v3966, %v4549
        %v4574 = vld [vmem:[%s302] sm:$0x77]
        %v4575 = vld [vmem:[%s302 + $0x8] sm:$0x77]
        %v4576 = vld [vmem:[%s302 + $0x10] sm:$0x77]
        %v4577 = vld [vmem:[%s302 + $0x18] sm:$0x77]
        %v4578 = vld [vmem:[%s302 + $0x20] sm:$0x77]
        %v4579 = vld [vmem:[%s302 + $0x28] sm:$0x77]
        %s4580 = scalar_lea.vmem %s1, 112
        %v4581 = vld [vmem:[%s4580] sm:$0xff]
        %v4582 = vld [vmem:[%s4580 + $0x8] sm:$0xff]
        %v4589 = vcombine.high %v4574, %v4574
        %v4590 = vcombine.high %v4575, %v4575
        %v4591 = vcombine.high %v4576, %v4576
        %v4592 = vcombine.high %v4577, %v4577
        %v4593 = vcombine.high %v4578, %v4578
        %v4594 = vcombine.high %v4579, %v4579
        %4595 = vrot.lane.b32.xlu0 %v4574, 48
        %v4596 = vpop.permute.xlu0 %4595
        %4597 = vrot.lane.b32.xlu0 %v4589, 48
        %v4598 = vpop.permute.xlu0 %4597
        %4599 = vrot.lane.b32.xlu0 %v4575, 48
        %v4600 = vpop.permute.xlu0 %4599
        %4601 = vrot.lane.b32.xlu0 %v4590, 48
        %v4602 = vpop.permute.xlu0 %4601
        %4603 = vrot.lane.b32.xlu0 %v4576, 48
        %v4604 = vpop.permute.xlu0 %4603
        %4605 = vrot.lane.b32.xlu0 %v4591, 48
        %v4606 = vpop.permute.xlu0 %4605
        %4607 = vrot.lane.b32.xlu0 %v4577, 48
        %v4608 = vpop.permute.xlu0 %4607
        %4609 = vrot.lane.b32.xlu0 %v4592, 48
        %v4610 = vpop.permute.xlu0 %4609
        %4611 = vrot.lane.b32.xlu0 %v4578, 48
        %v4612 = vpop.permute.xlu0 %4611
        %4613 = vrot.lane.b32.xlu0 %v4593, 48
        %v4614 = vpop.permute.xlu0 %4613
        %4615 = vrot.lane.b32.xlu0 %v4579, 48
        %v4616 = vpop.permute.xlu0 %4615
        %4617 = vrot.lane.b32.xlu0 %v4594, 48
        %v4618 = vpop.permute.xlu0 %4617
        %vm4619 = vcmask 392192
        %v4620 = vsel %vm4619, %v4596, %v4598
        %v4621 = vsel %vm4619, %v4598, %v4600
        %v4622 = vsel %vm4619, %v4600, %v4602
        %v4623 = vsel %vm4619, %v4602, %v4604
        %v4624 = vsel %vm4619, %v4604, %v4606
        %v4625 = vsel %vm4619, %v4606, %v4608
        %v4626 = vsel %vm4619, %v4608, %v4610
        %v4627 = vsel %vm4619, %v4610, %v4612
        %v4628 = vsel %vm4619, %v4612, %v4614
        %v4629 = vsel %vm4619, %v4614, %v4616
        %v4630 = vsel %vm4619, %v4616, %v4618
        %v4632 = vsel %vm499, %v4581, 0
        %v4635 = vsel %vm499, %v4582, 0
        %v4637 = vsel %vm506, %v4620, 0
        %v4639 = vsel %vm506, %v4621, 0
        %v4641 = vsel %vm506, %v4622, 0
        %v4643 = vsel %vm506, %v4623, 0
        %v4645 = vsel %vm506, %v4624, 0
        %v4647 = vsel %vm506, %v4625, 0
        %v4649 = vsel %vm506, %v4626, 0
        %v4651 = vsel %vm506, %v4627, 0
        %v4653 = vsel %vm506, %v4628, 0
        %v4655 = vsel %vm506, %v4629, 0
        %v4657 = vsel %vm506, %v4630, 0
        %4659 = vmatprep.subr.mxu0 %v4639
        %4660 = vmatpush1.msra.mxu0 %v4637
        %4661 = vmatprep.subr.mxu0 0.0
        %4662 = vmatpush1.msra.mxu0 0.0
        %4663 = vmatprep.subr.mxu0 0.0
        %4664 = vmatpush1.msra.mxu0 0.0
        %4665 = vmatprep.subr.mxu0 0.0
        %4666 = vmatpush1.msra.mxu0 0.0
        %4667 = vmatprep.subr.mxu0 0.0
        %4668 = vmatpush1.msra.mxu0 0.0
        %4669 = vmatprep.subr.mxu0 0.0
        %4670 = vmatpush1.msra.mxu0 0.0
        %4671 = vmatprep.subr.mxu0 0.0
        %4672 = vmatpush1.msra.mxu0 0.0
        %4673 = vmatprep.subr.mxu0 0.0
        %4674 = vmatpush1.msra.mxu0 0.0
        %4675 = vmatprep.subr.mxu0 0.0
        %4676 = vmatpush1.msra.mxu0 0.0
        %4677 = vmatprep.subr.mxu0 0.0
        %4678 = vmatpush1.msra.mxu0 0.0
        %4679 = vmatprep.subr.mxu0 0.0
        %4680 = vmatpush1.msra.mxu0 0.0
        %4681 = vmatprep.subr.mxu0 0.0
        %4682 = vmatpush1.msra.mxu0 0.0
        %4683 = vmatprep.subr.mxu0 0.0
        %4684 = vmatpush1.msra.mxu0 0.0
        %4685 = vmatprep.subr.mxu0 0.0
        %4686 = vmatpush1.msra.mxu0 0.0
        %4687 = vmatprep.subr.mxu0 0.0
        %4688 = vmatpush1.msra.mxu0 0.0
        %4689 = vmatprep.subr.mxu0 0.0
        %4690 = vmatpush1.msra.mxu0 0.0
        %4691 = vmatprep.subr.mxu0 0.0
        %4692 = vmatpush1.msra.mxu0 0.0
        %4693 = vmatprep.subr.mxu0 0.0
        %4694 = vmatpush1.msra.mxu0 0.0
        %4695 = vmatprep.subr.mxu0 0.0
        %4696 = vmatpush1.msra.mxu0 0.0
        %4697 = vmatprep.subr.mxu0 0.0
        %4698 = vmatpush1.msra.mxu0 0.0
        %4699 = vmatprep.subr.mxu0 0.0
        %4700 = vmatpush1.msra.mxu0 0.0
        %4701 = vmatprep.subr.mxu0 0.0
        %4702 = vmatpush1.msra.mxu0 0.0
        %4703 = vmatprep.subr.mxu0 0.0
        %4704 = vmatpush1.msra.mxu0 0.0
        %4705 = vmatprep.subr.mxu0 0.0
        %4706 = vmatpush1.msra.mxu0 0.0
        %4707 = vmatprep.subr.mxu0 0.0
        %4708 = vmatpush1.msra.mxu0 0.0
        %4709 = vmatprep.subr.mxu0 0.0
        %4710 = vmatpush1.msra.mxu0 0.0
        %4711 = vmatprep.subr.mxu0 0.0
        %4712 = vmatpush1.msra.mxu0 0.0
        %4713 = vmatprep.subr.mxu0 0.0
        %4714 = vmatpush1.msra.mxu0 0.0
        %4715 = vmatprep.subr.mxu0 0.0
        %4716 = vmatpush1.msra.mxu0 0.0
        %4717 = vmatprep.subr.mxu0 0.0
        %4718 = vmatpush1.msra.mxu0 0.0
        %4719 = vmatprep.subr.mxu0 0.0
        %4720 = vmatpush1.msra.mxu0 0.0
        %4721 = vmatprep.subr.mxu0 0.0
        %4722 = vmatpush1.msra.mxu0 0.0
        %4723 = vmatprep.mubr.f32.mxu0 0.0
        %4724 = vmatmul.mubr.f32.gmra.mrb[0].mxu0 %v4632
        %v4725 = vpop.f32.mrb[0].mxu0
        %v4726 = vadd.f32 0.0, %v4725
        %v4727 = vpop.f32.mrb[0].mxu0
        %v4728 = vadd.f32 0.0, %v4727
        %4729 = vmatprep.mubr.f32.mxu0 0.0
        %4730 = vmatmul.mubr.f32.gmra.mrb[0].mxu0 %v4635
        %v4731 = vpop.f32.mrb[0].mxu0
        %v4732 = vadd.f32 0.0, %v4731
        %v4733 = vpop.f32.mrb[0].mxu0
        %v4734 = vadd.f32 0.0, %v4733
        %4735 = vdwg.mxu0
        %4736 = vmatprep.subr.mxu0 %v4643
        %4737 = vmatpush1.msra.mxu0 %v4641
        %4738 = vmatprep.subr.mxu0 0.0
        %4739 = vmatpush1.msra.mxu0 0.0
        %4740 = vmatprep.subr.mxu0 0.0
        %4741 = vmatpush1.msra.mxu0 0.0
        %4742 = vmatprep.subr.mxu0 0.0
        %4743 = vmatpush1.msra.mxu0 0.0
        %4744 = vmatprep.subr.mxu0 0.0
        %4745 = vmatpush1.msra.mxu0 0.0
        %4746 = vmatprep.subr.mxu0 0.0
        %4747 = vmatpush1.msra.mxu0 0.0
        %4748 = vmatprep.subr.mxu0 0.0
        %4749 = vmatpush1.msra.mxu0 0.0
        %4750 = vmatprep.subr.mxu0 0.0
        %4751 = vmatpush1.msra.mxu0 0.0
        %4752 = vmatprep.subr.mxu0 0.0
        %4753 = vmatpush1.msra.mxu0 0.0
        %4754 = vmatprep.subr.mxu0 0.0
        %4755 = vmatpush1.msra.mxu0 0.0
        %4756 = vmatprep.subr.mxu0 0.0
        %4757 = vmatpush1.msra.mxu0 0.0
        %4758 = vmatprep.subr.mxu0 0.0
        %4759 = vmatpush1.msra.mxu0 0.0
        %4760 = vmatprep.subr.mxu0 0.0
        %4761 = vmatpush1.msra.mxu0 0.0
        %4762 = vmatprep.subr.mxu0 0.0
        %4763 = vmatpush1.msra.mxu0 0.0
        %4764 = vmatprep.subr.mxu0 0.0
        %4765 = vmatpush1.msra.mxu0 0.0
        %4766 = vmatprep.subr.mxu0 0.0
        %4767 = vmatpush1.msra.mxu0 0.0
        %4768 = vmatprep.subr.mxu0 0.0
        %4769 = vmatpush1.msra.mxu0 0.0
        %4770 = vmatprep.subr.mxu0 0.0
        %4771 = vmatpush1.msra.mxu0 0.0
        %4772 = vmatprep.subr.mxu0 0.0
        %4773 = vmatpush1.msra.mxu0 0.0
        %4774 = vmatprep.subr.mxu0 0.0
        %4775 = vmatpush1.msra.mxu0 0.0
        %4776 = vmatprep.subr.mxu0 0.0
        %4777 = vmatpush1.msra.mxu0 0.0
        %4778 = vmatprep.subr.mxu0 0.0
        %4779 = vmatpush1.msra.mxu0 0.0
        %4780 = vmatprep.subr.mxu0 0.0
        %4781 = vmatpush1.msra.mxu0 0.0
        %4782 = vmatprep.subr.mxu0 0.0
        %4783 = vmatpush1.msra.mxu0 0.0
        %4784 = vmatprep.subr.mxu0 0.0
        %4785 = vmatpush1.msra.mxu0 0.0
        %4786 = vmatprep.subr.mxu0 0.0
        %4787 = vmatpush1.msra.mxu0 0.0
        %4788 = vmatprep.subr.mxu0 0.0
        %4789 = vmatpush1.msra.mxu0 0.0
        %4790 = vmatprep.subr.mxu0 0.0
        %4791 = vmatpush1.msra.mxu0 0.0
        %4792 = vmatprep.subr.mxu0 0.0
        %4793 = vmatpush1.msra.mxu0 0.0
        %4794 = vmatprep.subr.mxu0 0.0
        %4795 = vmatpush1.msra.mxu0 0.0
        %4796 = vmatprep.subr.mxu0 0.0
        %4797 = vmatpush1.msra.mxu0 0.0
        %4798 = vmatprep.subr.mxu0 0.0
        %4799 = vmatpush1.msra.mxu0 0.0
        %4800 = vmatprep.mubr.f32.mxu0 0.0
        %4801 = vmatmul.mubr.f32.gmra.mrb[0].mxu0 %v4632
        %v4802 = vpop.f32.mrb[0].mxu0
        %v4803 = vadd.f32 0.0, %v4802
        %v4804 = vpop.f32.mrb[0].mxu0
        %v4805 = vadd.f32 0.0, %v4804
        %4806 = vmatprep.mubr.f32.mxu0 0.0
        %4807 = vmatmul.mubr.f32.gmra.mrb[0].mxu0 %v4635
        %v4808 = vpop.f32.mrb[0].mxu0
        %v4809 = vadd.f32 0.0, %v4808
        %v4810 = vpop.f32.mrb[0].mxu0
        %v4811 = vadd.f32 0.0, %v4810
        %4812 = vdwg.mxu0
        %4813 = vmatprep.subr.mxu0 %v4647
        %4814 = vmatpush1.msra.mxu0 %v4645
        %4815 = vmatprep.subr.mxu0 0.0
        %4816 = vmatpush1.msra.mxu0 0.0
        %4817 = vmatprep.subr.mxu0 0.0
        %4818 = vmatpush1.msra.mxu0 0.0
        %4819 = vmatprep.subr.mxu0 0.0
        %4820 = vmatpush1.msra.mxu0 0.0
        %4821 = vmatprep.subr.mxu0 0.0
        %4822 = vmatpush1.msra.mxu0 0.0
        %4823 = vmatprep.subr.mxu0 0.0
        %4824 = vmatpush1.msra.mxu0 0.0
        %4825 = vmatprep.subr.mxu0 0.0
        %4826 = vmatpush1.msra.mxu0 0.0
        %4827 = vmatprep.subr.mxu0 0.0
        %4828 = vmatpush1.msra.mxu0 0.0
        %4829 = vmatprep.subr.mxu0 0.0
        %4830 = vmatpush1.msra.mxu0 0.0
        %4831 = vmatprep.subr.mxu0 0.0
        %4832 = vmatpush1.msra.mxu0 0.0
        %4833 = vmatprep.subr.mxu0 0.0
        %4834 = vmatpush1.msra.mxu0 0.0
        %4835 = vmatprep.subr.mxu0 0.0
        %4836 = vmatpush1.msra.mxu0 0.0
        %4837 = vmatprep.subr.mxu0 0.0
        %4838 = vmatpush1.msra.mxu0 0.0
        %4839 = vmatprep.subr.mxu0 0.0
        %4840 = vmatpush1.msra.mxu0 0.0
        %4841 = vmatprep.subr.mxu0 0.0
        %4842 = vmatpush1.msra.mxu0 0.0
        %4843 = vmatprep.subr.mxu0 0.0
        %4844 = vmatpush1.msra.mxu0 0.0
        %4845 = vmatprep.subr.mxu0 0.0
        %4846 = vmatpush1.msra.mxu0 0.0
        %4847 = vmatprep.subr.mxu0 0.0
        %4848 = vmatpush1.msra.mxu0 0.0
        %4849 = vmatprep.subr.mxu0 0.0
        %4850 = vmatpush1.msra.mxu0 0.0
        %4851 = vmatprep.subr.mxu0 0.0
        %4852 = vmatpush1.msra.mxu0 0.0
        %4853 = vmatprep.subr.mxu0 0.0
        %4854 = vmatpush1.msra.mxu0 0.0
        %4855 = vmatprep.subr.mxu0 0.0
        %4856 = vmatpush1.msra.mxu0 0.0
        %4857 = vmatprep.subr.mxu0 0.0
        %4858 = vmatpush1.msra.mxu0 0.0
        %4859 = vmatprep.subr.mxu0 0.0
        %4860 = vmatpush1.msra.mxu0 0.0
        %4861 = vmatprep.subr.mxu0 0.0
        %4862 = vmatpush1.msra.mxu0 0.0
        %4863 = vmatprep.subr.mxu0 0.0
        %4864 = vmatpush1.msra.mxu0 0.0
        %4865 = vmatprep.subr.mxu0 0.0
        %4866 = vmatpush1.msra.mxu0 0.0
        %4867 = vmatprep.subr.mxu0 0.0
        %4868 = vmatpush1.msra.mxu0 0.0
        %4869 = vmatprep.subr.mxu0 0.0
        %4870 = vmatpush1.msra.mxu0 0.0
        %4871 = vmatprep.subr.mxu0 0.0
        %4872 = vmatpush1.msra.mxu0 0.0
        %4873 = vmatprep.subr.mxu0 0.0
        %4874 = vmatpush1.msra.mxu0 0.0
        %4875 = vmatprep.subr.mxu0 0.0
        %4876 = vmatpush1.msra.mxu0 0.0
        %4877 = vmatprep.mubr.f32.mxu0 0.0
        %4878 = vmatmul.mubr.f32.gmra.mrb[0].mxu0 %v4632
        %v4879 = vpop.f32.mrb[0].mxu0
        %v4880 = vadd.f32 0.0, %v4879
        %v4881 = vpop.f32.mrb[0].mxu0
        %v4882 = vadd.f32 0.0, %v4881
        %4883 = vmatprep.mubr.f32.mxu0 0.0
        %4884 = vmatmul.mubr.f32.gmra.mrb[0].mxu0 %v4635
        %v4885 = vpop.f32.mrb[0].mxu0
        %v4886 = vadd.f32 0.0, %v4885
        %v4887 = vpop.f32.mrb[0].mxu0
        %v4888 = vadd.f32 0.0, %v4887
        %4889 = vdwg.mxu0
        %4890 = vmatprep.subr.mxu0 %v4651
        %4891 = vmatpush1.msra.mxu0 %v4649
        %4892 = vmatprep.subr.mxu0 0.0
        %4893 = vmatpush1.msra.mxu0 0.0
        %4894 = vmatprep.subr.mxu0 0.0
        %4895 = vmatpush1.msra.mxu0 0.0
        %4896 = vmatprep.subr.mxu0 0.0
        %4897 = vmatpush1.msra.mxu0 0.0
        %4898 = vmatprep.subr.mxu0 0.0
        %4899 = vmatpush1.msra.mxu0 0.0
        %4900 = vmatprep.subr.mxu0 0.0
        %4901 = vmatpush1.msra.mxu0 0.0
        %4902 = vmatprep.subr.mxu0 0.0
        %4903 = vmatpush1.msra.mxu0 0.0
        %4904 = vmatprep.subr.mxu0 0.0
        %4905 = vmatpush1.msra.mxu0 0.0
        %4906 = vmatprep.subr.mxu0 0.0
        %4907 = vmatpush1.msra.mxu0 0.0
        %4908 = vmatprep.subr.mxu0 0.0
        %4909 = vmatpush1.msra.mxu0 0.0
        %4910 = vmatprep.subr.mxu0 0.0
        %4911 = vmatpush1.msra.mxu0 0.0
        %4912 = vmatprep.subr.mxu0 0.0
        %4913 = vmatpush1.msra.mxu0 0.0
        %4914 = vmatprep.subr.mxu0 0.0
        %4915 = vmatpush1.msra.mxu0 0.0
        %4916 = vmatprep.subr.mxu0 0.0
        %4917 = vmatpush1.msra.mxu0 0.0
        %4918 = vmatprep.subr.mxu0 0.0
        %4919 = vmatpush1.msra.mxu0 0.0
        %4920 = vmatprep.subr.mxu0 0.0
        %4921 = vmatpush1.msra.mxu0 0.0
        %4922 = vmatprep.subr.mxu0 0.0
        %4923 = vmatpush1.msra.mxu0 0.0
        %4924 = vmatprep.subr.mxu0 0.0
        %4925 = vmatpush1.msra.mxu0 0.0
        %4926 = vmatprep.subr.mxu0 0.0
        %4927 = vmatpush1.msra.mxu0 0.0
        %4928 = vmatprep.subr.mxu0 0.0
        %4929 = vmatpush1.msra.mxu0 0.0
        %4930 = vmatprep.subr.mxu0 0.0
        %4931 = vmatpush1.msra.mxu0 0.0
        %4932 = vmatprep.subr.mxu0 0.0
        %4933 = vmatpush1.msra.mxu0 0.0
        %4934 = vmatprep.subr.mxu0 0.0
        %4935 = vmatpush1.msra.mxu0 0.0
        %4936 = vmatprep.subr.mxu0 0.0
        %4937 = vmatpush1.msra.mxu0 0.0
        %4938 = vmatprep.subr.mxu0 0.0
        %4939 = vmatpush1.msra.mxu0 0.0
        %4940 = vmatprep.subr.mxu0 0.0
        %4941 = vmatpush1.msra.mxu0 0.0
        %4942 = vmatprep.subr.mxu0 0.0
        %4943 = vmatpush1.msra.mxu0 0.0
        %4944 = vmatprep.subr.mxu0 0.0
        %4945 = vmatpush1.msra.mxu0 0.0
        %4946 = vmatprep.subr.mxu0 0.0
        %4947 = vmatpush1.msra.mxu0 0.0
        %4948 = vmatprep.subr.mxu0 0.0
        %4949 = vmatpush1.msra.mxu0 0.0
        %4950 = vmatprep.subr.mxu0 0.0
        %4951 = vmatpush1.msra.mxu0 0.0
        %4952 = vmatprep.subr.mxu0 0.0
        %4953 = vmatpush1.msra.mxu0 0.0
        %4954 = vmatprep.mubr.f32.mxu0 0.0
        %4955 = vmatmul.mubr.f32.gmra.mrb[0].mxu0 %v4632
        %v4956 = vpop.f32.mrb[0].mxu0
        %v4957 = vadd.f32 0.0, %v4956
        %v4958 = vpop.f32.mrb[0].mxu0
        %v4959 = vadd.f32 0.0, %v4958
        %4960 = vmatprep.mubr.f32.mxu0 0.0
        %4961 = vmatmul.mubr.f32.gmra.mrb[0].mxu0 %v4635
        %v4962 = vpop.f32.mrb[0].mxu0
        %v4963 = vadd.f32 0.0, %v4962
        %v4964 = vpop.f32.mrb[0].mxu0
        %v4965 = vadd.f32 0.0, %v4964
        %4966 = vdwg.mxu0
        %4967 = vmatprep.subr.mxu0 %v4655
        %4968 = vmatpush1.msra.mxu0 %v4653
        %4969 = vmatprep.subr.mxu0 0.0
        %4970 = vmatpush1.msra.mxu0 0.0
        %4971 = vmatprep.subr.mxu0 0.0
        %4972 = vmatpush1.msra.mxu0 0.0
        %4973 = vmatprep.subr.mxu0 0.0
        %4974 = vmatpush1.msra.mxu0 0.0
        %4975 = vmatprep.subr.mxu0 0.0
        %4976 = vmatpush1.msra.mxu0 0.0
        %4977 = vmatprep.subr.mxu0 0.0
        %4978 = vmatpush1.msra.mxu0 0.0
        %4979 = vmatprep.subr.mxu0 0.0
        %4980 = vmatpush1.msra.mxu0 0.0
        %4981 = vmatprep.subr.mxu0 0.0
        %4982 = vmatpush1.msra.mxu0 0.0
        %4983 = vmatprep.subr.mxu0 0.0
        %4984 = vmatpush1.msra.mxu0 0.0
        %4985 = vmatprep.subr.mxu0 0.0
        %4986 = vmatpush1.msra.mxu0 0.0
        %4987 = vmatprep.subr.mxu0 0.0
        %4988 = vmatpush1.msra.mxu0 0.0
        %4989 = vmatprep.subr.mxu0 0.0
        %4990 = vmatpush1.msra.mxu0 0.0
        %4991 = vmatprep.subr.mxu0 0.0
        %4992 = vmatpush1.msra.mxu0 0.0
        %4993 = vmatprep.subr.mxu0 0.0
        %4994 = vmatpush1.msra.mxu0 0.0
        %4995 = vmatprep.subr.mxu0 0.0
        %4996 = vmatpush1.msra.mxu0 0.0
        %4997 = vmatprep.subr.mxu0 0.0
        %4998 = vmatpush1.msra.mxu0 0.0
        %4999 = vmatprep.subr.mxu0 0.0
        %5000 = vmatpush1.msra.mxu0 0.0
        %5001 = vmatprep.subr.mxu0 0.0
        %5002 = vmatpush1.msra.mxu0 0.0
        %5003 = vmatprep.subr.mxu0 0.0
        %5004 = vmatpush1.msra.mxu0 0.0
        %5005 = vmatprep.subr.mxu0 0.0
        %5006 = vmatpush1.msra.mxu0 0.0
        %5007 = vmatprep.subr.mxu0 0.0
        %5008 = vmatpush1.msra.mxu0 0.0
        %5009 = vmatprep.subr.mxu0 0.0
        %5010 = vmatpush1.msra.mxu0 0.0
        %5011 = vmatprep.subr.mxu0 0.0
        %5012 = vmatpush1.msra.mxu0 0.0
        %5013 = vmatprep.subr.mxu0 0.0
        %5014 = vmatpush1.msra.mxu0 0.0
        %5015 = vmatprep.subr.mxu0 0.0
        %5016 = vmatpush1.msra.mxu0 0.0
        %5017 = vmatprep.subr.mxu0 0.0
        %5018 = vmatpush1.msra.mxu0 0.0
        %5019 = vmatprep.subr.mxu0 0.0
        %5020 = vmatpush1.msra.mxu0 0.0
        %5021 = vmatprep.subr.mxu0 0.0
        %5022 = vmatpush1.msra.mxu0 0.0
        %5023 = vmatprep.subr.mxu0 0.0
        %5024 = vmatpush1.msra.mxu0 0.0
        %5025 = vmatprep.subr.mxu0 0.0
        %5026 = vmatpush1.msra.mxu0 0.0
        %5027 = vmatprep.subr.mxu0 0.0
        %5028 = vmatpush1.msra.mxu0 0.0
        %5029 = vmatprep.subr.mxu0 0.0
        %5030 = vmatpush1.msra.mxu0 0.0
        %5031 = vmatprep.mubr.f32.mxu0 0.0
        %5032 = vmatmul.mubr.f32.gmra.mrb[0].mxu0 %v4632
        %v5033 = vpop.f32.mrb[0].mxu0
        %v5034 = vadd.f32 0.0, %v5033
        %v5035 = vpop.f32.mrb[0].mxu0
        %v5036 = vadd.f32 0.0, %v5035
        %5037 = vmatprep.mubr.f32.mxu0 0.0
        %5038 = vmatmul.mubr.f32.gmra.mrb[0].mxu0 %v4635
        %v5039 = vpop.f32.mrb[0].mxu0
        %v5040 = vadd.f32 0.0, %v5039
        %v5041 = vpop.f32.mrb[0].mxu0
        %v5042 = vadd.f32 0.0, %v5041
        %5043 = vdwg.mxu0
        %5044 = vmatprep.subr.mxu0 0.0
        %5045 = vmatpush1.msra.mxu0 %v4657
        %5046 = vmatprep.subr.mxu0 0.0
        %5047 = vmatpush1.msra.mxu0 0.0
        %5048 = vmatprep.subr.mxu0 0.0
        %5049 = vmatpush1.msra.mxu0 0.0
        %5050 = vmatprep.subr.mxu0 0.0
        %5051 = vmatpush1.msra.mxu0 0.0
        %5052 = vmatprep.subr.mxu0 0.0
        %5053 = vmatpush1.msra.mxu0 0.0
        %5054 = vmatprep.subr.mxu0 0.0
        %5055 = vmatpush1.msra.mxu0 0.0
        %5056 = vmatprep.subr.mxu0 0.0
        %5057 = vmatpush1.msra.mxu0 0.0
        %5058 = vmatprep.subr.mxu0 0.0
        %5059 = vmatpush1.msra.mxu0 0.0
        %5060 = vmatprep.subr.mxu0 0.0
        %5061 = vmatpush1.msra.mxu0 0.0
        %5062 = vmatprep.subr.mxu0 0.0
        %5063 = vmatpush1.msra.mxu0 0.0
        %5064 = vmatprep.subr.mxu0 0.0
        %5065 = vmatpush1.msra.mxu0 0.0
        %5066 = vmatprep.subr.mxu0 0.0
        %5067 = vmatpush1.msra.mxu0 0.0
        %5068 = vmatprep.subr.mxu0 0.0
        %5069 = vmatpush1.msra.mxu0 0.0
        %5070 = vmatprep.subr.mxu0 0.0
        %5071 = vmatpush1.msra.mxu0 0.0
        %5072 = vmatprep.subr.mxu0 0.0
        %5073 = vmatpush1.msra.mxu0 0.0
        %5074 = vmatprep.subr.mxu0 0.0
        %5075 = vmatpush1.msra.mxu0 0.0
        %5076 = vmatprep.subr.mxu0 0.0
        %5077 = vmatpush1.msra.mxu0 0.0
        %5078 = vmatprep.subr.mxu0 0.0
        %5079 = vmatpush1.msra.mxu0 0.0
        %5080 = vmatprep.subr.mxu0 0.0
        %5081 = vmatpush1.msra.mxu0 0.0
        %5082 = vmatprep.subr.mxu0 0.0
        %5083 = vmatpush1.msra.mxu0 0.0
        %5084 = vmatprep.subr.mxu0 0.0
        %5085 = vmatpush1.msra.mxu0 0.0
        %5086 = vmatprep.subr.mxu0 0.0
        %5087 = vmatpush1.msra.mxu0 0.0
        %5088 = vmatprep.subr.mxu0 0.0
        %5089 = vmatpush1.msra.mxu0 0.0
        %5090 = vmatprep.subr.mxu0 0.0
        %5091 = vmatpush1.msra.mxu0 0.0
        %5092 = vmatprep.subr.mxu0 0.0
        %5093 = vmatpush1.msra.mxu0 0.0
        %5094 = vmatprep.subr.mxu0 0.0
        %5095 = vmatpush1.msra.mxu0 0.0
        %5096 = vmatprep.subr.mxu0 0.0
        %5097 = vmatpush1.msra.mxu0 0.0
        %5098 = vmatprep.subr.mxu0 0.0
        %5099 = vmatpush1.msra.mxu0 0.0
        %5100 = vmatprep.subr.mxu0 0.0
        %5101 = vmatpush1.msra.mxu0 0.0
        %5102 = vmatprep.subr.mxu0 0.0
        %5103 = vmatpush1.msra.mxu0 0.0
        %5104 = vmatprep.subr.mxu0 0.0
        %5105 = vmatpush1.msra.mxu0 0.0
        %5106 = vmatprep.subr.mxu0 0.0
        %5107 = vmatpush1.msra.mxu0 0.0
        %5108 = vmatprep.mubr.f32.mxu0 0.0
        %5109 = vmatmul.mubr.f32.gmra.mrb[0].mxu0 %v4632
        %v5110 = vpop.f32.mrb[0].mxu0
        %v5111 = vadd.f32 0.0, %v5110
        %v5112 = vpop.f32.mrb[0].mxu0
        %5113 = vmatprep.mubr.f32.mxu0 0.0
        %5114 = vmatmul.mubr.f32.gmra.mrb[0].mxu0 %v4635
        %v5115 = vpop.f32.mrb[0].mxu0
        %v5116 = vadd.f32 0.0, %v5115
        %v5117 = vpop.f32.mrb[0].mxu0
        %5118 = vdwg.mxu0
        %v5119 = vadd.f32 %v4552, %v4726
        %v5120 = vadd.f32 %v4553, %v4728
        %v5121 = vadd.f32 %v4554, %v4803
        %v5122 = vadd.f32 %v4555, %v4805
        %v5123 = vadd.f32 %v4556, %v4880
        %v5124 = vadd.f32 %v4557, %v4882
        %v5125 = vadd.f32 %v4558, %v4957
        %v5126 = vadd.f32 %v4559, %v4959
        %v5127 = vadd.f32 %v4560, %v5034
        %v5128 = vadd.f32 %v4561, %v5036
        %v5129 = vadd.f32 %v4562, %v5111
        %v5130 = vadd.f32 %v4563, %v4732
        %v5131 = vadd.f32 %v4564, %v4734
        %v5132 = vadd.f32 %v4565, %v4809
        %v5133 = vadd.f32 %v4566, %v4811
        %v5134 = vadd.f32 %v4567, %v4886
        %v5135 = vadd.f32 %v4568, %v4888
        %v5136 = vadd.f32 %v4569, %v4963
        %v5137 = vadd.f32 %v4570, %v4965
        %v5138 = vadd.f32 %v4571, %v5040
        %v5139 = vadd.f32 %v4572, %v5042
        %v5140 = vadd.f32 %v4573, %v5116
        %v5141 = vld [vmem:[%s302] sm:$0x77]
        %v5142 = vld [vmem:[%s302 + $0x8] sm:$0x77]
        %v5143 = vld [vmem:[%s302 + $0x10] sm:$0x77]
        %v5144 = vld [vmem:[%s302 + $0x18] sm:$0x77]
        %v5145 = vld [vmem:[%s302 + $0x20] sm:$0x77]
        %v5146 = vld [vmem:[%s302 + $0x28] sm:$0x77]
        %5147 = vrot.lane.b32.xlu0 %v1577, 81
        %v5148 = vpop.permute.xlu0 %5147
        %5149 = vrot.lane.b32.xlu0 %v1578, 81
        %v5150 = vpop.permute.xlu0 %5149
        %5151 = vrot.lane.b32.xlu0 %v1579, 81
        %v5152 = vpop.permute.xlu0 %5151
        %5153 = vrot.lane.b32.xlu0 %v1580, 81
        %v5154 = vpop.permute.xlu0 %5153
        %5155 = vrot.lane.b32.xlu0 %v1581, 81
        %v5156 = vpop.permute.xlu0 %5155
        %5157 = vrot.lane.b32.xlu0 %v1576, 81
        %v5158 = vpop.permute.xlu0 %5157
        %v5159 = vrot.slane %v5148, 4
        %v5160 = vrot.slane %v5150, 4
        %v5161 = vrot.slane %v5152, 4
        %v5162 = vrot.slane %v5154, 4
        %v5163 = vrot.slane %v5156, 4
        %v5164 = vrot.slane %v5158, 4
        %v5165 = vsel %vm1025, %v5159, %v5148
        %v5166 = vsel %vm423, %v5159, %v5160
        %v5167 = vsel %vm1025, %v5166, %v5150
        %v5168 = vsel %vm423, %v5160, %v5161
        %v5169 = vsel %vm1025, %v5168, %v5152
        %v5170 = vsel %vm423, %v5161, %v5162
        %v5171 = vsel %vm1025, %v5170, %v5154
        %v5172 = vsel %vm423, %v5162, %v5163
        %v5173 = vsel %vm1025, %v5172, %v5156
        %v5174 = vsel %vm423, %v5163, %v5164
        %v5175 = vsel %vm1025, %v5174, %v5158
        %v5182 = vmul.f32 %v5141, %v5165
        %v5183 = vmul.f32 %v5142, %v5167
        %v5184 = vmul.f32 %v5143, %v5169
        %v5185 = vmul.f32 %v5144, %v5171
        %v5186 = vmul.f32 %v5145, %v5173
        %v5187 = vmul.f32 %v5146, %v5175
        %s5188 = scalar_lea.vmem %s1, 128
        %v5189 = vld [vmem:[%s5188] sm:$0xff]
        %v5190 = vld [vmem:[%s5188 + $0x8] sm:$0xff]
        %v5197 = vcombine.high %v5182, %v5182
        %v5198 = vcombine.high %v5183, %v5183
        %v5199 = vcombine.high %v5184, %v5184
        %v5200 = vcombine.high %v5185, %v5185
        %v5201 = vcombine.high %v5186, %v5186
        %v5202 = vcombine.high %v5187, %v5187
        %5203 = vrot.lane.b32.xlu0 %v5182, 47
        %v5204 = vpop.permute.xlu0 %5203
        %5205 = vrot.lane.b32.xlu0 %v5197, 47
        %v5206 = vpop.permute.xlu0 %5205
        %5207 = vrot.lane.b32.xlu0 %v5183, 47
        %v5208 = vpop.permute.xlu0 %5207
        %5209 = vrot.lane.b32.xlu0 %v5198, 47
        %v5210 = vpop.permute.xlu0 %5209
        %5211 = vrot.lane.b32.xlu0 %v5184, 47
        %v5212 = vpop.permute.xlu0 %5211
        %5213 = vrot.lane.b32.xlu0 %v5199, 47
        %v5214 = vpop.permute.xlu0 %5213
        %5215 = vrot.lane.b32.xlu0 %v5185, 47
        %v5216 = vpop.permute.xlu0 %5215
        %5217 = vrot.lane.b32.xlu0 %v5200, 47
        %v5218 = vpop.permute.xlu0 %5217
        %5219 = vrot.lane.b32.xlu0 %v5186, 47
        %v5220 = vpop.permute.xlu0 %5219
        %5221 = vrot.lane.b32.xlu0 %v5201, 47
        %v5222 = vpop.permute.xlu0 %5221
        %5223 = vrot.lane.b32.xlu0 %v5187, 47
        %v5224 = vpop.permute.xlu0 %5223
        %5225 = vrot.lane.b32.xlu0 %v5202, 47
        %v5226 = vpop.permute.xlu0 %5225
        %v5227 = vsel %vm421, %v5204, %v5206
        %v5228 = vsel %vm421, %v5206, %v5208
        %v5229 = vsel %vm421, %v5208, %v5210
        %v5230 = vsel %vm421, %v5210, %v5212
        %v5231 = vsel %vm421, %v5212, %v5214
        %v5232 = vsel %vm421, %v5214, %v5216
        %v5233 = vsel %vm421, %v5216, %v5218
        %v5234 = vsel %vm421, %v5218, %v5220
        %v5235 = vsel %vm421, %v5220, %v5222
        %v5236 = vsel %vm421, %v5222, %v5224
        %v5237 = vsel %vm421, %v5224, %v5226
        %v5239 = vsel %vm499, %v5189, 0
        %v5242 = vsel %vm499, %v5190, 0
        %v5244 = vsel %vm506, %v5227, 0
        %v5246 = vsel %vm506, %v5228, 0
        %v5248 = vsel %vm506, %v5229, 0
        %v5250 = vsel %vm506, %v5230, 0
        %v5252 = vsel %vm506, %v5231, 0
        %v5254 = vsel %vm506, %v5232, 0
        %v5256 = vsel %vm506, %v5233, 0
        %v5258 = vsel %vm506, %v5234, 0
        %v5260 = vsel %vm506, %v5235, 0
        %v5262 = vsel %vm506, %v5236, 0
        %v5264 = vsel %vm506, %v5237, 0
        %5266 = vmatprep.subr.mxu0 %v5246
        %5267 = vmatpush1.msra.mxu0 %v5244
        %5268 = vmatprep.subr.mxu0 0.0
        %5269 = vmatpush1.msra.mxu0 0.0
        %5270 = vmatprep.subr.mxu0 0.0
        %5271 = vmatpush1.msra.mxu0 0.0
        %5272 = vmatprep.subr.mxu0 0.0
        %5273 = vmatpush1.msra.mxu0 0.0
        %5274 = vmatprep.subr.mxu0 0.0
        %5275 = vmatpush1.msra.mxu0 0.0
        %5276 = vmatprep.subr.mxu0 0.0
        %5277 = vmatpush1.msra.mxu0 0.0
        %5278 = vmatprep.subr.mxu0 0.0
        %5279 = vmatpush1.msra.mxu0 0.0
        %5280 = vmatprep.subr.mxu0 0.0
        %5281 = vmatpush1.msra.mxu0 0.0
        %5282 = vmatprep.subr.mxu0 0.0
        %5283 = vmatpush1.msra.mxu0 0.0
        %5284 = vmatprep.subr.mxu0 0.0
        %5285 = vmatpush1.msra.mxu0 0.0
        %5286 = vmatprep.subr.mxu0 0.0
        %5287 = vmatpush1.msra.mxu0 0.0
        %5288 = vmatprep.subr.mxu0 0.0
        %5289 = vmatpush1.msra.mxu0 0.0
        %5290 = vmatprep.subr.mxu0 0.0
        %5291 = vmatpush1.msra.mxu0 0.0
        %5292 = vmatprep.subr.mxu0 0.0
        %5293 = vmatpush1.msra.mxu0 0.0
        %5294 = vmatprep.subr.mxu0 0.0
        %5295 = vmatpush1.msra.mxu0 0.0
        %5296 = vmatprep.subr.mxu0 0.0
        %5297 = vmatpush1.msra.mxu0 0.0
        %5298 = vmatprep.subr.mxu0 0.0
        %5299 = vmatpush1.msra.mxu0 0.0
        %5300 = vmatprep.subr.mxu0 0.0
        %5301 = vmatpush1.msra.mxu0 0.0
        %5302 = vmatprep.subr.mxu0 0.0
        %5303 = vmatpush1.msra.mxu0 0.0
        %5304 = vmatprep.subr.mxu0 0.0
        %5305 = vmatpush1.msra.mxu0 0.0
        %5306 = vmatprep.subr.mxu0 0.0
        %5307 = vmatpush1.msra.mxu0 0.0
        %5308 = vmatprep.subr.mxu0 0.0
        %5309 = vmatpush1.msra.mxu0 0.0
        %5310 = vmatprep.subr.mxu0 0.0
        %5311 = vmatpush1.msra.mxu0 0.0
        %5312 = vmatprep.subr.mxu0 0.0
        %5313 = vmatpush1.msra.mxu0 0.0
        %5314 = vmatprep.subr.mxu0 0.0
        %5315 = vmatpush1.msra.mxu0 0.0
        %5316 = vmatprep.subr.mxu0 0.0
        %5317 = vmatpush1.msra.mxu0 0.0
        %5318 = vmatprep.subr.mxu0 0.0
        %5319 = vmatpush1.msra.mxu0 0.0
        %5320 = vmatprep.subr.mxu0 0.0
        %5321 = vmatpush1.msra.mxu0 0.0
        %5322 = vmatprep.subr.mxu0 0.0
        %5323 = vmatpush1.msra.mxu0 0.0
        %5324 = vmatprep.subr.mxu0 0.0
        %5325 = vmatpush1.msra.mxu0 0.0
        %5326 = vmatprep.subr.mxu0 0.0
        %5327 = vmatpush1.msra.mxu0 0.0
        %5328 = vmatprep.subr.mxu0 0.0
        %5329 = vmatpush1.msra.mxu0 0.0
        %5330 = vmatprep.mubr.f32.mxu0 0.0
        %5331 = vmatmul.mubr.f32.gmra.mrb[0].mxu0 %v5239
        %v5332 = vpop.f32.mrb[0].mxu0
        %v5333 = vadd.f32 0.0, %v5332
        %v5334 = vpop.f32.mrb[0].mxu0
        %v5335 = vadd.f32 0.0, %v5334
        %5336 = vmatprep.mubr.f32.mxu0 0.0
        %5337 = vmatmul.mubr.f32.gmra.mrb[0].mxu0 %v5242
        %v5338 = vpop.f32.mrb[0].mxu0
        %v5339 = vadd.f32 0.0, %v5338
        %v5340 = vpop.f32.mrb[0].mxu0
        %v5341 = vadd.f32 0.0, %v5340
        %5342 = vdwg.mxu0
        %5343 = vmatprep.subr.mxu0 %v5250
        %5344 = vmatpush1.msra.mxu0 %v5248
        %5345 = vmatprep.subr.mxu0 0.0
        %5346 = vmatpush1.msra.mxu0 0.0
        %5347 = vmatprep.subr.mxu0 0.0
        %5348 = vmatpush1.msra.mxu0 0.0
        %5349 = vmatprep.subr.mxu0 0.0
        %5350 = vmatpush1.msra.mxu0 0.0
        %5351 = vmatprep.subr.mxu0 0.0
        %5352 = vmatpush1.msra.mxu0 0.0
        %5353 = vmatprep.subr.mxu0 0.0
        %5354 = vmatpush1.msra.mxu0 0.0
        %5355 = vmatprep.subr.mxu0 0.0
        %5356 = vmatpush1.msra.mxu0 0.0
        %5357 = vmatprep.subr.mxu0 0.0
        %5358 = vmatpush1.msra.mxu0 0.0
        %5359 = vmatprep.subr.mxu0 0.0
        %5360 = vmatpush1.msra.mxu0 0.0
        %5361 = vmatprep.subr.mxu0 0.0
        %5362 = vmatpush1.msra.mxu0 0.0
        %5363 = vmatprep.subr.mxu0 0.0
        %5364 = vmatpush1.msra.mxu0 0.0
        %5365 = vmatprep.subr.mxu0 0.0
        %5366 = vmatpush1.msra.mxu0 0.0
        %5367 = vmatprep.subr.mxu0 0.0
        %5368 = vmatpush1.msra.mxu0 0.0
        %5369 = vmatprep.subr.mxu0 0.0
        %5370 = vmatpush1.msra.mxu0 0.0
        %5371 = vmatprep.subr.mxu0 0.0
        %5372 = vmatpush1.msra.mxu0 0.0
        %5373 = vmatprep.subr.mxu0 0.0
        %5374 = vmatpush1.msra.mxu0 0.0
        %5375 = vmatprep.subr.mxu0 0.0
        %5376 = vmatpush1.msra.mxu0 0.0
        %5377 = vmatprep.subr.mxu0 0.0
        %5378 = vmatpush1.msra.mxu0 0.0
        %5379 = vmatprep.subr.mxu0 0.0
        %5380 = vmatpush1.msra.mxu0 0.0
        %5381 = vmatprep.subr.mxu0 0.0
        %5382 = vmatpush1.msra.mxu0 0.0
        %5383 = vmatprep.subr.mxu0 0.0
        %5384 = vmatpush1.msra.mxu0 0.0
        %5385 = vmatprep.subr.mxu0 0.0
        %5386 = vmatpush1.msra.mxu0 0.0
        %5387 = vmatprep.subr.mxu0 0.0
        %5388 = vmatpush1.msra.mxu0 0.0
        %5389 = vmatprep.subr.mxu0 0.0
        %5390 = vmatpush1.msra.mxu0 0.0
        %5391 = vmatprep.subr.mxu0 0.0
        %5392 = vmatpush1.msra.mxu0 0.0
        %5393 = vmatprep.subr.mxu0 0.0
        %5394 = vmatpush1.msra.mxu0 0.0
        %5395 = vmatprep.subr.mxu0 0.0
        %5396 = vmatpush1.msra.mxu0 0.0
        %5397 = vmatprep.subr.mxu0 0.0
        %5398 = vmatpush1.msra.mxu0 0.0
        %5399 = vmatprep.subr.mxu0 0.0
        %5400 = vmatpush1.msra.mxu0 0.0
        %5401 = vmatprep.subr.mxu0 0.0
        %5402 = vmatpush1.msra.mxu0 0.0
        %5403 = vmatprep.subr.mxu0 0.0
        %5404 = vmatpush1.msra.mxu0 0.0
        %5405 = vmatprep.subr.mxu0 0.0
        %5406 = vmatpush1.msra.mxu0 0.0
        %5407 = vmatprep.mubr.f32.mxu0 0.0
        %5408 = vmatmul.mubr.f32.gmra.mrb[0].mxu0 %v5239
        %v5409 = vpop.f32.mrb[0].mxu0
        %v5410 = vadd.f32 0.0, %v5409
        %v5411 = vpop.f32.mrb[0].mxu0
        %v5412 = vadd.f32 0.0, %v5411
        %5413 = vmatprep.mubr.f32.mxu0 0.0
        %5414 = vmatmul.mubr.f32.gmra.mrb[0].mxu0 %v5242
        %v5415 = vpop.f32.mrb[0].mxu0
        %v5416 = vadd.f32 0.0, %v5415
        %v5417 = vpop.f32.mrb[0].mxu0
        %v5418 = vadd.f32 0.0, %v5417
        %5419 = vdwg.mxu0
        %5420 = vmatprep.subr.mxu0 %v5254
        %5421 = vmatpush1.msra.mxu0 %v5252
        %5422 = vmatprep.subr.mxu0 0.0
        %5423 = vmatpush1.msra.mxu0 0.0
        %5424 = vmatprep.subr.mxu0 0.0
        %5425 = vmatpush1.msra.mxu0 0.0
        %5426 = vmatprep.subr.mxu0 0.0
        %5427 = vmatpush1.msra.mxu0 0.0
        %5428 = vmatprep.subr.mxu0 0.0
        %5429 = vmatpush1.msra.mxu0 0.0
        %5430 = vmatprep.subr.mxu0 0.0
        %5431 = vmatpush1.msra.mxu0 0.0
        %5432 = vmatprep.subr.mxu0 0.0
        %5433 = vmatpush1.msra.mxu0 0.0
        %5434 = vmatprep.subr.mxu0 0.0
        %5435 = vmatpush1.msra.mxu0 0.0
        %5436 = vmatprep.subr.mxu0 0.0
        %5437 = vmatpush1.msra.mxu0 0.0
        %5438 = vmatprep.subr.mxu0 0.0
        %5439 = vmatpush1.msra.mxu0 0.0
        %5440 = vmatprep.subr.mxu0 0.0
        %5441 = vmatpush1.msra.mxu0 0.0
        %5442 = vmatprep.subr.mxu0 0.0
        %5443 = vmatpush1.msra.mxu0 0.0
        %5444 = vmatprep.subr.mxu0 0.0
        %5445 = vmatpush1.msra.mxu0 0.0
        %5446 = vmatprep.subr.mxu0 0.0
        %5447 = vmatpush1.msra.mxu0 0.0
        %5448 = vmatprep.subr.mxu0 0.0
        %5449 = vmatpush1.msra.mxu0 0.0
        %5450 = vmatprep.subr.mxu0 0.0
        %5451 = vmatpush1.msra.mxu0 0.0
        %5452 = vmatprep.subr.mxu0 0.0
        %5453 = vmatpush1.msra.mxu0 0.0
        %5454 = vmatprep.subr.mxu0 0.0
        %5455 = vmatpush1.msra.mxu0 0.0
        %5456 = vmatprep.subr.mxu0 0.0
        %5457 = vmatpush1.msra.mxu0 0.0
        %5458 = vmatprep.subr.mxu0 0.0
        %5459 = vmatpush1.msra.mxu0 0.0
        %5460 = vmatprep.subr.mxu0 0.0
        %5461 = vmatpush1.msra.mxu0 0.0
        %5462 = vmatprep.subr.mxu0 0.0
        %5463 = vmatpush1.msra.mxu0 0.0
        %5464 = vmatprep.subr.mxu0 0.0
        %5465 = vmatpush1.msra.mxu0 0.0
        %5466 = vmatprep.subr.mxu0 0.0
        %5467 = vmatpush1.msra.mxu0 0.0
        %5468 = vmatprep.subr.mxu0 0.0
        %5469 = vmatpush1.msra.mxu0 0.0
        %5470 = vmatprep.subr.mxu0 0.0
        %5471 = vmatpush1.msra.mxu0 0.0
        %5472 = vmatprep.subr.mxu0 0.0
        %5473 = vmatpush1.msra.mxu0 0.0
        %5474 = vmatprep.subr.mxu0 0.0
        %5475 = vmatpush1.msra.mxu0 0.0
        %5476 = vmatprep.subr.mxu0 0.0
        %5477 = vmatpush1.msra.mxu0 0.0
        %5478 = vmatprep.subr.mxu0 0.0
        %5479 = vmatpush1.msra.mxu0 0.0
        %5480 = vmatprep.subr.mxu0 0.0
        %5481 = vmatpush1.msra.mxu0 0.0
        %5482 = vmatprep.subr.mxu0 0.0
        %5483 = vmatpush1.msra.mxu0 0.0
        %5484 = vmatprep.mubr.f32.mxu0 0.0
        %5485 = vmatmul.mubr.f32.gmra.mrb[0].mxu0 %v5239
        %v5486 = vpop.f32.mrb[0].mxu0
        %v5487 = vadd.f32 0.0, %v5486
        %v5488 = vpop.f32.mrb[0].mxu0
        %v5489 = vadd.f32 0.0, %v5488
        %5490 = vmatprep.mubr.f32.mxu0 0.0
        %5491 = vmatmul.mubr.f32.gmra.mrb[0].mxu0 %v5242
        %v5492 = vpop.f32.mrb[0].mxu0
        %v5493 = vadd.f32 0.0, %v5492
        %v5494 = vpop.f32.mrb[0].mxu0
        %v5495 = vadd.f32 0.0, %v5494
        %5496 = vdwg.mxu0
        %5497 = vmatprep.subr.mxu0 %v5258
        %5498 = vmatpush1.msra.mxu0 %v5256
        %5499 = vmatprep.subr.mxu0 0.0
        %5500 = vmatpush1.msra.mxu0 0.0
        %5501 = vmatprep.subr.mxu0 0.0
        %5502 = vmatpush1.msra.mxu0 0.0
        %5503 = vmatprep.subr.mxu0 0.0
        %5504 = vmatpush1.msra.mxu0 0.0
        %5505 = vmatprep.subr.mxu0 0.0
        %5506 = vmatpush1.msra.mxu0 0.0
        %5507 = vmatprep.subr.mxu0 0.0
        %5508 = vmatpush1.msra.mxu0 0.0
        %5509 = vmatprep.subr.mxu0 0.0
        %5510 = vmatpush1.msra.mxu0 0.0
        %5511 = vmatprep.subr.mxu0 0.0
        %5512 = vmatpush1.msra.mxu0 0.0
        %5513 = vmatprep.subr.mxu0 0.0
        %5514 = vmatpush1.msra.mxu0 0.0
        %5515 = vmatprep.subr.mxu0 0.0
        %5516 = vmatpush1.msra.mxu0 0.0
        %5517 = vmatprep.subr.mxu0 0.0
        %5518 = vmatpush1.msra.mxu0 0.0
        %5519 = vmatprep.subr.mxu0 0.0
        %5520 = vmatpush1.msra.mxu0 0.0
        %5521 = vmatprep.subr.mxu0 0.0
        %5522 = vmatpush1.msra.mxu0 0.0
        %5523 = vmatprep.subr.mxu0 0.0
        %5524 = vmatpush1.msra.mxu0 0.0
        %5525 = vmatprep.subr.mxu0 0.0
        %5526 = vmatpush1.msra.mxu0 0.0
        %5527 = vmatprep.subr.mxu0 0.0
        %5528 = vmatpush1.msra.mxu0 0.0
        %5529 = vmatprep.subr.mxu0 0.0
        %5530 = vmatpush1.msra.mxu0 0.0
        %5531 = vmatprep.subr.mxu0 0.0
        %5532 = vmatpush1.msra.mxu0 0.0
        %5533 = vmatprep.subr.mxu0 0.0
        %5534 = vmatpush1.msra.mxu0 0.0
        %5535 = vmatprep.subr.mxu0 0.0
        %5536 = vmatpush1.msra.mxu0 0.0
        %5537 = vmatprep.subr.mxu0 0.0
        %5538 = vmatpush1.msra.mxu0 0.0
        %5539 = vmatprep.subr.mxu0 0.0
        %5540 = vmatpush1.msra.mxu0 0.0
        %5541 = vmatprep.subr.mxu0 0.0
        %5542 = vmatpush1.msra.mxu0 0.0
        %5543 = vmatprep.subr.mxu0 0.0
        %5544 = vmatpush1.msra.mxu0 0.0
        %5545 = vmatprep.subr.mxu0 0.0
        %5546 = vmatpush1.msra.mxu0 0.0
        %5547 = vmatprep.subr.mxu0 0.0
        %5548 = vmatpush1.msra.mxu0 0.0
        %5549 = vmatprep.subr.mxu0 0.0
        %5550 = vmatpush1.msra.mxu0 0.0
        %5551 = vmatprep.subr.mxu0 0.0
        %5552 = vmatpush1.msra.mxu0 0.0
        %5553 = vmatprep.subr.mxu0 0.0
        %5554 = vmatpush1.msra.mxu0 0.0
        %5555 = vmatprep.subr.mxu0 0.0
        %5556 = vmatpush1.msra.mxu0 0.0
        %5557 = vmatprep.subr.mxu0 0.0
        %5558 = vmatpush1.msra.mxu0 0.0
        %5559 = vmatprep.subr.mxu0 0.0
        %5560 = vmatpush1.msra.mxu0 0.0
        %5561 = vmatprep.mubr.f32.mxu0 0.0
        %5562 = vmatmul.mubr.f32.gmra.mrb[0].mxu0 %v5239
        %v5563 = vpop.f32.mrb[0].mxu0
        %v5564 = vadd.f32 0.0, %v5563
        %v5565 = vpop.f32.mrb[0].mxu0
        %v5566 = vadd.f32 0.0, %v5565
        %5567 = vmatprep.mubr.f32.mxu0 0.0
        %5568 = vmatmul.mubr.f32.gmra.mrb[0].mxu0 %v5242
        %v5569 = vpop.f32.mrb[0].mxu0
        %v5570 = vadd.f32 0.0, %v5569
        %v5571 = vpop.f32.mrb[0].mxu0
        %v5572 = vadd.f32 0.0, %v5571
        %5573 = vdwg.mxu0
        %5574 = vmatprep.subr.mxu0 %v5262
        %5575 = vmatpush1.msra.mxu0 %v5260
        %5576 = vmatprep.subr.mxu0 0.0
        %5577 = vmatpush1.msra.mxu0 0.0
        %5578 = vmatprep.subr.mxu0 0.0
        %5579 = vmatpush1.msra.mxu0 0.0
        %5580 = vmatprep.subr.mxu0 0.0
        %5581 = vmatpush1.msra.mxu0 0.0
        %5582 = vmatprep.subr.mxu0 0.0
        %5583 = vmatpush1.msra.mxu0 0.0
        %5584 = vmatprep.subr.mxu0 0.0
        %5585 = vmatpush1.msra.mxu0 0.0
        %5586 = vmatprep.subr.mxu0 0.0
        %5587 = vmatpush1.msra.mxu0 0.0
        %5588 = vmatprep.subr.mxu0 0.0
        %5589 = vmatpush1.msra.mxu0 0.0
        %5590 = vmatprep.subr.mxu0 0.0
        %5591 = vmatpush1.msra.mxu0 0.0
        %5592 = vmatprep.subr.mxu0 0.0
        %5593 = vmatpush1.msra.mxu0 0.0
        %5594 = vmatprep.subr.mxu0 0.0
        %5595 = vmatpush1.msra.mxu0 0.0
        %5596 = vmatprep.subr.mxu0 0.0
        %5597 = vmatpush1.msra.mxu0 0.0
        %5598 = vmatprep.subr.mxu0 0.0
        %5599 = vmatpush1.msra.mxu0 0.0
        %5600 = vmatprep.subr.mxu0 0.0
        %5601 = vmatpush1.msra.mxu0 0.0
        %5602 = vmatprep.subr.mxu0 0.0
        %5603 = vmatpush1.msra.mxu0 0.0
        %5604 = vmatprep.subr.mxu0 0.0
        %5605 = vmatpush1.msra.mxu0 0.0
        %5606 = vmatprep.subr.mxu0 0.0
        %5607 = vmatpush1.msra.mxu0 0.0
        %5608 = vmatprep.subr.mxu0 0.0
        %5609 = vmatpush1.msra.mxu0 0.0
        %5610 = vmatprep.subr.mxu0 0.0
        %5611 = vmatpush1.msra.mxu0 0.0
        %5612 = vmatprep.subr.mxu0 0.0
        %5613 = vmatpush1.msra.mxu0 0.0
        %5614 = vmatprep.subr.mxu0 0.0
        %5615 = vmatpush1.msra.mxu0 0.0
        %5616 = vmatprep.subr.mxu0 0.0
        %5617 = vmatpush1.msra.mxu0 0.0
        %5618 = vmatprep.subr.mxu0 0.0
        %5619 = vmatpush1.msra.mxu0 0.0
        %5620 = vmatprep.subr.mxu0 0.0
        %5621 = vmatpush1.msra.mxu0 0.0
        %5622 = vmatprep.subr.mxu0 0.0
        %5623 = vmatpush1.msra.mxu0 0.0
        %5624 = vmatprep.subr.mxu0 0.0
        %5625 = vmatpush1.msra.mxu0 0.0
        %5626 = vmatprep.subr.mxu0 0.0
        %5627 = vmatpush1.msra.mxu0 0.0
        %5628 = vmatprep.subr.mxu0 0.0
        %5629 = vmatpush1.msra.mxu0 0.0
        %5630 = vmatprep.subr.mxu0 0.0
        %5631 = vmatpush1.msra.mxu0 0.0
        %5632 = vmatprep.subr.mxu0 0.0
        %5633 = vmatpush1.msra.mxu0 0.0
        %5634 = vmatprep.subr.mxu0 0.0
        %5635 = vmatpush1.msra.mxu0 0.0
        %5636 = vmatprep.subr.mxu0 0.0
        %5637 = vmatpush1.msra.mxu0 0.0
        %5638 = vmatprep.mubr.f32.mxu0 0.0
        %5639 = vmatmul.mubr.f32.gmra.mrb[0].mxu0 %v5239
        %v5640 = vpop.f32.mrb[0].mxu0
        %v5641 = vadd.f32 0.0, %v5640
        %v5642 = vpop.f32.mrb[0].mxu0
        %v5643 = vadd.f32 0.0, %v5642
        %5644 = vmatprep.mubr.f32.mxu0 0.0
        %5645 = vmatmul.mubr.f32.gmra.mrb[0].mxu0 %v5242
        %v5646 = vpop.f32.mrb[0].mxu0
        %v5647 = vadd.f32 0.0, %v5646
        %v5648 = vpop.f32.mrb[0].mxu0
        %v5649 = vadd.f32 0.0, %v5648
        %5650 = vdwg.mxu0
        %5651 = vmatprep.subr.mxu0 0.0
        %5652 = vmatpush1.msra.mxu0 %v5264
        %5653 = vmatprep.subr.mxu0 0.0
        %5654 = vmatpush1.msra.mxu0 0.0
        %5655 = vmatprep.subr.mxu0 0.0
        %5656 = vmatpush1.msra.mxu0 0.0
        %5657 = vmatprep.subr.mxu0 0.0
        %5658 = vmatpush1.msra.mxu0 0.0
        %5659 = vmatprep.subr.mxu0 0.0
        %5660 = vmatpush1.msra.mxu0 0.0
        %5661 = vmatprep.subr.mxu0 0.0
        %5662 = vmatpush1.msra.mxu0 0.0
        %5663 = vmatprep.subr.mxu0 0.0
        %5664 = vmatpush1.msra.mxu0 0.0
        %5665 = vmatprep.subr.mxu0 0.0
        %5666 = vmatpush1.msra.mxu0 0.0
        %5667 = vmatprep.subr.mxu0 0.0
        %5668 = vmatpush1.msra.mxu0 0.0
        %5669 = vmatprep.subr.mxu0 0.0
        %5670 = vmatpush1.msra.mxu0 0.0
        %5671 = vmatprep.subr.mxu0 0.0
        %5672 = vmatpush1.msra.mxu0 0.0
        %5673 = vmatprep.subr.mxu0 0.0
        %5674 = vmatpush1.msra.mxu0 0.0
        %5675 = vmatprep.subr.mxu0 0.0
        %5676 = vmatpush1.msra.mxu0 0.0
        %5677 = vmatprep.subr.mxu0 0.0
        %5678 = vmatpush1.msra.mxu0 0.0
        %5679 = vmatprep.subr.mxu0 0.0
        %5680 = vmatpush1.msra.mxu0 0.0
        %5681 = vmatprep.subr.mxu0 0.0
        %5682 = vmatpush1.msra.mxu0 0.0
        %5683 = vmatprep.subr.mxu0 0.0
        %5684 = vmatpush1.msra.mxu0 0.0
        %5685 = vmatprep.subr.mxu0 0.0
        %5686 = vmatpush1.msra.mxu0 0.0
        %5687 = vmatprep.subr.mxu0 0.0
        %5688 = vmatpush1.msra.mxu0 0.0
        %5689 = vmatprep.subr.mxu0 0.0
        %5690 = vmatpush1.msra.mxu0 0.0
        %5691 = vmatprep.subr.mxu0 0.0
        %5692 = vmatpush1.msra.mxu0 0.0
        %5693 = vmatprep.subr.mxu0 0.0
        %5694 = vmatpush1.msra.mxu0 0.0
        %5695 = vmatprep.subr.mxu0 0.0
        %5696 = vmatpush1.msra.mxu0 0.0
        %5697 = vmatprep.subr.mxu0 0.0
        %5698 = vmatpush1.msra.mxu0 0.0
        %5699 = vmatprep.subr.mxu0 0.0
        %5700 = vmatpush1.msra.mxu0 0.0
        %5701 = vmatprep.subr.mxu0 0.0
        %5702 = vmatpush1.msra.mxu0 0.0
        %5703 = vmatprep.subr.mxu0 0.0
        %5704 = vmatpush1.msra.mxu0 0.0
        %5705 = vmatprep.subr.mxu0 0.0
        %5706 = vmatpush1.msra.mxu0 0.0
        %5707 = vmatprep.subr.mxu0 0.0
        %5708 = vmatpush1.msra.mxu0 0.0
        %5709 = vmatprep.subr.mxu0 0.0
        %5710 = vmatpush1.msra.mxu0 0.0
        %5711 = vmatprep.subr.mxu0 0.0
        %5712 = vmatpush1.msra.mxu0 0.0
        %5713 = vmatprep.subr.mxu0 0.0
        %5714 = vmatpush1.msra.mxu0 0.0
        %5715 = vmatprep.mubr.f32.mxu0 0.0
        %5716 = vmatmul.mubr.f32.gmra.mrb[0].mxu0 %v5239
        %v5717 = vpop.f32.mrb[0].mxu0
        %v5718 = vadd.f32 0.0, %v5717
        %v5719 = vpop.f32.mrb[0].mxu0
        %5720 = vmatprep.mubr.f32.mxu0 0.0
        %5721 = vmatmul.mubr.f32.gmra.mrb[0].mxu0 %v5242
        %v5722 = vpop.f32.mrb[0].mxu0
        %v5723 = vadd.f32 0.0, %v5722
        %v5724 = vpop.f32.mrb[0].mxu0
        %5725 = vdwg.mxu0
        %v5726 = vadd.f32 %v5119, %v5333
        %v5727 = vadd.f32 %v5120, %v5335
        %v5728 = vadd.f32 %v5121, %v5410
        %v5729 = vadd.f32 %v5122, %v5412
        %v5730 = vadd.f32 %v5123, %v5487
        %v5731 = vadd.f32 %v5124, %v5489
        %v5732 = vadd.f32 %v5125, %v5564
        %v5733 = vadd.f32 %v5126, %v5566
        %v5734 = vadd.f32 %v5127, %v5641
        %v5735 = vadd.f32 %v5128, %v5643
        %v5736 = vadd.f32 %v5129, %v5718
        %v5737 = vadd.f32 %v5130, %v5339
        %v5738 = vadd.f32 %v5131, %v5341
        %v5739 = vadd.f32 %v5132, %v5416
        %v5740 = vadd.f32 %v5133, %v5418
        %v5741 = vadd.f32 %v5134, %v5493
        %v5742 = vadd.f32 %v5135, %v5495
        %v5743 = vadd.f32 %v5136, %v5570
        %v5744 = vadd.f32 %v5137, %v5572
        %v5745 = vadd.f32 %v5138, %v5647
        %v5746 = vadd.f32 %v5139, %v5649
        %v5747 = vadd.f32 %v5140, %v5723
        %v5748 = vld [vmem:[%s2] sm:$0xff]
        %v5749 = vld [vmem:[%s2 + $0x8] sm:$0xff]
        %5751 = vset.pattern.permute.xlu0 0
        %5752 = vperm.xlu0 %5751, %v5748
        %v5753 = vpop.permute.xlu0 %5752
        %5756 = vset.pattern.permute.xlu0 0
        %5757 = vperm.xlu0 %5756, %v5749
        %v5758 = vpop.permute.xlu0 %5757
        %v5760 = vadd.f32 %v5726, %v5753
        %v5761 = vadd.f32 %v5727, %v5753
        %v5762 = vadd.f32 %v5728, %v5753
        %v5763 = vadd.f32 %v5729, %v5753
        %v5764 = vadd.f32 %v5730, %v5753
        %v5765 = vadd.f32 %v5731, %v5753
        %v5766 = vadd.f32 %v5732, %v5753
        %v5767 = vadd.f32 %v5733, %v5753
        %v5768 = vadd.f32 %v5734, %v5753
        %v5769 = vadd.f32 %v5735, %v5753
        %v5770 = vadd.f32 %v5736, %v5753
        %v5771 = vadd.f32 %v5737, %v5758
        %v5772 = vadd.f32 %v5738, %v5758
        %v5773 = vadd.f32 %v5739, %v5758
        %v5774 = vadd.f32 %v5740, %v5758
        %v5775 = vadd.f32 %v5741, %v5758
        %v5776 = vadd.f32 %v5742, %v5758
        %v5777 = vadd.f32 %v5743, %v5758
        %v5778 = vadd.f32 %v5744, %v5758
        %v5779 = vadd.f32 %v5745, %v5758
        %v5780 = vadd.f32 %v5746, %v5758
        %v5781 = vadd.f32 %v5747, %v5758
        %v5782 = vmax.f32 %v5760, 0.0
        %v5783 = vmax.f32 %v5761, 0.0
        %v5784 = vmax.f32 %v5762, 0.0
        %v5785 = vmax.f32 %v5763, 0.0
        %v5786 = vmax.f32 %v5764, 0.0
        %v5787 = vmax.f32 %v5765, 0.0
        %v5788 = vmax.f32 %v5766, 0.0
        %v5789 = vmax.f32 %v5767, 0.0
        %v5790 = vmax.f32 %v5768, 0.0
        %v5791 = vmax.f32 %v5769, 0.0
        %v5792 = vmax.f32 %v5770, 0.0
        %v5793 = vmax.f32 %v5771, 0.0
        %v5794 = vmax.f32 %v5772, 0.0
        %v5795 = vmax.f32 %v5773, 0.0
        %v5796 = vmax.f32 %v5774, 0.0
        %v5797 = vmax.f32 %v5775, 0.0
        %v5798 = vmax.f32 %v5776, 0.0
        %v5799 = vmax.f32 %v5777, 0.0
        %v5800 = vmax.f32 %v5778, 0.0
        %v5801 = vmax.f32 %v5779, 0.0
        %v5802 = vmax.f32 %v5780, 0.0
        %v5803 = vmax.f32 %v5781, 0.0
        %v5806 = vlaneseq
        %v5807 = vshrl.u32 %v5806, 7
        %v5808 = vsub.s32 0, %v5807
        %v5809 = vrot.slane %v305, %v5808
        %v5810 = vlaneseq
        %v5811 = vshrl.u32 %v5810, 7
        %v5812 = vsub.s32 1, %v5811
        %v5813 = vrot.slane %v305, %v5812
        %v5814 = vlaneseq
        %v5815 = vshrl.u32 %v5814, 7
        %v5816 = vsub.s32 2, %v5815
        %v5817 = vrot.slane %v305, %v5816
        %v5818 = vlaneseq
        %v5819 = vshrl.u32 %v5818, 7
        %v5820 = vsub.s32 3, %v5819
        %v5821 = vrot.slane %v305, %v5820
        %v5822 = vlaneseq
        %v5823 = vshrl.u32 %v5822, 7
        %v5824 = vsub.s32 4, %v5823
        %v5825 = vrot.slane %v305, %v5824
        %v5826 = vlaneseq
        %v5827 = vshrl.u32 %v5826, 7
        %v5828 = vsub.s32 5, %v5827
        %v5829 = vrot.slane %v305, %v5828
        %v5830 = vlaneseq
        %v5831 = vshrl.u32 %v5830, 7
        %v5832 = vsub.s32 6, %v5831
        %v5833 = vrot.slane %v305, %v5832
        %v5834 = vlaneseq
        %v5835 = vshrl.u32 %v5834, 7
        %v5836 = vsub.s32 7, %v5835
        %v5837 = vrot.slane %v305, %v5836
        %v5838 = vlaneseq
        %v5839 = vshrl.u32 %v5838, 7
        %v5840 = vsub.s32 0, %v5839
        %v5841 = vrot.slane %v307, %v5840
        %v5842 = vlaneseq
        %v5843 = vshrl.u32 %v5842, 7
        %v5844 = vsub.s32 1, %v5843
        %v5845 = vrot.slane %v307, %v5844
        %v5846 = vlaneseq
        %v5847 = vshrl.u32 %v5846, 7
        %v5848 = vsub.s32 2, %v5847
        %v5849 = vrot.slane %v307, %v5848
        %v5861 = vmul.f32 %v5782, %v5809
        %v5862 = vmul.f32 %v5783, %v5813
        %v5863 = vmul.f32 %v5784, %v5817
        %v5864 = vmul.f32 %v5785, %v5821
        %v5865 = vmul.f32 %v5786, %v5825
        %v5866 = vmul.f32 %v5787, %v5829
        %v5867 = vmul.f32 %v5788, %v5833
        %v5868 = vmul.f32 %v5789, %v5837
        %v5869 = vmul.f32 %v5790, %v5841
        %v5870 = vmul.f32 %v5791, %v5845
        %v5871 = vmul.f32 %v5792, %v5849
        %v5872 = vmul.f32 %v5793, %v5809
        %v5873 = vmul.f32 %v5794, %v5813
        %v5874 = vmul.f32 %v5795, %v5817
        %v5875 = vmul.f32 %v5796, %v5821
        %v5876 = vmul.f32 %v5797, %v5825
        %v5877 = vmul.f32 %v5798, %v5829
        %v5878 = vmul.f32 %v5799, %v5833
        %v5879 = vmul.f32 %v5800, %v5837
        %v5880 = vmul.f32 %v5801, %v5841
        %v5881 = vmul.f32 %v5802, %v5845
        %v5882 = vmul.f32 %v5803, %v5849
        %5905 = vrot.lane.b32.xlu0 %v5861, 64
        %v5906 = vpop.permute.xlu0 %5905
        %5907 = vrot.lane.b32.xlu0 %v5862, 64
        %v5908 = vpop.permute.xlu0 %5907
        %5909 = vrot.lane.b32.xlu0 %v5863, 64
        %v5910 = vpop.permute.xlu0 %5909
        %5911 = vrot.lane.b32.xlu0 %v5864, 64
        %v5912 = vpop.permute.xlu0 %5911
        %5913 = vrot.lane.b32.xlu0 %v5865, 64
        %v5914 = vpop.permute.xlu0 %5913
        %5915 = vrot.lane.b32.xlu0 %v5866, 64
        %v5916 = vpop.permute.xlu0 %5915
        %5917 = vrot.lane.b32.xlu0 %v5867, 64
        %v5918 = vpop.permute.xlu0 %5917
        %5919 = vrot.lane.b32.xlu0 %v5868, 64
        %v5920 = vpop.permute.xlu0 %5919
        %5921 = vrot.lane.b32.xlu0 %v5869, 64
        %v5922 = vpop.permute.xlu0 %5921
        %5923 = vrot.lane.b32.xlu0 %v5870, 64
        %v5924 = vpop.permute.xlu0 %5923
        %5925 = vrot.lane.b32.xlu0 %v5871, 64
        %v5926 = vpop.permute.xlu0 %5925
        %5927 = vrot.lane.b32.xlu0 %v5872, 64
        %v5928 = vpop.permute.xlu0 %5927
        %5929 = vrot.lane.b32.xlu0 %v5873, 64
        %v5930 = vpop.permute.xlu0 %5929
        %5931 = vrot.lane.b32.xlu0 %v5874, 64
        %v5932 = vpop.permute.xlu0 %5931
        %5933 = vrot.lane.b32.xlu0 %v5875, 64
        %v5934 = vpop.permute.xlu0 %5933
        %5935 = vrot.lane.b32.xlu0 %v5876, 64
        %v5936 = vpop.permute.xlu0 %5935
        %5937 = vrot.lane.b32.xlu0 %v5877, 64
        %v5938 = vpop.permute.xlu0 %5937
        %5939 = vrot.lane.b32.xlu0 %v5878, 64
        %v5940 = vpop.permute.xlu0 %5939
        %5941 = vrot.lane.b32.xlu0 %v5879, 64
        %v5942 = vpop.permute.xlu0 %5941
        %5943 = vrot.lane.b32.xlu0 %v5880, 64
        %v5944 = vpop.permute.xlu0 %5943
        %5945 = vrot.lane.b32.xlu0 %v5881, 64
        %v5946 = vpop.permute.xlu0 %5945
        %5947 = vrot.lane.b32.xlu0 %v5882, 64
        %v5948 = vpop.permute.xlu0 %5947
        %v5949 = vsel %vm332, %v5906, %v5908
        %v5950 = vsel %vm332, %v5908, %v5910
        %v5951 = vsel %vm332, %v5910, %v5912
        %v5952 = vsel %vm332, %v5912, %v5914
        %v5953 = vsel %vm332, %v5914, %v5916
        %v5954 = vsel %vm332, %v5916, %v5918
        %v5955 = vsel %vm332, %v5918, %v5920
        %v5956 = vsel %vm332, %v5920, %v5922
        %v5957 = vsel %vm332, %v5922, %v5924
        %v5958 = vsel %vm332, %v5924, %v5926
        %v5959 = vsel %vm332, %v5928, %v5930
        %v5960 = vsel %vm332, %v5930, %v5932
        %v5961 = vsel %vm332, %v5932, %v5934
        %v5962 = vsel %vm332, %v5934, %v5936
        %v5963 = vsel %vm332, %v5936, %v5938
        %v5964 = vsel %vm332, %v5938, %v5940
        %v5965 = vsel %vm332, %v5940, %v5942
        %v5966 = vsel %vm332, %v5942, %v5944
        %v5967 = vsel %vm332, %v5944, %v5946
        %v5968 = vsel %vm332, %v5946, %v5948
        %5993 = vst.msk [vmem:[#allocation2] sm:$0xff] %vm335, %v5906
        %5994 = vst [vmem:[#allocation2 + $0x8] sm:$0xff] %v5949
        %5995 = vst [vmem:[#allocation2 + $0x10] sm:$0xff] %v5950
        %5996 = vst [vmem:[#allocation2 + $0x18] sm:$0xff] %v5951
        %5997 = vst [vmem:[#allocation2 + $0x20] sm:$0xff] %v5952
        %5998 = vst [vmem:[#allocation2 + $0x28] sm:$0xff] %v5953
        %5999 = vst [vmem:[#allocation2 + $0x30] sm:$0xff] %v5954
        %6000 = vst [vmem:[#allocation2 + $0x38] sm:$0xff] %v5955
        %6001 = vst [vmem:[#allocation2 + $0x40] sm:$0xff] %v5956
        %6002 = vst [vmem:[#allocation2 + $0x48] sm:$0xff] %v5957
        %6003 = vst [vmem:[#allocation2 + $0x50] sm:$0xff] %v5958
        %6004 = vst.msk [vmem:[#allocation2 + $0x58] sm:$0xff] %vm332, %v5926
        %6005 = vst.msk [vmem:[#allocation2 + $0x60] sm:$0xff] %vm335, %v5928
        %6006 = vst [vmem:[#allocation2 + $0x68] sm:$0xff] %v5959
        %6007 = vst [vmem:[#allocation2 + $0x70] sm:$0xff] %v5960
        %6008 = vst [vmem:[#allocation2 + $0x78] sm:$0xff] %v5961
        %6009 = vst [vmem:[#allocation2 + $0x80] sm:$0xff] %v5962
        %6010 = vst [vmem:[#allocation2 + $0x88] sm:$0xff] %v5963
        %6011 = vst [vmem:[#allocation2 + $0x90] sm:$0xff] %v5964
        %6012 = vst [vmem:[#allocation2 + $0x98] sm:$0xff] %v5965
        %6013 = vst [vmem:[#allocation2 + $0xa0] sm:$0xff] %v5966
        %6014 = vst [vmem:[#allocation2 + $0xa8] sm:$0xff] %v5967
        %6015 = vst [vmem:[#allocation2 + $0xb0] sm:$0xff] %v5968
        %6016 = vst.msk [vmem:[#allocation2 + $0xb8] sm:$0xff] %vm332, %v5948
        %v6017 = vld [vmem:[#allocation2] sm:$0xff]
        %v6018 = vld [vmem:[#allocation2 + $0x8] sm:$0xff]
        %v6019 = vld [vmem:[#allocation2 + $0x10] sm:$0xff]
        %v6020 = vld [vmem:[#allocation2 + $0x18] sm:$0xff]
        %v6021 = vld [vmem:[#allocation2 + $0x20] sm:$0xff]
        %v6022 = vld [vmem:[#allocation2 + $0x28] sm:$0xff]
        %v6023 = vld [vmem:[#allocation2 + $0x30] sm:$0xff]
        %v6024 = vld [vmem:[#allocation2 + $0x38] sm:$0xff]
        %v6025 = vld [vmem:[#allocation2 + $0x40] sm:$0xff]
        %v6026 = vld [vmem:[#allocation2 + $0x48] sm:$0xff]
        %v6027 = vld [vmem:[#allocation2 + $0x50] sm:$0xff]
        %v6028 = vld [vmem:[#allocation2 + $0x58] sm:$0xff]
        %v6029 = vld [vmem:[#allocation2 + $0x60] sm:$0xff]
        %v6030 = vld [vmem:[#allocation2 + $0x68] sm:$0xff]
        %v6031 = vld [vmem:[#allocation2 + $0x70] sm:$0xff]
        %v6032 = vld [vmem:[#allocation2 + $0x78] sm:$0xff]
        %v6033 = vld [vmem:[#allocation2 + $0x80] sm:$0xff]
        %v6034 = vld [vmem:[#allocation2 + $0x88] sm:$0xff]
        %v6035 = vld [vmem:[#allocation2 + $0x90] sm:$0xff]
        %v6036 = vld [vmem:[#allocation2 + $0x98] sm:$0xff]
        %v6037 = vld [vmem:[#allocation2 + $0xa0] sm:$0xff]
        %v6038 = vld [vmem:[#allocation2 + $0xa8] sm:$0xff]
        %v6039 = vld [vmem:[#allocation2 + $0xb0] sm:$0xff]
        %v6040 = vld [vmem:[#allocation2 + $0xb8] sm:$0xff]
        %6065 = vrot.lane.b32.xlu0 %v6017, 63
        %v6066 = vpop.permute.xlu0 %6065
        %6067 = vrot.lane.b32.xlu0 %v6018, 63
        %v6068 = vpop.permute.xlu0 %6067
        %6069 = vrot.lane.b32.xlu0 %v6019, 63
        %v6070 = vpop.permute.xlu0 %6069
        %6071 = vrot.lane.b32.xlu0 %v6020, 63
        %v6072 = vpop.permute.xlu0 %6071
        %6073 = vrot.lane.b32.xlu0 %v6021, 63
        %v6074 = vpop.permute.xlu0 %6073
        %6075 = vrot.lane.b32.xlu0 %v6022, 63
        %v6076 = vpop.permute.xlu0 %6075
        %6077 = vrot.lane.b32.xlu0 %v6023, 63
        %v6078 = vpop.permute.xlu0 %6077
        %6079 = vrot.lane.b32.xlu0 %v6024, 63
        %v6080 = vpop.permute.xlu0 %6079
        %6081 = vrot.lane.b32.xlu0 %v6025, 63
        %v6082 = vpop.permute.xlu0 %6081
        %6083 = vrot.lane.b32.xlu0 %v6026, 63
        %v6084 = vpop.permute.xlu0 %6083
        %6085 = vrot.lane.b32.xlu0 %v6027, 63
        %v6086 = vpop.permute.xlu0 %6085
        %6087 = vrot.lane.b32.xlu0 %v6028, 63
        %v6088 = vpop.permute.xlu0 %6087
        %6089 = vrot.lane.b32.xlu0 %v6029, 63
        %v6090 = vpop.permute.xlu0 %6089
        %6091 = vrot.lane.b32.xlu0 %v6030, 63
        %v6092 = vpop.permute.xlu0 %6091
        %6093 = vrot.lane.b32.xlu0 %v6031, 63
        %v6094 = vpop.permute.xlu0 %6093
        %6095 = vrot.lane.b32.xlu0 %v6032, 63
        %v6096 = vpop.permute.xlu0 %6095
        %6097 = vrot.lane.b32.xlu0 %v6033, 63
        %v6098 = vpop.permute.xlu0 %6097
        %6099 = vrot.lane.b32.xlu0 %v6034, 63
        %v6100 = vpop.permute.xlu0 %6099
        %6101 = vrot.lane.b32.xlu0 %v6035, 63
        %v6102 = vpop.permute.xlu0 %6101
        %6103 = vrot.lane.b32.xlu0 %v6036, 63
        %v6104 = vpop.permute.xlu0 %6103
        %6105 = vrot.lane.b32.xlu0 %v6037, 63
        %v6106 = vpop.permute.xlu0 %6105
        %6107 = vrot.lane.b32.xlu0 %v6038, 63
        %v6108 = vpop.permute.xlu0 %6107
        %6109 = vrot.lane.b32.xlu0 %v6039, 63
        %v6110 = vpop.permute.xlu0 %6109
        %6111 = vrot.lane.b32.xlu0 %v6040, 63
        %v6112 = vpop.permute.xlu0 %6111
        %v6113 = vsel %vm2209, %v6066, %v6068
        %v6114 = vsel %vm2209, %v6068, %v6070
        %v6115 = vsel %vm2209, %v6070, %v6072
        %v6116 = vsel %vm2209, %v6072, %v6074
        %v6117 = vsel %vm2209, %v6074, %v6076
        %v6118 = vsel %vm2209, %v6076, %v6078
        %v6119 = vsel %vm2209, %v6078, %v6080
        %v6120 = vsel %vm2209, %v6080, %v6082
        %v6121 = vsel %vm2209, %v6082, %v6084
        %v6122 = vsel %vm2209, %v6084, %v6086
        %v6123 = vsel %vm2209, %v6086, %v6088
        %v6124 = vsel %vm2209, %v6090, %v6092
        %v6125 = vsel %vm2209, %v6092, %v6094
        %v6126 = vsel %vm2209, %v6094, %v6096
        %v6127 = vsel %vm2209, %v6096, %v6098
        %v6128 = vsel %vm2209, %v6098, %v6100
        %v6129 = vsel %vm2209, %v6100, %v6102
        %v6130 = vsel %vm2209, %v6102, %v6104
        %v6131 = vsel %vm2209, %v6104, %v6106
        %v6132 = vsel %vm2209, %v6106, %v6108
        %v6133 = vsel %vm2209, %v6108, %v6110
        %v6134 = vsel %vm2209, %v6110, %v6112
        %v6157 = vmax.f32 %v5861, %v6113
        %v6158 = vmax.f32 %v5862, %v6114
        %v6159 = vmax.f32 %v5863, %v6115
        %v6160 = vmax.f32 %v5864, %v6116
        %v6161 = vmax.f32 %v5865, %v6117
        %v6162 = vmax.f32 %v5866, %v6118
        %v6163 = vmax.f32 %v5867, %v6119
        %v6164 = vmax.f32 %v5868, %v6120
        %v6165 = vmax.f32 %v5869, %v6121
        %v6166 = vmax.f32 %v5870, %v6122
        %v6167 = vmax.f32 %v5871, %v6123
        %v6168 = vmax.f32 %v5872, %v6124
        %v6169 = vmax.f32 %v5873, %v6125
        %v6170 = vmax.f32 %v5874, %v6126
        %v6171 = vmax.f32 %v5875, %v6127
        %v6172 = vmax.f32 %v5876, %v6128
        %v6173 = vmax.f32 %v5877, %v6129
        %v6174 = vmax.f32 %v5878, %v6130
        %v6175 = vmax.f32 %v5879, %v6131
        %v6176 = vmax.f32 %v5880, %v6132
        %v6177 = vmax.f32 %v5881, %v6133
        %v6178 = vmax.f32 %v5882, %v6134
        %6179 = vrot.lane.b32.xlu0 %v6017, 48
        %v6180 = vpop.permute.xlu0 %6179
        %6181 = vrot.lane.b32.xlu0 %v6018, 48
        %v6182 = vpop.permute.xlu0 %6181
        %6183 = vrot.lane.b32.xlu0 %v6019, 48
        %v6184 = vpop.permute.xlu0 %6183
        %6185 = vrot.lane.b32.xlu0 %v6020, 48
        %v6186 = vpop.permute.xlu0 %6185
        %6187 = vrot.lane.b32.xlu0 %v6021, 48
        %v6188 = vpop.permute.xlu0 %6187
        %6189 = vrot.lane.b32.xlu0 %v6022, 48
        %v6190 = vpop.permute.xlu0 %6189
        %6191 = vrot.lane.b32.xlu0 %v6023, 48
        %v6192 = vpop.permute.xlu0 %6191
        %6193 = vrot.lane.b32.xlu0 %v6024, 48
        %v6194 = vpop.permute.xlu0 %6193
        %6195 = vrot.lane.b32.xlu0 %v6025, 48
        %v6196 = vpop.permute.xlu0 %6195
        %6197 = vrot.lane.b32.xlu0 %v6026, 48
        %v6198 = vpop.permute.xlu0 %6197
        %6199 = vrot.lane.b32.xlu0 %v6027, 48
        %v6200 = vpop.permute.xlu0 %6199
        %6201 = vrot.lane.b32.xlu0 %v6028, 48
        %v6202 = vpop.permute.xlu0 %6201
        %6203 = vrot.lane.b32.xlu0 %v6029, 48
        %v6204 = vpop.permute.xlu0 %6203
        %6205 = vrot.lane.b32.xlu0 %v6030, 48
        %v6206 = vpop.permute.xlu0 %6205
        %6207 = vrot.lane.b32.xlu0 %v6031, 48
        %v6208 = vpop.permute.xlu0 %6207
        %6209 = vrot.lane.b32.xlu0 %v6032, 48
        %v6210 = vpop.permute.xlu0 %6209
        %6211 = vrot.lane.b32.xlu0 %v6033, 48
        %v6212 = vpop.permute.xlu0 %6211
        %6213 = vrot.lane.b32.xlu0 %v6034, 48
        %v6214 = vpop.permute.xlu0 %6213
        %6215 = vrot.lane.b32.xlu0 %v6035, 48
        %v6216 = vpop.permute.xlu0 %6215
        %6217 = vrot.lane.b32.xlu0 %v6036, 48
        %v6218 = vpop.permute.xlu0 %6217
        %6219 = vrot.lane.b32.xlu0 %v6037, 48
        %v6220 = vpop.permute.xlu0 %6219
        %6221 = vrot.lane.b32.xlu0 %v6038, 48
        %v6222 = vpop.permute.xlu0 %6221
        %6223 = vrot.lane.b32.xlu0 %v6039, 48
        %v6224 = vpop.permute.xlu0 %6223
        %6225 = vrot.lane.b32.xlu0 %v6040, 48
        %v6226 = vpop.permute.xlu0 %6225
        %v6227 = vsel %vm4619, %v6180, %v6182
        %v6228 = vsel %vm4619, %v6182, %v6184
        %v6229 = vsel %vm4619, %v6184, %v6186
        %v6230 = vsel %vm4619, %v6186, %v6188
        %v6231 = vsel %vm4619, %v6188, %v6190
        %v6232 = vsel %vm4619, %v6190, %v6192
        %v6233 = vsel %vm4619, %v6192, %v6194
        %v6234 = vsel %vm4619, %v6194, %v6196
        %v6235 = vsel %vm4619, %v6196, %v6198
        %v6236 = vsel %vm4619, %v6198, %v6200
        %v6237 = vsel %vm4619, %v6200, %v6202
        %v6238 = vsel %vm4619, %v6204, %v6206
        %v6239 = vsel %vm4619, %v6206, %v6208
        %v6240 = vsel %vm4619, %v6208, %v6210
        %v6241 = vsel %vm4619, %v6210, %v6212
        %v6242 = vsel %vm4619, %v6212, %v6214
        %v6243 = vsel %vm4619, %v6214, %v6216
        %v6244 = vsel %vm4619, %v6216, %v6218
        %v6245 = vsel %vm4619, %v6218, %v6220
        %v6246 = vsel %vm4619, %v6220, %v6222
        %v6247 = vsel %vm4619, %v6222, %v6224
        %v6248 = vsel %vm4619, %v6224, %v6226
        %v6271 = vmax.f32 %v6157, %v6227
        %v6272 = vmax.f32 %v6158, %v6228
        %v6273 = vmax.f32 %v6159, %v6229
        %v6274 = vmax.f32 %v6160, %v6230
        %v6275 = vmax.f32 %v6161, %v6231
        %v6276 = vmax.f32 %v6162, %v6232
        %v6277 = vmax.f32 %v6163, %v6233
        %v6278 = vmax.f32 %v6164, %v6234
        %v6279 = vmax.f32 %v6165, %v6235
        %v6280 = vmax.f32 %v6166, %v6236
        %v6281 = vmax.f32 %v6167, %v6237
        %v6282 = vmax.f32 %v6168, %v6238
        %v6283 = vmax.f32 %v6169, %v6239
        %v6284 = vmax.f32 %v6170, %v6240
        %v6285 = vmax.f32 %v6171, %v6241
        %v6286 = vmax.f32 %v6172, %v6242
        %v6287 = vmax.f32 %v6173, %v6243
        %v6288 = vmax.f32 %v6174, %v6244
        %v6289 = vmax.f32 %v6175, %v6245
        %v6290 = vmax.f32 %v6176, %v6246
        %v6291 = vmax.f32 %v6177, %v6247
        %v6292 = vmax.f32 %v6178, %v6248
        %6293 = vrot.lane.b32.xlu0 %v6017, 47
        %v6294 = vpop.permute.xlu0 %6293
        %6295 = vrot.lane.b32.xlu0 %v6018, 47
        %v6296 = vpop.permute.xlu0 %6295
        %6297 = vrot.lane.b32.xlu0 %v6019, 47
        %v6298 = vpop.permute.xlu0 %6297
        %6299 = vrot.lane.b32.xlu0 %v6020, 47
        %v6300 = vpop.permute.xlu0 %6299
        %6301 = vrot.lane.b32.xlu0 %v6021, 47
        %v6302 = vpop.permute.xlu0 %6301
        %6303 = vrot.lane.b32.xlu0 %v6022, 47
        %v6304 = vpop.permute.xlu0 %6303
        %6305 = vrot.lane.b32.xlu0 %v6023, 47
        %v6306 = vpop.permute.xlu0 %6305
        %6307 = vrot.lane.b32.xlu0 %v6024, 47
        %v6308 = vpop.permute.xlu0 %6307
        %6309 = vrot.lane.b32.xlu0 %v6025, 47
        %v6310 = vpop.permute.xlu0 %6309
        %6311 = vrot.lane.b32.xlu0 %v6026, 47
        %v6312 = vpop.permute.xlu0 %6311
        %6313 = vrot.lane.b32.xlu0 %v6027, 47
        %v6314 = vpop.permute.xlu0 %6313
        %6315 = vrot.lane.b32.xlu0 %v6028, 47
        %v6316 = vpop.permute.xlu0 %6315
        %6317 = vrot.lane.b32.xlu0 %v6029, 47
        %v6318 = vpop.permute.xlu0 %6317
        %6319 = vrot.lane.b32.xlu0 %v6030, 47
        %v6320 = vpop.permute.xlu0 %6319
        %6321 = vrot.lane.b32.xlu0 %v6031, 47
        %v6322 = vpop.permute.xlu0 %6321
        %6323 = vrot.lane.b32.xlu0 %v6032, 47
        %v6324 = vpop.permute.xlu0 %6323
        %6325 = vrot.lane.b32.xlu0 %v6033, 47
        %v6326 = vpop.permute.xlu0 %6325
        %6327 = vrot.lane.b32.xlu0 %v6034, 47
        %v6328 = vpop.permute.xlu0 %6327
        %6329 = vrot.lane.b32.xlu0 %v6035, 47
        %v6330 = vpop.permute.xlu0 %6329
        %6331 = vrot.lane.b32.xlu0 %v6036, 47
        %v6332 = vpop.permute.xlu0 %6331
        %6333 = vrot.lane.b32.xlu0 %v6037, 47
        %v6334 = vpop.permute.xlu0 %6333
        %6335 = vrot.lane.b32.xlu0 %v6038, 47
        %v6336 = vpop.permute.xlu0 %6335
        %6337 = vrot.lane.b32.xlu0 %v6039, 47
        %v6338 = vpop.permute.xlu0 %6337
        %6339 = vrot.lane.b32.xlu0 %v6040, 47
        %v6340 = vpop.permute.xlu0 %6339
        %v6341 = vsel %vm421, %v6294, %v6296
        %v6342 = vsel %vm421, %v6296, %v6298
        %v6343 = vsel %vm421, %v6298, %v6300
        %v6344 = vsel %vm421, %v6300, %v6302
        %v6345 = vsel %vm421, %v6302, %v6304
        %v6346 = vsel %vm421, %v6304, %v6306
        %v6347 = vsel %vm421, %v6306, %v6308
        %v6348 = vsel %vm421, %v6308, %v6310
        %v6349 = vsel %vm421, %v6310, %v6312
        %v6350 = vsel %vm421, %v6312, %v6314
        %v6351 = vsel %vm421, %v6314, %v6316
        %v6352 = vsel %vm421, %v6318, %v6320
        %v6353 = vsel %vm421, %v6320, %v6322
        %v6354 = vsel %vm421, %v6322, %v6324
        %v6355 = vsel %vm421, %v6324, %v6326
        %v6356 = vsel %vm421, %v6326, %v6328
        %v6357 = vsel %vm421, %v6328, %v6330
        %v6358 = vsel %vm421, %v6330, %v6332
        %v6359 = vsel %vm421, %v6332, %v6334
        %v6360 = vsel %vm421, %v6334, %v6336
        %v6361 = vsel %vm421, %v6336, %v6338
        %v6362 = vsel %vm421, %v6338, %v6340
        %v6385 = vmax.f32 %v6271, %v6341
        %v6386 = vmax.f32 %v6272, %v6342
        %v6387 = vmax.f32 %v6273, %v6343
        %v6388 = vmax.f32 %v6274, %v6344
        %v6389 = vmax.f32 %v6275, %v6345
        %v6390 = vmax.f32 %v6276, %v6346
        %v6391 = vmax.f32 %v6277, %v6347
        %v6392 = vmax.f32 %v6278, %v6348
        %v6393 = vmax.f32 %v6279, %v6349
        %v6394 = vmax.f32 %v6280, %v6350
        %v6395 = vmax.f32 %v6281, %v6351
        %v6396 = vmax.f32 %v6282, %v6352
        %v6397 = vmax.f32 %v6283, %v6353
        %v6398 = vmax.f32 %v6284, %v6354
        %v6399 = vmax.f32 %v6285, %v6355
        %v6400 = vmax.f32 %v6286, %v6356
        %v6401 = vmax.f32 %v6287, %v6357
        %v6402 = vmax.f32 %v6288, %v6358
        %v6403 = vmax.f32 %v6289, %v6359
        %v6404 = vmax.f32 %v6290, %v6360
        %v6405 = vmax.f32 %v6291, %v6361
        %v6406 = vmax.f32 %v6292, %v6362
        %v6407 = vmul.f32 %v6385, %v5809
        %v6408 = vmul.f32 %v6386, %v5813
        %v6409 = vmul.f32 %v6387, %v5817
        %v6410 = vmul.f32 %v6388, %v5821
        %v6411 = vmul.f32 %v6389, %v5825
        %v6412 = vmul.f32 %v6390, %v5829
        %v6413 = vmul.f32 %v6391, %v5833
        %v6414 = vmul.f32 %v6392, %v5837
        %v6415 = vmul.f32 %v6393, %v5841
        %v6416 = vmul.f32 %v6394, %v5845
        %v6417 = vmul.f32 %v6395, %v5849
        %v6418 = vmul.f32 %v6396, %v5809
        %v6419 = vmul.f32 %v6397, %v5813
        %v6420 = vmul.f32 %v6398, %v5817
        %v6421 = vmul.f32 %v6399, %v5821
        %v6422 = vmul.f32 %v6400, %v5825
        %v6423 = vmul.f32 %v6401, %v5829
        %v6424 = vmul.f32 %v6402, %v5833
        %v6425 = vmul.f32 %v6403, %v5837
        %v6426 = vmul.f32 %v6404, %v5841
        %v6427 = vmul.f32 %v6405, %v5845
        %v6428 = vmul.f32 %v6406, %v5849
        %6451 = vrot.lane.b32.xlu0 %v6407, 64
        %v6452 = vpop.permute.xlu0 %6451
        %6453 = vrot.lane.b32.xlu0 %v6408, 64
        %v6454 = vpop.permute.xlu0 %6453
        %6455 = vrot.lane.b32.xlu0 %v6409, 64
        %v6456 = vpop.permute.xlu0 %6455
        %6457 = vrot.lane.b32.xlu0 %v6410, 64
        %v6458 = vpop.permute.xlu0 %6457
        %6459 = vrot.lane.b32.xlu0 %v6411, 64
        %v6460 = vpop.permute.xlu0 %6459
        %6461 = vrot.lane.b32.xlu0 %v6412, 64
        %v6462 = vpop.permute.xlu0 %6461
        %6463 = vrot.lane.b32.xlu0 %v6413, 64
        %v6464 = vpop.permute.xlu0 %6463
        %6465 = vrot.lane.b32.xlu0 %v6414, 64
        %v6466 = vpop.permute.xlu0 %6465
        %6467 = vrot.lane.b32.xlu0 %v6415, 64
        %v6468 = vpop.permute.xlu0 %6467
        %6469 = vrot.lane.b32.xlu0 %v6416, 64
        %v6470 = vpop.permute.xlu0 %6469
        %6471 = vrot.lane.b32.xlu0 %v6417, 64
        %v6472 = vpop.permute.xlu0 %6471
        %6473 = vrot.lane.b32.xlu0 %v6418, 64
        %v6474 = vpop.permute.xlu0 %6473
        %6475 = vrot.lane.b32.xlu0 %v6419, 64
        %v6476 = vpop.permute.xlu0 %6475
        %6477 = vrot.lane.b32.xlu0 %v6420, 64
        %v6478 = vpop.permute.xlu0 %6477
        %6479 = vrot.lane.b32.xlu0 %v6421, 64
        %v6480 = vpop.permute.xlu0 %6479
        %6481 = vrot.lane.b32.xlu0 %v6422, 64
        %v6482 = vpop.permute.xlu0 %6481
        %6483 = vrot.lane.b32.xlu0 %v6423, 64
        %v6484 = vpop.permute.xlu0 %6483
        %6485 = vrot.lane.b32.xlu0 %v6424, 64
        %v6486 = vpop.permute.xlu0 %6485
        %6487 = vrot.lane.b32.xlu0 %v6425, 64
        %v6488 = vpop.permute.xlu0 %6487
        %6489 = vrot.lane.b32.xlu0 %v6426, 64
        %v6490 = vpop.permute.xlu0 %6489
        %6491 = vrot.lane.b32.xlu0 %v6427, 64
        %v6492 = vpop.permute.xlu0 %6491
        %6493 = vrot.lane.b32.xlu0 %v6428, 64
        %v6494 = vpop.permute.xlu0 %6493
        %v6495 = vsel %vm332, %v6452, %v6454
        %v6496 = vsel %vm332, %v6454, %v6456
        %v6497 = vsel %vm332, %v6456, %v6458
        %v6498 = vsel %vm332, %v6458, %v6460
        %v6499 = vsel %vm332, %v6460, %v6462
        %v6500 = vsel %vm332, %v6462, %v6464
        %v6501 = vsel %vm332, %v6464, %v6466
        %v6502 = vsel %vm332, %v6466, %v6468
        %v6503 = vsel %vm332, %v6468, %v6470
        %v6504 = vsel %vm332, %v6470, %v6472
        %v6505 = vsel %vm332, %v6474, %v6476
        %v6506 = vsel %vm332, %v6476, %v6478
        %v6507 = vsel %vm332, %v6478, %v6480
        %v6508 = vsel %vm332, %v6480, %v6482
        %v6509 = vsel %vm332, %v6482, %v6484
        %v6510 = vsel %vm332, %v6484, %v6486
        %v6511 = vsel %vm332, %v6486, %v6488
        %v6512 = vsel %vm332, %v6488, %v6490
        %v6513 = vsel %vm332, %v6490, %v6492
        %v6514 = vsel %vm332, %v6492, %v6494
        %6539 = vst.msk [vmem:[#allocation3] sm:$0xff] %vm335, %v6452
        %6540 = vst [vmem:[#allocation3 + $0x8] sm:$0xff] %v6495
        %6541 = vst [vmem:[#allocation3 + $0x10] sm:$0xff] %v6496
        %6542 = vst [vmem:[#allocation3 + $0x18] sm:$0xff] %v6497
        %6543 = vst [vmem:[#allocation3 + $0x20] sm:$0xff] %v6498
        %6544 = vst [vmem:[#allocation3 + $0x28] sm:$0xff] %v6499
        %6545 = vst [vmem:[#allocation3 + $0x30] sm:$0xff] %v6500
        %6546 = vst [vmem:[#allocation3 + $0x38] sm:$0xff] %v6501
        %6547 = vst [vmem:[#allocation3 + $0x40] sm:$0xff] %v6502
        %6548 = vst [vmem:[#allocation3 + $0x48] sm:$0xff] %v6503
        %6549 = vst [vmem:[#allocation3 + $0x50] sm:$0xff] %v6504
        %6550 = vst.msk [vmem:[#allocation3 + $0x58] sm:$0xff] %vm332, %v6472
        %6551 = vst.msk [vmem:[#allocation3 + $0x60] sm:$0xff] %vm335, %v6474
        %6552 = vst [vmem:[#allocation3 + $0x68] sm:$0xff] %v6505
        %6553 = vst [vmem:[#allocation3 + $0x70] sm:$0xff] %v6506
        %6554 = vst [vmem:[#allocation3 + $0x78] sm:$0xff] %v6507
        %6555 = vst [vmem:[#allocation3 + $0x80] sm:$0xff] %v6508
        %6556 = vst [vmem:[#allocation3 + $0x88] sm:$0xff] %v6509
        %6557 = vst [vmem:[#allocation3 + $0x90] sm:$0xff] %v6510
        %6558 = vst [vmem:[#allocation3 + $0x98] sm:$0xff] %v6511
        %6559 = vst [vmem:[#allocation3 + $0xa0] sm:$0xff] %v6512
        %6560 = vst [vmem:[#allocation3 + $0xa8] sm:$0xff] %v6513
        %6561 = vst [vmem:[#allocation3 + $0xb0] sm:$0xff] %v6514
        %6562 = vst.msk [vmem:[#allocation3 + $0xb8] sm:$0xff] %vm332, %v6494
        %v6563 = vld [vmem:[#allocation3] sm:$0xff]
        %v6564 = vld [vmem:[#allocation3 + $0x8] sm:$0xff]
        %v6565 = vld [vmem:[#allocation3 + $0x10] sm:$0xff]
        %v6566 = vld [vmem:[#allocation3 + $0x18] sm:$0xff]
        %v6567 = vld [vmem:[#allocation3 + $0x20] sm:$0xff]
        %v6568 = vld [vmem:[#allocation3 + $0x28] sm:$0xff]
        %v6569 = vld [vmem:[#allocation3 + $0x30] sm:$0xff]
        %v6570 = vld [vmem:[#allocation3 + $0x38] sm:$0xff]
        %v6571 = vld [vmem:[#allocation3 + $0x40] sm:$0xff]
        %v6572 = vld [vmem:[#allocation3 + $0x48] sm:$0xff]
        %v6573 = vld [vmem:[#allocation3 + $0x50] sm:$0xff]
        %v6574 = vld [vmem:[#allocation3 + $0x58] sm:$0xff]
        %v6575 = vld [vmem:[#allocation3 + $0x60] sm:$0xff]
        %v6576 = vld [vmem:[#allocation3 + $0x68] sm:$0xff]
        %v6577 = vld [vmem:[#allocation3 + $0x70] sm:$0xff]
        %v6578 = vld [vmem:[#allocation3 + $0x78] sm:$0xff]
        %v6579 = vld [vmem:[#allocation3 + $0x80] sm:$0xff]
        %v6580 = vld [vmem:[#allocation3 + $0x88] sm:$0xff]
        %v6581 = vld [vmem:[#allocation3 + $0x90] sm:$0xff]
        %v6582 = vld [vmem:[#allocation3 + $0x98] sm:$0xff]
        %v6583 = vld [vmem:[#allocation3 + $0xa0] sm:$0xff]
        %v6584 = vld [vmem:[#allocation3 + $0xa8] sm:$0xff]
        %v6585 = vld [vmem:[#allocation3 + $0xb0] sm:$0xff]
        %v6586 = vld [vmem:[#allocation3 + $0xb8] sm:$0xff]
        %v6589 = vlaneseq
        %v6590 = vshrl.u32 %v6589, 7
        %v6591 = vsub.s32 0, %v6590
        %v6592 = vrot.slane %v323, %v6591
        %v6593 = vlaneseq
        %v6594 = vshrl.u32 %v6593, 7
        %v6595 = vsub.s32 1, %v6594
        %v6596 = vrot.slane %v323, %v6595
        %v6597 = vlaneseq
        %v6598 = vshrl.u32 %v6597, 7
        %v6599 = vsub.s32 2, %v6598
        %v6600 = vrot.slane %v323, %v6599
        %v6601 = vlaneseq
        %v6602 = vshrl.u32 %v6601, 7
        %v6603 = vsub.s32 3, %v6602
        %v6604 = vrot.slane %v323, %v6603
        %v6605 = vlaneseq
        %v6606 = vshrl.u32 %v6605, 7
        %v6607 = vsub.s32 4, %v6606
        %v6608 = vrot.slane %v323, %v6607
        %v6609 = vlaneseq
        %v6610 = vshrl.u32 %v6609, 7
        %v6611 = vsub.s32 5, %v6610
        %v6612 = vrot.slane %v323, %v6611
        %v6613 = vlaneseq
        %v6614 = vshrl.u32 %v6613, 7
        %v6615 = vsub.s32 6, %v6614
        %v6616 = vrot.slane %v323, %v6615
        %v6617 = vlaneseq
        %v6618 = vshrl.u32 %v6617, 7
        %v6619 = vsub.s32 7, %v6618
        %v6620 = vrot.slane %v323, %v6619
        %v6621 = vlaneseq
        %v6622 = vshrl.u32 %v6621, 7
        %v6623 = vsub.s32 0, %v6622
        %v6624 = vrot.slane %v325, %v6623
        %v6625 = vlaneseq
        %v6626 = vshrl.u32 %v6625, 7
        %v6627 = vsub.s32 1, %v6626
        %v6628 = vrot.slane %v325, %v6627
        %v6629 = vlaneseq
        %v6630 = vshrl.u32 %v6629, 7
        %v6631 = vsub.s32 2, %v6630
        %v6632 = vrot.slane %v325, %v6631
        %6633 = vrot.lane.b32.xlu0 %v6592, 30
        %v6634 = vpop.permute.xlu0 %6633
        %6635 = vrot.lane.b32.xlu0 %v6596, 30
        %v6636 = vpop.permute.xlu0 %6635
        %6637 = vrot.lane.b32.xlu0 %v6600, 30
        %v6638 = vpop.permute.xlu0 %6637
        %6639 = vrot.lane.b32.xlu0 %v6604, 30
        %v6640 = vpop.permute.xlu0 %6639
        %6641 = vrot.lane.b32.xlu0 %v6608, 30
        %v6642 = vpop.permute.xlu0 %6641
        %6643 = vrot.lane.b32.xlu0 %v6612, 30
        %v6644 = vpop.permute.xlu0 %6643
        %6645 = vrot.lane.b32.xlu0 %v6616, 30
        %v6646 = vpop.permute.xlu0 %6645
        %6647 = vrot.lane.b32.xlu0 %v6620, 30
        %v6648 = vpop.permute.xlu0 %6647
        %6649 = vrot.lane.b32.xlu0 %v6624, 30
        %v6650 = vpop.permute.xlu0 %6649
        %6651 = vrot.lane.b32.xlu0 %v6628, 30
        %v6652 = vpop.permute.xlu0 %6651
        %6653 = vrot.lane.b32.xlu0 %v6632, 30
        %v6654 = vpop.permute.xlu0 %6653
        %vm6655 = vcmask 244736
        %v6656 = vsel %vm6655, %v6634, %v6636
        %v6657 = vsel %vm6655, %v6636, %v6638
        %v6658 = vsel %vm6655, %v6638, %v6640
        %v6659 = vsel %vm6655, %v6640, %v6642
        %v6660 = vsel %vm6655, %v6642, %v6644
        %v6661 = vsel %vm6655, %v6644, %v6646
        %v6662 = vsel %vm6655, %v6646, %v6648
        %v6663 = vsel %vm6655, %v6648, %v6650
        %v6664 = vsel %vm6655, %v6650, %v6652
        %v6665 = vsel %vm6655, %v6652, %v6654
        %v6678 = vmul.f32 %v6563, %v6634
        %v6679 = vmul.f32 %v6564, %v6656
        %v6680 = vmul.f32 %v6565, %v6657
        %v6681 = vmul.f32 %v6566, %v6658
        %v6682 = vmul.f32 %v6567, %v6659
        %v6683 = vmul.f32 %v6568, %v6660
        %v6684 = vmul.f32 %v6569, %v6661
        %v6685 = vmul.f32 %v6570, %v6662
        %v6686 = vmul.f32 %v6571, %v6663
        %v6687 = vmul.f32 %v6572, %v6664
        %v6688 = vmul.f32 %v6573, %v6665
        %v6689 = vmul.f32 %v6574, %v6654
        %v6690 = vmul.f32 %v6575, %v6634
        %v6691 = vmul.f32 %v6576, %v6656
        %v6692 = vmul.f32 %v6577, %v6657
        %v6693 = vmul.f32 %v6578, %v6658
        %v6694 = vmul.f32 %v6579, %v6659
        %v6695 = vmul.f32 %v6580, %v6660
        %v6696 = vmul.f32 %v6581, %v6661
        %v6697 = vmul.f32 %v6582, %v6662
        %v6698 = vmul.f32 %v6583, %v6663
        %v6699 = vmul.f32 %v6584, %v6664
        %v6700 = vmul.f32 %v6585, %v6665
        %v6701 = vmul.f32 %v6586, %v6654
        %6726 = vrot.lane.b32.xlu0 %v6678, 98
        %v6727 = vpop.permute.xlu0 %6726
        %6728 = vrot.lane.b32.xlu0 %v6679, 98
        %v6729 = vpop.permute.xlu0 %6728
        %6730 = vrot.lane.b32.xlu0 %v6680, 98
        %v6731 = vpop.permute.xlu0 %6730
        %6732 = vrot.lane.b32.xlu0 %v6681, 98
        %v6733 = vpop.permute.xlu0 %6732
        %6734 = vrot.lane.b32.xlu0 %v6682, 98
        %v6735 = vpop.permute.xlu0 %6734
        %6736 = vrot.lane.b32.xlu0 %v6683, 98
        %v6737 = vpop.permute.xlu0 %6736
        %6738 = vrot.lane.b32.xlu0 %v6684, 98
        %v6739 = vpop.permute.xlu0 %6738
        %6740 = vrot.lane.b32.xlu0 %v6685, 98
        %v6741 = vpop.permute.xlu0 %6740
        %6742 = vrot.lane.b32.xlu0 %v6686, 98
        %v6743 = vpop.permute.xlu0 %6742
        %6744 = vrot.lane.b32.xlu0 %v6687, 98
        %v6745 = vpop.permute.xlu0 %6744
        %6746 = vrot.lane.b32.xlu0 %v6688, 98
        %v6747 = vpop.permute.xlu0 %6746
        %6748 = vrot.lane.b32.xlu0 %v6689, 98
        %v6749 = vpop.permute.xlu0 %6748
        %6750 = vrot.lane.b32.xlu0 %v6690, 98
        %v6751 = vpop.permute.xlu0 %6750
        %6752 = vrot.lane.b32.xlu0 %v6691, 98
        %v6753 = vpop.permute.xlu0 %6752
        %6754 = vrot.lane.b32.xlu0 %v6692, 98
        %v6755 = vpop.permute.xlu0 %6754
        %6756 = vrot.lane.b32.xlu0 %v6693, 98
        %v6757 = vpop.permute.xlu0 %6756
        %6758 = vrot.lane.b32.xlu0 %v6694, 98
        %v6759 = vpop.permute.xlu0 %6758
        %6760 = vrot.lane.b32.xlu0 %v6695, 98
        %v6761 = vpop.permute.xlu0 %6760
        %6762 = vrot.lane.b32.xlu0 %v6696, 98
        %v6763 = vpop.permute.xlu0 %6762
        %6764 = vrot.lane.b32.xlu0 %v6697, 98
        %v6765 = vpop.permute.xlu0 %6764
        %6766 = vrot.lane.b32.xlu0 %v6698, 98
        %v6767 = vpop.permute.xlu0 %6766
        %6768 = vrot.lane.b32.xlu0 %v6699, 98
        %v6769 = vpop.permute.xlu0 %6768
        %6770 = vrot.lane.b32.xlu0 %v6700, 98
        %v6771 = vpop.permute.xlu0 %6770
        %6772 = vrot.lane.b32.xlu0 %v6701, 98
        %v6773 = vpop.permute.xlu0 %6772
        %vm6774 = vcmask 801792
        %v6775 = vsel %vm6774, %v6727, %v6729
        %v6776 = vsel %vm6774, %v6729, %v6731
        %v6777 = vsel %vm6774, %v6731, %v6733
        %v6778 = vsel %vm6774, %v6733, %v6735
        %v6779 = vsel %vm6774, %v6735, %v6737
        %v6780 = vsel %vm6774, %v6737, %v6739
        %v6781 = vsel %vm6774, %v6739, %v6741
        %v6782 = vsel %vm6774, %v6741, %v6743
        %v6783 = vsel %vm6774, %v6743, %v6745
        %v6784 = vsel %vm6774, %v6745, %v6747
        %v6785 = vsel %vm6774, %v6747, %v6749
        %v6786 = vsel %vm6774, %v6751, %v6753
        %v6787 = vsel %vm6774, %v6753, %v6755
        %v6788 = vsel %vm6774, %v6755, %v6757
        %v6789 = vsel %vm6774, %v6757, %v6759
        %v6790 = vsel %vm6774, %v6759, %v6761
        %v6791 = vsel %vm6774, %v6761, %v6763
        %v6792 = vsel %vm6774, %v6763, %v6765
        %v6793 = vsel %vm6774, %v6765, %v6767
        %v6794 = vsel %vm6774, %v6767, %v6769
        %v6795 = vsel %vm6774, %v6769, %v6771
        %v6796 = vsel %vm6774, %v6771, %v6773
        %6819 = vst [vmem:[#allocation5] sm:$0xff] %v6775
        %6820 = vst [vmem:[#allocation5 + $0x8] sm:$0xff] %v6776
        %6821 = vst [vmem:[#allocation5 + $0x10] sm:$0xff] %v6777
        %6822 = vst [vmem:[#allocation5 + $0x18] sm:$0xff] %v6778
        %6823 = vst [vmem:[#allocation5 + $0x20] sm:$0xff] %v6779
        %6824 = vst [vmem:[#allocation5 + $0x28] sm:$0xff] %v6780
        %6825 = vst [vmem:[#allocation5 + $0x30] sm:$0xff] %v6781
        %6826 = vst [vmem:[#allocation5 + $0x38] sm:$0xff] %v6782
        %6827 = vst [vmem:[#allocation5 + $0x40] sm:$0xff] %v6783
        %6828 = vst [vmem:[#allocation5 + $0x48] sm:$0xff] %v6784
        %6829 = vst [vmem:[#allocation5 + $0x50] sm:$0xff] %v6785
        %6830 = vst [vmem:[#allocation5 + $0x58] sm:$0xff] %v6786
        %6831 = vst [vmem:[#allocation5 + $0x60] sm:$0xff] %v6787
        %6832 = vst [vmem:[#allocation5 + $0x68] sm:$0xff] %v6788
        %6833 = vst [vmem:[#allocation5 + $0x70] sm:$0xff] %v6789
        %6834 = vst [vmem:[#allocation5 + $0x78] sm:$0xff] %v6790
        %6835 = vst [vmem:[#allocation5 + $0x80] sm:$0xff] %v6791
        %6836 = vst [vmem:[#allocation5 + $0x88] sm:$0xff] %v6792
        %6837 = vst [vmem:[#allocation5 + $0x90] sm:$0xff] %v6793
        %6838 = vst [vmem:[#allocation5 + $0x98] sm:$0xff] %v6794
        %6839 = vst [vmem:[#allocation5 + $0xa0] sm:$0xff] %v6795
        %6840 = vst [vmem:[#allocation5 + $0xa8] sm:$0xff] %v6796
        %v6841 = vld [vmem:[#allocation3] sm:$0xff]
        %v6842 = vld [vmem:[#allocation3 + $0x8] sm:$0xff]
        %v6843 = vld [vmem:[#allocation3 + $0x10] sm:$0xff]
        %v6844 = vld [vmem:[#allocation3 + $0x18] sm:$0xff]
        %v6845 = vld [vmem:[#allocation3 + $0x20] sm:$0xff]
        %v6846 = vld [vmem:[#allocation3 + $0x28] sm:$0xff]
        %v6847 = vld [vmem:[#allocation3 + $0x30] sm:$0xff]
        %v6848 = vld [vmem:[#allocation3 + $0x38] sm:$0xff]
        %v6849 = vld [vmem:[#allocation3 + $0x40] sm:$0xff]
        %v6850 = vld [vmem:[#allocation3 + $0x48] sm:$0xff]
        %v6851 = vld [vmem:[#allocation3 + $0x50] sm:$0xff]
        %v6852 = vld [vmem:[#allocation3 + $0x58] sm:$0xff]
        %v6853 = vld [vmem:[#allocation3 + $0x60] sm:$0xff]
        %v6854 = vld [vmem:[#allocation3 + $0x68] sm:$0xff]
        %v6855 = vld [vmem:[#allocation3 + $0x70] sm:$0xff]
        %v6856 = vld [vmem:[#allocation3 + $0x78] sm:$0xff]
        %v6857 = vld [vmem:[#allocation3 + $0x80] sm:$0xff]
        %v6858 = vld [vmem:[#allocation3 + $0x88] sm:$0xff]
        %v6859 = vld [vmem:[#allocation3 + $0x90] sm:$0xff]
        %v6860 = vld [vmem:[#allocation3 + $0x98] sm:$0xff]
        %v6861 = vld [vmem:[#allocation3 + $0xa0] sm:$0xff]
        %v6862 = vld [vmem:[#allocation3 + $0xa8] sm:$0xff]
        %v6863 = vld [vmem:[#allocation3 + $0xb0] sm:$0xff]
        %v6864 = vld [vmem:[#allocation3 + $0xb8] sm:$0xff]
        %6889 = vrot.lane.b32.xlu0 %v6841, 96
        %v6890 = vpop.permute.xlu0 %6889
        %6891 = vrot.lane.b32.xlu0 %v6842, 96
        %v6892 = vpop.permute.xlu0 %6891
        %6893 = vrot.lane.b32.xlu0 %v6843, 96
        %v6894 = vpop.permute.xlu0 %6893
        %6895 = vrot.lane.b32.xlu0 %v6844, 96
        %v6896 = vpop.permute.xlu0 %6895
        %6897 = vrot.lane.b32.xlu0 %v6845, 96
        %v6898 = vpop.permute.xlu0 %6897
        %6899 = vrot.lane.b32.xlu0 %v6846, 96
        %v6900 = vpop.permute.xlu0 %6899
        %6901 = vrot.lane.b32.xlu0 %v6847, 96
        %v6902 = vpop.permute.xlu0 %6901
        %6903 = vrot.lane.b32.xlu0 %v6848, 96
        %v6904 = vpop.permute.xlu0 %6903
        %6905 = vrot.lane.b32.xlu0 %v6849, 96
        %v6906 = vpop.permute.xlu0 %6905
        %6907 = vrot.lane.b32.xlu0 %v6850, 96
        %v6908 = vpop.permute.xlu0 %6907
        %6909 = vrot.lane.b32.xlu0 %v6851, 96
        %v6910 = vpop.permute.xlu0 %6909
        %6911 = vrot.lane.b32.xlu0 %v6852, 96
        %v6912 = vpop.permute.xlu0 %6911
        %6913 = vrot.lane.b32.xlu0 %v6853, 96
        %v6914 = vpop.permute.xlu0 %6913
        %6915 = vrot.lane.b32.xlu0 %v6854, 96
        %v6916 = vpop.permute.xlu0 %6915
        %6917 = vrot.lane.b32.xlu0 %v6855, 96
        %v6918 = vpop.permute.xlu0 %6917
        %6919 = vrot.lane.b32.xlu0 %v6856, 96
        %v6920 = vpop.permute.xlu0 %6919
        %6921 = vrot.lane.b32.xlu0 %v6857, 96
        %v6922 = vpop.permute.xlu0 %6921
        %6923 = vrot.lane.b32.xlu0 %v6858, 96
        %v6924 = vpop.permute.xlu0 %6923
        %6925 = vrot.lane.b32.xlu0 %v6859, 96
        %v6926 = vpop.permute.xlu0 %6925
        %6927 = vrot.lane.b32.xlu0 %v6860, 96
        %v6928 = vpop.permute.xlu0 %6927
        %6929 = vrot.lane.b32.xlu0 %v6861, 96
        %v6930 = vpop.permute.xlu0 %6929
        %6931 = vrot.lane.b32.xlu0 %v6862, 96
        %v6932 = vpop.permute.xlu0 %6931
        %6933 = vrot.lane.b32.xlu0 %v6863, 96
        %v6934 = vpop.permute.xlu0 %6933
        %6935 = vrot.lane.b32.xlu0 %v6864, 96
        %v6936 = vpop.permute.xlu0 %6935
        %vm6937 = vcmask 785408
        %v6938 = vsel %vm6937, %v6890, %v6892
        %v6939 = vsel %vm6937, %v6892, %v6894
        %v6940 = vsel %vm6937, %v6894, %v6896
        %v6941 = vsel %vm6937, %v6896, %v6898
        %v6942 = vsel %vm6937, %v6898, %v6900
        %v6943 = vsel %vm6937, %v6900, %v6902
        %v6944 = vsel %vm6937, %v6902, %v6904
        %v6945 = vsel %vm6937, %v6904, %v6906
        %v6946 = vsel %vm6937, %v6906, %v6908
        %v6947 = vsel %vm6937, %v6908, %v6910
        %v6948 = vsel %vm6937, %v6910, %v6912
        %v6949 = vsel %vm6937, %v6914, %v6916
        %v6950 = vsel %vm6937, %v6916, %v6918
        %v6951 = vsel %vm6937, %v6918, %v6920
        %v6952 = vsel %vm6937, %v6920, %v6922
        %v6953 = vsel %vm6937, %v6922, %v6924
        %v6954 = vsel %vm6937, %v6924, %v6926
        %v6955 = vsel %vm6937, %v6926, %v6928
        %v6956 = vsel %vm6937, %v6928, %v6930
        %v6957 = vsel %vm6937, %v6930, %v6932
        %v6958 = vsel %vm6937, %v6932, %v6934
        %v6959 = vsel %vm6937, %v6934, %v6936
        %6982 = vst [vmem:[#allocation5 + $0xb0] sm:$0xff] %v6938
        %6983 = vst [vmem:[#allocation5 + $0xb8] sm:$0xff] %v6939
        %6984 = vst [vmem:[#allocation5 + $0xc0] sm:$0xff] %v6940
        %6985 = vst [vmem:[#allocation5 + $0xc8] sm:$0xff] %v6941
        %6986 = vst [vmem:[#allocation5 + $0xd0] sm:$0xff] %v6942
        %6987 = vst [vmem:[#allocation5 + $0xd8] sm:$0xff] %v6943
        %6988 = vst [vmem:[#allocation5 + $0xe0] sm:$0xff] %v6944
        %6989 = vst [vmem:[#allocation5 + $0xe8] sm:$0xff] %v6945
        %6990 = vst [vmem:[#allocation5 + $0xf0] sm:$0xff] %v6946
        %6991 = vst [vmem:[#allocation5 + $0xf8] sm:$0xff] %v6947
        %6992 = vst [vmem:[#allocation5 + $0x100] sm:$0xff] %v6948
        %6993 = vst [vmem:[#allocation5 + $0x108] sm:$0xff] %v6949
        %6994 = vst [vmem:[#allocation5 + $0x110] sm:$0xff] %v6950
        %6995 = vst [vmem:[#allocation5 + $0x118] sm:$0xff] %v6951
        %6996 = vst [vmem:[#allocation5 + $0x120] sm:$0xff] %v6952
        %6997 = vst [vmem:[#allocation5 + $0x128] sm:$0xff] %v6953
        %6998 = vst [vmem:[#allocation5 + $0x130] sm:$0xff] %v6954
        %6999 = vst [vmem:[#allocation5 + $0x138] sm:$0xff] %v6955
        %7000 = vst [vmem:[#allocation5 + $0x140] sm:$0xff] %v6956
        %7001 = vst [vmem:[#allocation5 + $0x148] sm:$0xff] %v6957
        %7002 = vst [vmem:[#allocation5 + $0x150] sm:$0xff] %v6958
        %7003 = vst [vmem:[#allocation5 + $0x158] sm:$0xff] %v6959
        %v7004 = vld [vmem:[#allocation3] sm:$0xff]
        %v7005 = vld [vmem:[#allocation3 + $0x8] sm:$0xff]
        %v7006 = vld [vmem:[#allocation3 + $0x10] sm:$0xff]
        %v7007 = vld [vmem:[#allocation3 + $0x18] sm:$0xff]
        %v7008 = vld [vmem:[#allocation3 + $0x20] sm:$0xff]
        %v7009 = vld [vmem:[#allocation3 + $0x28] sm:$0xff]
        %v7010 = vld [vmem:[#allocation3 + $0x30] sm:$0xff]
        %v7011 = vld [vmem:[#allocation3 + $0x38] sm:$0xff]
        %v7012 = vld [vmem:[#allocation3 + $0x40] sm:$0xff]
        %v7013 = vld [vmem:[#allocation3 + $0x48] sm:$0xff]
        %v7014 = vld [vmem:[#allocation3 + $0x50] sm:$0xff]
        %v7015 = vld [vmem:[#allocation3 + $0x58] sm:$0xff]
        %v7016 = vld [vmem:[#allocation3 + $0x60] sm:$0xff]
        %v7017 = vld [vmem:[#allocation3 + $0x68] sm:$0xff]
        %v7018 = vld [vmem:[#allocation3 + $0x70] sm:$0xff]
        %v7019 = vld [vmem:[#allocation3 + $0x78] sm:$0xff]
        %v7020 = vld [vmem:[#allocation3 + $0x80] sm:$0xff]
        %v7021 = vld [vmem:[#allocation3 + $0x88] sm:$0xff]
        %v7022 = vld [vmem:[#allocation3 + $0x90] sm:$0xff]
        %v7023 = vld [vmem:[#allocation3 + $0x98] sm:$0xff]
        %v7024 = vld [vmem:[#allocation3 + $0xa0] sm:$0xff]
        %v7025 = vld [vmem:[#allocation3 + $0xa8] sm:$0xff]
        %v7026 = vld [vmem:[#allocation3 + $0xb0] sm:$0xff]
        %v7027 = vld [vmem:[#allocation3 + $0xb8] sm:$0xff]
        %v7030 = vlaneseq
        %v7031 = vshrl.u32 %v7030, 7
        %v7032 = vsub.s32 0, %v7031
        %v7033 = vrot.slane %v329, %v7032
        %v7034 = vlaneseq
        %v7035 = vshrl.u32 %v7034, 7
        %v7036 = vsub.s32 1, %v7035
        %v7037 = vrot.slane %v329, %v7036
        %v7038 = vlaneseq
        %v7039 = vshrl.u32 %v7038, 7
        %v7040 = vsub.s32 2, %v7039
        %v7041 = vrot.slane %v329, %v7040
        %v7042 = vlaneseq
        %v7043 = vshrl.u32 %v7042, 7
        %v7044 = vsub.s32 3, %v7043
        %v7045 = vrot.slane %v329, %v7044
        %v7046 = vlaneseq
        %v7047 = vshrl.u32 %v7046, 7
        %v7048 = vsub.s32 4, %v7047
        %v7049 = vrot.slane %v329, %v7048
        %v7050 = vlaneseq
        %v7051 = vshrl.u32 %v7050, 7
        %v7052 = vsub.s32 5, %v7051
        %v7053 = vrot.slane %v329, %v7052
        %v7054 = vlaneseq
        %v7055 = vshrl.u32 %v7054, 7
        %v7056 = vsub.s32 6, %v7055
        %v7057 = vrot.slane %v329, %v7056
        %v7058 = vlaneseq
        %v7059 = vshrl.u32 %v7058, 7
        %v7060 = vsub.s32 7, %v7059
        %v7061 = vrot.slane %v329, %v7060
        %v7062 = vlaneseq
        %v7063 = vshrl.u32 %v7062, 7
        %v7064 = vsub.s32 0, %v7063
        %v7065 = vrot.slane %v331, %v7064
        %v7066 = vlaneseq
        %v7067 = vshrl.u32 %v7066, 7
        %v7068 = vsub.s32 1, %v7067
        %v7069 = vrot.slane %v331, %v7068
        %v7070 = vlaneseq
        %v7071 = vshrl.u32 %v7070, 7
        %v7072 = vsub.s32 2, %v7071
        %v7073 = vrot.slane %v331, %v7072
        %7074 = vrot.lane.b32.xlu0 %v7033, 34
        %v7075 = vpop.permute.xlu0 %7074
        %7076 = vrot.lane.b32.xlu0 %v7037, 34
        %v7077 = vpop.permute.xlu0 %7076
        %7078 = vrot.lane.b32.xlu0 %v7041, 34
        %v7079 = vpop.permute.xlu0 %7078
        %7080 = vrot.lane.b32.xlu0 %v7045, 34
        %v7081 = vpop.permute.xlu0 %7080
        %7082 = vrot.lane.b32.xlu0 %v7049, 34
        %v7083 = vpop.permute.xlu0 %7082
        %7084 = vrot.lane.b32.xlu0 %v7053, 34
        %v7085 = vpop.permute.xlu0 %7084
        %7086 = vrot.lane.b32.xlu0 %v7057, 34
        %v7087 = vpop.permute.xlu0 %7086
        %7088 = vrot.lane.b32.xlu0 %v7061, 34
        %v7089 = vpop.permute.xlu0 %7088
        %7090 = vrot.lane.b32.xlu0 %v7065, 34
        %v7091 = vpop.permute.xlu0 %7090
        %7092 = vrot.lane.b32.xlu0 %v7069, 34
        %v7093 = vpop.permute.xlu0 %7092
        %7094 = vrot.lane.b32.xlu0 %v7073, 34
        %v7095 = vpop.permute.xlu0 %7094
        %vm7096 = vcmask 277504
        %v7097 = vsel %vm7096, %v7075, %v7077
        %v7098 = vsel %vm7096, %v7077, %v7079
        %v7099 = vsel %vm7096, %v7079, %v7081
        %v7100 = vsel %vm7096, %v7081, %v7083
        %v7101 = vsel %vm7096, %v7083, %v7085
        %v7102 = vsel %vm7096, %v7085, %v7087
        %v7103 = vsel %vm7096, %v7087, %v7089
        %v7104 = vsel %vm7096, %v7089, %v7091
        %v7105 = vsel %vm7096, %v7091, %v7093
        %v7106 = vsel %vm7096, %v7093, %v7095
        %v7119 = vmul.f32 %v7004, %v7075
        %v7120 = vmul.f32 %v7005, %v7097
        %v7121 = vmul.f32 %v7006, %v7098
        %v7122 = vmul.f32 %v7007, %v7099
        %v7123 = vmul.f32 %v7008, %v7100
        %v7124 = vmul.f32 %v7009, %v7101
        %v7125 = vmul.f32 %v7010, %v7102
        %v7126 = vmul.f32 %v7011, %v7103
        %v7127 = vmul.f32 %v7012, %v7104
        %v7128 = vmul.f32 %v7013, %v7105
        %v7129 = vmul.f32 %v7014, %v7106
        %v7130 = vmul.f32 %v7015, %v7095
        %v7131 = vmul.f32 %v7016, %v7075
        %v7132 = vmul.f32 %v7017, %v7097
        %v7133 = vmul.f32 %v7018, %v7098
        %v7134 = vmul.f32 %v7019, %v7099
        %v7135 = vmul.f32 %v7020, %v7100
        %v7136 = vmul.f32 %v7021, %v7101
        %v7137 = vmul.f32 %v7022, %v7102
        %v7138 = vmul.f32 %v7023, %v7103
        %v7139 = vmul.f32 %v7024, %v7104
        %v7140 = vmul.f32 %v7025, %v7105
        %v7141 = vmul.f32 %v7026, %v7106
        %v7142 = vmul.f32 %v7027, %v7095
        %7167 = vrot.lane.b32.xlu0 %v7119, 94
        %v7168 = vpop.permute.xlu0 %7167
        %7169 = vrot.lane.b32.xlu0 %v7120, 94
        %v7170 = vpop.permute.xlu0 %7169
        %7171 = vrot.lane.b32.xlu0 %v7121, 94
        %v7172 = vpop.permute.xlu0 %7171
        %7173 = vrot.lane.b32.xlu0 %v7122, 94
        %v7174 = vpop.permute.xlu0 %7173
        %7175 = vrot.lane.b32.xlu0 %v7123, 94
        %v7176 = vpop.permute.xlu0 %7175
        %7177 = vrot.lane.b32.xlu0 %v7124, 94
        %v7178 = vpop.permute.xlu0 %7177
        %7179 = vrot.lane.b32.xlu0 %v7125, 94
        %v7180 = vpop.permute.xlu0 %7179
        %7181 = vrot.lane.b32.xlu0 %v7126, 94
        %v7182 = vpop.permute.xlu0 %7181
        %7183 = vrot.lane.b32.xlu0 %v7127, 94
        %v7184 = vpop.permute.xlu0 %7183
        %7185 = vrot.lane.b32.xlu0 %v7128, 94
        %v7186 = vpop.permute.xlu0 %7185
        %7187 = vrot.lane.b32.xlu0 %v7129, 94
        %v7188 = vpop.permute.xlu0 %7187
        %7189 = vrot.lane.b32.xlu0 %v7130, 94
        %v7190 = vpop.permute.xlu0 %7189
        %7191 = vrot.lane.b32.xlu0 %v7131, 94
        %v7192 = vpop.permute.xlu0 %7191
        %7193 = vrot.lane.b32.xlu0 %v7132, 94
        %v7194 = vpop.permute.xlu0 %7193
        %7195 = vrot.lane.b32.xlu0 %v7133, 94
        %v7196 = vpop.permute.xlu0 %7195
        %7197 = vrot.lane.b32.xlu0 %v7134, 94
        %v7198 = vpop.permute.xlu0 %7197
        %7199 = vrot.lane.b32.xlu0 %v7135, 94
        %v7200 = vpop.permute.xlu0 %7199
        %7201 = vrot.lane.b32.xlu0 %v7136, 94
        %v7202 = vpop.permute.xlu0 %7201
        %7203 = vrot.lane.b32.xlu0 %v7137, 94
        %v7204 = vpop.permute.xlu0 %7203
        %7205 = vrot.lane.b32.xlu0 %v7138, 94
        %v7206 = vpop.permute.xlu0 %7205
        %7207 = vrot.lane.b32.xlu0 %v7139, 94
        %v7208 = vpop.permute.xlu0 %7207
        %7209 = vrot.lane.b32.xlu0 %v7140, 94
        %v7210 = vpop.permute.xlu0 %7209
        %7211 = vrot.lane.b32.xlu0 %v7141, 94
        %v7212 = vpop.permute.xlu0 %7211
        %7213 = vrot.lane.b32.xlu0 %v7142, 94
        %v7214 = vpop.permute.xlu0 %7213
        %vm7215 = vcmask 769024
        %v7216 = vsel %vm7215, %v7168, %v7170
        %v7217 = vsel %vm7215, %v7170, %v7172
        %v7218 = vsel %vm7215, %v7172, %v7174
        %v7219 = vsel %vm7215, %v7174, %v7176
        %v7220 = vsel %vm7215, %v7176, %v7178
        %v7221 = vsel %vm7215, %v7178, %v7180
        %v7222 = vsel %vm7215, %v7180, %v7182
        %v7223 = vsel %vm7215, %v7182, %v7184
        %v7224 = vsel %vm7215, %v7184, %v7186
        %v7225 = vsel %vm7215, %v7186, %v7188
        %v7226 = vsel %vm7215, %v7188, %v7190
        %v7227 = vsel %vm7215, %v7192, %v7194
        %v7228 = vsel %vm7215, %v7194, %v7196
        %v7229 = vsel %vm7215, %v7196, %v7198
        %v7230 = vsel %vm7215, %v7198, %v7200
        %v7231 = vsel %vm7215, %v7200, %v7202
        %v7232 = vsel %vm7215, %v7202, %v7204
        %v7233 = vsel %vm7215, %v7204, %v7206
        %v7234 = vsel %vm7215, %v7206, %v7208
        %v7235 = vsel %vm7215, %v7208, %v7210
        %v7236 = vsel %vm7215, %v7210, %v7212
        %v7237 = vsel %vm7215, %v7212, %v7214
        %7260 = vst [vmem:[#allocation5 + $0x160] sm:$0xff] %v7216
        %7261 = vst [vmem:[#allocation5 + $0x168] sm:$0xff] %v7217
        %7262 = vst [vmem:[#allocation5 + $0x170] sm:$0xff] %v7218
        %7263 = vst [vmem:[#allocation5 + $0x178] sm:$0xff] %v7219
        %7264 = vst [vmem:[#allocation5 + $0x180] sm:$0xff] %v7220
        %7265 = vst [vmem:[#allocation5 + $0x188] sm:$0xff] %v7221
        %7266 = vst [vmem:[#allocation5 + $0x190] sm:$0xff] %v7222
        %7267 = vst [vmem:[#allocation5 + $0x198] sm:$0xff] %v7223
        %7268 = vst [vmem:[#allocation5 + $0x1a0] sm:$0xff] %v7224
        %7269 = vst [vmem:[#allocation5 + $0x1a8] sm:$0xff] %v7225
        %7270 = vst [vmem:[#allocation5 + $0x1b0] sm:$0xff] %v7226
        %7271 = vst [vmem:[#allocation5 + $0x1b8] sm:$0xff] %v7227
        %7272 = vst [vmem:[#allocation5 + $0x1c0] sm:$0xff] %v7228
        %7273 = vst [vmem:[#allocation5 + $0x1c8] sm:$0xff] %v7229
        %7274 = vst [vmem:[#allocation5 + $0x1d0] sm:$0xff] %v7230
        %7275 = vst [vmem:[#allocation5 + $0x1d8] sm:$0xff] %v7231
        %7276 = vst [vmem:[#allocation5 + $0x1e0] sm:$0xff] %v7232
        %7277 = vst [vmem:[#allocation5 + $0x1e8] sm:$0xff] %v7233
        %7278 = vst [vmem:[#allocation5 + $0x1f0] sm:$0xff] %v7234
        %7279 = vst [vmem:[#allocation5 + $0x1f8] sm:$0xff] %v7235
        %7280 = vst [vmem:[#allocation5 + $0x200] sm:$0xff] %v7236
        %7281 = vst [vmem:[#allocation5 + $0x208] sm:$0xff] %v7237
        %v7282 = vld [vmem:[#allocation3] sm:$0xff]
        %v7283 = vld [vmem:[#allocation3 + $0x8] sm:$0xff]
        %v7284 = vld [vmem:[#allocation3 + $0x10] sm:$0xff]
        %v7285 = vld [vmem:[#allocation3 + $0x18] sm:$0xff]
        %v7286 = vld [vmem:[#allocation3 + $0x20] sm:$0xff]
        %v7287 = vld [vmem:[#allocation3 + $0x28] sm:$0xff]
        %v7288 = vld [vmem:[#allocation3 + $0x30] sm:$0xff]
        %v7289 = vld [vmem:[#allocation3 + $0x38] sm:$0xff]
        %v7290 = vld [vmem:[#allocation3 + $0x40] sm:$0xff]
        %v7291 = vld [vmem:[#allocation3 + $0x48] sm:$0xff]
        %v7292 = vld [vmem:[#allocation3 + $0x50] sm:$0xff]
        %v7293 = vld [vmem:[#allocation3 + $0x58] sm:$0xff]
        %v7294 = vld [vmem:[#allocation3 + $0x60] sm:$0xff]
        %v7295 = vld [vmem:[#allocation3 + $0x68] sm:$0xff]
        %v7296 = vld [vmem:[#allocation3 + $0x70] sm:$0xff]
        %v7297 = vld [vmem:[#allocation3 + $0x78] sm:$0xff]
        %v7298 = vld [vmem:[#allocation3 + $0x80] sm:$0xff]
        %v7299 = vld [vmem:[#allocation3 + $0x88] sm:$0xff]
        %v7300 = vld [vmem:[#allocation3 + $0x90] sm:$0xff]
        %v7301 = vld [vmem:[#allocation3 + $0x98] sm:$0xff]
        %v7302 = vld [vmem:[#allocation3 + $0xa0] sm:$0xff]
        %v7303 = vld [vmem:[#allocation3 + $0xa8] sm:$0xff]
        %v7304 = vld [vmem:[#allocation3 + $0xb0] sm:$0xff]
        %v7305 = vld [vmem:[#allocation3 + $0xb8] sm:$0xff]
        %7306 = vrot.lane.b32.xlu0 %v6592, 62
        %v7307 = vpop.permute.xlu0 %7306
        %7308 = vrot.lane.b32.xlu0 %v6596, 62
        %v7309 = vpop.permute.xlu0 %7308
        %7310 = vrot.lane.b32.xlu0 %v6600, 62
        %v7311 = vpop.permute.xlu0 %7310
        %7312 = vrot.lane.b32.xlu0 %v6604, 62
        %v7313 = vpop.permute.xlu0 %7312
        %7314 = vrot.lane.b32.xlu0 %v6608, 62
        %v7315 = vpop.permute.xlu0 %7314
        %7316 = vrot.lane.b32.xlu0 %v6612, 62
        %v7317 = vpop.permute.xlu0 %7316
        %7318 = vrot.lane.b32.xlu0 %v6616, 62
        %v7319 = vpop.permute.xlu0 %7318
        %7320 = vrot.lane.b32.xlu0 %v6620, 62
        %v7321 = vpop.permute.xlu0 %7320
        %7322 = vrot.lane.b32.xlu0 %v6624, 62
        %v7323 = vpop.permute.xlu0 %7322
        %7324 = vrot.lane.b32.xlu0 %v6628, 62
        %v7325 = vpop.permute.xlu0 %7324
        %7326 = vrot.lane.b32.xlu0 %v6632, 62
        %v7327 = vpop.permute.xlu0 %7326
        %vm7328 = vcmask 506880
        %v7329 = vsel %vm7328, %v7307, %v7309
        %v7330 = vsel %vm7328, %v7309, %v7311
        %v7331 = vsel %vm7328, %v7311, %v7313
        %v7332 = vsel %vm7328, %v7313, %v7315
        %v7333 = vsel %vm7328, %v7315, %v7317
        %v7334 = vsel %vm7328, %v7317, %v7319
        %v7335 = vsel %vm7328, %v7319, %v7321
        %v7336 = vsel %vm7328, %v7321, %v7323
        %v7337 = vsel %vm7328, %v7323, %v7325
        %v7338 = vsel %vm7328, %v7325, %v7327
        %v7351 = vmul.f32 %v7282, %v7307
        %v7352 = vmul.f32 %v7283, %v7329
        %v7353 = vmul.f32 %v7284, %v7330
        %v7354 = vmul.f32 %v7285, %v7331
        %v7355 = vmul.f32 %v7286, %v7332
        %v7356 = vmul.f32 %v7287, %v7333
        %v7357 = vmul.f32 %v7288, %v7334
        %v7358 = vmul.f32 %v7289, %v7335
        %v7359 = vmul.f32 %v7290, %v7336
        %v7360 = vmul.f32 %v7291, %v7337
        %v7361 = vmul.f32 %v7292, %v7338
        %v7362 = vmul.f32 %v7293, %v7327
        %v7363 = vmul.f32 %v7294, %v7307
        %v7364 = vmul.f32 %v7295, %v7329
        %v7365 = vmul.f32 %v7296, %v7330
        %v7366 = vmul.f32 %v7297, %v7331
        %v7367 = vmul.f32 %v7298, %v7332
        %v7368 = vmul.f32 %v7299, %v7333
        %v7369 = vmul.f32 %v7300, %v7334
        %v7370 = vmul.f32 %v7301, %v7335
        %v7371 = vmul.f32 %v7302, %v7336
        %v7372 = vmul.f32 %v7303, %v7337
        %v7373 = vmul.f32 %v7304, %v7338
        %v7374 = vmul.f32 %v7305, %v7327
        %7399 = vrot.lane.b32.xlu0 %v7351, 66
        %v7400 = vpop.permute.xlu0 %7399
        %7401 = vrot.lane.b32.xlu0 %v7352, 66
        %v7402 = vpop.permute.xlu0 %7401
        %7403 = vrot.lane.b32.xlu0 %v7353, 66
        %v7404 = vpop.permute.xlu0 %7403
        %7405 = vrot.lane.b32.xlu0 %v7354, 66
        %v7406 = vpop.permute.xlu0 %7405
        %7407 = vrot.lane.b32.xlu0 %v7355, 66
        %v7408 = vpop.permute.xlu0 %7407
        %7409 = vrot.lane.b32.xlu0 %v7356, 66
        %v7410 = vpop.permute.xlu0 %7409
        %7411 = vrot.lane.b32.xlu0 %v7357, 66
        %v7412 = vpop.permute.xlu0 %7411
        %7413 = vrot.lane.b32.xlu0 %v7358, 66
        %v7414 = vpop.permute.xlu0 %7413
        %7415 = vrot.lane.b32.xlu0 %v7359, 66
        %v7416 = vpop.permute.xlu0 %7415
        %7417 = vrot.lane.b32.xlu0 %v7360, 66
        %v7418 = vpop.permute.xlu0 %7417
        %7419 = vrot.lane.b32.xlu0 %v7361, 66
        %v7420 = vpop.permute.xlu0 %7419
        %7421 = vrot.lane.b32.xlu0 %v7362, 66
        %v7422 = vpop.permute.xlu0 %7421
        %7423 = vrot.lane.b32.xlu0 %v7363, 66
        %v7424 = vpop.permute.xlu0 %7423
        %7425 = vrot.lane.b32.xlu0 %v7364, 66
        %v7426 = vpop.permute.xlu0 %7425
        %7427 = vrot.lane.b32.xlu0 %v7365, 66
        %v7428 = vpop.permute.xlu0 %7427
        %7429 = vrot.lane.b32.xlu0 %v7366, 66
        %v7430 = vpop.permute.xlu0 %7429
        %7431 = vrot.lane.b32.xlu0 %v7367, 66
        %v7432 = vpop.permute.xlu0 %7431
        %7433 = vrot.lane.b32.xlu0 %v7368, 66
        %v7434 = vpop.permute.xlu0 %7433
        %7435 = vrot.lane.b32.xlu0 %v7369, 66
        %v7436 = vpop.permute.xlu0 %7435
        %7437 = vrot.lane.b32.xlu0 %v7370, 66
        %v7438 = vpop.permute.xlu0 %7437
        %7439 = vrot.lane.b32.xlu0 %v7371, 66
        %v7440 = vpop.permute.xlu0 %7439
        %7441 = vrot.lane.b32.xlu0 %v7372, 66
        %v7442 = vpop.permute.xlu0 %7441
        %7443 = vrot.lane.b32.xlu0 %v7373, 66
        %v7444 = vpop.permute.xlu0 %7443
        %7445 = vrot.lane.b32.xlu0 %v7374, 66
        %v7446 = vpop.permute.xlu0 %7445
        %vm7447 = vcmask 539648
        %v7448 = vsel %vm7447, %v7400, %v7402
        %v7449 = vsel %vm7447, %v7402, %v7404
        %v7450 = vsel %vm7447, %v7404, %v7406
        %v7451 = vsel %vm7447, %v7406, %v7408
        %v7452 = vsel %vm7447, %v7408, %v7410
        %v7453 = vsel %vm7447, %v7410, %v7412
        %v7454 = vsel %vm7447, %v7412, %v7414
        %v7455 = vsel %vm7447, %v7414, %v7416
        %v7456 = vsel %vm7447, %v7416, %v7418
        %v7457 = vsel %vm7447, %v7418, %v7420
        %v7458 = vsel %vm7447, %v7420, %v7422
        %v7459 = vsel %vm7447, %v7424, %v7426
        %v7460 = vsel %vm7447, %v7426, %v7428
        %v7461 = vsel %vm7447, %v7428, %v7430
        %v7462 = vsel %vm7447, %v7430, %v7432
        %v7463 = vsel %vm7447, %v7432, %v7434
        %v7464 = vsel %vm7447, %v7434, %v7436
        %v7465 = vsel %vm7447, %v7436, %v7438
        %v7466 = vsel %vm7447, %v7438, %v7440
        %v7467 = vsel %vm7447, %v7440, %v7442
        %v7468 = vsel %vm7447, %v7442, %v7444
        %v7469 = vsel %vm7447, %v7444, %v7446
        %7492 = vst [vmem:[#allocation5 + $0x210] sm:$0xff] %v7448
        %7493 = vst [vmem:[#allocation5 + $0x218] sm:$0xff] %v7449
        %7494 = vst [vmem:[#allocation5 + $0x220] sm:$0xff] %v7450
        %7495 = vst [vmem:[#allocation5 + $0x228] sm:$0xff] %v7451
        %7496 = vst [vmem:[#allocation5 + $0x230] sm:$0xff] %v7452
        %7497 = vst [vmem:[#allocation5 + $0x238] sm:$0xff] %v7453
        %7498 = vst [vmem:[#allocation5 + $0x240] sm:$0xff] %v7454
        %7499 = vst [vmem:[#allocation5 + $0x248] sm:$0xff] %v7455
        %7500 = vst [vmem:[#allocation5 + $0x250] sm:$0xff] %v7456
        %7501 = vst [vmem:[#allocation5 + $0x258] sm:$0xff] %v7457
        %7502 = vst [vmem:[#allocation5 + $0x260] sm:$0xff] %v7458
        %7503 = vst [vmem:[#allocation5 + $0x268] sm:$0xff] %v7459
        %7504 = vst [vmem:[#allocation5 + $0x270] sm:$0xff] %v7460
        %7505 = vst [vmem:[#allocation5 + $0x278] sm:$0xff] %v7461
        %7506 = vst [vmem:[#allocation5 + $0x280] sm:$0xff] %v7462
        %7507 = vst [vmem:[#allocation5 + $0x288] sm:$0xff] %v7463
        %7508 = vst [vmem:[#allocation5 + $0x290] sm:$0xff] %v7464
        %7509 = vst [vmem:[#allocation5 + $0x298] sm:$0xff] %v7465
        %7510 = vst [vmem:[#allocation5 + $0x2a0] sm:$0xff] %v7466
        %7511 = vst [vmem:[#allocation5 + $0x2a8] sm:$0xff] %v7467
        %7512 = vst [vmem:[#allocation5 + $0x2b0] sm:$0xff] %v7468
        %7513 = vst [vmem:[#allocation5 + $0x2b8] sm:$0xff] %v7469
        %7514 = vst [vmem:[#allocation5 + $0x2c0] sm:$0xff] %v6407
        %7515 = vst [vmem:[#allocation5 + $0x2c8] sm:$0xff] %v6408
        %7516 = vst [vmem:[#allocation5 + $0x2d0] sm:$0xff] %v6409
        %7517 = vst [vmem:[#allocation5 + $0x2d8] sm:$0xff] %v6410
        %7518 = vst [vmem:[#allocation5 + $0x2e0] sm:$0xff] %v6411
        %7519 = vst [vmem:[#allocation5 + $0x2e8] sm:$0xff] %v6412
        %7520 = vst [vmem:[#allocation5 + $0x2f0] sm:$0xff] %v6413
        %7521 = vst [vmem:[#allocation5 + $0x2f8] sm:$0xff] %v6414
        %7522 = vst [vmem:[#allocation5 + $0x300] sm:$0xff] %v6415
        %7523 = vst [vmem:[#allocation5 + $0x308] sm:$0xff] %v6416
        %7524 = vst [vmem:[#allocation5 + $0x310] sm:$0xff] %v6417
        %7525 = vst [vmem:[#allocation5 + $0x318] sm:$0xff] %v6418
        %7526 = vst [vmem:[#allocation5 + $0x320] sm:$0xff] %v6419
        %7527 = vst [vmem:[#allocation5 + $0x328] sm:$0xff] %v6420
        %7528 = vst [vmem:[#allocation5 + $0x330] sm:$0xff] %v6421
        %7529 = vst [vmem:[#allocation5 + $0x338] sm:$0xff] %v6422
        %7530 = vst [vmem:[#allocation5 + $0x340] sm:$0xff] %v6423
        %7531 = vst [vmem:[#allocation5 + $0x348] sm:$0xff] %v6424
        %7532 = vst [vmem:[#allocation5 + $0x350] sm:$0xff] %v6425
        %7533 = vst [vmem:[#allocation5 + $0x358] sm:$0xff] %v6426
        %7534 = vst [vmem:[#allocation5 + $0x360] sm:$0xff] %v6427
        %7535 = vst [vmem:[#allocation5 + $0x368] sm:$0xff] %v6428
        %v7536 = vld [vmem:[#allocation3] sm:$0xff]
        %v7537 = vld [vmem:[#allocation3 + $0x8] sm:$0xff]
        %v7538 = vld [vmem:[#allocation3 + $0x10] sm:$0xff]
        %v7539 = vld [vmem:[#allocation3 + $0x18] sm:$0xff]
        %v7540 = vld [vmem:[#allocation3 + $0x20] sm:$0xff]
        %v7541 = vld [vmem:[#allocation3 + $0x28] sm:$0xff]
        %v7542 = vld [vmem:[#allocation3 + $0x30] sm:$0xff]
        %v7543 = vld [vmem:[#allocation3 + $0x38] sm:$0xff]
        %v7544 = vld [vmem:[#allocation3 + $0x40] sm:$0xff]
        %v7545 = vld [vmem:[#allocation3 + $0x48] sm:$0xff]
        %v7546 = vld [vmem:[#allocation3 + $0x50] sm:$0xff]
        %v7547 = vld [vmem:[#allocation3 + $0x58] sm:$0xff]
        %v7548 = vld [vmem:[#allocation3 + $0x60] sm:$0xff]
        %v7549 = vld [vmem:[#allocation3 + $0x68] sm:$0xff]
        %v7550 = vld [vmem:[#allocation3 + $0x70] sm:$0xff]
        %v7551 = vld [vmem:[#allocation3 + $0x78] sm:$0xff]
        %v7552 = vld [vmem:[#allocation3 + $0x80] sm:$0xff]
        %v7553 = vld [vmem:[#allocation3 + $0x88] sm:$0xff]
        %v7554 = vld [vmem:[#allocation3 + $0x90] sm:$0xff]
        %v7555 = vld [vmem:[#allocation3 + $0x98] sm:$0xff]
        %v7556 = vld [vmem:[#allocation3 + $0xa0] sm:$0xff]
        %v7557 = vld [vmem:[#allocation3 + $0xa8] sm:$0xff]
        %v7558 = vld [vmem:[#allocation3 + $0xb0] sm:$0xff]
        %v7559 = vld [vmem:[#allocation3 + $0xb8] sm:$0xff]
        %7560 = vrot.lane.b32.xlu0 %v7033, 66
        %v7561 = vpop.permute.xlu0 %7560
        %7562 = vrot.lane.b32.xlu0 %v7037, 66
        %v7563 = vpop.permute.xlu0 %7562
        %7564 = vrot.lane.b32.xlu0 %v7041, 66
        %v7565 = vpop.permute.xlu0 %7564
        %7566 = vrot.lane.b32.xlu0 %v7045, 66
        %v7567 = vpop.permute.xlu0 %7566
        %7568 = vrot.lane.b32.xlu0 %v7049, 66
        %v7569 = vpop.permute.xlu0 %7568
        %7570 = vrot.lane.b32.xlu0 %v7053, 66
        %v7571 = vpop.permute.xlu0 %7570
        %7572 = vrot.lane.b32.xlu0 %v7057, 66
        %v7573 = vpop.permute.xlu0 %7572
        %7574 = vrot.lane.b32.xlu0 %v7061, 66
        %v7575 = vpop.permute.xlu0 %7574
        %7576 = vrot.lane.b32.xlu0 %v7065, 66
        %v7577 = vpop.permute.xlu0 %7576
        %7578 = vrot.lane.b32.xlu0 %v7069, 66
        %v7579 = vpop.permute.xlu0 %7578
        %7580 = vrot.lane.b32.xlu0 %v7073, 66
        %v7581 = vpop.permute.xlu0 %7580
        %v7582 = vsel %vm7447, %v7561, %v7563
        %v7583 = vsel %vm7447, %v7563, %v7565
        %v7584 = vsel %vm7447, %v7565, %v7567
        %v7585 = vsel %vm7447, %v7567, %v7569
        %v7586 = vsel %vm7447, %v7569, %v7571
        %v7587 = vsel %vm7447, %v7571, %v7573
        %v7588 = vsel %vm7447, %v7573, %v7575
        %v7589 = vsel %vm7447, %v7575, %v7577
        %v7590 = vsel %vm7447, %v7577, %v7579
        %v7591 = vsel %vm7447, %v7579, %v7581
        %v7604 = vmul.f32 %v7536, %v7561
        %v7605 = vmul.f32 %v7537, %v7582
        %v7606 = vmul.f32 %v7538, %v7583
        %v7607 = vmul.f32 %v7539, %v7584
        %v7608 = vmul.f32 %v7540, %v7585
        %v7609 = vmul.f32 %v7541, %v7586
        %v7610 = vmul.f32 %v7542, %v7587
        %v7611 = vmul.f32 %v7543, %v7588
        %v7612 = vmul.f32 %v7544, %v7589
        %v7613 = vmul.f32 %v7545, %v7590
        %v7614 = vmul.f32 %v7546, %v7591
        %v7615 = vmul.f32 %v7547, %v7581
        %v7616 = vmul.f32 %v7548, %v7561
        %v7617 = vmul.f32 %v7549, %v7582
        %v7618 = vmul.f32 %v7550, %v7583
        %v7619 = vmul.f32 %v7551, %v7584
        %v7620 = vmul.f32 %v7552, %v7585
        %v7621 = vmul.f32 %v7553, %v7586
        %v7622 = vmul.f32 %v7554, %v7587
        %v7623 = vmul.f32 %v7555, %v7588
        %v7624 = vmul.f32 %v7556, %v7589
        %v7625 = vmul.f32 %v7557, %v7590
        %v7626 = vmul.f32 %v7558, %v7591
        %v7627 = vmul.f32 %v7559, %v7581
        %7652 = vrot.lane.b32.xlu0 %v7604, 62
        %v7653 = vpop.permute.xlu0 %7652
        %7654 = vrot.lane.b32.xlu0 %v7605, 62
        %v7655 = vpop.permute.xlu0 %7654
        %7656 = vrot.lane.b32.xlu0 %v7606, 62
        %v7657 = vpop.permute.xlu0 %7656
        %7658 = vrot.lane.b32.xlu0 %v7607, 62
        %v7659 = vpop.permute.xlu0 %7658
        %7660 = vrot.lane.b32.xlu0 %v7608, 62
        %v7661 = vpop.permute.xlu0 %7660
        %7662 = vrot.lane.b32.xlu0 %v7609, 62
        %v7663 = vpop.permute.xlu0 %7662
        %7664 = vrot.lane.b32.xlu0 %v7610, 62
        %v7665 = vpop.permute.xlu0 %7664
        %7666 = vrot.lane.b32.xlu0 %v7611, 62
        %v7667 = vpop.permute.xlu0 %7666
        %7668 = vrot.lane.b32.xlu0 %v7612, 62
        %v7669 = vpop.permute.xlu0 %7668
        %7670 = vrot.lane.b32.xlu0 %v7613, 62
        %v7671 = vpop.permute.xlu0 %7670
        %7672 = vrot.lane.b32.xlu0 %v7614, 62
        %v7673 = vpop.permute.xlu0 %7672
        %7674 = vrot.lane.b32.xlu0 %v7615, 62
        %v7675 = vpop.permute.xlu0 %7674
        %7676 = vrot.lane.b32.xlu0 %v7616, 62
        %v7677 = vpop.permute.xlu0 %7676
        %7678 = vrot.lane.b32.xlu0 %v7617, 62
        %v7679 = vpop.permute.xlu0 %7678
        %7680 = vrot.lane.b32.xlu0 %v7618, 62
        %v7681 = vpop.permute.xlu0 %7680
        %7682 = vrot.lane.b32.xlu0 %v7619, 62
        %v7683 = vpop.permute.xlu0 %7682
        %7684 = vrot.lane.b32.xlu0 %v7620, 62
        %v7685 = vpop.permute.xlu0 %7684
        %7686 = vrot.lane.b32.xlu0 %v7621, 62
        %v7687 = vpop.permute.xlu0 %7686
        %7688 = vrot.lane.b32.xlu0 %v7622, 62
        %v7689 = vpop.permute.xlu0 %7688
        %7690 = vrot.lane.b32.xlu0 %v7623, 62
        %v7691 = vpop.permute.xlu0 %7690
        %7692 = vrot.lane.b32.xlu0 %v7624, 62
        %v7693 = vpop.permute.xlu0 %7692
        %7694 = vrot.lane.b32.xlu0 %v7625, 62
        %v7695 = vpop.permute.xlu0 %7694
        %7696 = vrot.lane.b32.xlu0 %v7626, 62
        %v7697 = vpop.permute.xlu0 %7696
        %7698 = vrot.lane.b32.xlu0 %v7627, 62
        %v7699 = vpop.permute.xlu0 %7698
        %v7700 = vsel %vm7328, %v7653, %v7655
        %v7701 = vsel %vm7328, %v7655, %v7657
        %v7702 = vsel %vm7328, %v7657, %v7659
        %v7703 = vsel %vm7328, %v7659, %v7661
        %v7704 = vsel %vm7328, %v7661, %v7663
        %v7705 = vsel %vm7328, %v7663, %v7665
        %v7706 = vsel %vm7328, %v7665, %v7667
        %v7707 = vsel %vm7328, %v7667, %v7669
        %v7708 = vsel %vm7328, %v7669, %v7671
        %v7709 = vsel %vm7328, %v7671, %v7673
        %v7710 = vsel %vm7328, %v7673, %v7675
        %v7711 = vsel %vm7328, %v7677, %v7679
        %v7712 = vsel %vm7328, %v7679, %v7681
        %v7713 = vsel %vm7328, %v7681, %v7683
        %v7714 = vsel %vm7328, %v7683, %v7685
        %v7715 = vsel %vm7328, %v7685, %v7687
        %v7716 = vsel %vm7328, %v7687, %v7689
        %v7717 = vsel %vm7328, %v7689, %v7691
        %v7718 = vsel %vm7328, %v7691, %v7693
        %v7719 = vsel %vm7328, %v7693, %v7695
        %v7720 = vsel %vm7328, %v7695, %v7697
        %v7721 = vsel %vm7328, %v7697, %v7699
        %7744 = vst [vmem:[#allocation5 + $0x370] sm:$0xff] %v7700
        %7745 = vst [vmem:[#allocation5 + $0x378] sm:$0xff] %v7701
        %7746 = vst [vmem:[#allocation5 + $0x380] sm:$0xff] %v7702
        %7747 = vst [vmem:[#allocation5 + $0x388] sm:$0xff] %v7703
        %7748 = vst [vmem:[#allocation5 + $0x390] sm:$0xff] %v7704
        %7749 = vst [vmem:[#allocation5 + $0x398] sm:$0xff] %v7705
        %7750 = vst [vmem:[#allocation5 + $0x3a0] sm:$0xff] %v7706
        %7751 = vst [vmem:[#allocation5 + $0x3a8] sm:$0xff] %v7707
        %7752 = vst [vmem:[#allocation5 + $0x3b0] sm:$0xff] %v7708
        %7753 = vst [vmem:[#allocation5 + $0x3b8] sm:$0xff] %v7709
        %7754 = vst [vmem:[#allocation5 + $0x3c0] sm:$0xff] %v7710
        %7755 = vst [vmem:[#allocation5 + $0x3c8] sm:$0xff] %v7711
        %7756 = vst [vmem:[#allocation5 + $0x3d0] sm:$0xff] %v7712
        %7757 = vst [vmem:[#allocation5 + $0x3d8] sm:$0xff] %v7713
        %7758 = vst [vmem:[#allocation5 + $0x3e0] sm:$0xff] %v7714
        %7759 = vst [vmem:[#allocation5 + $0x3e8] sm:$0xff] %v7715
        %7760 = vst [vmem:[#allocation5 + $0x3f0] sm:$0xff] %v7716
        %7761 = vst [vmem:[#allocation5 + $0x3f8] sm:$0xff] %v7717
        %7762 = vst [vmem:[#allocation5 + $0x400] sm:$0xff] %v7718
        %7763 = vst [vmem:[#allocation5 + $0x408] sm:$0xff] %v7719
        %7764 = vst [vmem:[#allocation5 + $0x410] sm:$0xff] %v7720
        %7765 = vst [vmem:[#allocation5 + $0x418] sm:$0xff] %v7721
        %v7766 = vld [vmem:[#allocation3] sm:$0xff]
        %v7767 = vld [vmem:[#allocation3 + $0x8] sm:$0xff]
        %v7768 = vld [vmem:[#allocation3 + $0x10] sm:$0xff]
        %v7769 = vld [vmem:[#allocation3 + $0x18] sm:$0xff]
        %v7770 = vld [vmem:[#allocation3 + $0x20] sm:$0xff]
        %v7771 = vld [vmem:[#allocation3 + $0x28] sm:$0xff]
        %v7772 = vld [vmem:[#allocation3 + $0x30] sm:$0xff]
        %v7773 = vld [vmem:[#allocation3 + $0x38] sm:$0xff]
        %v7774 = vld [vmem:[#allocation3 + $0x40] sm:$0xff]
        %v7775 = vld [vmem:[#allocation3 + $0x48] sm:$0xff]
        %v7776 = vld [vmem:[#allocation3 + $0x50] sm:$0xff]
        %v7777 = vld [vmem:[#allocation3 + $0x58] sm:$0xff]
        %v7778 = vld [vmem:[#allocation3 + $0x60] sm:$0xff]
        %v7779 = vld [vmem:[#allocation3 + $0x68] sm:$0xff]
        %v7780 = vld [vmem:[#allocation3 + $0x70] sm:$0xff]
        %v7781 = vld [vmem:[#allocation3 + $0x78] sm:$0xff]
        %v7782 = vld [vmem:[#allocation3 + $0x80] sm:$0xff]
        %v7783 = vld [vmem:[#allocation3 + $0x88] sm:$0xff]
        %v7784 = vld [vmem:[#allocation3 + $0x90] sm:$0xff]
        %v7785 = vld [vmem:[#allocation3 + $0x98] sm:$0xff]
        %v7786 = vld [vmem:[#allocation3 + $0xa0] sm:$0xff]
        %v7787 = vld [vmem:[#allocation3 + $0xa8] sm:$0xff]
        %v7788 = vld [vmem:[#allocation3 + $0xb0] sm:$0xff]
        %v7789 = vld [vmem:[#allocation3 + $0xb8] sm:$0xff]
        %7790 = vrot.lane.b32.xlu0 %v6592, 94
        %v7791 = vpop.permute.xlu0 %7790
        %7792 = vrot.lane.b32.xlu0 %v6596, 94
        %v7793 = vpop.permute.xlu0 %7792
        %7794 = vrot.lane.b32.xlu0 %v6600, 94
        %v7795 = vpop.permute.xlu0 %7794
        %7796 = vrot.lane.b32.xlu0 %v6604, 94
        %v7797 = vpop.permute.xlu0 %7796
        %7798 = vrot.lane.b32.xlu0 %v6608, 94
        %v7799 = vpop.permute.xlu0 %7798
        %7800 = vrot.lane.b32.xlu0 %v6612, 94
        %v7801 = vpop.permute.xlu0 %7800
        %7802 = vrot.lane.b32.xlu0 %v6616, 94
        %v7803 = vpop.permute.xlu0 %7802
        %7804 = vrot.lane.b32.xlu0 %v6620, 94
        %v7805 = vpop.permute.xlu0 %7804
        %7806 = vrot.lane.b32.xlu0 %v6624, 94
        %v7807 = vpop.permute.xlu0 %7806
        %7808 = vrot.lane.b32.xlu0 %v6628, 94
        %v7809 = vpop.permute.xlu0 %7808
        %7810 = vrot.lane.b32.xlu0 %v6632, 94
        %v7811 = vpop.permute.xlu0 %7810
        %v7812 = vsel %vm7215, %v7791, %v7793
        %v7813 = vsel %vm7215, %v7793, %v7795
        %v7814 = vsel %vm7215, %v7795, %v7797
        %v7815 = vsel %vm7215, %v7797, %v7799
        %v7816 = vsel %vm7215, %v7799, %v7801
        %v7817 = vsel %vm7215, %v7801, %v7803
        %v7818 = vsel %vm7215, %v7803, %v7805
        %v7819 = vsel %vm7215, %v7805, %v7807
        %v7820 = vsel %vm7215, %v7807, %v7809
        %v7821 = vsel %vm7215, %v7809, %v7811
        %v7834 = vmul.f32 %v7766, %v7791
        %v7835 = vmul.f32 %v7767, %v7812
        %v7836 = vmul.f32 %v7768, %v7813
        %v7837 = vmul.f32 %v7769, %v7814
        %v7838 = vmul.f32 %v7770, %v7815
        %v7839 = vmul.f32 %v7771, %v7816
        %v7840 = vmul.f32 %v7772, %v7817
        %v7841 = vmul.f32 %v7773, %v7818
        %v7842 = vmul.f32 %v7774, %v7819
        %v7843 = vmul.f32 %v7775, %v7820
        %v7844 = vmul.f32 %v7776, %v7821
        %v7845 = vmul.f32 %v7777, %v7811
        %v7846 = vmul.f32 %v7778, %v7791
        %v7847 = vmul.f32 %v7779, %v7812
        %v7848 = vmul.f32 %v7780, %v7813
        %v7849 = vmul.f32 %v7781, %v7814
        %v7850 = vmul.f32 %v7782, %v7815
        %v7851 = vmul.f32 %v7783, %v7816
        %v7852 = vmul.f32 %v7784, %v7817
        %v7853 = vmul.f32 %v7785, %v7818
        %v7854 = vmul.f32 %v7786, %v7819
        %v7855 = vmul.f32 %v7787, %v7820
        %v7856 = vmul.f32 %v7788, %v7821
        %v7857 = vmul.f32 %v7789, %v7811
        %7882 = vrot.lane.b32.xlu0 %v7834, 34
        %v7883 = vpop.permute.xlu0 %7882
        %7884 = vrot.lane.b32.xlu0 %v7835, 34
        %v7885 = vpop.permute.xlu0 %7884
        %7886 = vrot.lane.b32.xlu0 %v7836, 34
        %v7887 = vpop.permute.xlu0 %7886
        %7888 = vrot.lane.b32.xlu0 %v7837, 34
        %v7889 = vpop.permute.xlu0 %7888
        %7890 = vrot.lane.b32.xlu0 %v7838, 34
        %v7891 = vpop.permute.xlu0 %7890
        %7892 = vrot.lane.b32.xlu0 %v7839, 34
        %v7893 = vpop.permute.xlu0 %7892
        %7894 = vrot.lane.b32.xlu0 %v7840, 34
        %v7895 = vpop.permute.xlu0 %7894
        %7896 = vrot.lane.b32.xlu0 %v7841, 34
        %v7897 = vpop.permute.xlu0 %7896
        %7898 = vrot.lane.b32.xlu0 %v7842, 34
        %v7899 = vpop.permute.xlu0 %7898
        %7900 = vrot.lane.b32.xlu0 %v7843, 34
        %v7901 = vpop.permute.xlu0 %7900
        %7902 = vrot.lane.b32.xlu0 %v7844, 34
        %v7903 = vpop.permute.xlu0 %7902
        %7904 = vrot.lane.b32.xlu0 %v7845, 34
        %v7905 = vpop.permute.xlu0 %7904
        %7906 = vrot.lane.b32.xlu0 %v7846, 34
        %v7907 = vpop.permute.xlu0 %7906
        %7908 = vrot.lane.b32.xlu0 %v7847, 34
        %v7909 = vpop.permute.xlu0 %7908
        %7910 = vrot.lane.b32.xlu0 %v7848, 34
        %v7911 = vpop.permute.xlu0 %7910
        %7912 = vrot.lane.b32.xlu0 %v7849, 34
        %v7913 = vpop.permute.xlu0 %7912
        %7914 = vrot.lane.b32.xlu0 %v7850, 34
        %v7915 = vpop.permute.xlu0 %7914
        %7916 = vrot.lane.b32.xlu0 %v7851, 34
        %v7917 = vpop.permute.xlu0 %7916
        %7918 = vrot.lane.b32.xlu0 %v7852, 34
        %v7919 = vpop.permute.xlu0 %7918
        %7920 = vrot.lane.b32.xlu0 %v7853, 34
        %v7921 = vpop.permute.xlu0 %7920
        %7922 = vrot.lane.b32.xlu0 %v7854, 34
        %v7923 = vpop.permute.xlu0 %7922
        %7924 = vrot.lane.b32.xlu0 %v7855, 34
        %v7925 = vpop.permute.xlu0 %7924
        %7926 = vrot.lane.b32.xlu0 %v7856, 34
        %v7927 = vpop.permute.xlu0 %7926
        %7928 = vrot.lane.b32.xlu0 %v7857, 34
        %v7929 = vpop.permute.xlu0 %7928
        %v7930 = vsel %vm7096, %v7883, %v7885
        %v7931 = vsel %vm7096, %v7885, %v7887
        %v7932 = vsel %vm7096, %v7887, %v7889
        %v7933 = vsel %vm7096, %v7889, %v7891
        %v7934 = vsel %vm7096, %v7891, %v7893
        %v7935 = vsel %vm7096, %v7893, %v7895
        %v7936 = vsel %vm7096, %v7895, %v7897
        %v7937 = vsel %vm7096, %v7897, %v7899
        %v7938 = vsel %vm7096, %v7899, %v7901
        %v7939 = vsel %vm7096, %v7901, %v7903
        %v7940 = vsel %vm7096, %v7903, %v7905
        %v7941 = vsel %vm7096, %v7907, %v7909
        %v7942 = vsel %vm7096, %v7909, %v7911
        %v7943 = vsel %vm7096, %v7911, %v7913
        %v7944 = vsel %vm7096, %v7913, %v7915
        %v7945 = vsel %vm7096, %v7915, %v7917
        %v7946 = vsel %vm7096, %v7917, %v7919
        %v7947 = vsel %vm7096, %v7919, %v7921
        %v7948 = vsel %vm7096, %v7921, %v7923
        %v7949 = vsel %vm7096, %v7923, %v7925
        %v7950 = vsel %vm7096, %v7925, %v7927
        %v7951 = vsel %vm7096, %v7927, %v7929
        %7974 = vst [vmem:[#allocation5 + $0x420] sm:$0xff] %v7930
        %7975 = vst [vmem:[#allocation5 + $0x428] sm:$0xff] %v7931
        %7976 = vst [vmem:[#allocation5 + $0x430] sm:$0xff] %v7932
        %7977 = vst [vmem:[#allocation5 + $0x438] sm:$0xff] %v7933
        %7978 = vst [vmem:[#allocation5 + $0x440] sm:$0xff] %v7934
        %7979 = vst [vmem:[#allocation5 + $0x448] sm:$0xff] %v7935
        %7980 = vst [vmem:[#allocation5 + $0x450] sm:$0xff] %v7936
        %7981 = vst [vmem:[#allocation5 + $0x458] sm:$0xff] %v7937
        %7982 = vst [vmem:[#allocation5 + $0x460] sm:$0xff] %v7938
        %7983 = vst [vmem:[#allocation5 + $0x468] sm:$0xff] %v7939
        %7984 = vst [vmem:[#allocation5 + $0x470] sm:$0xff] %v7940
        %7985 = vst [vmem:[#allocation5 + $0x478] sm:$0xff] %v7941
        %7986 = vst [vmem:[#allocation5 + $0x480] sm:$0xff] %v7942
        %7987 = vst [vmem:[#allocation5 + $0x488] sm:$0xff] %v7943
        %7988 = vst [vmem:[#allocation5 + $0x490] sm:$0xff] %v7944
        %7989 = vst [vmem:[#allocation5 + $0x498] sm:$0xff] %v7945
        %7990 = vst [vmem:[#allocation5 + $0x4a0] sm:$0xff] %v7946
        %7991 = vst [vmem:[#allocation5 + $0x4a8] sm:$0xff] %v7947
        %7992 = vst [vmem:[#allocation5 + $0x4b0] sm:$0xff] %v7948
        %7993 = vst [vmem:[#allocation5 + $0x4b8] sm:$0xff] %v7949
        %7994 = vst [vmem:[#allocation5 + $0x4c0] sm:$0xff] %v7950
        %7995 = vst [vmem:[#allocation5 + $0x4c8] sm:$0xff] %v7951
        %v7996 = vld [vmem:[#allocation3] sm:$0xff]
        %v7997 = vld [vmem:[#allocation3 + $0x8] sm:$0xff]
        %v7998 = vld [vmem:[#allocation3 + $0x10] sm:$0xff]
        %v7999 = vld [vmem:[#allocation3 + $0x18] sm:$0xff]
        %v8000 = vld [vmem:[#allocation3 + $0x20] sm:$0xff]
        %v8001 = vld [vmem:[#allocation3 + $0x28] sm:$0xff]
        %v8002 = vld [vmem:[#allocation3 + $0x30] sm:$0xff]
        %v8003 = vld [vmem:[#allocation3 + $0x38] sm:$0xff]
        %v8004 = vld [vmem:[#allocation3 + $0x40] sm:$0xff]
        %v8005 = vld [vmem:[#allocation3 + $0x48] sm:$0xff]
        %v8006 = vld [vmem:[#allocation3 + $0x50] sm:$0xff]
        %v8007 = vld [vmem:[#allocation3 + $0x58] sm:$0xff]
        %v8008 = vld [vmem:[#allocation3 + $0x60] sm:$0xff]
        %v8009 = vld [vmem:[#allocation3 + $0x68] sm:$0xff]
        %v8010 = vld [vmem:[#allocation3 + $0x70] sm:$0xff]
        %v8011 = vld [vmem:[#allocation3 + $0x78] sm:$0xff]
        %v8012 = vld [vmem:[#allocation3 + $0x80] sm:$0xff]
        %v8013 = vld [vmem:[#allocation3 + $0x88] sm:$0xff]
        %v8014 = vld [vmem:[#allocation3 + $0x90] sm:$0xff]
        %v8015 = vld [vmem:[#allocation3 + $0x98] sm:$0xff]
        %v8016 = vld [vmem:[#allocation3 + $0xa0] sm:$0xff]
        %v8017 = vld [vmem:[#allocation3 + $0xa8] sm:$0xff]
        %v8018 = vld [vmem:[#allocation3 + $0xb0] sm:$0xff]
        %v8019 = vld [vmem:[#allocation3 + $0xb8] sm:$0xff]
        %8044 = vrot.lane.b32.xlu0 %v7996, 32
        %v8045 = vpop.permute.xlu0 %8044
        %8046 = vrot.lane.b32.xlu0 %v7997, 32
        %v8047 = vpop.permute.xlu0 %8046
        %8048 = vrot.lane.b32.xlu0 %v7998, 32
        %v8049 = vpop.permute.xlu0 %8048
        %8050 = vrot.lane.b32.xlu0 %v7999, 32
        %v8051 = vpop.permute.xlu0 %8050
        %8052 = vrot.lane.b32.xlu0 %v8000, 32
        %v8053 = vpop.permute.xlu0 %8052
        %8054 = vrot.lane.b32.xlu0 %v8001, 32
        %v8055 = vpop.permute.xlu0 %8054
        %8056 = vrot.lane.b32.xlu0 %v8002, 32
        %v8057 = vpop.permute.xlu0 %8056
        %8058 = vrot.lane.b32.xlu0 %v8003, 32
        %v8059 = vpop.permute.xlu0 %8058
        %8060 = vrot.lane.b32.xlu0 %v8004, 32
        %v8061 = vpop.permute.xlu0 %8060
        %8062 = vrot.lane.b32.xlu0 %v8005, 32
        %v8063 = vpop.permute.xlu0 %8062
        %8064 = vrot.lane.b32.xlu0 %v8006, 32
        %v8065 = vpop.permute.xlu0 %8064
        %8066 = vrot.lane.b32.xlu0 %v8007, 32
        %v8067 = vpop.permute.xlu0 %8066
        %8068 = vrot.lane.b32.xlu0 %v8008, 32
        %v8069 = vpop.permute.xlu0 %8068
        %8070 = vrot.lane.b32.xlu0 %v8009, 32
        %v8071 = vpop.permute.xlu0 %8070
        %8072 = vrot.lane.b32.xlu0 %v8010, 32
        %v8073 = vpop.permute.xlu0 %8072
        %8074 = vrot.lane.b32.xlu0 %v8011, 32
        %v8075 = vpop.permute.xlu0 %8074
        %8076 = vrot.lane.b32.xlu0 %v8012, 32
        %v8077 = vpop.permute.xlu0 %8076
        %8078 = vrot.lane.b32.xlu0 %v8013, 32
        %v8079 = vpop.permute.xlu0 %8078
        %8080 = vrot.lane.b32.xlu0 %v8014, 32
        %v8081 = vpop.permute.xlu0 %8080
        %8082 = vrot.lane.b32.xlu0 %v8015, 32
        %v8083 = vpop.permute.xlu0 %8082
        %8084 = vrot.lane.b32.xlu0 %v8016, 32
        %v8085 = vpop.permute.xlu0 %8084
        %8086 = vrot.lane.b32.xlu0 %v8017, 32
        %v8087 = vpop.permute.xlu0 %8086
        %8088 = vrot.lane.b32.xlu0 %v8018, 32
        %v8089 = vpop.permute.xlu0 %8088
        %8090 = vrot.lane.b32.xlu0 %v8019, 32
        %v8091 = vpop.permute.xlu0 %8090
        %vm8092 = vcmask 261120
        %v8093 = vsel %vm8092, %v8045, %v8047
        %v8094 = vsel %vm8092, %v8047, %v8049
        %v8095 = vsel %vm8092, %v8049, %v8051
        %v8096 = vsel %vm8092, %v8051, %v8053
        %v8097 = vsel %vm8092, %v8053, %v8055
        %v8098 = vsel %vm8092, %v8055, %v8057
        %v8099 = vsel %vm8092, %v8057, %v8059
        %v8100 = vsel %vm8092, %v8059, %v8061
        %v8101 = vsel %vm8092, %v8061, %v8063
        %v8102 = vsel %vm8092, %v8063, %v8065
        %v8103 = vsel %vm8092, %v8065, %v8067
        %v8104 = vsel %vm8092, %v8069, %v8071
        %v8105 = vsel %vm8092, %v8071, %v8073
        %v8106 = vsel %vm8092, %v8073, %v8075
        %v8107 = vsel %vm8092, %v8075, %v8077
        %v8108 = vsel %vm8092, %v8077, %v8079
        %v8109 = vsel %vm8092, %v8079, %v8081
        %v8110 = vsel %vm8092, %v8081, %v8083
        %v8111 = vsel %vm8092, %v8083, %v8085
        %v8112 = vsel %vm8092, %v8085, %v8087
        %v8113 = vsel %vm8092, %v8087, %v8089
        %v8114 = vsel %vm8092, %v8089, %v8091
        %8137 = vst [vmem:[#allocation5 + $0x4d0] sm:$0xff] %v8093
        %8138 = vst [vmem:[#allocation5 + $0x4d8] sm:$0xff] %v8094
        %8139 = vst [vmem:[#allocation5 + $0x4e0] sm:$0xff] %v8095
        %8140 = vst [vmem:[#allocation5 + $0x4e8] sm:$0xff] %v8096
        %8141 = vst [vmem:[#allocation5 + $0x4f0] sm:$0xff] %v8097
        %8142 = vst [vmem:[#allocation5 + $0x4f8] sm:$0xff] %v8098
        %8143 = vst [vmem:[#allocation5 + $0x500] sm:$0xff] %v8099
        %8144 = vst [vmem:[#allocation5 + $0x508] sm:$0xff] %v8100
        %8145 = vst [vmem:[#allocation5 + $0x510] sm:$0xff] %v8101
        %8146 = vst [vmem:[#allocation5 + $0x518] sm:$0xff] %v8102
        %8147 = vst [vmem:[#allocation5 + $0x520] sm:$0xff] %v8103
        %8148 = vst [vmem:[#allocation5 + $0x528] sm:$0xff] %v8104
        %8149 = vst [vmem:[#allocation5 + $0x530] sm:$0xff] %v8105
        %8150 = vst [vmem:[#allocation5 + $0x538] sm:$0xff] %v8106
        %8151 = vst [vmem:[#allocation5 + $0x540] sm:$0xff] %v8107
        %8152 = vst [vmem:[#allocation5 + $0x548] sm:$0xff] %v8108
        %8153 = vst [vmem:[#allocation5 + $0x550] sm:$0xff] %v8109
        %8154 = vst [vmem:[#allocation5 + $0x558] sm:$0xff] %v8110
        %8155 = vst [vmem:[#allocation5 + $0x560] sm:$0xff] %v8111
        %8156 = vst [vmem:[#allocation5 + $0x568] sm:$0xff] %v8112
        %8157 = vst [vmem:[#allocation5 + $0x570] sm:$0xff] %v8113
        %8158 = vst [vmem:[#allocation5 + $0x578] sm:$0xff] %v8114
        %v8159 = vld [vmem:[#allocation3] sm:$0xff]
        %v8160 = vld [vmem:[#allocation3 + $0x8] sm:$0xff]
        %v8161 = vld [vmem:[#allocation3 + $0x10] sm:$0xff]
        %v8162 = vld [vmem:[#allocation3 + $0x18] sm:$0xff]
        %v8163 = vld [vmem:[#allocation3 + $0x20] sm:$0xff]
        %v8164 = vld [vmem:[#allocation3 + $0x28] sm:$0xff]
        %v8165 = vld [vmem:[#allocation3 + $0x30] sm:$0xff]
        %v8166 = vld [vmem:[#allocation3 + $0x38] sm:$0xff]
        %v8167 = vld [vmem:[#allocation3 + $0x40] sm:$0xff]
        %v8168 = vld [vmem:[#allocation3 + $0x48] sm:$0xff]
        %v8169 = vld [vmem:[#allocation3 + $0x50] sm:$0xff]
        %v8170 = vld [vmem:[#allocation3 + $0x58] sm:$0xff]
        %v8171 = vld [vmem:[#allocation3 + $0x60] sm:$0xff]
        %v8172 = vld [vmem:[#allocation3 + $0x68] sm:$0xff]
        %v8173 = vld [vmem:[#allocation3 + $0x70] sm:$0xff]
        %v8174 = vld [vmem:[#allocation3 + $0x78] sm:$0xff]
        %v8175 = vld [vmem:[#allocation3 + $0x80] sm:$0xff]
        %v8176 = vld [vmem:[#allocation3 + $0x88] sm:$0xff]
        %v8177 = vld [vmem:[#allocation3 + $0x90] sm:$0xff]
        %v8178 = vld [vmem:[#allocation3 + $0x98] sm:$0xff]
        %v8179 = vld [vmem:[#allocation3 + $0xa0] sm:$0xff]
        %v8180 = vld [vmem:[#allocation3 + $0xa8] sm:$0xff]
        %v8181 = vld [vmem:[#allocation3 + $0xb0] sm:$0xff]
        %v8182 = vld [vmem:[#allocation3 + $0xb8] sm:$0xff]
        %8183 = vrot.lane.b32.xlu0 %v7033, 98
        %v8184 = vpop.permute.xlu0 %8183
        %8185 = vrot.lane.b32.xlu0 %v7037, 98
        %v8186 = vpop.permute.xlu0 %8185
        %8187 = vrot.lane.b32.xlu0 %v7041, 98
        %v8188 = vpop.permute.xlu0 %8187
        %8189 = vrot.lane.b32.xlu0 %v7045, 98
        %v8190 = vpop.permute.xlu0 %8189
        %8191 = vrot.lane.b32.xlu0 %v7049, 98
        %v8192 = vpop.permute.xlu0 %8191
        %8193 = vrot.lane.b32.xlu0 %v7053, 98
        %v8194 = vpop.permute.xlu0 %8193
        %8195 = vrot.lane.b32.xlu0 %v7057, 98
        %v8196 = vpop.permute.xlu0 %8195
        %8197 = vrot.lane.b32.xlu0 %v7061, 98
        %v8198 = vpop.permute.xlu0 %8197
        %8199 = vrot.lane.b32.xlu0 %v7065, 98
        %v8200 = vpop.permute.xlu0 %8199
        %8201 = vrot.lane.b32.xlu0 %v7069, 98
        %v8202 = vpop.permute.xlu0 %8201
        %8203 = vrot.lane.b32.xlu0 %v7073, 98
        %v8204 = vpop.permute.xlu0 %8203
        %v8205 = vsel %vm6774, %v8184, %v8186
        %v8206 = vsel %vm6774, %v8186, %v8188
        %v8207 = vsel %vm6774, %v8188, %v8190
        %v8208 = vsel %vm6774, %v8190, %v8192
        %v8209 = vsel %vm6774, %v8192, %v8194
        %v8210 = vsel %vm6774, %v8194, %v8196
        %v8211 = vsel %vm6774, %v8196, %v8198
        %v8212 = vsel %vm6774, %v8198, %v8200
        %v8213 = vsel %vm6774, %v8200, %v8202
        %v8214 = vsel %vm6774, %v8202, %v8204
        %v8227 = vmul.f32 %v8159, %v8184
        %v8228 = vmul.f32 %v8160, %v8205
        %v8229 = vmul.f32 %v8161, %v8206
        %v8230 = vmul.f32 %v8162, %v8207
        %v8231 = vmul.f32 %v8163, %v8208
        %v8232 = vmul.f32 %v8164, %v8209
        %v8233 = vmul.f32 %v8165, %v8210
        %v8234 = vmul.f32 %v8166, %v8211
        %v8235 = vmul.f32 %v8167, %v8212
        %v8236 = vmul.f32 %v8168, %v8213
        %v8237 = vmul.f32 %v8169, %v8214
        %v8238 = vmul.f32 %v8170, %v8204
        %v8239 = vmul.f32 %v8171, %v8184
        %v8240 = vmul.f32 %v8172, %v8205
        %v8241 = vmul.f32 %v8173, %v8206
        %v8242 = vmul.f32 %v8174, %v8207
        %v8243 = vmul.f32 %v8175, %v8208
        %v8244 = vmul.f32 %v8176, %v8209
        %v8245 = vmul.f32 %v8177, %v8210
        %v8246 = vmul.f32 %v8178, %v8211
        %v8247 = vmul.f32 %v8179, %v8212
        %v8248 = vmul.f32 %v8180, %v8213
        %v8249 = vmul.f32 %v8181, %v8214
        %v8250 = vmul.f32 %v8182, %v8204
        %8275 = vrot.lane.b32.xlu0 %v8227, 30
        %v8276 = vpop.permute.xlu0 %8275
        %8277 = vrot.lane.b32.xlu0 %v8228, 30
        %v8278 = vpop.permute.xlu0 %8277
        %8279 = vrot.lane.b32.xlu0 %v8229, 30
        %v8280 = vpop.permute.xlu0 %8279
        %8281 = vrot.lane.b32.xlu0 %v8230, 30
        %v8282 = vpop.permute.xlu0 %8281
        %8283 = vrot.lane.b32.xlu0 %v8231, 30
        %v8284 = vpop.permute.xlu0 %8283
        %8285 = vrot.lane.b32.xlu0 %v8232, 30
        %v8286 = vpop.permute.xlu0 %8285
        %8287 = vrot.lane.b32.xlu0 %v8233, 30
        %v8288 = vpop.permute.xlu0 %8287
        %8289 = vrot.lane.b32.xlu0 %v8234, 30
        %v8290 = vpop.permute.xlu0 %8289
        %8291 = vrot.lane.b32.xlu0 %v8235, 30
        %v8292 = vpop.permute.xlu0 %8291
        %8293 = vrot.lane.b32.xlu0 %v8236, 30
        %v8294 = vpop.permute.xlu0 %8293
        %8295 = vrot.lane.b32.xlu0 %v8237, 30
        %v8296 = vpop.permute.xlu0 %8295
        %8297 = vrot.lane.b32.xlu0 %v8238, 30
        %v8298 = vpop.permute.xlu0 %8297
        %8299 = vrot.lane.b32.xlu0 %v8239, 30
        %v8300 = vpop.permute.xlu0 %8299
        %8301 = vrot.lane.b32.xlu0 %v8240, 30
        %v8302 = vpop.permute.xlu0 %8301
        %8303 = vrot.lane.b32.xlu0 %v8241, 30
        %v8304 = vpop.permute.xlu0 %8303
        %8305 = vrot.lane.b32.xlu0 %v8242, 30
        %v8306 = vpop.permute.xlu0 %8305
        %8307 = vrot.lane.b32.xlu0 %v8243, 30
        %v8308 = vpop.permute.xlu0 %8307
        %8309 = vrot.lane.b32.xlu0 %v8244, 30
        %v8310 = vpop.permute.xlu0 %8309
        %8311 = vrot.lane.b32.xlu0 %v8245, 30
        %v8312 = vpop.permute.xlu0 %8311
        %8313 = vrot.lane.b32.xlu0 %v8246, 30
        %v8314 = vpop.permute.xlu0 %8313
        %8315 = vrot.lane.b32.xlu0 %v8247, 30
        %v8316 = vpop.permute.xlu0 %8315
        %8317 = vrot.lane.b32.xlu0 %v8248, 30
        %v8318 = vpop.permute.xlu0 %8317
        %8319 = vrot.lane.b32.xlu0 %v8249, 30
        %v8320 = vpop.permute.xlu0 %8319
        %8321 = vrot.lane.b32.xlu0 %v8250, 30
        %v8322 = vpop.permute.xlu0 %8321
        %v8323 = vsel %vm6655, %v8276, %v8278
        %v8324 = vsel %vm6655, %v8278, %v8280
        %v8325 = vsel %vm6655, %v8280, %v8282
        %v8326 = vsel %vm6655, %v8282, %v8284
        %v8327 = vsel %vm6655, %v8284, %v8286
        %v8328 = vsel %vm6655, %v8286, %v8288
        %v8329 = vsel %vm6655, %v8288, %v8290
        %v8330 = vsel %vm6655, %v8290, %v8292
        %v8331 = vsel %vm6655, %v8292, %v8294
        %v8332 = vsel %vm6655, %v8294, %v8296
        %v8333 = vsel %vm6655, %v8296, %v8298
        %v8334 = vsel %vm6655, %v8300, %v8302
        %v8335 = vsel %vm6655, %v8302, %v8304
        %v8336 = vsel %vm6655, %v8304, %v8306
        %v8337 = vsel %vm6655, %v8306, %v8308
        %v8338 = vsel %vm6655, %v8308, %v8310
        %v8339 = vsel %vm6655, %v8310, %v8312
        %v8340 = vsel %vm6655, %v8312, %v8314
        %v8341 = vsel %vm6655, %v8314, %v8316
        %v8342 = vsel %vm6655, %v8316, %v8318
        %v8343 = vsel %vm6655, %v8318, %v8320
        %v8344 = vsel %vm6655, %v8320, %v8322
        %8367 = vst [vmem:[#allocation5 + $0x580] sm:$0xff] %v8323
        %8368 = vst [vmem:[#allocation5 + $0x588] sm:$0xff] %v8324
        %8369 = vst [vmem:[#allocation5 + $0x590] sm:$0xff] %v8325
        %8370 = vst [vmem:[#allocation5 + $0x598] sm:$0xff] %v8326
        %8371 = vst [vmem:[#allocation5 + $0x5a0] sm:$0xff] %v8327
        %8372 = vst [vmem:[#allocation5 + $0x5a8] sm:$0xff] %v8328
        %8373 = vst [vmem:[#allocation5 + $0x5b0] sm:$0xff] %v8329
        %8374 = vst [vmem:[#allocation5 + $0x5b8] sm:$0xff] %v8330
        %8375 = vst [vmem:[#allocation5 + $0x5c0] sm:$0xff] %v8331
        %8376 = vst [vmem:[#allocation5 + $0x5c8] sm:$0xff] %v8332
        %8377 = vst [vmem:[#allocation5 + $0x5d0] sm:$0xff] %v8333
        %8378 = vst [vmem:[#allocation5 + $0x5d8] sm:$0xff] %v8334
        %8379 = vst [vmem:[#allocation5 + $0x5e0] sm:$0xff] %v8335
        %8380 = vst [vmem:[#allocation5 + $0x5e8] sm:$0xff] %v8336
        %8381 = vst [vmem:[#allocation5 + $0x5f0] sm:$0xff] %v8337
        %8382 = vst [vmem:[#allocation5 + $0x5f8] sm:$0xff] %v8338
        %8383 = vst [vmem:[#allocation5 + $0x600] sm:$0xff] %v8339
        %8384 = vst [vmem:[#allocation5 + $0x608] sm:$0xff] %v8340
        %8385 = vst [vmem:[#allocation5 + $0x610] sm:$0xff] %v8341
        %8386 = vst [vmem:[#allocation5 + $0x618] sm:$0xff] %v8342
        %8387 = vst [vmem:[#allocation5 + $0x620] sm:$0xff] %v8343
        %8388 = vst [vmem:[#allocation5 + $0x628] sm:$0xff] %v8344
        %v8389 = vld [vmem:[%s3] sm:$0x77]
        %v8390 = vld [vmem:[#allocation5] sm:$0xff]
        %v8391 = vld [vmem:[#allocation5 + $0x8] sm:$0xff]
        %v8392 = vld [vmem:[#allocation5 + $0x10] sm:$0xff]
        %v8393 = vld [vmem:[#allocation5 + $0x18] sm:$0xff]
        %v8394 = vld [vmem:[#allocation5 + $0x20] sm:$0xff]
        %v8395 = vld [vmem:[#allocation5 + $0x28] sm:$0xff]
        %v8396 = vld [vmem:[#allocation5 + $0x30] sm:$0xff]
        %v8397 = vld [vmem:[#allocation5 + $0x38] sm:$0xff]
        %v8398 = vld [vmem:[#allocation5 + $0x40] sm:$0xff]
        %v8399 = vld [vmem:[#allocation5 + $0x48] sm:$0xff]
        %v8400 = vld [vmem:[#allocation5 + $0x50] sm:$0xff]
        %v8401 = vld [vmem:[#allocation5 + $0x58] sm:$0xff]
        %v8402 = vld [vmem:[#allocation5 + $0x60] sm:$0xff]
        %v8403 = vld [vmem:[#allocation5 + $0x68] sm:$0xff]
        %v8404 = vld [vmem:[#allocation5 + $0x70] sm:$0xff]
        %v8405 = vld [vmem:[#allocation5 + $0x78] sm:$0xff]
        %v8406 = vld [vmem:[#allocation5 + $0x80] sm:$0xff]
        %v8407 = vld [vmem:[#allocation5 + $0x88] sm:$0xff]
        %v8408 = vld [vmem:[#allocation5 + $0x90] sm:$0xff]
        %v8409 = vld [vmem:[#allocation5 + $0x98] sm:$0xff]
        %v8410 = vld [vmem:[#allocation5 + $0xa0] sm:$0xff]
        %v8411 = vld [vmem:[#allocation5 + $0xa8] sm:$0xff]
        %v8412 = vld [vmem:[#allocation5 + $0xb0] sm:$0xff]
        %v8413 = vld [vmem:[#allocation5 + $0xb8] sm:$0xff]
        %v8414 = vld [vmem:[#allocation5 + $0xc0] sm:$0xff]
        %v8415 = vld [vmem:[#allocation5 + $0xc8] sm:$0xff]
        %v8416 = vld [vmem:[#allocation5 + $0xd0] sm:$0xff]
        %v8417 = vld [vmem:[#allocation5 + $0xd8] sm:$0xff]
        %v8418 = vld [vmem:[#allocation5 + $0xe0] sm:$0xff]
        %v8419 = vld [vmem:[#allocation5 + $0xe8] sm:$0xff]
        %v8420 = vld [vmem:[#allocation5 + $0xf0] sm:$0xff]
        %v8421 = vld [vmem:[#allocation5 + $0xf8] sm:$0xff]
        %v8422 = vld [vmem:[#allocation5 + $0x100] sm:$0xff]
        %v8423 = vld [vmem:[#allocation5 + $0x108] sm:$0xff]
        %v8424 = vld [vmem:[#allocation5 + $0x110] sm:$0xff]
        %v8425 = vld [vmem:[#allocation5 + $0x118] sm:$0xff]
        %v8426 = vld [vmem:[#allocation5 + $0x120] sm:$0xff]
        %v8427 = vld [vmem:[#allocation5 + $0x128] sm:$0xff]
        %v8428 = vld [vmem:[#allocation5 + $0x130] sm:$0xff]
        %v8429 = vld [vmem:[#allocation5 + $0x138] sm:$0xff]
        %v8430 = vld [vmem:[#allocation5 + $0x140] sm:$0xff]
        %v8431 = vld [vmem:[#allocation5 + $0x148] sm:$0xff]
        %v8432 = vld [vmem:[#allocation5 + $0x150] sm:$0xff]
        %v8433 = vld [vmem:[#allocation5 + $0x158] sm:$0xff]
        %v8434 = vld [vmem:[#allocation5 + $0x160] sm:$0xff]
        %v8435 = vld [vmem:[#allocation5 + $0x168] sm:$0xff]
        %v8436 = vld [vmem:[#allocation5 + $0x170] sm:$0xff]
        %v8437 = vld [vmem:[#allocation5 + $0x178] sm:$0xff]
        %v8438 = vld [vmem:[#allocation5 + $0x180] sm:$0xff]
        %v8439 = vld [vmem:[#allocation5 + $0x188] sm:$0xff]
        %v8440 = vld [vmem:[#allocation5 + $0x190] sm:$0xff]
        %v8441 = vld [vmem:[#allocation5 + $0x198] sm:$0xff]
        %v8442 = vld [vmem:[#allocation5 + $0x1a0] sm:$0xff]
        %v8443 = vld [vmem:[#allocation5 + $0x1a8] sm:$0xff]
        %v8444 = vld [vmem:[#allocation5 + $0x1b0] sm:$0xff]
        %v8445 = vld [vmem:[#allocation5 + $0x1b8] sm:$0xff]
        %v8446 = vld [vmem:[#allocation5 + $0x1c0] sm:$0xff]
        %v8447 = vld [vmem:[#allocation5 + $0x1c8] sm:$0xff]
        %v8448 = vld [vmem:[#allocation5 + $0x1d0] sm:$0xff]
        %v8449 = vld [vmem:[#allocation5 + $0x1d8] sm:$0xff]
        %v8450 = vld [vmem:[#allocation5 + $0x1e0] sm:$0xff]
        %v8451 = vld [vmem:[#allocation5 + $0x1e8] sm:$0xff]
        %v8452 = vld [vmem:[#allocation5 + $0x1f0] sm:$0xff]
        %v8453 = vld [vmem:[#allocation5 + $0x1f8] sm:$0xff]
        %v8454 = vld [vmem:[#allocation5 + $0x200] sm:$0xff]
        %v8455 = vld [vmem:[#allocation5 + $0x208] sm:$0xff]
        %v8456 = vld [vmem:[#allocation5 + $0x210] sm:$0xff]
        %v8457 = vld [vmem:[#allocation5 + $0x218] sm:$0xff]
        %v8458 = vld [vmem:[#allocation5 + $0x220] sm:$0xff]
        %v8459 = vld [vmem:[#allocation5 + $0x228] sm:$0xff]
        %v8460 = vld [vmem:[#allocation5 + $0x230] sm:$0xff]
        %v8461 = vld [vmem:[#allocation5 + $0x238] sm:$0xff]
        %v8462 = vld [vmem:[#allocation5 + $0x240] sm:$0xff]
        %v8463 = vld [vmem:[#allocation5 + $0x248] sm:$0xff]
        %v8464 = vld [vmem:[#allocation5 + $0x250] sm:$0xff]
        %v8465 = vld [vmem:[#allocation5 + $0x258] sm:$0xff]
        %v8466 = vld [vmem:[#allocation5 + $0x260] sm:$0xff]
        %v8467 = vld [vmem:[#allocation5 + $0x268] sm:$0xff]
        %v8468 = vld [vmem:[#allocation5 + $0x270] sm:$0xff]
        %v8469 = vld [vmem:[#allocation5 + $0x278] sm:$0xff]
        %v8470 = vld [vmem:[#allocation5 + $0x280] sm:$0xff]
        %v8471 = vld [vmem:[#allocation5 + $0x288] sm:$0xff]
        %v8472 = vld [vmem:[#allocation5 + $0x290] sm:$0xff]
        %v8473 = vld [vmem:[#allocation5 + $0x298] sm:$0xff]
        %v8474 = vld [vmem:[#allocation5 + $0x2a0] sm:$0xff]
        %v8475 = vld [vmem:[#allocation5 + $0x2a8] sm:$0xff]
        %v8476 = vld [vmem:[#allocation5 + $0x2b0] sm:$0xff]
        %v8477 = vld [vmem:[#allocation5 + $0x2b8] sm:$0xff]
        %v8478 = vld [vmem:[#allocation5 + $0x2c0] sm:$0xff]
        %v8479 = vld [vmem:[#allocation5 + $0x2c8] sm:$0xff]
        %v8480 = vld [vmem:[#allocation5 + $0x2d0] sm:$0xff]
        %v8481 = vld [vmem:[#allocation5 + $0x2d8] sm:$0xff]
        %v8482 = vld [vmem:[#allocation5 + $0x2e0] sm:$0xff]
        %v8483 = vld [vmem:[#allocation5 + $0x2e8] sm:$0xff]
        %v8484 = vld [vmem:[#allocation5 + $0x2f0] sm:$0xff]
        %v8485 = vld [vmem:[#allocation5 + $0x2f8] sm:$0xff]
        %v8486 = vld [vmem:[#allocation5 + $0x300] sm:$0xff]
        %v8487 = vld [vmem:[#allocation5 + $0x308] sm:$0xff]
        %v8488 = vld [vmem:[#allocation5 + $0x310] sm:$0xff]
        %v8489 = vld [vmem:[#allocation5 + $0x318] sm:$0xff]
        %v8490 = vld [vmem:[#allocation5 + $0x320] sm:$0xff]
        %v8491 = vld [vmem:[#allocation5 + $0x328] sm:$0xff]
        %v8492 = vld [vmem:[#allocation5 + $0x330] sm:$0xff]
        %v8493 = vld [vmem:[#allocation5 + $0x338] sm:$0xff]
        %v8494 = vld [vmem:[#allocation5 + $0x340] sm:$0xff]
        %v8495 = vld [vmem:[#allocation5 + $0x348] sm:$0xff]
        %v8496 = vld [vmem:[#allocation5 + $0x350] sm:$0xff]
        %v8497 = vld [vmem:[#allocation5 + $0x358] sm:$0xff]
        %v8498 = vld [vmem:[#allocation5 + $0x360] sm:$0xff]
        %v8499 = vld [vmem:[#allocation5 + $0x368] sm:$0xff]
        %v8500 = vld [vmem:[#allocation5 + $0x370] sm:$0xff]
        %v8501 = vld [vmem:[#allocation5 + $0x378] sm:$0xff]
        %v8502 = vld [vmem:[#allocation5 + $0x380] sm:$0xff]
        %v8503 = vld [vmem:[#allocation5 + $0x388] sm:$0xff]
        %v8504 = vld [vmem:[#allocation5 + $0x390] sm:$0xff]
        %v8505 = vld [vmem:[#allocation5 + $0x398] sm:$0xff]
        %v8506 = vld [vmem:[#allocation5 + $0x3a0] sm:$0xff]
        %v8507 = vld [vmem:[#allocation5 + $0x3a8] sm:$0xff]
        %v8508 = vld [vmem:[#allocation5 + $0x3b0] sm:$0xff]
        %v8509 = vld [vmem:[#allocation5 + $0x3b8] sm:$0xff]
        %v8510 = vld [vmem:[#allocation5 + $0x3c0] sm:$0xff]
        %v8511 = vld [vmem:[#allocation5 + $0x3c8] sm:$0xff]
        %v8512 = vld [vmem:[#allocation5 + $0x3d0] sm:$0xff]
        %v8513 = vld [vmem:[#allocation5 + $0x3d8] sm:$0xff]
        %v8514 = vld [vmem:[#allocation5 + $0x3e0] sm:$0xff]
        %v8515 = vld [vmem:[#allocation5 + $0x3e8] sm:$0xff]
        %v8516 = vld [vmem:[#allocation5 + $0x3f0] sm:$0xff]
        %v8517 = vld [vmem:[#allocation5 + $0x3f8] sm:$0xff]
        %v8518 = vld [vmem:[#allocation5 + $0x400] sm:$0xff]
        %v8519 = vld [vmem:[#allocation5 + $0x408] sm:$0xff]
        %v8520 = vld [vmem:[#allocation5 + $0x410] sm:$0xff]
        %v8521 = vld [vmem:[#allocation5 + $0x418] sm:$0xff]
        %v8522 = vld [vmem:[#allocation5 + $0x420] sm:$0xff]
        %v8523 = vld [vmem:[#allocation5 + $0x428] sm:$0xff]
        %v8524 = vld [vmem:[#allocation5 + $0x430] sm:$0xff]
        %v8525 = vld [vmem:[#allocation5 + $0x438] sm:$0xff]
        %v8526 = vld [vmem:[#allocation5 + $0x440] sm:$0xff]
        %v8527 = vld [vmem:[#allocation5 + $0x448] sm:$0xff]
        %v8528 = vld [vmem:[#allocation5 + $0x450] sm:$0xff]
        %v8529 = vld [vmem:[#allocation5 + $0x458] sm:$0xff]
        %v8530 = vld [vmem:[#allocation5 + $0x460] sm:$0xff]
        %v8531 = vld [vmem:[#allocation5 + $0x468] sm:$0xff]
        %v8532 = vld [vmem:[#allocation5 + $0x470] sm:$0xff]
        %v8533 = vld [vmem:[#allocation5 + $0x478] sm:$0xff]
        %v8534 = vld [vmem:[#allocation5 + $0x480] sm:$0xff]
        %v8535 = vld [vmem:[#allocation5 + $0x488] sm:$0xff]
        %v8536 = vld [vmem:[#allocation5 + $0x490] sm:$0xff]
        %v8537 = vld [vmem:[#allocation5 + $0x498] sm:$0xff]
        %v8538 = vld [vmem:[#allocation5 + $0x4a0] sm:$0xff]
        %v8539 = vld [vmem:[#allocation5 + $0x4a8] sm:$0xff]
        %v8540 = vld [vmem:[#allocation5 + $0x4b0] sm:$0xff]
        %v8541 = vld [vmem:[#allocation5 + $0x4b8] sm:$0xff]
        %v8542 = vld [vmem:[#allocation5 + $0x4c0] sm:$0xff]
        %v8543 = vld [vmem:[#allocation5 + $0x4c8] sm:$0xff]
        %v8544 = vld [vmem:[#allocation5 + $0x4d0] sm:$0xff]
        %v8545 = vld [vmem:[#allocation5 + $0x4d8] sm:$0xff]
        %v8546 = vld [vmem:[#allocation5 + $0x4e0] sm:$0xff]
        %v8547 = vld [vmem:[#allocation5 + $0x4e8] sm:$0xff]
        %v8548 = vld [vmem:[#allocation5 + $0x4f0] sm:$0xff]
        %v8549 = vld [vmem:[#allocation5 + $0x4f8] sm:$0xff]
        %v8550 = vld [vmem:[#allocation5 + $0x500] sm:$0xff]
        %v8551 = vld [vmem:[#allocation5 + $0x508] sm:$0xff]
        %v8552 = vld [vmem:[#allocation5 + $0x510] sm:$0xff]
        %v8553 = vld [vmem:[#allocation5 + $0x518] sm:$0xff]
        %v8554 = vld [vmem:[#allocation5 + $0x520] sm:$0xff]
        %v8555 = vld [vmem:[#allocation5 + $0x528] sm:$0xff]
        %v8556 = vld [vmem:[#allocation5 + $0x530] sm:$0xff]
        %v8557 = vld [vmem:[#allocation5 + $0x538] sm:$0xff]
        %v8558 = vld [vmem:[#allocation5 + $0x540] sm:$0xff]
        %v8559 = vld [vmem:[#allocation5 + $0x548] sm:$0xff]
        %v8560 = vld [vmem:[#allocation5 + $0x550] sm:$0xff]
        %v8561 = vld [vmem:[#allocation5 + $0x558] sm:$0xff]
        %v8562 = vld [vmem:[#allocation5 + $0x560] sm:$0xff]
        %v8563 = vld [vmem:[#allocation5 + $0x568] sm:$0xff]
        %v8564 = vld [vmem:[#allocation5 + $0x570] sm:$0xff]
        %v8565 = vld [vmem:[#allocation5 + $0x578] sm:$0xff]
        %v8566 = vld [vmem:[#allocation5 + $0x580] sm:$0xff]
        %v8567 = vld [vmem:[#allocation5 + $0x588] sm:$0xff]
        %v8568 = vld [vmem:[#allocation5 + $0x590] sm:$0xff]
        %v8569 = vld [vmem:[#allocation5 + $0x598] sm:$0xff]
        %v8570 = vld [vmem:[#allocation5 + $0x5a0] sm:$0xff]
        %v8571 = vld [vmem:[#allocation5 + $0x5a8] sm:$0xff]
        %v8572 = vld [vmem:[#allocation5 + $0x5b0] sm:$0xff]
        %v8573 = vld [vmem:[#allocation5 + $0x5b8] sm:$0xff]
        %v8574 = vld [vmem:[#allocation5 + $0x5c0] sm:$0xff]
        %v8575 = vld [vmem:[#allocation5 + $0x5c8] sm:$0xff]
        %v8576 = vld [vmem:[#allocation5 + $0x5d0] sm:$0xff]
        %v8577 = vld [vmem:[#allocation5 + $0x5d8] sm:$0xff]
        %v8578 = vld [vmem:[#allocation5 + $0x5e0] sm:$0xff]
        %v8579 = vld [vmem:[#allocation5 + $0x5e8] sm:$0xff]
        %v8580 = vld [vmem:[#allocation5 + $0x5f0] sm:$0xff]
        %v8581 = vld [vmem:[#allocation5 + $0x5f8] sm:$0xff]
        %v8582 = vld [vmem:[#allocation5 + $0x600] sm:$0xff]
        %v8583 = vld [vmem:[#allocation5 + $0x608] sm:$0xff]
        %v8584 = vld [vmem:[#allocation5 + $0x610] sm:$0xff]
        %v8585 = vld [vmem:[#allocation5 + $0x618] sm:$0xff]
        %v8586 = vld [vmem:[#allocation5 + $0x620] sm:$0xff]
        %v8587 = vld [vmem:[#allocation5 + $0x628] sm:$0xff]
        %v8588 = vld [vmem:[%s4] sm:$0x7]
        %8590 = vset.pattern.permute.xlu0 0
        %8591 = vperm.xlu0 %8590, %v8588
        %v8592 = vpop.permute.xlu0 %8591
        %v8595 = vcombine.high %v8389, %v8389
        %vm8596 = vcmask 130048
        %v8597 = vsel %vm8596, %v8595, 0
        %8599 = vmatprep.subr.mxu0 %v8391
        %8600 = vmatpush1.msra.mxu0 %v8390
        %8601 = vmatprep.subr.mxu0 %v8402
        %8602 = vmatpush1.msra.mxu0 %v8401
        %8603 = vmatprep.subr.mxu0 %v8413
        %8604 = vmatpush1.msra.mxu0 %v8412
        %8605 = vmatprep.subr.mxu0 %v8424
        %8606 = vmatpush1.msra.mxu0 %v8423
        %8607 = vmatprep.subr.mxu0 %v8435
        %8608 = vmatpush1.msra.mxu0 %v8434
        %8609 = vmatprep.subr.mxu0 %v8446
        %8610 = vmatpush1.msra.mxu0 %v8445
        %8611 = vmatprep.subr.mxu0 %v8457
        %8612 = vmatpush1.msra.mxu0 %v8456
        %8613 = vmatprep.subr.mxu0 %v8468
        %8614 = vmatpush1.msra.mxu0 %v8467
        %8615 = vmatprep.subr.mxu0 %v8479
        %8616 = vmatpush1.msra.mxu0 %v8478
        %8617 = vmatprep.subr.mxu0 %v8490
        %8618 = vmatpush1.msra.mxu0 %v8489
        %8619 = vmatprep.subr.mxu0 %v8501
        %8620 = vmatpush1.msra.mxu0 %v8500
        %8621 = vmatprep.subr.mxu0 %v8512
        %8622 = vmatpush1.msra.mxu0 %v8511
        %8623 = vmatprep.subr.mxu0 %v8523
        %8624 = vmatpush1.msra.mxu0 %v8522
        %8625 = vmatprep.subr.mxu0 %v8534
        %8626 = vmatpush1.msra.mxu0 %v8533
        %8627 = vmatprep.subr.mxu0 %v8545
        %8628 = vmatpush1.msra.mxu0 %v8544
        %8629 = vmatprep.subr.mxu0 %v8556
        %8630 = vmatpush1.msra.mxu0 %v8555
        %8631 = vmatprep.subr.mxu0 %v8567
        %8632 = vmatpush1.msra.mxu0 %v8566
        %8633 = vmatprep.subr.mxu0 %v8578
        %8634 = vmatpush1.msra.mxu0 %v8577
        %8635 = vmatprep.subr.mxu0 0.0
        %8636 = vmatpush1.msra.mxu0 0.0
        %8637 = vmatprep.subr.mxu0 0.0
        %8638 = vmatpush1.msra.mxu0 0.0
        %8639 = vmatprep.subr.mxu0 0.0
        %8640 = vmatpush1.msra.mxu0 0.0
        %8641 = vmatprep.subr.mxu0 0.0
        %8642 = vmatpush1.msra.mxu0 0.0
        %8643 = vmatprep.subr.mxu0 0.0
        %8644 = vmatpush1.msra.mxu0 0.0
        %8645 = vmatprep.subr.mxu0 0.0
        %8646 = vmatpush1.msra.mxu0 0.0
        %8647 = vmatprep.subr.mxu0 0.0
        %8648 = vmatpush1.msra.mxu0 0.0
        %8649 = vmatprep.subr.mxu0 0.0
        %8650 = vmatpush1.msra.mxu0 0.0
        %8651 = vmatprep.subr.mxu0 0.0
        %8652 = vmatpush1.msra.mxu0 0.0
        %8653 = vmatprep.subr.mxu0 0.0
        %8654 = vmatpush1.msra.mxu0 0.0
        %8655 = vmatprep.subr.mxu0 0.0
        %8656 = vmatpush1.msra.mxu0 0.0
        %8657 = vmatprep.subr.mxu0 0.0
        %8658 = vmatpush1.msra.mxu0 0.0
        %8659 = vmatprep.subr.mxu0 0.0
        %8660 = vmatpush1.msra.mxu0 0.0
        %8661 = vmatprep.subr.mxu0 0.0
        %8662 = vmatpush1.msra.mxu0 0.0
        %8663 = vmatprep.mubr.f32.mxu0 %v8597
        %8664 = vmatmul.mubr.f32.gmra.mrb[0].mxu0 %v8389
        %v8665 = vpop.f32.mrb[0].mxu0
        %v8666 = vadd.f32 %v8592, %v8665
        %v8667 = vpop.f32.mrb[0].mxu0
        %v8668 = vadd.f32 %v8592, %v8667
        %8669 = vdwg.mxu0
        %8670 = vmatprep.subr.mxu0 %v8393
        %8671 = vmatpush1.msra.mxu0 %v8392
        %8672 = vmatprep.subr.mxu0 %v8404
        %8673 = vmatpush1.msra.mxu0 %v8403
        %8674 = vmatprep.subr.mxu0 %v8415
        %8675 = vmatpush1.msra.mxu0 %v8414
        %8676 = vmatprep.subr.mxu0 %v8426
        %8677 = vmatpush1.msra.mxu0 %v8425
        %8678 = vmatprep.subr.mxu0 %v8437
        %8679 = vmatpush1.msra.mxu0 %v8436
        %8680 = vmatprep.subr.mxu0 %v8448
        %8681 = vmatpush1.msra.mxu0 %v8447
        %8682 = vmatprep.subr.mxu0 %v8459
        %8683 = vmatpush1.msra.mxu0 %v8458
        %8684 = vmatprep.subr.mxu0 %v8470
        %8685 = vmatpush1.msra.mxu0 %v8469
        %8686 = vmatprep.subr.mxu0 %v8481
        %8687 = vmatpush1.msra.mxu0 %v8480
        %8688 = vmatprep.subr.mxu0 %v8492
        %8689 = vmatpush1.msra.mxu0 %v8491
        %8690 = vmatprep.subr.mxu0 %v8503
        %8691 = vmatpush1.msra.mxu0 %v8502
        %8692 = vmatprep.subr.mxu0 %v8514
        %8693 = vmatpush1.msra.mxu0 %v8513
        %8694 = vmatprep.subr.mxu0 %v8525
        %8695 = vmatpush1.msra.mxu0 %v8524
        %8696 = vmatprep.subr.mxu0 %v8536
        %8697 = vmatpush1.msra.mxu0 %v8535
        %8698 = vmatprep.subr.mxu0 %v8547
        %8699 = vmatpush1.msra.mxu0 %v8546
        %8700 = vmatprep.subr.mxu0 %v8558
        %8701 = vmatpush1.msra.mxu0 %v8557
        %8702 = vmatprep.subr.mxu0 %v8569
        %8703 = vmatpush1.msra.mxu0 %v8568
        %8704 = vmatprep.subr.mxu0 %v8580
        %8705 = vmatpush1.msra.mxu0 %v8579
        %8706 = vmatprep.subr.mxu0 0.0
        %8707 = vmatpush1.msra.mxu0 0.0
        %8708 = vmatprep.subr.mxu0 0.0
        %8709 = vmatpush1.msra.mxu0 0.0
        %8710 = vmatprep.subr.mxu0 0.0
        %8711 = vmatpush1.msra.mxu0 0.0
        %8712 = vmatprep.subr.mxu0 0.0
        %8713 = vmatpush1.msra.mxu0 0.0
        %8714 = vmatprep.subr.mxu0 0.0
        %8715 = vmatpush1.msra.mxu0 0.0
        %8716 = vmatprep.subr.mxu0 0.0
        %8717 = vmatpush1.msra.mxu0 0.0
        %8718 = vmatprep.subr.mxu0 0.0
        %8719 = vmatpush1.msra.mxu0 0.0
        %8720 = vmatprep.subr.mxu0 0.0
        %8721 = vmatpush1.msra.mxu0 0.0
        %8722 = vmatprep.subr.mxu0 0.0
        %8723 = vmatpush1.msra.mxu0 0.0
        %8724 = vmatprep.subr.mxu0 0.0
        %8725 = vmatpush1.msra.mxu0 0.0
        %8726 = vmatprep.subr.mxu0 0.0
        %8727 = vmatpush1.msra.mxu0 0.0
        %8728 = vmatprep.subr.mxu0 0.0
        %8729 = vmatpush1.msra.mxu0 0.0
        %8730 = vmatprep.subr.mxu0 0.0
        %8731 = vmatpush1.msra.mxu0 0.0
        %8732 = vmatprep.subr.mxu0 0.0
        %8733 = vmatpush1.msra.mxu0 0.0
        %8734 = vmatprep.mubr.f32.mxu0 %v8597
        %8735 = vmatmul.mubr.f32.gmra.mrb[0].mxu0 %v8389
        %v8736 = vpop.f32.mrb[0].mxu0
        %v8737 = vadd.f32 %v8592, %v8736
        %v8738 = vpop.f32.mrb[0].mxu0
        %v8739 = vadd.f32 %v8592, %v8738
        %8740 = vdwg.mxu0
        %8741 = vmatprep.subr.mxu0 %v8395
        %8742 = vmatpush1.msra.mxu0 %v8394
        %8743 = vmatprep.subr.mxu0 %v8406
        %8744 = vmatpush1.msra.mxu0 %v8405
        %8745 = vmatprep.subr.mxu0 %v8417
        %8746 = vmatpush1.msra.mxu0 %v8416
        %8747 = vmatprep.subr.mxu0 %v8428
        %8748 = vmatpush1.msra.mxu0 %v8427
        %8749 = vmatprep.subr.mxu0 %v8439
        %8750 = vmatpush1.msra.mxu0 %v8438
        %8751 = vmatprep.subr.mxu0 %v8450
        %8752 = vmatpush1.msra.mxu0 %v8449
        %8753 = vmatprep.subr.mxu0 %v8461
        %8754 = vmatpush1.msra.mxu0 %v8460
        %8755 = vmatprep.subr.mxu0 %v8472
        %8756 = vmatpush1.msra.mxu0 %v8471
        %8757 = vmatprep.subr.mxu0 %v8483
        %8758 = vmatpush1.msra.mxu0 %v8482
        %8759 = vmatprep.subr.mxu0 %v8494
        %8760 = vmatpush1.msra.mxu0 %v8493
        %8761 = vmatprep.subr.mxu0 %v8505
        %8762 = vmatpush1.msra.mxu0 %v8504
        %8763 = vmatprep.subr.mxu0 %v8516
        %8764 = vmatpush1.msra.mxu0 %v8515
        %8765 = vmatprep.subr.mxu0 %v8527
        %8766 = vmatpush1.msra.mxu0 %v8526
        %8767 = vmatprep.subr.mxu0 %v8538
        %8768 = vmatpush1.msra.mxu0 %v8537
        %8769 = vmatprep.subr.mxu0 %v8549
        %8770 = vmatpush1.msra.mxu0 %v8548
        %8771 = vmatprep.subr.mxu0 %v8560
        %8772 = vmatpush1.msra.mxu0 %v8559
        %8773 = vmatprep.subr.mxu0 %v8571
        %8774 = vmatpush1.msra.mxu0 %v8570
        %8775 = vmatprep.subr.mxu0 %v8582
        %8776 = vmatpush1.msra.mxu0 %v8581
        %8777 = vmatprep.subr.mxu0 0.0
        %8778 = vmatpush1.msra.mxu0 0.0
        %8779 = vmatprep.subr.mxu0 0.0
        %8780 = vmatpush1.msra.mxu0 0.0
        %8781 = vmatprep.subr.mxu0 0.0
        %8782 = vmatpush1.msra.mxu0 0.0
        %8783 = vmatprep.subr.mxu0 0.0
        %8784 = vmatpush1.msra.mxu0 0.0
        %8785 = vmatprep.subr.mxu0 0.0
        %8786 = vmatpush1.msra.mxu0 0.0
        %8787 = vmatprep.subr.mxu0 0.0
        %8788 = vmatpush1.msra.mxu0 0.0
        %8789 = vmatprep.subr.mxu0 0.0
        %8790 = vmatpush1.msra.mxu0 0.0
        %8791 = vmatprep.subr.mxu0 0.0
        %8792 = vmatpush1.msra.mxu0 0.0
        %8793 = vmatprep.subr.mxu0 0.0
        %8794 = vmatpush1.msra.mxu0 0.0
        %8795 = vmatprep.subr.mxu0 0.0
        %8796 = vmatpush1.msra.mxu0 0.0
        %8797 = vmatprep.subr.mxu0 0.0
        %8798 = vmatpush1.msra.mxu0 0.0
        %8799 = vmatprep.subr.mxu0 0.0
        %8800 = vmatpush1.msra.mxu0 0.0
        %8801 = vmatprep.subr.mxu0 0.0
        %8802 = vmatpush1.msra.mxu0 0.0
        %8803 = vmatprep.subr.mxu0 0.0
        %8804 = vmatpush1.msra.mxu0 0.0
        %8805 = vmatprep.mubr.f32.mxu0 %v8597
        %8806 = vmatmul.mubr.f32.gmra.mrb[0].mxu0 %v8389
        %v8807 = vpop.f32.mrb[0].mxu0
        %v8808 = vadd.f32 %v8592, %v8807
        %v8809 = vpop.f32.mrb[0].mxu0
        %v8810 = vadd.f32 %v8592, %v8809
        %8811 = vdwg.mxu0
        %8812 = vmatprep.subr.mxu0 %v8397
        %8813 = vmatpush1.msra.mxu0 %v8396
        %8814 = vmatprep.subr.mxu0 %v8408
        %8815 = vmatpush1.msra.mxu0 %v8407
        %8816 = vmatprep.subr.mxu0 %v8419
        %8817 = vmatpush1.msra.mxu0 %v8418
        %8818 = vmatprep.subr.mxu0 %v8430
        %8819 = vmatpush1.msra.mxu0 %v8429
        %8820 = vmatprep.subr.mxu0 %v8441
        %8821 = vmatpush1.msra.mxu0 %v8440
        %8822 = vmatprep.subr.mxu0 %v8452
        %8823 = vmatpush1.msra.mxu0 %v8451
        %8824 = vmatprep.subr.mxu0 %v8463
        %8825 = vmatpush1.msra.mxu0 %v8462
        %8826 = vmatprep.subr.mxu0 %v8474
        %8827 = vmatpush1.msra.mxu0 %v8473
        %8828 = vmatprep.subr.mxu0 %v8485
        %8829 = vmatpush1.msra.mxu0 %v8484
        %8830 = vmatprep.subr.mxu0 %v8496
        %8831 = vmatpush1.msra.mxu0 %v8495
        %8832 = vmatprep.subr.mxu0 %v8507
        %8833 = vmatpush1.msra.mxu0 %v8506
        %8834 = vmatprep.subr.mxu0 %v8518
        %8835 = vmatpush1.msra.mxu0 %v8517
        %8836 = vmatprep.subr.mxu0 %v8529
        %8837 = vmatpush1.msra.mxu0 %v8528
        %8838 = vmatprep.subr.mxu0 %v8540
        %8839 = vmatpush1.msra.mxu0 %v8539
        %8840 = vmatprep.subr.mxu0 %v8551
        %8841 = vmatpush1.msra.mxu0 %v8550
        %8842 = vmatprep.subr.mxu0 %v8562
        %8843 = vmatpush1.msra.mxu0 %v8561
        %8844 = vmatprep.subr.mxu0 %v8573
        %8845 = vmatpush1.msra.mxu0 %v8572
        %8846 = vmatprep.subr.mxu0 %v8584
        %8847 = vmatpush1.msra.mxu0 %v8583
        %8848 = vmatprep.subr.mxu0 0.0
        %8849 = vmatpush1.msra.mxu0 0.0
        %8850 = vmatprep.subr.mxu0 0.0
        %8851 = vmatpush1.msra.mxu0 0.0
        %8852 = vmatprep.subr.mxu0 0.0
        %8853 = vmatpush1.msra.mxu0 0.0
        %8854 = vmatprep.subr.mxu0 0.0
        %8855 = vmatpush1.msra.mxu0 0.0
        %8856 = vmatprep.subr.mxu0 0.0
        %8857 = vmatpush1.msra.mxu0 0.0
        %8858 = vmatprep.subr.mxu0 0.0
        %8859 = vmatpush1.msra.mxu0 0.0
        %8860 = vmatprep.subr.mxu0 0.0
        %8861 = vmatpush1.msra.mxu0 0.0
        %8862 = vmatprep.subr.mxu0 0.0
        %8863 = vmatpush1.msra.mxu0 0.0
        %8864 = vmatprep.subr.mxu0 0.0
        %8865 = vmatpush1.msra.mxu0 0.0
        %8866 = vmatprep.subr.mxu0 0.0
        %8867 = vmatpush1.msra.mxu0 0.0
        %8868 = vmatprep.subr.mxu0 0.0
        %8869 = vmatpush1.msra.mxu0 0.0
        %8870 = vmatprep.subr.mxu0 0.0
        %8871 = vmatpush1.msra.mxu0 0.0
        %8872 = vmatprep.subr.mxu0 0.0
        %8873 = vmatpush1.msra.mxu0 0.0
        %8874 = vmatprep.subr.mxu0 0.0
        %8875 = vmatpush1.msra.mxu0 0.0
        %8876 = vmatprep.mubr.f32.mxu0 %v8597
        %8877 = vmatmul.mubr.f32.gmra.mrb[0].mxu0 %v8389
        %v8878 = vpop.f32.mrb[0].mxu0
        %v8879 = vadd.f32 %v8592, %v8878
        %v8880 = vpop.f32.mrb[0].mxu0
        %v8881 = vadd.f32 %v8592, %v8880
        %8882 = vdwg.mxu0
        %8883 = vmatprep.subr.mxu0 %v8399
        %8884 = vmatpush1.msra.mxu0 %v8398
        %8885 = vmatprep.subr.mxu0 %v8410
        %8886 = vmatpush1.msra.mxu0 %v8409
        %8887 = vmatprep.subr.mxu0 %v8421
        %8888 = vmatpush1.msra.mxu0 %v8420
        %8889 = vmatprep.subr.mxu0 %v8432
        %8890 = vmatpush1.msra.mxu0 %v8431
        %8891 = vmatprep.subr.mxu0 %v8443
        %8892 = vmatpush1.msra.mxu0 %v8442
        %8893 = vmatprep.subr.mxu0 %v8454
        %8894 = vmatpush1.msra.mxu0 %v8453
        %8895 = vmatprep.subr.mxu0 %v8465
        %8896 = vmatpush1.msra.mxu0 %v8464
        %8897 = vmatprep.subr.mxu0 %v8476
        %8898 = vmatpush1.msra.mxu0 %v8475
        %8899 = vmatprep.subr.mxu0 %v8487
        %8900 = vmatpush1.msra.mxu0 %v8486
        %8901 = vmatprep.subr.mxu0 %v8498
        %8902 = vmatpush1.msra.mxu0 %v8497
        %8903 = vmatprep.subr.mxu0 %v8509
        %8904 = vmatpush1.msra.mxu0 %v8508
        %8905 = vmatprep.subr.mxu0 %v8520
        %8906 = vmatpush1.msra.mxu0 %v8519
        %8907 = vmatprep.subr.mxu0 %v8531
        %8908 = vmatpush1.msra.mxu0 %v8530
        %8909 = vmatprep.subr.mxu0 %v8542
        %8910 = vmatpush1.msra.mxu0 %v8541
        %8911 = vmatprep.subr.mxu0 %v8553
        %8912 = vmatpush1.msra.mxu0 %v8552
        %8913 = vmatprep.subr.mxu0 %v8564
        %8914 = vmatpush1.msra.mxu0 %v8563
        %8915 = vmatprep.subr.mxu0 %v8575
        %8916 = vmatpush1.msra.mxu0 %v8574
        %8917 = vmatprep.subr.mxu0 %v8586
        %8918 = vmatpush1.msra.mxu0 %v8585
        %8919 = vmatprep.subr.mxu0 0.0
        %8920 = vmatpush1.msra.mxu0 0.0
        %8921 = vmatprep.subr.mxu0 0.0
        %8922 = vmatpush1.msra.mxu0 0.0
        %8923 = vmatprep.subr.mxu0 0.0
        %8924 = vmatpush1.msra.mxu0 0.0
        %8925 = vmatprep.subr.mxu0 0.0
        %8926 = vmatpush1.msra.mxu0 0.0
        %8927 = vmatprep.subr.mxu0 0.0
        %8928 = vmatpush1.msra.mxu0 0.0
        %8929 = vmatprep.subr.mxu0 0.0
        %8930 = vmatpush1.msra.mxu0 0.0
        %8931 = vmatprep.subr.mxu0 0.0
        %8932 = vmatpush1.msra.mxu0 0.0
        %8933 = vmatprep.subr.mxu0 0.0
        %8934 = vmatpush1.msra.mxu0 0.0
        %8935 = vmatprep.subr.mxu0 0.0
        %8936 = vmatpush1.msra.mxu0 0.0
        %8937 = vmatprep.subr.mxu0 0.0
        %8938 = vmatpush1.msra.mxu0 0.0
        %8939 = vmatprep.subr.mxu0 0.0
        %8940 = vmatpush1.msra.mxu0 0.0
        %8941 = vmatprep.subr.mxu0 0.0
        %8942 = vmatpush1.msra.mxu0 0.0
        %8943 = vmatprep.subr.mxu0 0.0
        %8944 = vmatpush1.msra.mxu0 0.0
        %8945 = vmatprep.subr.mxu0 0.0
        %8946 = vmatpush1.msra.mxu0 0.0
        %8947 = vmatprep.mubr.f32.mxu0 %v8597
        %8948 = vmatmul.mubr.f32.gmra.mrb[0].mxu0 %v8389
        %v8949 = vpop.f32.mrb[0].mxu0
        %v8950 = vadd.f32 %v8592, %v8949
        %v8951 = vpop.f32.mrb[0].mxu0
        %v8952 = vadd.f32 %v8592, %v8951
        %8953 = vdwg.mxu0
        %8954 = vmatprep.subr.mxu0 0.0
        %8955 = vmatpush1.msra.mxu0 %v8400
        %8956 = vmatprep.subr.mxu0 0.0
        %8957 = vmatpush1.msra.mxu0 %v8411
        %8958 = vmatprep.subr.mxu0 0.0
        %8959 = vmatpush1.msra.mxu0 %v8422
        %8960 = vmatprep.subr.mxu0 0.0
        %8961 = vmatpush1.msra.mxu0 %v8433
        %8962 = vmatprep.subr.mxu0 0.0
        %8963 = vmatpush1.msra.mxu0 %v8444
        %8964 = vmatprep.subr.mxu0 0.0
        %8965 = vmatpush1.msra.mxu0 %v8455
        %8966 = vmatprep.subr.mxu0 0.0
        %8967 = vmatpush1.msra.mxu0 %v8466
        %8968 = vmatprep.subr.mxu0 0.0
        %8969 = vmatpush1.msra.mxu0 %v8477
        %8970 = vmatprep.subr.mxu0 0.0
        %8971 = vmatpush1.msra.mxu0 %v8488
        %8972 = vmatprep.subr.mxu0 0.0
        %8973 = vmatpush1.msra.mxu0 %v8499
        %8974 = vmatprep.subr.mxu0 0.0
        %8975 = vmatpush1.msra.mxu0 %v8510
        %8976 = vmatprep.subr.mxu0 0.0
        %8977 = vmatpush1.msra.mxu0 %v8521
        %8978 = vmatprep.subr.mxu0 0.0
        %8979 = vmatpush1.msra.mxu0 %v8532
        %8980 = vmatprep.subr.mxu0 0.0
        %8981 = vmatpush1.msra.mxu0 %v8543
        %8982 = vmatprep.subr.mxu0 0.0
        %8983 = vmatpush1.msra.mxu0 %v8554
        %8984 = vmatprep.subr.mxu0 0.0
        %8985 = vmatpush1.msra.mxu0 %v8565
        %8986 = vmatprep.subr.mxu0 0.0
        %8987 = vmatpush1.msra.mxu0 %v8576
        %8988 = vmatprep.subr.mxu0 0.0
        %8989 = vmatpush1.msra.mxu0 %v8587
        %8990 = vmatprep.subr.mxu0 0.0
        %8991 = vmatpush1.msra.mxu0 0.0
        %8992 = vmatprep.subr.mxu0 0.0
        %8993 = vmatpush1.msra.mxu0 0.0
        %8994 = vmatprep.subr.mxu0 0.0
        %8995 = vmatpush1.msra.mxu0 0.0
        %8996 = vmatprep.subr.mxu0 0.0
        %8997 = vmatpush1.msra.mxu0 0.0
        %8998 = vmatprep.subr.mxu0 0.0
        %8999 = vmatpush1.msra.mxu0 0.0
        %9000 = vmatprep.subr.mxu0 0.0
        %9001 = vmatpush1.msra.mxu0 0.0
        %9002 = vmatprep.subr.mxu0 0.0
        %9003 = vmatpush1.msra.mxu0 0.0
        %9004 = vmatprep.subr.mxu0 0.0
        %9005 = vmatpush1.msra.mxu0 0.0
        %9006 = vmatprep.subr.mxu0 0.0
        %9007 = vmatpush1.msra.mxu0 0.0
        %9008 = vmatprep.subr.mxu0 0.0
        %9009 = vmatpush1.msra.mxu0 0.0
        %9010 = vmatprep.subr.mxu0 0.0
        %9011 = vmatpush1.msra.mxu0 0.0
        %9012 = vmatprep.subr.mxu0 0.0
        %9013 = vmatpush1.msra.mxu0 0.0
        %9014 = vmatprep.subr.mxu0 0.0
        %9015 = vmatpush1.msra.mxu0 0.0
        %9016 = vmatprep.subr.mxu0 0.0
        %9017 = vmatpush1.msra.mxu0 0.0
        %9018 = vmatprep.mubr.f32.mxu0 %v8597
        %9019 = vmatmul.mubr.f32.gmra.mrb[0].mxu0 %v8389
        %v9020 = vpop.f32.mrb[0].mxu0
        %v9021 = vadd.f32 %v8592, %v9020
        %v9022 = vpop.f32.mrb[0].mxu0
        %9023 = vdwg.mxu0
        %v9024 = vmax.f32 %v8666, 0.0
        %v9025 = vmax.f32 %v8668, 0.0
        %v9026 = vmax.f32 %v8737, 0.0
        %v9027 = vmax.f32 %v8739, 0.0
        %v9028 = vmax.f32 %v8808, 0.0
        %v9029 = vmax.f32 %v8810, 0.0
        %v9030 = vmax.f32 %v8879, 0.0
        %v9031 = vmax.f32 %v8881, 0.0
        %v9032 = vmax.f32 %v8950, 0.0
        %v9033 = vmax.f32 %v8952, 0.0
        %v9034 = vmax.f32 %v9021, 0.0
        %v9046 = vcombine.low %v9024, %v9025
        %v9047 = vcombine.low %v9026, %v9027
        %v9048 = vcombine.low %v9028, %v9029
        %v9049 = vcombine.low %v9030, %v9031
        %v9050 = vcombine.low %v9032, %v9033
        %9051 = vrot.lane.b32.xlu0 %v9046, 64
        %v9052 = vpop.permute.xlu0 %9051
        %9053 = vrot.lane.b32.xlu0 %v9047, 64
        %v9054 = vpop.permute.xlu0 %9053
        %9055 = vrot.lane.b32.xlu0 %v9048, 64
        %v9056 = vpop.permute.xlu0 %9055
        %9057 = vrot.lane.b32.xlu0 %v9049, 64
        %v9058 = vpop.permute.xlu0 %9057
        %9059 = vrot.lane.b32.xlu0 %v9050, 64
        %v9060 = vpop.permute.xlu0 %9059
        %9061 = vrot.lane.b32.xlu0 %v9034, 64
        %v9062 = vpop.permute.xlu0 %9061
        %v9063 = vrot.slane %v9052, 4
        %v9064 = vrot.slane %v9054, 4
        %v9065 = vrot.slane %v9056, 4
        %v9066 = vrot.slane %v9058, 4
        %v9067 = vrot.slane %v9060, 4
        %v9068 = vrot.slane %v9062, 4
        %v9069 = vsel %vm332, %v9063, %v9052
        %v9070 = vsel %vm423, %v9063, %v9064
        %v9071 = vsel %vm332, %v9070, %v9054
        %v9072 = vsel %vm423, %v9064, %v9065
        %v9073 = vsel %vm332, %v9072, %v9056
        %v9074 = vsel %vm423, %v9065, %v9066
        %v9075 = vsel %vm332, %v9074, %v9058
        %v9076 = vsel %vm423, %v9066, %v9067
        %v9077 = vsel %vm332, %v9076, %v9060
        %v9078 = vsel %vm423, %v9067, %v9068
        %v9079 = vsel %vm332, %v9078, %v9062
        %vm9086 = vcmask 1046532
        %vm9087 = vmor %vm9086, %vm344
        %9088 = vst.msk [vmem:[#allocation4] sm:$0x77] %vm9087, %v9069
        %9089 = vst [vmem:[#allocation4 + $0x8] sm:$0x77] %v9071
        %9090 = vst [vmem:[#allocation4 + $0x10] sm:$0x77] %v9073
        %9091 = vst [vmem:[#allocation4 + $0x18] sm:$0x77] %v9075
        %9092 = vst [vmem:[#allocation4 + $0x20] sm:$0x77] %v9077
        %vm9093 = vcmask 522244
        %vm9094 = vmor %vm9093, %vm506
        %9095 = vst.msk [vmem:[#allocation4 + $0x28] sm:$0x77] %vm9094, %v9079
        %v9096 = vld [vmem:[#allocation4] sm:$0x77]
        %v9097 = vld [vmem:[#allocation4 + $0x8] sm:$0x77]
        %v9098 = vld [vmem:[#allocation4 + $0x10] sm:$0x77]
        %v9099 = vld [vmem:[#allocation4 + $0x18] sm:$0x77]
        %v9100 = vld [vmem:[#allocation4 + $0x20] sm:$0x77]
        %v9101 = vld [vmem:[#allocation4 + $0x28] sm:$0x77]
        %v9108 = vcombine.high %v9096, %v9096
        %v9109 = vcombine.high %v9097, %v9097
        %v9110 = vcombine.high %v9098, %v9098
        %v9111 = vcombine.high %v9099, %v9099
        %v9112 = vcombine.high %v9100, %v9100
        %v9113 = vcombine.high %v9101, %v9101
        %9114 = vrot.lane.b32.xlu0 %v9096, 62
        %v9115 = vpop.permute.xlu0 %9114
        %9116 = vrot.lane.b32.xlu0 %v9108, 62
        %v9117 = vpop.permute.xlu0 %9116
        %9118 = vrot.lane.b32.xlu0 %v9097, 62
        %v9119 = vpop.permute.xlu0 %9118
        %9120 = vrot.lane.b32.xlu0 %v9109, 62
        %v9121 = vpop.permute.xlu0 %9120
        %9122 = vrot.lane.b32.xlu0 %v9098, 62
        %v9123 = vpop.permute.xlu0 %9122
        %9124 = vrot.lane.b32.xlu0 %v9110, 62
        %v9125 = vpop.permute.xlu0 %9124
        %9126 = vrot.lane.b32.xlu0 %v9099, 62
        %v9127 = vpop.permute.xlu0 %9126
        %9128 = vrot.lane.b32.xlu0 %v9111, 62
        %v9129 = vpop.permute.xlu0 %9128
        %9130 = vrot.lane.b32.xlu0 %v9100, 62
        %v9131 = vpop.permute.xlu0 %9130
        %9132 = vrot.lane.b32.xlu0 %v9112, 62
        %v9133 = vpop.permute.xlu0 %9132
        %9134 = vrot.lane.b32.xlu0 %v9101, 62
        %v9135 = vpop.permute.xlu0 %9134
        %9136 = vrot.lane.b32.xlu0 %v9113, 62
        %v9137 = vpop.permute.xlu0 %9136
        %v9138 = vsel %vm7328, %v9115, %v9117
        %v9139 = vsel %vm7328, %v9117, %v9119
        %v9140 = vsel %vm7328, %v9119, %v9121
        %v9141 = vsel %vm7328, %v9121, %v9123
        %v9142 = vsel %vm7328, %v9123, %v9125
        %v9143 = vsel %vm7328, %v9125, %v9127
        %v9144 = vsel %vm7328, %v9127, %v9129
        %v9145 = vsel %vm7328, %v9129, %v9131
        %v9146 = vsel %vm7328, %v9131, %v9133
        %v9147 = vsel %vm7328, %v9133, %v9135
        %v9148 = vsel %vm7328, %v9135, %v9137
        %v9160 = vmax.f32 %v9024, %v9138
        %v9161 = vmax.f32 %v9025, %v9139
        %v9162 = vmax.f32 %v9026, %v9140
        %v9163 = vmax.f32 %v9027, %v9141
        %v9164 = vmax.f32 %v9028, %v9142
        %v9165 = vmax.f32 %v9029, %v9143
        %v9166 = vmax.f32 %v9030, %v9144
        %v9167 = vmax.f32 %v9031, %v9145
        %v9168 = vmax.f32 %v9032, %v9146
        %v9169 = vmax.f32 %v9033, %v9147
        %v9170 = vmax.f32 %v9034, %v9148
        %9171 = vrot.lane.b32.xlu0 %v9096, 32
        %v9172 = vpop.permute.xlu0 %9171
        %9173 = vrot.lane.b32.xlu0 %v9108, 32
        %v9174 = vpop.permute.xlu0 %9173
        %9175 = vrot.lane.b32.xlu0 %v9097, 32
        %v9176 = vpop.permute.xlu0 %9175
        %9177 = vrot.lane.b32.xlu0 %v9109, 32
        %v9178 = vpop.permute.xlu0 %9177
        %9179 = vrot.lane.b32.xlu0 %v9098, 32
        %v9180 = vpop.permute.xlu0 %9179
        %9181 = vrot.lane.b32.xlu0 %v9110, 32
        %v9182 = vpop.permute.xlu0 %9181
        %9183 = vrot.lane.b32.xlu0 %v9099, 32
        %v9184 = vpop.permute.xlu0 %9183
        %9185 = vrot.lane.b32.xlu0 %v9111, 32
        %v9186 = vpop.permute.xlu0 %9185
        %9187 = vrot.lane.b32.xlu0 %v9100, 32
        %v9188 = vpop.permute.xlu0 %9187
        %9189 = vrot.lane.b32.xlu0 %v9112, 32
        %v9190 = vpop.permute.xlu0 %9189
        %9191 = vrot.lane.b32.xlu0 %v9101, 32
        %v9192 = vpop.permute.xlu0 %9191
        %9193 = vrot.lane.b32.xlu0 %v9113, 32
        %v9194 = vpop.permute.xlu0 %9193
        %v9195 = vsel %vm8092, %v9172, %v9174
        %v9196 = vsel %vm8092, %v9174, %v9176
        %v9197 = vsel %vm8092, %v9176, %v9178
        %v9198 = vsel %vm8092, %v9178, %v9180
        %v9199 = vsel %vm8092, %v9180, %v9182
        %v9200 = vsel %vm8092, %v9182, %v9184
        %v9201 = vsel %vm8092, %v9184, %v9186
        %v9202 = vsel %vm8092, %v9186, %v9188
        %v9203 = vsel %vm8092, %v9188, %v9190
        %v9204 = vsel %vm8092, %v9190, %v9192
        %v9205 = vsel %vm8092, %v9192, %v9194
        %v9217 = vmax.f32 %v9160, %v9195
        %v9218 = vmax.f32 %v9161, %v9196
        %v9219 = vmax.f32 %v9162, %v9197
        %v9220 = vmax.f32 %v9163, %v9198
        %v9221 = vmax.f32 %v9164, %v9199
        %v9222 = vmax.f32 %v9165, %v9200
        %v9223 = vmax.f32 %v9166, %v9201
        %v9224 = vmax.f32 %v9167, %v9202
        %v9225 = vmax.f32 %v9168, %v9203
        %v9226 = vmax.f32 %v9169, %v9204
        %v9227 = vmax.f32 %v9170, %v9205
        %9228 = vrot.lane.b32.xlu0 %v9096, 30
        %v9229 = vpop.permute.xlu0 %9228
        %9230 = vrot.lane.b32.xlu0 %v9108, 30
        %v9231 = vpop.permute.xlu0 %9230
        %9232 = vrot.lane.b32.xlu0 %v9097, 30
        %v9233 = vpop.permute.xlu0 %9232
        %9234 = vrot.lane.b32.xlu0 %v9109, 30
        %v9235 = vpop.permute.xlu0 %9234
        %9236 = vrot.lane.b32.xlu0 %v9098, 30
        %v9237 = vpop.permute.xlu0 %9236
        %9238 = vrot.lane.b32.xlu0 %v9110, 30
        %v9239 = vpop.permute.xlu0 %9238
        %9240 = vrot.lane.b32.xlu0 %v9099, 30
        %v9241 = vpop.permute.xlu0 %9240
        %9242 = vrot.lane.b32.xlu0 %v9111, 30
        %v9243 = vpop.permute.xlu0 %9242
        %9244 = vrot.lane.b32.xlu0 %v9100, 30
        %v9245 = vpop.permute.xlu0 %9244
        %9246 = vrot.lane.b32.xlu0 %v9112, 30
        %v9247 = vpop.permute.xlu0 %9246
        %9248 = vrot.lane.b32.xlu0 %v9101, 30
        %v9249 = vpop.permute.xlu0 %9248
        %9250 = vrot.lane.b32.xlu0 %v9113, 30
        %v9251 = vpop.permute.xlu0 %9250
        %v9252 = vsel %vm6655, %v9229, %v9231
        %v9253 = vsel %vm6655, %v9231, %v9233
        %v9254 = vsel %vm6655, %v9233, %v9235
        %v9255 = vsel %vm6655, %v9235, %v9237
        %v9256 = vsel %vm6655, %v9237, %v9239
        %v9257 = vsel %vm6655, %v9239, %v9241
        %v9258 = vsel %vm6655, %v9241, %v9243
        %v9259 = vsel %vm6655, %v9243, %v9245
        %v9260 = vsel %vm6655, %v9245, %v9247
        %v9261 = vsel %vm6655, %v9247, %v9249
        %v9262 = vsel %vm6655, %v9249, %v9251
        %v9274 = vmax.f32 %v9217, %v9252
        %v9275 = vmax.f32 %v9218, %v9253
        %v9276 = vmax.f32 %v9219, %v9254
        %v9277 = vmax.f32 %v9220, %v9255
        %v9278 = vmax.f32 %v9221, %v9256
        %v9279 = vmax.f32 %v9222, %v9257
        %v9280 = vmax.f32 %v9223, %v9258
        %v9281 = vmax.f32 %v9224, %v9259
        %v9282 = vmax.f32 %v9225, %v9260
        %v9283 = vmax.f32 %v9226, %v9261
        %v9284 = vmax.f32 %v9227, %v9262
        %v9285 = vld [vmem:[%s5] sm:$0xff]
        %v9286 = vld [vmem:[%s5 + $0x8] sm:$0xff]
        %v9287 = vld [vmem:[%s5 + $0x10] sm:$0xff]
        %v9288 = vld [vmem:[%s5 + $0x18] sm:$0xff]
        %v9289 = vld [vmem:[%s5 + $0x20] sm:$0xff]
        %v9290 = vld [vmem:[%s5 + $0x28] sm:$0xff]
        %v9291 = vld [vmem:[%s5 + $0x30] sm:$0xff]
        %v9292 = vld [vmem:[%s5 + $0x38] sm:$0xff]
        %v9293 = vld [vmem:[%s5 + $0x40] sm:$0xff]
        %v9294 = vld [vmem:[%s5 + $0x48] sm:$0xff]
        %v9295 = vld [vmem:[%s5 + $0x50] sm:$0xff]
        %v9296 = vld [vmem:[%s5 + $0x58] sm:$0xff]
        %v9297 = vld [vmem:[%s5 + $0x60] sm:$0xff]
        %v9298 = vld [vmem:[%s5 + $0x68] sm:$0xff]
        %v9299 = vld [vmem:[%s5 + $0x70] sm:$0xff]
        %v9300 = vld [vmem:[%s5 + $0x78] sm:$0xff]
        %v9301 = vld [vmem:[%s5 + $0x80] sm:$0xff]
        %v9302 = vld [vmem:[%s5 + $0x88] sm:$0xff]
        %v9303 = vld [vmem:[%s5 + $0x90] sm:$0xff]
        %v9304 = vld [vmem:[%s5 + $0x98] sm:$0xff]
        %v9305 = vld [vmem:[%s5 + $0xa0] sm:$0xff]
        %v9306 = vld [vmem:[%s5 + $0xa8] sm:$0xff]
        %v9307 = vld [vmem:[%s5 + $0xb0] sm:$0xff]
        %v9308 = vld [vmem:[%s5 + $0xb8] sm:$0xff]
        %v9309 = vld [vmem:[%s5 + $0xc0] sm:$0xff]
        %v9310 = vld [vmem:[%s5 + $0xc8] sm:$0xff]
        %v9311 = vld [vmem:[%s5 + $0xd0] sm:$0xff]
        %v9312 = vld [vmem:[%s5 + $0xd8] sm:$0xff]
        %v9313 = vld [vmem:[%s5 + $0xe0] sm:$0xff]
        %v9314 = vld [vmem:[%s5 + $0xe8] sm:$0xff]
        %v9315 = vld [vmem:[%s5 + $0xf0] sm:$0xff]
        %v9316 = vld [vmem:[%s5 + $0xf8] sm:$0xff]
        %v9317 = vld [vmem:[%s5 + $0x100] sm:$0xff]
        %v9318 = vld [vmem:[%s5 + $0x108] sm:$0xff]
        %v9319 = vld [vmem:[%s5 + $0x110] sm:$0xff]
        %v9320 = vld [vmem:[%s5 + $0x118] sm:$0xff]
        %v9321 = vld [vmem:[%s5 + $0x120] sm:$0xff]
        %v9322 = vld [vmem:[%s5 + $0x128] sm:$0xff]
        %v9323 = vld [vmem:[%s5 + $0x130] sm:$0xff]
        %v9324 = vld [vmem:[%s5 + $0x138] sm:$0xff]
        %v9325 = vld [vmem:[%s5 + $0x140] sm:$0xff]
        %v9326 = vld [vmem:[%s5 + $0x148] sm:$0xff]
        %v9327 = vld [vmem:[%s5 + $0x150] sm:$0xff]
        %v9328 = vld [vmem:[%s5 + $0x158] sm:$0xff]
        %v9329 = vld [vmem:[%s5 + $0x160] sm:$0xff]
        %v9330 = vld [vmem:[%s5 + $0x168] sm:$0xff]
        %v9331 = vld [vmem:[%s5 + $0x170] sm:$0xff]
        %v9332 = vld [vmem:[%s5 + $0x178] sm:$0xff]
        %v9333 = vld [vmem:[%s5 + $0x180] sm:$0xff]
        %v9334 = vld [vmem:[%s5 + $0x188] sm:$0xff]
        %v9335 = vld [vmem:[%s5 + $0x190] sm:$0xff]
        %v9336 = vld [vmem:[%s5 + $0x198] sm:$0xff]
        %v9337 = vld [vmem:[%s5 + $0x1a0] sm:$0xff]
        %v9338 = vld [vmem:[%s5 + $0x1a8] sm:$0xff]
        %v9339 = vld [vmem:[%s5 + $0x1b0] sm:$0xff]
        %v9340 = vld [vmem:[%s5 + $0x1b8] sm:$0xff]
        %v9341 = vld [vmem:[%s5 + $0x1c0] sm:$0xff]
        %v9342 = vld [vmem:[%s5 + $0x1c8] sm:$0xff]
        %v9343 = vld [vmem:[%s5 + $0x1d0] sm:$0xff]
        %v9344 = vld [vmem:[%s5 + $0x1d8] sm:$0xff]
        %v9345 = vld [vmem:[%s5 + $0x1e0] sm:$0xff]
        %v9346 = vld [vmem:[%s5 + $0x1e8] sm:$0xff]
        %v9347 = vld [vmem:[%s5 + $0x1f0] sm:$0xff]
        %v9348 = vld [vmem:[%s5 + $0x1f8] sm:$0xff]
        %v9349 = vld [vmem:[%s5 + $0x200] sm:$0xff]
        %v9350 = vld [vmem:[%s5 + $0x208] sm:$0xff]
        %v9351 = vld [vmem:[%s5 + $0x210] sm:$0xff]
        %v9352 = vld [vmem:[%s5 + $0x218] sm:$0xff]
        %v9353 = vld [vmem:[%s5 + $0x220] sm:$0xff]
        %v9354 = vld [vmem:[%s5 + $0x228] sm:$0xff]
        %v9355 = vld [vmem:[%s5 + $0x230] sm:$0xff]
        %v9356 = vld [vmem:[%s5 + $0x238] sm:$0xff]
        %v9357 = vld [vmem:[%s5 + $0x240] sm:$0xff]
        %v9358 = vld [vmem:[%s5 + $0x248] sm:$0xff]
        %v9359 = vld [vmem:[%s5 + $0x250] sm:$0xff]
        %v9360 = vld [vmem:[%s5 + $0x258] sm:$0xff]
        %v9361 = vld [vmem:[%s5 + $0x260] sm:$0xff]
        %v9362 = vld [vmem:[%s5 + $0x268] sm:$0xff]
        %v9363 = vld [vmem:[%s5 + $0x270] sm:$0xff]
        %v9364 = vld [vmem:[%s5 + $0x278] sm:$0xff]
        %v9365 = vld [vmem:[%s5 + $0x280] sm:$0xff]
        %v9366 = vld [vmem:[%s5 + $0x288] sm:$0xff]
        %v9367 = vld [vmem:[%s5 + $0x290] sm:$0xff]
        %v9368 = vld [vmem:[%s5 + $0x298] sm:$0xff]
        %v9369 = vld [vmem:[%s5 + $0x2a0] sm:$0xff]
        %v9370 = vld [vmem:[%s5 + $0x2a8] sm:$0xff]
        %v9371 = vld [vmem:[%s5 + $0x2b0] sm:$0xff]
        %v9372 = vld [vmem:[%s5 + $0x2b8] sm:$0xff]
        %v9373 = vld [vmem:[%s5 + $0x2c0] sm:$0xff]
        %v9374 = vld [vmem:[%s5 + $0x2c8] sm:$0xff]
        %v9375 = vld [vmem:[%s5 + $0x2d0] sm:$0xff]
        %v9376 = vld [vmem:[%s5 + $0x2d8] sm:$0xff]
        %v9377 = vld [vmem:[%s5 + $0x2e0] sm:$0xff]
        %v9378 = vld [vmem:[%s5 + $0x2e8] sm:$0xff]
        %v9379 = vld [vmem:[%s5 + $0x2f0] sm:$0xff]
        %v9380 = vld [vmem:[%s5 + $0x2f8] sm:$0xff]
        %v9381 = vld [vmem:[%s5 + $0x300] sm:$0xff]
        %v9382 = vld [vmem:[%s5 + $0x308] sm:$0xff]
        %v9383 = vld [vmem:[%s5 + $0x310] sm:$0xff]
        %v9384 = vld [vmem:[%s5 + $0x318] sm:$0xff]
        %v9385 = vld [vmem:[%s5 + $0x320] sm:$0xff]
        %v9386 = vld [vmem:[%s5 + $0x328] sm:$0xff]
        %v9387 = vld [vmem:[%s5 + $0x330] sm:$0xff]
        %v9388 = vld [vmem:[%s5 + $0x338] sm:$0xff]
        %v9389 = vld [vmem:[%s5 + $0x340] sm:$0xff]
        %v9390 = vld [vmem:[%s5 + $0x348] sm:$0xff]
        %v9391 = vld [vmem:[%s5 + $0x350] sm:$0xff]
        %v9392 = vld [vmem:[%s5 + $0x358] sm:$0xff]
        %v9393 = vld [vmem:[%s5 + $0x360] sm:$0xff]
        %v9394 = vld [vmem:[%s5 + $0x368] sm:$0xff]
        %v9395 = vld [vmem:[%s5 + $0x370] sm:$0xff]
        %v9396 = vld [vmem:[%s5 + $0x378] sm:$0xff]
        %v9397 = vld [vmem:[%s5 + $0x380] sm:$0xff]
        %v9398 = vld [vmem:[%s5 + $0x388] sm:$0xff]
        %v9399 = vld [vmem:[%s5 + $0x390] sm:$0xff]
        %v9400 = vld [vmem:[%s5 + $0x398] sm:$0xff]
        %v9401 = vld [vmem:[%s5 + $0x3a0] sm:$0xff]
        %v9402 = vld [vmem:[%s5 + $0x3a8] sm:$0xff]
        %v9403 = vld [vmem:[%s5 + $0x3b0] sm:$0xff]
        %v9404 = vld [vmem:[%s5 + $0x3b8] sm:$0xff]
        %v9405 = vld [vmem:[%s5 + $0x3c0] sm:$0xff]
        %v9406 = vld [vmem:[%s5 + $0x3c8] sm:$0xff]
        %v9407 = vld [vmem:[%s5 + $0x3d0] sm:$0xff]
        %v9408 = vld [vmem:[%s5 + $0x3d8] sm:$0xff]
        %v9409 = vld [vmem:[%s5 + $0x3e0] sm:$0xff]
        %v9410 = vld [vmem:[%s5 + $0x3e8] sm:$0xff]
        %v9411 = vld [vmem:[%s5 + $0x3f0] sm:$0xff]
        %v9412 = vld [vmem:[%s5 + $0x3f8] sm:$0xff]
        %v9413 = vld [vmem:[%s5 + $0x400] sm:$0xff]
        %v9414 = vld [vmem:[%s5 + $0x408] sm:$0xff]
        %v9415 = vld [vmem:[%s5 + $0x410] sm:$0xff]
        %v9416 = vld [vmem:[%s5 + $0x418] sm:$0xff]
        %v9417 = vld [vmem:[%s5 + $0x420] sm:$0xff]
        %v9418 = vld [vmem:[%s5 + $0x428] sm:$0xff]
        %v9419 = vld [vmem:[%s5 + $0x430] sm:$0xff]
        %v9420 = vld [vmem:[%s5 + $0x438] sm:$0xff]
        %v9421 = vld [vmem:[%s5 + $0x440] sm:$0xff]
        %v9422 = vld [vmem:[%s5 + $0x448] sm:$0xff]
        %v9423 = vld [vmem:[%s5 + $0x450] sm:$0xff]
        %v9424 = vld [vmem:[%s5 + $0x458] sm:$0xff]
        %v9425 = vld [vmem:[%s5 + $0x460] sm:$0xff]
        %v9426 = vld [vmem:[%s5 + $0x468] sm:$0xff]
        %v9427 = vld [vmem:[%s5 + $0x470] sm:$0xff]
        %v9428 = vld [vmem:[%s5 + $0x478] sm:$0xff]
        %v9429 = vld [vmem:[%s5 + $0x480] sm:$0xff]
        %v9430 = vld [vmem:[%s5 + $0x488] sm:$0xff]
        %v9431 = vld [vmem:[%s5 + $0x490] sm:$0xff]
        %v9432 = vld [vmem:[%s5 + $0x498] sm:$0xff]
        %v9433 = vld [vmem:[%s5 + $0x4a0] sm:$0xff]
        %v9434 = vld [vmem:[%s5 + $0x4a8] sm:$0xff]
        %v9435 = vld [vmem:[%s5 + $0x4b0] sm:$0xff]
        %v9436 = vld [vmem:[%s5 + $0x4b8] sm:$0xff]
        %v9437 = vld [vmem:[%s5 + $0x4c0] sm:$0xff]
        %v9438 = vld [vmem:[%s5 + $0x4c8] sm:$0xff]
        %v9439 = vld [vmem:[%s5 + $0x4d0] sm:$0xff]
        %v9440 = vld [vmem:[%s5 + $0x4d8] sm:$0xff]
        %v9441 = vld [vmem:[%s5 + $0x4e0] sm:$0xff]
        %v9442 = vld [vmem:[%s5 + $0x4e8] sm:$0xff]
        %v9443 = vld [vmem:[%s5 + $0x4f0] sm:$0xff]
        %v9444 = vld [vmem:[%s5 + $0x4f8] sm:$0xff]
        %v9445 = vld [vmem:[%s5 + $0x500] sm:$0xff]
        %v9446 = vld [vmem:[%s5 + $0x508] sm:$0xff]
        %v9447 = vld [vmem:[%s5 + $0x510] sm:$0xff]
        %v9448 = vld [vmem:[%s5 + $0x518] sm:$0xff]
        %v9449 = vld [vmem:[%s5 + $0x520] sm:$0xff]
        %v9450 = vld [vmem:[%s5 + $0x528] sm:$0xff]
        %v9451 = vld [vmem:[%s5 + $0x530] sm:$0xff]
        %v9452 = vld [vmem:[%s5 + $0x538] sm:$0xff]
        %v9453 = vld [vmem:[%s5 + $0x540] sm:$0xff]
        %v9454 = vld [vmem:[%s5 + $0x548] sm:$0xff]
        %v9455 = vld [vmem:[%s5 + $0x550] sm:$0xff]
        %v9456 = vld [vmem:[%s5 + $0x558] sm:$0xff]
        %v9457 = vld [vmem:[%s5 + $0x560] sm:$0xff]
        %v9458 = vld [vmem:[%s5 + $0x568] sm:$0xff]
        %v9459 = vld [vmem:[%s5 + $0x570] sm:$0xff]
        %v9460 = vld [vmem:[%s5 + $0x578] sm:$0xff]
        %s9461 = scalar_lea.vmem %s5, 1408
        %v9462 = vld [vmem:[%s9461] sm:$0xff]
        %v9463 = vld [vmem:[%s9461 + $0x8] sm:$0xff]
        %v9464 = vld [vmem:[%s9461 + $0x10] sm:$0xff]
        %v9465 = vld [vmem:[%s9461 + $0x18] sm:$0xff]
        %v9466 = vld [vmem:[%s9461 + $0x20] sm:$0xff]
        %v9467 = vld [vmem:[%s9461 + $0x28] sm:$0xff]
        %v9468 = vld [vmem:[%s9461 + $0x30] sm:$0xff]
        %v9469 = vld [vmem:[%s9461 + $0x38] sm:$0xff]
        %v9470 = vld [vmem:[%s9461 + $0x40] sm:$0xff]
        %v9471 = vld [vmem:[%s9461 + $0x48] sm:$0xff]
        %v9472 = vld [vmem:[%s9461 + $0x50] sm:$0xff]
        %v9473 = vld [vmem:[%s9461 + $0x58] sm:$0xff]
        %v9474 = vld [vmem:[%s9461 + $0x60] sm:$0xff]
        %v9475 = vld [vmem:[%s9461 + $0x68] sm:$0xff]
        %v9476 = vld [vmem:[%s9461 + $0x70] sm:$0xff]
        %v9477 = vld [vmem:[%s9461 + $0x78] sm:$0xff]
        %v9478 = vld [vmem:[%s9461 + $0x80] sm:$0xff]
        %v9479 = vld [vmem:[%s9461 + $0x88] sm:$0xff]
        %v9480 = vld [vmem:[%s9461 + $0x90] sm:$0xff]
        %v9481 = vld [vmem:[%s9461 + $0x98] sm:$0xff]
        %v9482 = vld [vmem:[%s9461 + $0xa0] sm:$0xff]
        %v9483 = vld [vmem:[%s9461 + $0xa8] sm:$0xff]
        %v9484 = vld [vmem:[%s9461 + $0xb0] sm:$0xff]
        %v9485 = vld [vmem:[%s9461 + $0xb8] sm:$0xff]
        %v9486 = vld [vmem:[%s9461 + $0xc0] sm:$0xff]
        %v9487 = vld [vmem:[%s9461 + $0xc8] sm:$0xff]
        %v9488 = vld [vmem:[%s9461 + $0xd0] sm:$0xff]
        %v9489 = vld [vmem:[%s9461 + $0xd8] sm:$0xff]
        %v9490 = vld [vmem:[%s9461 + $0xe0] sm:$0xff]
        %v9491 = vld [vmem:[%s9461 + $0xe8] sm:$0xff]
        %v9492 = vld [vmem:[%s9461 + $0xf0] sm:$0xff]
        %v9493 = vld [vmem:[%s9461 + $0xf8] sm:$0xff]
        %v9494 = vld [vmem:[%s9461 + $0x100] sm:$0xff]
        %v9495 = vld [vmem:[%s9461 + $0x108] sm:$0xff]
        %v9496 = vld [vmem:[%s9461 + $0x110] sm:$0xff]
        %v9497 = vld [vmem:[%s9461 + $0x118] sm:$0xff]
        %v9498 = vld [vmem:[%s9461 + $0x120] sm:$0xff]
        %v9499 = vld [vmem:[%s9461 + $0x128] sm:$0xff]
        %v9500 = vld [vmem:[%s9461 + $0x130] sm:$0xff]
        %v9501 = vld [vmem:[%s9461 + $0x138] sm:$0xff]
        %v9502 = vld [vmem:[%s9461 + $0x140] sm:$0xff]
        %v9503 = vld [vmem:[%s9461 + $0x148] sm:$0xff]
        %v9504 = vld [vmem:[%s9461 + $0x150] sm:$0xff]
        %v9505 = vld [vmem:[%s9461 + $0x158] sm:$0xff]
        %v9506 = vld [vmem:[%s9461 + $0x160] sm:$0xff]
        %v9507 = vld [vmem:[%s9461 + $0x168] sm:$0xff]
        %v9508 = vld [vmem:[%s9461 + $0x170] sm:$0xff]
        %v9509 = vld [vmem:[%s9461 + $0x178] sm:$0xff]
        %v9510 = vld [vmem:[%s9461 + $0x180] sm:$0xff]
        %v9511 = vld [vmem:[%s9461 + $0x188] sm:$0xff]
        %v9512 = vld [vmem:[%s9461 + $0x190] sm:$0xff]
        %v9513 = vld [vmem:[%s9461 + $0x198] sm:$0xff]
        %v9514 = vld [vmem:[%s9461 + $0x1a0] sm:$0xff]
        %v9515 = vld [vmem:[%s9461 + $0x1a8] sm:$0xff]
        %v9516 = vld [vmem:[%s9461 + $0x1b0] sm:$0xff]
        %v9517 = vld [vmem:[%s9461 + $0x1b8] sm:$0xff]
        %v9518 = vld [vmem:[%s9461 + $0x1c0] sm:$0xff]
        %v9519 = vld [vmem:[%s9461 + $0x1c8] sm:$0xff]
        %v9520 = vld [vmem:[%s9461 + $0x1d0] sm:$0xff]
        %v9521 = vld [vmem:[%s9461 + $0x1d8] sm:$0xff]
        %v9522 = vld [vmem:[%s9461 + $0x1e0] sm:$0xff]
        %v9523 = vld [vmem:[%s9461 + $0x1e8] sm:$0xff]
        %v9524 = vld [vmem:[%s9461 + $0x1f0] sm:$0xff]
        %v9525 = vld [vmem:[%s9461 + $0x1f8] sm:$0xff]
        %v9526 = vld [vmem:[%s9461 + $0x200] sm:$0xff]
        %v9527 = vld [vmem:[%s9461 + $0x208] sm:$0xff]
        %v9528 = vld [vmem:[%s9461 + $0x210] sm:$0xff]
        %v9529 = vld [vmem:[%s9461 + $0x218] sm:$0xff]
        %v9530 = vld [vmem:[%s9461 + $0x220] sm:$0xff]
        %v9531 = vld [vmem:[%s9461 + $0x228] sm:$0xff]
        %v9532 = vld [vmem:[%s9461 + $0x230] sm:$0xff]
        %v9533 = vld [vmem:[%s9461 + $0x238] sm:$0xff]
        %v9534 = vld [vmem:[%s9461 + $0x240] sm:$0xff]
        %v9535 = vld [vmem:[%s9461 + $0x248] sm:$0xff]
        %v9536 = vld [vmem:[%s9461 + $0x250] sm:$0xff]
        %v9537 = vld [vmem:[%s9461 + $0x258] sm:$0xff]
        %v9538 = vld [vmem:[%s9461 + $0x260] sm:$0xff]
        %v9539 = vld [vmem:[%s9461 + $0x268] sm:$0xff]
        %v9540 = vld [vmem:[%s9461 + $0x270] sm:$0xff]
        %v9541 = vld [vmem:[%s9461 + $0x278] sm:$0xff]
        %v9542 = vld [vmem:[%s9461 + $0x280] sm:$0xff]
        %v9543 = vld [vmem:[%s9461 + $0x288] sm:$0xff]
        %v9544 = vld [vmem:[%s9461 + $0x290] sm:$0xff]
        %v9545 = vld [vmem:[%s9461 + $0x298] sm:$0xff]
        %v9546 = vld [vmem:[%s9461 + $0x2a0] sm:$0xff]
        %v9547 = vld [vmem:[%s9461 + $0x2a8] sm:$0xff]
        %v9548 = vld [vmem:[%s9461 + $0x2b0] sm:$0xff]
        %v9549 = vld [vmem:[%s9461 + $0x2b8] sm:$0xff]
        %v9550 = vld [vmem:[%s9461 + $0x2c0] sm:$0xff]
        %v9551 = vld [vmem:[%s9461 + $0x2c8] sm:$0xff]
        %v9552 = vld [vmem:[%s9461 + $0x2d0] sm:$0xff]
        %v9553 = vld [vmem:[%s9461 + $0x2d8] sm:$0xff]
        %v9554 = vld [vmem:[%s9461 + $0x2e0] sm:$0xff]
        %v9555 = vld [vmem:[%s9461 + $0x2e8] sm:$0xff]
        %v9556 = vld [vmem:[%s9461 + $0x2f0] sm:$0xff]
        %v9557 = vld [vmem:[%s9461 + $0x2f8] sm:$0xff]
        %v9558 = vld [vmem:[%s9461 + $0x300] sm:$0xff]
        %v9559 = vld [vmem:[%s9461 + $0x308] sm:$0xff]
        %v9560 = vld [vmem:[%s9461 + $0x310] sm:$0xff]
        %v9561 = vld [vmem:[%s9461 + $0x318] sm:$0xff]
        %v9562 = vld [vmem:[%s9461 + $0x320] sm:$0xff]
        %v9563 = vld [vmem:[%s9461 + $0x328] sm:$0xff]
        %v9564 = vld [vmem:[%s9461 + $0x330] sm:$0xff]
        %v9565 = vld [vmem:[%s9461 + $0x338] sm:$0xff]
        %v9566 = vld [vmem:[%s9461 + $0x340] sm:$0xff]
        %v9567 = vld [vmem:[%s9461 + $0x348] sm:$0xff]
        %v9568 = vld [vmem:[%s9461 + $0x350] sm:$0xff]
        %v9569 = vld [vmem:[%s9461 + $0x358] sm:$0xff]
        %v9570 = vld [vmem:[%s9461 + $0x360] sm:$0xff]
        %v9571 = vld [vmem:[%s9461 + $0x368] sm:$0xff]
        %v9572 = vld [vmem:[%s9461 + $0x370] sm:$0xff]
        %v9573 = vld [vmem:[%s9461 + $0x378] sm:$0xff]
        %v9574 = vld [vmem:[%s9461 + $0x380] sm:$0xff]
        %v9575 = vld [vmem:[%s9461 + $0x388] sm:$0xff]
        %v9576 = vld [vmem:[%s9461 + $0x390] sm:$0xff]
        %v9577 = vld [vmem:[%s9461 + $0x398] sm:$0xff]
        %v9578 = vld [vmem:[%s9461 + $0x3a0] sm:$0xff]
        %v9579 = vld [vmem:[%s9461 + $0x3a8] sm:$0xff]
        %v9580 = vld [vmem:[%s9461 + $0x3b0] sm:$0xff]
        %v9581 = vld [vmem:[%s9461 + $0x3b8] sm:$0xff]
        %v9582 = vld [vmem:[%s9461 + $0x3c0] sm:$0xff]
        %v9583 = vld [vmem:[%s9461 + $0x3c8] sm:$0xff]
        %v9584 = vld [vmem:[%s9461 + $0x3d0] sm:$0xff]
        %v9585 = vld [vmem:[%s9461 + $0x3d8] sm:$0xff]
        %v9586 = vld [vmem:[%s9461 + $0x3e0] sm:$0xff]
        %v9587 = vld [vmem:[%s9461 + $0x3e8] sm:$0xff]
        %v9588 = vld [vmem:[%s9461 + $0x3f0] sm:$0xff]
        %v9589 = vld [vmem:[%s9461 + $0x3f8] sm:$0xff]
        %v9590 = vld [vmem:[%s9461 + $0x400] sm:$0xff]
        %v9591 = vld [vmem:[%s9461 + $0x408] sm:$0xff]
        %v9592 = vld [vmem:[%s9461 + $0x410] sm:$0xff]
        %v9593 = vld [vmem:[%s9461 + $0x418] sm:$0xff]
        %v9594 = vld [vmem:[%s9461 + $0x420] sm:$0xff]
        %v9595 = vld [vmem:[%s9461 + $0x428] sm:$0xff]
        %v9596 = vld [vmem:[%s9461 + $0x430] sm:$0xff]
        %v9597 = vld [vmem:[%s9461 + $0x438] sm:$0xff]
        %v9598 = vld [vmem:[%s9461 + $0x440] sm:$0xff]
        %v9599 = vld [vmem:[%s9461 + $0x448] sm:$0xff]
        %v9600 = vld [vmem:[%s9461 + $0x450] sm:$0xff]
        %v9601 = vld [vmem:[%s9461 + $0x458] sm:$0xff]
        %v9602 = vld [vmem:[%s9461 + $0x460] sm:$0xff]
        %v9603 = vld [vmem:[%s9461 + $0x468] sm:$0xff]
        %v9604 = vld [vmem:[%s9461 + $0x470] sm:$0xff]
        %v9605 = vld [vmem:[%s9461 + $0x478] sm:$0xff]
        %v9606 = vld [vmem:[%s9461 + $0x480] sm:$0xff]
        %v9607 = vld [vmem:[%s9461 + $0x488] sm:$0xff]
        %v9608 = vld [vmem:[%s9461 + $0x490] sm:$0xff]
        %v9609 = vld [vmem:[%s9461 + $0x498] sm:$0xff]
        %v9610 = vld [vmem:[%s9461 + $0x4a0] sm:$0xff]
        %v9611 = vld [vmem:[%s9461 + $0x4a8] sm:$0xff]
        %v9612 = vld [vmem:[%s9461 + $0x4b0] sm:$0xff]
        %v9613 = vld [vmem:[%s9461 + $0x4b8] sm:$0xff]
        %v9614 = vld [vmem:[%s9461 + $0x4c0] sm:$0xff]
        %v9615 = vld [vmem:[%s9461 + $0x4c8] sm:$0xff]
        %v9616 = vld [vmem:[%s9461 + $0x4d0] sm:$0xff]
        %v9617 = vld [vmem:[%s9461 + $0x4d8] sm:$0xff]
        %v9618 = vld [vmem:[%s9461 + $0x4e0] sm:$0xff]
        %v9619 = vld [vmem:[%s9461 + $0x4e8] sm:$0xff]
        %v9620 = vld [vmem:[%s9461 + $0x4f0] sm:$0xff]
        %v9621 = vld [vmem:[%s9461 + $0x4f8] sm:$0xff]
        %v9622 = vld [vmem:[%s9461 + $0x500] sm:$0xff]
        %v9623 = vld [vmem:[%s9461 + $0x508] sm:$0xff]
        %v9624 = vld [vmem:[%s9461 + $0x510] sm:$0xff]
        %v9625 = vld [vmem:[%s9461 + $0x518] sm:$0xff]
        %v9626 = vld [vmem:[%s9461 + $0x520] sm:$0xff]
        %v9627 = vld [vmem:[%s9461 + $0x528] sm:$0xff]
        %v9628 = vld [vmem:[%s9461 + $0x530] sm:$0xff]
        %v9629 = vld [vmem:[%s9461 + $0x538] sm:$0xff]
        %v9630 = vld [vmem:[%s9461 + $0x540] sm:$0xff]
        %v9631 = vld [vmem:[%s9461 + $0x548] sm:$0xff]
        %v9632 = vld [vmem:[%s9461 + $0x550] sm:$0xff]
        %v9633 = vld [vmem:[%s9461 + $0x558] sm:$0xff]
        %v9634 = vld [vmem:[%s9461 + $0x560] sm:$0xff]
        %v9635 = vld [vmem:[%s9461 + $0x568] sm:$0xff]
        %v9636 = vld [vmem:[%s9461 + $0x570] sm:$0xff]
        %v9637 = vld [vmem:[%s9461 + $0x578] sm:$0xff]
        %v9649 = vrot.slane %v9274, 1
        %v9650 = vrot.slane %v9275, 1
        %v9651 = vrot.slane %v9276, 1
        %v9652 = vrot.slane %v9277, 1
        %v9653 = vrot.slane %v9278, 1
        %v9654 = vrot.slane %v9279, 1
        %v9655 = vrot.slane %v9280, 1
        %v9656 = vrot.slane %v9281, 1
        %v9657 = vrot.slane %v9282, 1
        %v9658 = vrot.slane %v9283, 1
        %v9659 = vrot.slane %v9284, 1
        %9671 = vmatprep.subr.mxu0 0.0
        %9672 = vmatpush1.msra.mxu0 %v9462
        %9673 = vmatprep.subr.mxu0 0.0
        %9674 = vmatpush1.msra.mxu0 %v9463
        %9675 = vmatprep.subr.mxu0 0.0
        %9676 = vmatpush1.msra.mxu0 %v9464
        %9677 = vmatprep.subr.mxu0 0.0
        %9678 = vmatpush1.msra.mxu0 %v9465
        %9679 = vmatprep.subr.mxu0 0.0
        %9680 = vmatpush1.msra.mxu0 %v9466
        %9681 = vmatprep.subr.mxu0 0.0
        %9682 = vmatpush1.msra.mxu0 %v9467
        %9683 = vmatprep.subr.mxu0 0.0
        %9684 = vmatpush1.msra.mxu0 %v9468
        %9685 = vmatprep.subr.mxu0 0.0
        %9686 = vmatpush1.msra.mxu0 %v9469
        %9687 = vmatprep.subr.mxu0 0.0
        %9688 = vmatpush1.msra.mxu0 %v9470
        %9689 = vmatprep.subr.mxu0 0.0
        %9690 = vmatpush1.msra.mxu0 %v9471
        %9691 = vmatprep.subr.mxu0 0.0
        %9692 = vmatpush1.msra.mxu0 %v9472
        %9693 = vmatprep.subr.mxu0 0.0
        %9694 = vmatpush1.msra.mxu0 %v9473
        %9695 = vmatprep.subr.mxu0 0.0
        %9696 = vmatpush1.msra.mxu0 %v9474
        %9697 = vmatprep.subr.mxu0 0.0
        %9698 = vmatpush1.msra.mxu0 %v9475
        %9699 = vmatprep.subr.mxu0 0.0
        %9700 = vmatpush1.msra.mxu0 %v9476
        %9701 = vmatprep.subr.mxu0 0.0
        %9702 = vmatpush1.msra.mxu0 %v9477
        %9703 = vmatprep.subr.mxu0 0.0
        %9704 = vmatpush1.msra.mxu0 %v9478
        %9705 = vmatprep.subr.mxu0 0.0
        %9706 = vmatpush1.msra.mxu0 %v9479
        %9707 = vmatprep.subr.mxu0 0.0
        %9708 = vmatpush1.msra.mxu0 %v9480
        %9709 = vmatprep.subr.mxu0 0.0
        %9710 = vmatpush1.msra.mxu0 %v9481
        %9711 = vmatprep.subr.mxu0 0.0
        %9712 = vmatpush1.msra.mxu0 %v9482
        %9713 = vmatprep.subr.mxu0 0.0
        %9714 = vmatpush1.msra.mxu0 %v9483
        %9715 = vmatprep.subr.mxu0 0.0
        %9716 = vmatpush1.msra.mxu0 %v9484
        %9717 = vmatprep.subr.mxu0 0.0
        %9718 = vmatpush1.msra.mxu0 %v9485
        %9719 = vmatprep.subr.mxu0 0.0
        %9720 = vmatpush1.msra.mxu0 %v9486
        %9721 = vmatprep.subr.mxu0 0.0
        %9722 = vmatpush1.msra.mxu0 %v9487
        %9723 = vmatprep.subr.mxu0 0.0
        %9724 = vmatpush1.msra.mxu0 %v9488
        %9725 = vmatprep.subr.mxu0 0.0
        %9726 = vmatpush1.msra.mxu0 %v9489
        %9727 = vmatprep.subr.mxu0 0.0
        %9728 = vmatpush1.msra.mxu0 %v9490
        %9729 = vmatprep.subr.mxu0 0.0
        %9730 = vmatpush1.msra.mxu0 %v9491
        %9731 = vmatprep.subr.mxu0 0.0
        %9732 = vmatpush1.msra.mxu0 %v9492
        %9733 = vmatprep.subr.mxu0 0.0
        %9734 = vmatpush1.msra.mxu0 %v9493
        %9735 = vmatprep.mubr.f32.mxu0 %v9650
        %9736 = vmatmul.mubr.f32.gmra.mrb[0].mxu0 %v9649
        %v9737 = vpop.f32.mrb[0].mxu0
        %v9738 = vadd.f32 0.0, %v9737
        %v9739 = vpop.f32.mrb[0].mxu0
        %9740 = vdwg.mxu0
        %9741 = vmatprep.subr.mxu0 0.0
        %9742 = vmatpush1.msra.mxu0 %v9494
        %9743 = vmatprep.subr.mxu0 0.0
        %9744 = vmatpush1.msra.mxu0 %v9495
        %9745 = vmatprep.subr.mxu0 0.0
        %9746 = vmatpush1.msra.mxu0 %v9496
        %9747 = vmatprep.subr.mxu0 0.0
        %9748 = vmatpush1.msra.mxu0 %v9497
        %9749 = vmatprep.subr.mxu0 0.0
        %9750 = vmatpush1.msra.mxu0 %v9498
        %9751 = vmatprep.subr.mxu0 0.0
        %9752 = vmatpush1.msra.mxu0 %v9499
        %9753 = vmatprep.subr.mxu0 0.0
        %9754 = vmatpush1.msra.mxu0 %v9500
        %9755 = vmatprep.subr.mxu0 0.0
        %9756 = vmatpush1.msra.mxu0 %v9501
        %9757 = vmatprep.subr.mxu0 0.0
        %9758 = vmatpush1.msra.mxu0 %v9502
        %9759 = vmatprep.subr.mxu0 0.0
        %9760 = vmatpush1.msra.mxu0 %v9503
        %9761 = vmatprep.subr.mxu0 0.0
        %9762 = vmatpush1.msra.mxu0 %v9504
        %9763 = vmatprep.subr.mxu0 0.0
        %9764 = vmatpush1.msra.mxu0 %v9505
        %9765 = vmatprep.subr.mxu0 0.0
        %9766 = vmatpush1.msra.mxu0 %v9506
        %9767 = vmatprep.subr.mxu0 0.0
        %9768 = vmatpush1.msra.mxu0 %v9507
        %9769 = vmatprep.subr.mxu0 0.0
        %9770 = vmatpush1.msra.mxu0 %v9508
        %9771 = vmatprep.subr.mxu0 0.0
        %9772 = vmatpush1.msra.mxu0 %v9509
        %9773 = vmatprep.subr.mxu0 0.0
        %9774 = vmatpush1.msra.mxu0 %v9510
        %9775 = vmatprep.subr.mxu0 0.0
        %9776 = vmatpush1.msra.mxu0 %v9511
        %9777 = vmatprep.subr.mxu0 0.0
        %9778 = vmatpush1.msra.mxu0 %v9512
        %9779 = vmatprep.subr.mxu0 0.0
        %9780 = vmatpush1.msra.mxu0 %v9513
        %9781 = vmatprep.subr.mxu0 0.0
        %9782 = vmatpush1.msra.mxu0 %v9514
        %9783 = vmatprep.subr.mxu0 0.0
        %9784 = vmatpush1.msra.mxu0 %v9515
        %9785 = vmatprep.subr.mxu0 0.0
        %9786 = vmatpush1.msra.mxu0 %v9516
        %9787 = vmatprep.subr.mxu0 0.0
        %9788 = vmatpush1.msra.mxu0 %v9517
        %9789 = vmatprep.subr.mxu0 0.0
        %9790 = vmatpush1.msra.mxu0 %v9518
        %9791 = vmatprep.subr.mxu0 0.0
        %9792 = vmatpush1.msra.mxu0 %v9519
        %9793 = vmatprep.subr.mxu0 0.0
        %9794 = vmatpush1.msra.mxu0 %v9520
        %9795 = vmatprep.subr.mxu0 0.0
        %9796 = vmatpush1.msra.mxu0 %v9521
        %9797 = vmatprep.subr.mxu0 0.0
        %9798 = vmatpush1.msra.mxu0 %v9522
        %9799 = vmatprep.subr.mxu0 0.0
        %9800 = vmatpush1.msra.mxu0 %v9523
        %9801 = vmatprep.subr.mxu0 0.0
        %9802 = vmatpush1.msra.mxu0 %v9524
        %9803 = vmatprep.subr.mxu0 0.0
        %9804 = vmatpush1.msra.mxu0 %v9525
        %9805 = vmatprep.mubr.f32.mxu0 %v9652
        %9806 = vmatmul.mubr.f32.gmra.mrb[0].mxu0 %v9651
        %v9807 = vpop.f32.mrb[0].mxu0
        %v9808 = vadd.f32 %v9738, %v9807
        %v9809 = vpop.f32.mrb[0].mxu0
        %9810 = vdwg.mxu0
        %9811 = vmatprep.subr.mxu0 0.0
        %9812 = vmatpush1.msra.mxu0 %v9526
        %9813 = vmatprep.subr.mxu0 0.0
        %9814 = vmatpush1.msra.mxu0 %v9527
        %9815 = vmatprep.subr.mxu0 0.0
        %9816 = vmatpush1.msra.mxu0 %v9528
        %9817 = vmatprep.subr.mxu0 0.0
        %9818 = vmatpush1.msra.mxu0 %v9529
        %9819 = vmatprep.subr.mxu0 0.0
        %9820 = vmatpush1.msra.mxu0 %v9530
        %9821 = vmatprep.subr.mxu0 0.0
        %9822 = vmatpush1.msra.mxu0 %v9531
        %9823 = vmatprep.subr.mxu0 0.0
        %9824 = vmatpush1.msra.mxu0 %v9532
        %9825 = vmatprep.subr.mxu0 0.0
        %9826 = vmatpush1.msra.mxu0 %v9533
        %9827 = vmatprep.subr.mxu0 0.0
        %9828 = vmatpush1.msra.mxu0 %v9534
        %9829 = vmatprep.subr.mxu0 0.0
        %9830 = vmatpush1.msra.mxu0 %v9535
        %9831 = vmatprep.subr.mxu0 0.0
        %9832 = vmatpush1.msra.mxu0 %v9536
        %9833 = vmatprep.subr.mxu0 0.0
        %9834 = vmatpush1.msra.mxu0 %v9537
        %9835 = vmatprep.subr.mxu0 0.0
        %9836 = vmatpush1.msra.mxu0 %v9538
        %9837 = vmatprep.subr.mxu0 0.0
        %9838 = vmatpush1.msra.mxu0 %v9539
        %9839 = vmatprep.subr.mxu0 0.0
        %9840 = vmatpush1.msra.mxu0 %v9540
        %9841 = vmatprep.subr.mxu0 0.0
        %9842 = vmatpush1.msra.mxu0 %v9541
        %9843 = vmatprep.subr.mxu0 0.0
        %9844 = vmatpush1.msra.mxu0 %v9542
        %9845 = vmatprep.subr.mxu0 0.0
        %9846 = vmatpush1.msra.mxu0 %v9543
        %9847 = vmatprep.subr.mxu0 0.0
        %9848 = vmatpush1.msra.mxu0 %v9544
        %9849 = vmatprep.subr.mxu0 0.0
        %9850 = vmatpush1.msra.mxu0 %v9545
        %9851 = vmatprep.subr.mxu0 0.0
        %9852 = vmatpush1.msra.mxu0 %v9546
        %9853 = vmatprep.subr.mxu0 0.0
        %9854 = vmatpush1.msra.mxu0 %v9547
        %9855 = vmatprep.subr.mxu0 0.0
        %9856 = vmatpush1.msra.mxu0 %v9548
        %9857 = vmatprep.subr.mxu0 0.0
        %9858 = vmatpush1.msra.mxu0 %v9549
        %9859 = vmatprep.subr.mxu0 0.0
        %9860 = vmatpush1.msra.mxu0 %v9550
        %9861 = vmatprep.subr.mxu0 0.0
        %9862 = vmatpush1.msra.mxu0 %v9551
        %9863 = vmatprep.subr.mxu0 0.0
        %9864 = vmatpush1.msra.mxu0 %v9552
        %9865 = vmatprep.subr.mxu0 0.0
        %9866 = vmatpush1.msra.mxu0 %v9553
        %9867 = vmatprep.subr.mxu0 0.0
        %9868 = vmatpush1.msra.mxu0 %v9554
        %9869 = vmatprep.subr.mxu0 0.0
        %9870 = vmatpush1.msra.mxu0 %v9555
        %9871 = vmatprep.subr.mxu0 0.0
        %9872 = vmatpush1.msra.mxu0 %v9556
        %9873 = vmatprep.subr.mxu0 0.0
        %9874 = vmatpush1.msra.mxu0 %v9557
        %9875 = vmatprep.mubr.f32.mxu0 %v9654
        %9876 = vmatmul.mubr.f32.gmra.mrb[0].mxu0 %v9653
        %v9877 = vpop.f32.mrb[0].mxu0
        %v9878 = vadd.f32 %v9808, %v9877
        %v9879 = vpop.f32.mrb[0].mxu0
        %9880 = vdwg.mxu0
        %9881 = vmatprep.subr.mxu0 0.0
        %9882 = vmatpush1.msra.mxu0 %v9558
        %9883 = vmatprep.subr.mxu0 0.0
        %9884 = vmatpush1.msra.mxu0 %v9559
        %9885 = vmatprep.subr.mxu0 0.0
        %9886 = vmatpush1.msra.mxu0 %v9560
        %9887 = vmatprep.subr.mxu0 0.0
        %9888 = vmatpush1.msra.mxu0 %v9561
        %9889 = vmatprep.subr.mxu0 0.0
        %9890 = vmatpush1.msra.mxu0 %v9562
        %9891 = vmatprep.subr.mxu0 0.0
        %9892 = vmatpush1.msra.mxu0 %v9563
        %9893 = vmatprep.subr.mxu0 0.0
        %9894 = vmatpush1.msra.mxu0 %v9564
        %9895 = vmatprep.subr.mxu0 0.0
        %9896 = vmatpush1.msra.mxu0 %v9565
        %9897 = vmatprep.subr.mxu0 0.0
        %9898 = vmatpush1.msra.mxu0 %v9566
        %9899 = vmatprep.subr.mxu0 0.0
        %9900 = vmatpush1.msra.mxu0 %v9567
        %9901 = vmatprep.subr.mxu0 0.0
        %9902 = vmatpush1.msra.mxu0 %v9568
        %9903 = vmatprep.subr.mxu0 0.0
        %9904 = vmatpush1.msra.mxu0 %v9569
        %9905 = vmatprep.subr.mxu0 0.0
        %9906 = vmatpush1.msra.mxu0 %v9570
        %9907 = vmatprep.subr.mxu0 0.0
        %9908 = vmatpush1.msra.mxu0 %v9571
        %9909 = vmatprep.subr.mxu0 0.0
        %9910 = vmatpush1.msra.mxu0 %v9572
        %9911 = vmatprep.subr.mxu0 0.0
        %9912 = vmatpush1.msra.mxu0 %v9573
        %9913 = vmatprep.subr.mxu0 0.0
        %9914 = vmatpush1.msra.mxu0 %v9574
        %9915 = vmatprep.subr.mxu0 0.0
        %9916 = vmatpush1.msra.mxu0 %v9575
        %9917 = vmatprep.subr.mxu0 0.0
        %9918 = vmatpush1.msra.mxu0 %v9576
        %9919 = vmatprep.subr.mxu0 0.0
        %9920 = vmatpush1.msra.mxu0 %v9577
        %9921 = vmatprep.subr.mxu0 0.0
        %9922 = vmatpush1.msra.mxu0 %v9578
        %9923 = vmatprep.subr.mxu0 0.0
        %9924 = vmatpush1.msra.mxu0 %v9579
        %9925 = vmatprep.subr.mxu0 0.0
        %9926 = vmatpush1.msra.mxu0 %v9580
        %9927 = vmatprep.subr.mxu0 0.0
        %9928 = vmatpush1.msra.mxu0 %v9581
        %9929 = vmatprep.subr.mxu0 0.0
        %9930 = vmatpush1.msra.mxu0 %v9582
        %9931 = vmatprep.subr.mxu0 0.0
        %9932 = vmatpush1.msra.mxu0 %v9583
        %9933 = vmatprep.subr.mxu0 0.0
        %9934 = vmatpush1.msra.mxu0 %v9584
        %9935 = vmatprep.subr.mxu0 0.0
        %9936 = vmatpush1.msra.mxu0 %v9585
        %9937 = vmatprep.subr.mxu0 0.0
        %9938 = vmatpush1.msra.mxu0 %v9586
        %9939 = vmatprep.subr.mxu0 0.0
        %9940 = vmatpush1.msra.mxu0 %v9587
        %9941 = vmatprep.subr.mxu0 0.0
        %9942 = vmatpush1.msra.mxu0 %v9588
        %9943 = vmatprep.subr.mxu0 0.0
        %9944 = vmatpush1.msra.mxu0 %v9589
        %9945 = vmatprep.mubr.f32.mxu0 %v9656
        %9946 = vmatmul.mubr.f32.gmra.mrb[0].mxu0 %v9655
        %v9947 = vpop.f32.mrb[0].mxu0
        %v9948 = vadd.f32 %v9878, %v9947
        %v9949 = vpop.f32.mrb[0].mxu0
        %9950 = vdwg.mxu0
        %9951 = vmatprep.subr.mxu0 0.0
        %9952 = vmatpush1.msra.mxu0 %v9590
        %9953 = vmatprep.subr.mxu0 0.0
        %9954 = vmatpush1.msra.mxu0 %v9591
        %9955 = vmatprep.subr.mxu0 0.0
        %9956 = vmatpush1.msra.mxu0 %v9592
        %9957 = vmatprep.subr.mxu0 0.0
        %9958 = vmatpush1.msra.mxu0 %v9593
        %9959 = vmatprep.subr.mxu0 0.0
        %9960 = vmatpush1.msra.mxu0 %v9594
        %9961 = vmatprep.subr.mxu0 0.0
        %9962 = vmatpush1.msra.mxu0 %v9595
        %9963 = vmatprep.subr.mxu0 0.0
        %9964 = vmatpush1.msra.mxu0 %v9596
        %9965 = vmatprep.subr.mxu0 0.0
        %9966 = vmatpush1.msra.mxu0 %v9597
        %9967 = vmatprep.subr.mxu0 0.0
        %9968 = vmatpush1.msra.mxu0 %v9598
        %9969 = vmatprep.subr.mxu0 0.0
        %9970 = vmatpush1.msra.mxu0 %v9599
        %9971 = vmatprep.subr.mxu0 0.0
        %9972 = vmatpush1.msra.mxu0 %v9600
        %9973 = vmatprep.subr.mxu0 0.0
        %9974 = vmatpush1.msra.mxu0 %v9601
        %9975 = vmatprep.subr.mxu0 0.0
        %9976 = vmatpush1.msra.mxu0 %v9602
        %9977 = vmatprep.subr.mxu0 0.0
        %9978 = vmatpush1.msra.mxu0 %v9603
        %9979 = vmatprep.subr.mxu0 0.0
        %9980 = vmatpush1.msra.mxu0 %v9604
        %9981 = vmatprep.subr.mxu0 0.0
        %9982 = vmatpush1.msra.mxu0 %v9605
        %9983 = vmatprep.subr.mxu0 0.0
        %9984 = vmatpush1.msra.mxu0 %v9606
        %9985 = vmatprep.subr.mxu0 0.0
        %9986 = vmatpush1.msra.mxu0 %v9607
        %9987 = vmatprep.subr.mxu0 0.0
        %9988 = vmatpush1.msra.mxu0 %v9608
        %9989 = vmatprep.subr.mxu0 0.0
        %9990 = vmatpush1.msra.mxu0 %v9609
        %9991 = vmatprep.subr.mxu0 0.0
        %9992 = vmatpush1.msra.mxu0 %v9610
        %9993 = vmatprep.subr.mxu0 0.0
        %9994 = vmatpush1.msra.mxu0 %v9611
        %9995 = vmatprep.subr.mxu0 0.0
        %9996 = vmatpush1.msra.mxu0 %v9612
        %9997 = vmatprep.subr.mxu0 0.0
        %9998 = vmatpush1.msra.mxu0 %v9613
        %9999 = vmatprep.subr.mxu0 0.0
        %10000 = vmatpush1.msra.mxu0 %v9614
        %10001 = vmatprep.subr.mxu0 0.0
        %10002 = vmatpush1.msra.mxu0 %v9615
        %10003 = vmatprep.subr.mxu0 0.0
        %10004 = vmatpush1.msra.mxu0 %v9616
        %10005 = vmatprep.subr.mxu0 0.0
        %10006 = vmatpush1.msra.mxu0 %v9617
        %10007 = vmatprep.subr.mxu0 0.0
        %10008 = vmatpush1.msra.mxu0 %v9618
        %10009 = vmatprep.subr.mxu0 0.0
        %10010 = vmatpush1.msra.mxu0 %v9619
        %10011 = vmatprep.subr.mxu0 0.0
        %10012 = vmatpush1.msra.mxu0 %v9620
        %10013 = vmatprep.subr.mxu0 0.0
        %10014 = vmatpush1.msra.mxu0 %v9621
        %10015 = vmatprep.mubr.f32.mxu0 %v9658
        %10016 = vmatmul.mubr.f32.gmra.mrb[0].mxu0 %v9657
        %v10017 = vpop.f32.mrb[0].mxu0
        %v10018 = vadd.f32 %v9948, %v10017
        %v10019 = vpop.f32.mrb[0].mxu0
        %10020 = vdwg.mxu0
        %10021 = vmatprep.subr.mxu0 0.0
        %10022 = vmatpush1.msra.mxu0 %v9622
        %10023 = vmatprep.subr.mxu0 0.0
        %10024 = vmatpush1.msra.mxu0 %v9623
        %10025 = vmatprep.subr.mxu0 0.0
        %10026 = vmatpush1.msra.mxu0 %v9624
        %10027 = vmatprep.subr.mxu0 0.0
        %10028 = vmatpush1.msra.mxu0 %v9625
        %10029 = vmatprep.subr.mxu0 0.0
        %10030 = vmatpush1.msra.mxu0 %v9626
        %10031 = vmatprep.subr.mxu0 0.0
        %10032 = vmatpush1.msra.mxu0 %v9627
        %10033 = vmatprep.subr.mxu0 0.0
        %10034 = vmatpush1.msra.mxu0 %v9628
        %10035 = vmatprep.subr.mxu0 0.0
        %10036 = vmatpush1.msra.mxu0 %v9629
        %10037 = vmatprep.subr.mxu0 0.0
        %10038 = vmatpush1.msra.mxu0 %v9630
        %10039 = vmatprep.subr.mxu0 0.0
        %10040 = vmatpush1.msra.mxu0 %v9631
        %10041 = vmatprep.subr.mxu0 0.0
        %10042 = vmatpush1.msra.mxu0 %v9632
        %10043 = vmatprep.subr.mxu0 0.0
        %10044 = vmatpush1.msra.mxu0 %v9633
        %10045 = vmatprep.subr.mxu0 0.0
        %10046 = vmatpush1.msra.mxu0 %v9634
        %10047 = vmatprep.subr.mxu0 0.0
        %10048 = vmatpush1.msra.mxu0 %v9635
        %10049 = vmatprep.subr.mxu0 0.0
        %10050 = vmatpush1.msra.mxu0 %v9636
        %10051 = vmatprep.subr.mxu0 0.0
        %10052 = vmatpush1.msra.mxu0 %v9637
        %10053 = vmatprep.subr.mxu0 0.0
        %10054 = vmatpush1.msra.mxu0 0.0
        %10055 = vmatprep.subr.mxu0 0.0
        %10056 = vmatpush1.msra.mxu0 0.0
        %10057 = vmatprep.subr.mxu0 0.0
        %10058 = vmatpush1.msra.mxu0 0.0
        %10059 = vmatprep.subr.mxu0 0.0
        %10060 = vmatpush1.msra.mxu0 0.0
        %10061 = vmatprep.subr.mxu0 0.0
        %10062 = vmatpush1.msra.mxu0 0.0
        %10063 = vmatprep.subr.mxu0 0.0
        %10064 = vmatpush1.msra.mxu0 0.0
        %10065 = vmatprep.subr.mxu0 0.0
        %10066 = vmatpush1.msra.mxu0 0.0
        %10067 = vmatprep.subr.mxu0 0.0
        %10068 = vmatpush1.msra.mxu0 0.0
        %10069 = vmatprep.subr.mxu0 0.0
        %10070 = vmatpush1.msra.mxu0 0.0
        %10071 = vmatprep.subr.mxu0 0.0
        %10072 = vmatpush1.msra.mxu0 0.0
        %10073 = vmatprep.subr.mxu0 0.0
        %10074 = vmatpush1.msra.mxu0 0.0
        %10075 = vmatprep.subr.mxu0 0.0
        %10076 = vmatpush1.msra.mxu0 0.0
        %10077 = vmatprep.subr.mxu0 0.0
        %10078 = vmatpush1.msra.mxu0 0.0
        %10079 = vmatprep.subr.mxu0 0.0
        %10080 = vmatpush1.msra.mxu0 0.0
        %10081 = vmatprep.subr.mxu0 0.0
        %10082 = vmatpush1.msra.mxu0 0.0
        %10083 = vmatprep.subr.mxu0 0.0
        %10084 = vmatpush1.msra.mxu0 0.0
        %10085 = vmatprep.mubr.f32.mxu0 0.0
        %10086 = vmatmul.mubr.f32.gmra.mrb[0].mxu0 %v9659
        %v10087 = vpop.f32.mrb[0].mxu0
        %v10088 = vadd.f32 %v10018, %v10087
        %v10089 = vpop.f32.mrb[0].mxu0
        %10090 = vdwg.mxu0
        %10091 = vmatprep.subr.mxu0 0.0
        %10092 = vmatpush1.msra.mxu0 %v9285
        %10093 = vmatprep.subr.mxu0 0.0
        %10094 = vmatpush1.msra.mxu0 %v9286
        %10095 = vmatprep.subr.mxu0 0.0
        %10096 = vmatpush1.msra.mxu0 %v9287
        %10097 = vmatprep.subr.mxu0 0.0
        %10098 = vmatpush1.msra.mxu0 %v9288
        %10099 = vmatprep.subr.mxu0 0.0
        %10100 = vmatpush1.msra.mxu0 %v9289
        %10101 = vmatprep.subr.mxu0 0.0
        %10102 = vmatpush1.msra.mxu0 %v9290
        %10103 = vmatprep.subr.mxu0 0.0
        %10104 = vmatpush1.msra.mxu0 %v9291
        %10105 = vmatprep.subr.mxu0 0.0
        %10106 = vmatpush1.msra.mxu0 %v9292
        %10107 = vmatprep.subr.mxu0 0.0
        %10108 = vmatpush1.msra.mxu0 %v9293
        %10109 = vmatprep.subr.mxu0 0.0
        %10110 = vmatpush1.msra.mxu0 %v9294
        %10111 = vmatprep.subr.mxu0 0.0
        %10112 = vmatpush1.msra.mxu0 %v9295
        %10113 = vmatprep.subr.mxu0 0.0
        %10114 = vmatpush1.msra.mxu0 %v9296
        %10115 = vmatprep.subr.mxu0 0.0
        %10116 = vmatpush1.msra.mxu0 %v9297
        %10117 = vmatprep.subr.mxu0 0.0
        %10118 = vmatpush1.msra.mxu0 %v9298
        %10119 = vmatprep.subr.mxu0 0.0
        %10120 = vmatpush1.msra.mxu0 %v9299
        %10121 = vmatprep.subr.mxu0 0.0
        %10122 = vmatpush1.msra.mxu0 %v9300
        %10123 = vmatprep.subr.mxu0 0.0
        %10124 = vmatpush1.msra.mxu0 %v9301
        %10125 = vmatprep.subr.mxu0 0.0
        %10126 = vmatpush1.msra.mxu0 %v9302
        %10127 = vmatprep.subr.mxu0 0.0
        %10128 = vmatpush1.msra.mxu0 %v9303
        %10129 = vmatprep.subr.mxu0 0.0
        %10130 = vmatpush1.msra.mxu0 %v9304
        %10131 = vmatprep.subr.mxu0 0.0
        %10132 = vmatpush1.msra.mxu0 %v9305
        %10133 = vmatprep.subr.mxu0 0.0
        %10134 = vmatpush1.msra.mxu0 %v9306
        %10135 = vmatprep.subr.mxu0 0.0
        %10136 = vmatpush1.msra.mxu0 %v9307
        %10137 = vmatprep.subr.mxu0 0.0
        %10138 = vmatpush1.msra.mxu0 %v9308
        %10139 = vmatprep.subr.mxu0 0.0
        %10140 = vmatpush1.msra.mxu0 %v9309
        %10141 = vmatprep.subr.mxu0 0.0
        %10142 = vmatpush1.msra.mxu0 %v9310
        %10143 = vmatprep.subr.mxu0 0.0
        %10144 = vmatpush1.msra.mxu0 %v9311
        %10145 = vmatprep.subr.mxu0 0.0
        %10146 = vmatpush1.msra.mxu0 %v9312
        %10147 = vmatprep.subr.mxu0 0.0
        %10148 = vmatpush1.msra.mxu0 %v9313
        %10149 = vmatprep.subr.mxu0 0.0
        %10150 = vmatpush1.msra.mxu0 %v9314
        %10151 = vmatprep.subr.mxu0 0.0
        %10152 = vmatpush1.msra.mxu0 %v9315
        %10153 = vmatprep.subr.mxu0 0.0
        %10154 = vmatpush1.msra.mxu0 %v9316
        %10155 = vmatprep.mubr.f32.mxu0 %v9275
        %10156 = vmatmul.mubr.f32.gmra.mrb[0].mxu0 %v9274
        %v10157 = vpop.f32.mrb[0].mxu0
        %v10158 = vadd.f32 %v10088, %v10157
        %v10159 = vpop.f32.mrb[0].mxu0
        %10160 = vdwg.mxu0
        %10161 = vmatprep.subr.mxu0 0.0
        %10162 = vmatpush1.msra.mxu0 %v9317
        %10163 = vmatprep.subr.mxu0 0.0
        %10164 = vmatpush1.msra.mxu0 %v9318
        %10165 = vmatprep.subr.mxu0 0.0
        %10166 = vmatpush1.msra.mxu0 %v9319
        %10167 = vmatprep.subr.mxu0 0.0
        %10168 = vmatpush1.msra.mxu0 %v9320
        %10169 = vmatprep.subr.mxu0 0.0
        %10170 = vmatpush1.msra.mxu0 %v9321
        %10171 = vmatprep.subr.mxu0 0.0
        %10172 = vmatpush1.msra.mxu0 %v9322
        %10173 = vmatprep.subr.mxu0 0.0
        %10174 = vmatpush1.msra.mxu0 %v9323
        %10175 = vmatprep.subr.mxu0 0.0
        %10176 = vmatpush1.msra.mxu0 %v9324
        %10177 = vmatprep.subr.mxu0 0.0
        %10178 = vmatpush1.msra.mxu0 %v9325
        %10179 = vmatprep.subr.mxu0 0.0
        %10180 = vmatpush1.msra.mxu0 %v9326
        %10181 = vmatprep.subr.mxu0 0.0
        %10182 = vmatpush1.msra.mxu0 %v9327
        %10183 = vmatprep.subr.mxu0 0.0
        %10184 = vmatpush1.msra.mxu0 %v9328
        %10185 = vmatprep.subr.mxu0 0.0
        %10186 = vmatpush1.msra.mxu0 %v9329
        %10187 = vmatprep.subr.mxu0 0.0
        %10188 = vmatpush1.msra.mxu0 %v9330
        %10189 = vmatprep.subr.mxu0 0.0
        %10190 = vmatpush1.msra.mxu0 %v9331
        %10191 = vmatprep.subr.mxu0 0.0
        %10192 = vmatpush1.msra.mxu0 %v9332
        %10193 = vmatprep.subr.mxu0 0.0
        %10194 = vmatpush1.msra.mxu0 %v9333
        %10195 = vmatprep.subr.mxu0 0.0
        %10196 = vmatpush1.msra.mxu0 %v9334
        %10197 = vmatprep.subr.mxu0 0.0
        %10198 = vmatpush1.msra.mxu0 %v9335
        %10199 = vmatprep.subr.mxu0 0.0
        %10200 = vmatpush1.msra.mxu0 %v9336
        %10201 = vmatprep.subr.mxu0 0.0
        %10202 = vmatpush1.msra.mxu0 %v9337
        %10203 = vmatprep.subr.mxu0 0.0
        %10204 = vmatpush1.msra.mxu0 %v9338
        %10205 = vmatprep.subr.mxu0 0.0
        %10206 = vmatpush1.msra.mxu0 %v9339
        %10207 = vmatprep.subr.mxu0 0.0
        %10208 = vmatpush1.msra.mxu0 %v9340
        %10209 = vmatprep.subr.mxu0 0.0
        %10210 = vmatpush1.msra.mxu0 %v9341
        %10211 = vmatprep.subr.mxu0 0.0
        %10212 = vmatpush1.msra.mxu0 %v9342
        %10213 = vmatprep.subr.mxu0 0.0
        %10214 = vmatpush1.msra.mxu0 %v9343
        %10215 = vmatprep.subr.mxu0 0.0
        %10216 = vmatpush1.msra.mxu0 %v9344
        %10217 = vmatprep.subr.mxu0 0.0
        %10218 = vmatpush1.msra.mxu0 %v9345
        %10219 = vmatprep.subr.mxu0 0.0
        %10220 = vmatpush1.msra.mxu0 %v9346
        %10221 = vmatprep.subr.mxu0 0.0
        %10222 = vmatpush1.msra.mxu0 %v9347
        %10223 = vmatprep.subr.mxu0 0.0
        %10224 = vmatpush1.msra.mxu0 %v9348
        %10225 = vmatprep.mubr.f32.mxu0 %v9277
        %10226 = vmatmul.mubr.f32.gmra.mrb[0].mxu0 %v9276
        %v10227 = vpop.f32.mrb[0].mxu0
        %v10228 = vadd.f32 %v10158, %v10227
        %v10229 = vpop.f32.mrb[0].mxu0
        %10230 = vdwg.mxu0
        %10231 = vmatprep.subr.mxu0 0.0
        %10232 = vmatpush1.msra.mxu0 %v9349
        %10233 = vmatprep.subr.mxu0 0.0
        %10234 = vmatpush1.msra.mxu0 %v9350
        %10235 = vmatprep.subr.mxu0 0.0
        %10236 = vmatpush1.msra.mxu0 %v9351
        %10237 = vmatprep.subr.mxu0 0.0
        %10238 = vmatpush1.msra.mxu0 %v9352
        %10239 = vmatprep.subr.mxu0 0.0
        %10240 = vmatpush1.msra.mxu0 %v9353
        %10241 = vmatprep.subr.mxu0 0.0
        %10242 = vmatpush1.msra.mxu0 %v9354
        %10243 = vmatprep.subr.mxu0 0.0
        %10244 = vmatpush1.msra.mxu0 %v9355
        %10245 = vmatprep.subr.mxu0 0.0
        %10246 = vmatpush1.msra.mxu0 %v9356
        %10247 = vmatprep.subr.mxu0 0.0
        %10248 = vmatpush1.msra.mxu0 %v9357
        %10249 = vmatprep.subr.mxu0 0.0
        %10250 = vmatpush1.msra.mxu0 %v9358
        %10251 = vmatprep.subr.mxu0 0.0
        %10252 = vmatpush1.msra.mxu0 %v9359
        %10253 = vmatprep.subr.mxu0 0.0
        %10254 = vmatpush1.msra.mxu0 %v9360
        %10255 = vmatprep.subr.mxu0 0.0
        %10256 = vmatpush1.msra.mxu0 %v9361
        %10257 = vmatprep.subr.mxu0 0.0
        %10258 = vmatpush1.msra.mxu0 %v9362
        %10259 = vmatprep.subr.mxu0 0.0
        %10260 = vmatpush1.msra.mxu0 %v9363
        %10261 = vmatprep.subr.mxu0 0.0
        %10262 = vmatpush1.msra.mxu0 %v9364
        %10263 = vmatprep.subr.mxu0 0.0
        %10264 = vmatpush1.msra.mxu0 %v9365
        %10265 = vmatprep.subr.mxu0 0.0
        %10266 = vmatpush1.msra.mxu0 %v9366
        %10267 = vmatprep.subr.mxu0 0.0
        %10268 = vmatpush1.msra.mxu0 %v9367
        %10269 = vmatprep.subr.mxu0 0.0
        %10270 = vmatpush1.msra.mxu0 %v9368
        %10271 = vmatprep.subr.mxu0 0.0
        %10272 = vmatpush1.msra.mxu0 %v9369
        %10273 = vmatprep.subr.mxu0 0.0
        %10274 = vmatpush1.msra.mxu0 %v9370
        %10275 = vmatprep.subr.mxu0 0.0
        %10276 = vmatpush1.msra.mxu0 %v9371
        %10277 = vmatprep.subr.mxu0 0.0
        %10278 = vmatpush1.msra.mxu0 %v9372
        %10279 = vmatprep.subr.mxu0 0.0
        %10280 = vmatpush1.msra.mxu0 %v9373
        %10281 = vmatprep.subr.mxu0 0.0
        %10282 = vmatpush1.msra.mxu0 %v9374
        %10283 = vmatprep.subr.mxu0 0.0
        %10284 = vmatpush1.msra.mxu0 %v9375
        %10285 = vmatprep.subr.mxu0 0.0
        %10286 = vmatpush1.msra.mxu0 %v9376
        %10287 = vmatprep.subr.mxu0 0.0
        %10288 = vmatpush1.msra.mxu0 %v9377
        %10289 = vmatprep.subr.mxu0 0.0
        %10290 = vmatpush1.msra.mxu0 %v9378
        %10291 = vmatprep.subr.mxu0 0.0
        %10292 = vmatpush1.msra.mxu0 %v9379
        %10293 = vmatprep.subr.mxu0 0.0
        %10294 = vmatpush1.msra.mxu0 %v9380
        %10295 = vmatprep.mubr.f32.mxu0 %v9279
        %10296 = vmatmul.mubr.f32.gmra.mrb[0].mxu0 %v9278
        %v10297 = vpop.f32.mrb[0].mxu0
        %v10298 = vadd.f32 %v10228, %v10297
        %v10299 = vpop.f32.mrb[0].mxu0
        %10300 = vdwg.mxu0
        %10301 = vmatprep.subr.mxu0 0.0
        %10302 = vmatpush1.msra.mxu0 %v9381
        %10303 = vmatprep.subr.mxu0 0.0
        %10304 = vmatpush1.msra.mxu0 %v9382
        %10305 = vmatprep.subr.mxu0 0.0
        %10306 = vmatpush1.msra.mxu0 %v9383
        %10307 = vmatprep.subr.mxu0 0.0
        %10308 = vmatpush1.msra.mxu0 %v9384
        %10309 = vmatprep.subr.mxu0 0.0
        %10310 = vmatpush1.msra.mxu0 %v9385
        %10311 = vmatprep.subr.mxu0 0.0
        %10312 = vmatpush1.msra.mxu0 %v9386
        %10313 = vmatprep.subr.mxu0 0.0
        %10314 = vmatpush1.msra.mxu0 %v9387
        %10315 = vmatprep.subr.mxu0 0.0
        %10316 = vmatpush1.msra.mxu0 %v9388
        %10317 = vmatprep.subr.mxu0 0.0
        %10318 = vmatpush1.msra.mxu0 %v9389
        %10319 = vmatprep.subr.mxu0 0.0
        %10320 = vmatpush1.msra.mxu0 %v9390
        %10321 = vmatprep.subr.mxu0 0.0
        %10322 = vmatpush1.msra.mxu0 %v9391
        %10323 = vmatprep.subr.mxu0 0.0
        %10324 = vmatpush1.msra.mxu0 %v9392
        %10325 = vmatprep.subr.mxu0 0.0
        %10326 = vmatpush1.msra.mxu0 %v9393
        %10327 = vmatprep.subr.mxu0 0.0
        %10328 = vmatpush1.msra.mxu0 %v9394
        %10329 = vmatprep.subr.mxu0 0.0
        %10330 = vmatpush1.msra.mxu0 %v9395
        %10331 = vmatprep.subr.mxu0 0.0
        %10332 = vmatpush1.msra.mxu0 %v9396
        %10333 = vmatprep.subr.mxu0 0.0
        %10334 = vmatpush1.msra.mxu0 %v9397
        %10335 = vmatprep.subr.mxu0 0.0
        %10336 = vmatpush1.msra.mxu0 %v9398
        %10337 = vmatprep.subr.mxu0 0.0
        %10338 = vmatpush1.msra.mxu0 %v9399
        %10339 = vmatprep.subr.mxu0 0.0
        %10340 = vmatpush1.msra.mxu0 %v9400
        %10341 = vmatprep.subr.mxu0 0.0
        %10342 = vmatpush1.msra.mxu0 %v9401
        %10343 = vmatprep.subr.mxu0 0.0
        %10344 = vmatpush1.msra.mxu0 %v9402
        %10345 = vmatprep.subr.mxu0 0.0
        %10346 = vmatpush1.msra.mxu0 %v9403
        %10347 = vmatprep.subr.mxu0 0.0
        %10348 = vmatpush1.msra.mxu0 %v9404
        %10349 = vmatprep.subr.mxu0 0.0
        %10350 = vmatpush1.msra.mxu0 %v9405
        %10351 = vmatprep.subr.mxu0 0.0
        %10352 = vmatpush1.msra.mxu0 %v9406
        %10353 = vmatprep.subr.mxu0 0.0
        %10354 = vmatpush1.msra.mxu0 %v9407
        %10355 = vmatprep.subr.mxu0 0.0
        %10356 = vmatpush1.msra.mxu0 %v9408
        %10357 = vmatprep.subr.mxu0 0.0
        %10358 = vmatpush1.msra.mxu0 %v9409
        %10359 = vmatprep.subr.mxu0 0.0
        %10360 = vmatpush1.msra.mxu0 %v9410
        %10361 = vmatprep.subr.mxu0 0.0
        %10362 = vmatpush1.msra.mxu0 %v9411
        %10363 = vmatprep.subr.mxu0 0.0
        %10364 = vmatpush1.msra.mxu0 %v9412
        %10365 = vmatprep.mubr.f32.mxu0 %v9281
        %10366 = vmatmul.mubr.f32.gmra.mrb[0].mxu0 %v9280
        %v10367 = vpop.f32.mrb[0].mxu0
        %v10368 = vadd.f32 %v10298, %v10367
        %v10369 = vpop.f32.mrb[0].mxu0
        %10370 = vdwg.mxu0
        %10371 = vmatprep.subr.mxu0 0.0
        %10372 = vmatpush1.msra.mxu0 %v9413
        %10373 = vmatprep.subr.mxu0 0.0
        %10374 = vmatpush1.msra.mxu0 %v9414
        %10375 = vmatprep.subr.mxu0 0.0
        %10376 = vmatpush1.msra.mxu0 %v9415
        %10377 = vmatprep.subr.mxu0 0.0
        %10378 = vmatpush1.msra.mxu0 %v9416
        %10379 = vmatprep.subr.mxu0 0.0
        %10380 = vmatpush1.msra.mxu0 %v9417
        %10381 = vmatprep.subr.mxu0 0.0
        %10382 = vmatpush1.msra.mxu0 %v9418
        %10383 = vmatprep.subr.mxu0 0.0
        %10384 = vmatpush1.msra.mxu0 %v9419
        %10385 = vmatprep.subr.mxu0 0.0
        %10386 = vmatpush1.msra.mxu0 %v9420
        %10387 = vmatprep.subr.mxu0 0.0
        %10388 = vmatpush1.msra.mxu0 %v9421
        %10389 = vmatprep.subr.mxu0 0.0
        %10390 = vmatpush1.msra.mxu0 %v9422
        %10391 = vmatprep.subr.mxu0 0.0
        %10392 = vmatpush1.msra.mxu0 %v9423
        %10393 = vmatprep.subr.mxu0 0.0
        %10394 = vmatpush1.msra.mxu0 %v9424
        %10395 = vmatprep.subr.mxu0 0.0
        %10396 = vmatpush1.msra.mxu0 %v9425
        %10397 = vmatprep.subr.mxu0 0.0
        %10398 = vmatpush1.msra.mxu0 %v9426
        %10399 = vmatprep.subr.mxu0 0.0
        %10400 = vmatpush1.msra.mxu0 %v9427
        %10401 = vmatprep.subr.mxu0 0.0
        %10402 = vmatpush1.msra.mxu0 %v9428
        %10403 = vmatprep.subr.mxu0 0.0
        %10404 = vmatpush1.msra.mxu0 %v9429
        %10405 = vmatprep.subr.mxu0 0.0
        %10406 = vmatpush1.msra.mxu0 %v9430
        %10407 = vmatprep.subr.mxu0 0.0
        %10408 = vmatpush1.msra.mxu0 %v9431
        %10409 = vmatprep.subr.mxu0 0.0
        %10410 = vmatpush1.msra.mxu0 %v9432
        %10411 = vmatprep.subr.mxu0 0.0
        %10412 = vmatpush1.msra.mxu0 %v9433
        %10413 = vmatprep.subr.mxu0 0.0
        %10414 = vmatpush1.msra.mxu0 %v9434
        %10415 = vmatprep.subr.mxu0 0.0
        %10416 = vmatpush1.msra.mxu0 %v9435
        %10417 = vmatprep.subr.mxu0 0.0
        %10418 = vmatpush1.msra.mxu0 %v9436
        %10419 = vmatprep.subr.mxu0 0.0
        %10420 = vmatpush1.msra.mxu0 %v9437
        %10421 = vmatprep.subr.mxu0 0.0
        %10422 = vmatpush1.msra.mxu0 %v9438
        %10423 = vmatprep.subr.mxu0 0.0
        %10424 = vmatpush1.msra.mxu0 %v9439
        %10425 = vmatprep.subr.mxu0 0.0
        %10426 = vmatpush1.msra.mxu0 %v9440
        %10427 = vmatprep.subr.mxu0 0.0
        %10428 = vmatpush1.msra.mxu0 %v9441
        %10429 = vmatprep.subr.mxu0 0.0
        %10430 = vmatpush1.msra.mxu0 %v9442
        %10431 = vmatprep.subr.mxu0 0.0
        %10432 = vmatpush1.msra.mxu0 %v9443
        %10433 = vmatprep.subr.mxu0 0.0
        %10434 = vmatpush1.msra.mxu0 %v9444
        %10435 = vmatprep.mubr.f32.mxu0 %v9283
        %10436 = vmatmul.mubr.f32.gmra.mrb[0].mxu0 %v9282
        %v10437 = vpop.f32.mrb[0].mxu0
        %v10438 = vadd.f32 %v10368, %v10437
        %v10439 = vpop.f32.mrb[0].mxu0
        %10440 = vdwg.mxu0
        %10441 = vmatprep.subr.mxu0 0.0
        %10442 = vmatpush1.msra.mxu0 %v9445
        %10443 = vmatprep.subr.mxu0 0.0
        %10444 = vmatpush1.msra.mxu0 %v9446
        %10445 = vmatprep.subr.mxu0 0.0
        %10446 = vmatpush1.msra.mxu0 %v9447
        %10447 = vmatprep.subr.mxu0 0.0
        %10448 = vmatpush1.msra.mxu0 %v9448
        %10449 = vmatprep.subr.mxu0 0.0
        %10450 = vmatpush1.msra.mxu0 %v9449
        %10451 = vmatprep.subr.mxu0 0.0
        %10452 = vmatpush1.msra.mxu0 %v9450
        %10453 = vmatprep.subr.mxu0 0.0
        %10454 = vmatpush1.msra.mxu0 %v9451
        %10455 = vmatprep.subr.mxu0 0.0
        %10456 = vmatpush1.msra.mxu0 %v9452
        %10457 = vmatprep.subr.mxu0 0.0
        %10458 = vmatpush1.msra.mxu0 %v9453
        %10459 = vmatprep.subr.mxu0 0.0
        %10460 = vmatpush1.msra.mxu0 %v9454
        %10461 = vmatprep.subr.mxu0 0.0
        %10462 = vmatpush1.msra.mxu0 %v9455
        %10463 = vmatprep.subr.mxu0 0.0
        %10464 = vmatpush1.msra.mxu0 %v9456
        %10465 = vmatprep.subr.mxu0 0.0
        %10466 = vmatpush1.msra.mxu0 %v9457
        %10467 = vmatprep.subr.mxu0 0.0
        %10468 = vmatpush1.msra.mxu0 %v9458
        %10469 = vmatprep.subr.mxu0 0.0
        %10470 = vmatpush1.msra.mxu0 %v9459
        %10471 = vmatprep.subr.mxu0 0.0
        %10472 = vmatpush1.msra.mxu0 %v9460
        %10473 = vmatprep.subr.mxu0 0.0
        %10474 = vmatpush1.msra.mxu0 0.0
        %10475 = vmatprep.subr.mxu0 0.0
        %10476 = vmatpush1.msra.mxu0 0.0
        %10477 = vmatprep.subr.mxu0 0.0
        %10478 = vmatpush1.msra.mxu0 0.0
        %10479 = vmatprep.subr.mxu0 0.0
        %10480 = vmatpush1.msra.mxu0 0.0
        %10481 = vmatprep.subr.mxu0 0.0
        %10482 = vmatpush1.msra.mxu0 0.0
        %10483 = vmatprep.subr.mxu0 0.0
        %10484 = vmatpush1.msra.mxu0 0.0
        %10485 = vmatprep.subr.mxu0 0.0
        %10486 = vmatpush1.msra.mxu0 0.0
        %10487 = vmatprep.subr.mxu0 0.0
        %10488 = vmatpush1.msra.mxu0 0.0
        %10489 = vmatprep.subr.mxu0 0.0
        %10490 = vmatpush1.msra.mxu0 0.0
        %10491 = vmatprep.subr.mxu0 0.0
        %10492 = vmatpush1.msra.mxu0 0.0
        %10493 = vmatprep.subr.mxu0 0.0
        %10494 = vmatpush1.msra.mxu0 0.0
        %10495 = vmatprep.subr.mxu0 0.0
        %10496 = vmatpush1.msra.mxu0 0.0
        %10497 = vmatprep.subr.mxu0 0.0
        %10498 = vmatpush1.msra.mxu0 0.0
        %10499 = vmatprep.subr.mxu0 0.0
        %10500 = vmatpush1.msra.mxu0 0.0
        %10501 = vmatprep.subr.mxu0 0.0
        %10502 = vmatpush1.msra.mxu0 0.0
        %10503 = vmatprep.subr.mxu0 0.0
        %10504 = vmatpush1.msra.mxu0 0.0
        %10505 = vmatprep.mubr.f32.mxu0 0.0
        %10506 = vmatmul.mubr.f32.gmra.mrb[0].mxu0 %v9284
        %v10507 = vpop.f32.mrb[0].mxu0
        %v10508 = vadd.f32 %v10438, %v10507
        %v10509 = vpop.f32.mrb[0].mxu0
        %10510 = vdwg.mxu0
        %s10511 = scalar_lea.vmem %s5, 2816
        %v10512 = vld [vmem:[%s10511] sm:$0xff]
        %v10513 = vld [vmem:[%s10511 + $0x8] sm:$0xff]
        %v10514 = vld [vmem:[%s10511 + $0x10] sm:$0xff]
        %v10515 = vld [vmem:[%s10511 + $0x18] sm:$0xff]
        %v10516 = vld [vmem:[%s10511 + $0x20] sm:$0xff]
        %v10517 = vld [vmem:[%s10511 + $0x28] sm:$0xff]
        %v10518 = vld [vmem:[%s10511 + $0x30] sm:$0xff]
        %v10519 = vld [vmem:[%s10511 + $0x38] sm:$0xff]
        %v10520 = vld [vmem:[%s10511 + $0x40] sm:$0xff]
        %v10521 = vld [vmem:[%s10511 + $0x48] sm:$0xff]
        %v10522 = vld [vmem:[%s10511 + $0x50] sm:$0xff]
        %v10523 = vld [vmem:[%s10511 + $0x58] sm:$0xff]
        %v10524 = vld [vmem:[%s10511 + $0x60] sm:$0xff]
        %v10525 = vld [vmem:[%s10511 + $0x68] sm:$0xff]
        %v10526 = vld [vmem:[%s10511 + $0x70] sm:$0xff]
        %v10527 = vld [vmem:[%s10511 + $0x78] sm:$0xff]
        %v10528 = vld [vmem:[%s10511 + $0x80] sm:$0xff]
        %v10529 = vld [vmem:[%s10511 + $0x88] sm:$0xff]
        %v10530 = vld [vmem:[%s10511 + $0x90] sm:$0xff]
        %v10531 = vld [vmem:[%s10511 + $0x98] sm:$0xff]
        %v10532 = vld [vmem:[%s10511 + $0xa0] sm:$0xff]
        %v10533 = vld [vmem:[%s10511 + $0xa8] sm:$0xff]
        %v10534 = vld [vmem:[%s10511 + $0xb0] sm:$0xff]
        %v10535 = vld [vmem:[%s10511 + $0xb8] sm:$0xff]
        %v10536 = vld [vmem:[%s10511 + $0xc0] sm:$0xff]
        %v10537 = vld [vmem:[%s10511 + $0xc8] sm:$0xff]
        %v10538 = vld [vmem:[%s10511 + $0xd0] sm:$0xff]
        %v10539 = vld [vmem:[%s10511 + $0xd8] sm:$0xff]
        %v10540 = vld [vmem:[%s10511 + $0xe0] sm:$0xff]
        %v10541 = vld [vmem:[%s10511 + $0xe8] sm:$0xff]
        %v10542 = vld [vmem:[%s10511 + $0xf0] sm:$0xff]
        %v10543 = vld [vmem:[%s10511 + $0xf8] sm:$0xff]
        %v10544 = vld [vmem:[%s10511 + $0x100] sm:$0xff]
        %v10545 = vld [vmem:[%s10511 + $0x108] sm:$0xff]
        %v10546 = vld [vmem:[%s10511 + $0x110] sm:$0xff]
        %v10547 = vld [vmem:[%s10511 + $0x118] sm:$0xff]
        %v10548 = vld [vmem:[%s10511 + $0x120] sm:$0xff]
        %v10549 = vld [vmem:[%s10511 + $0x128] sm:$0xff]
        %v10550 = vld [vmem:[%s10511 + $0x130] sm:$0xff]
        %v10551 = vld [vmem:[%s10511 + $0x138] sm:$0xff]
        %v10552 = vld [vmem:[%s10511 + $0x140] sm:$0xff]
        %v10553 = vld [vmem:[%s10511 + $0x148] sm:$0xff]
        %v10554 = vld [vmem:[%s10511 + $0x150] sm:$0xff]
        %v10555 = vld [vmem:[%s10511 + $0x158] sm:$0xff]
        %v10556 = vld [vmem:[%s10511 + $0x160] sm:$0xff]
        %v10557 = vld [vmem:[%s10511 + $0x168] sm:$0xff]
        %v10558 = vld [vmem:[%s10511 + $0x170] sm:$0xff]
        %v10559 = vld [vmem:[%s10511 + $0x178] sm:$0xff]
        %v10560 = vld [vmem:[%s10511 + $0x180] sm:$0xff]
        %v10561 = vld [vmem:[%s10511 + $0x188] sm:$0xff]
        %v10562 = vld [vmem:[%s10511 + $0x190] sm:$0xff]
        %v10563 = vld [vmem:[%s10511 + $0x198] sm:$0xff]
        %v10564 = vld [vmem:[%s10511 + $0x1a0] sm:$0xff]
        %v10565 = vld [vmem:[%s10511 + $0x1a8] sm:$0xff]
        %v10566 = vld [vmem:[%s10511 + $0x1b0] sm:$0xff]
        %v10567 = vld [vmem:[%s10511 + $0x1b8] sm:$0xff]
        %v10568 = vld [vmem:[%s10511 + $0x1c0] sm:$0xff]
        %v10569 = vld [vmem:[%s10511 + $0x1c8] sm:$0xff]
        %v10570 = vld [vmem:[%s10511 + $0x1d0] sm:$0xff]
        %v10571 = vld [vmem:[%s10511 + $0x1d8] sm:$0xff]
        %v10572 = vld [vmem:[%s10511 + $0x1e0] sm:$0xff]
        %v10573 = vld [vmem:[%s10511 + $0x1e8] sm:$0xff]
        %v10574 = vld [vmem:[%s10511 + $0x1f0] sm:$0xff]
        %v10575 = vld [vmem:[%s10511 + $0x1f8] sm:$0xff]
        %v10576 = vld [vmem:[%s10511 + $0x200] sm:$0xff]
        %v10577 = vld [vmem:[%s10511 + $0x208] sm:$0xff]
        %v10578 = vld [vmem:[%s10511 + $0x210] sm:$0xff]
        %v10579 = vld [vmem:[%s10511 + $0x218] sm:$0xff]
        %v10580 = vld [vmem:[%s10511 + $0x220] sm:$0xff]
        %v10581 = vld [vmem:[%s10511 + $0x228] sm:$0xff]
        %v10582 = vld [vmem:[%s10511 + $0x230] sm:$0xff]
        %v10583 = vld [vmem:[%s10511 + $0x238] sm:$0xff]
        %v10584 = vld [vmem:[%s10511 + $0x240] sm:$0xff]
        %v10585 = vld [vmem:[%s10511 + $0x248] sm:$0xff]
        %v10586 = vld [vmem:[%s10511 + $0x250] sm:$0xff]
        %v10587 = vld [vmem:[%s10511 + $0x258] sm:$0xff]
        %v10588 = vld [vmem:[%s10511 + $0x260] sm:$0xff]
        %v10589 = vld [vmem:[%s10511 + $0x268] sm:$0xff]
        %v10590 = vld [vmem:[%s10511 + $0x270] sm:$0xff]
        %v10591 = vld [vmem:[%s10511 + $0x278] sm:$0xff]
        %v10592 = vld [vmem:[%s10511 + $0x280] sm:$0xff]
        %v10593 = vld [vmem:[%s10511 + $0x288] sm:$0xff]
        %v10594 = vld [vmem:[%s10511 + $0x290] sm:$0xff]
        %v10595 = vld [vmem:[%s10511 + $0x298] sm:$0xff]
        %v10596 = vld [vmem:[%s10511 + $0x2a0] sm:$0xff]
        %v10597 = vld [vmem:[%s10511 + $0x2a8] sm:$0xff]
        %v10598 = vld [vmem:[%s10511 + $0x2b0] sm:$0xff]
        %v10599 = vld [vmem:[%s10511 + $0x2b8] sm:$0xff]
        %v10600 = vld [vmem:[%s10511 + $0x2c0] sm:$0xff]
        %v10601 = vld [vmem:[%s10511 + $0x2c8] sm:$0xff]
        %v10602 = vld [vmem:[%s10511 + $0x2d0] sm:$0xff]
        %v10603 = vld [vmem:[%s10511 + $0x2d8] sm:$0xff]
        %v10604 = vld [vmem:[%s10511 + $0x2e0] sm:$0xff]
        %v10605 = vld [vmem:[%s10511 + $0x2e8] sm:$0xff]
        %v10606 = vld [vmem:[%s10511 + $0x2f0] sm:$0xff]
        %v10607 = vld [vmem:[%s10511 + $0x2f8] sm:$0xff]
        %v10608 = vld [vmem:[%s10511 + $0x300] sm:$0xff]
        %v10609 = vld [vmem:[%s10511 + $0x308] sm:$0xff]
        %v10610 = vld [vmem:[%s10511 + $0x310] sm:$0xff]
        %v10611 = vld [vmem:[%s10511 + $0x318] sm:$0xff]
        %v10612 = vld [vmem:[%s10511 + $0x320] sm:$0xff]
        %v10613 = vld [vmem:[%s10511 + $0x328] sm:$0xff]
        %v10614 = vld [vmem:[%s10511 + $0x330] sm:$0xff]
        %v10615 = vld [vmem:[%s10511 + $0x338] sm:$0xff]
        %v10616 = vld [vmem:[%s10511 + $0x340] sm:$0xff]
        %v10617 = vld [vmem:[%s10511 + $0x348] sm:$0xff]
        %v10618 = vld [vmem:[%s10511 + $0x350] sm:$0xff]
        %v10619 = vld [vmem:[%s10511 + $0x358] sm:$0xff]
        %v10620 = vld [vmem:[%s10511 + $0x360] sm:$0xff]
        %v10621 = vld [vmem:[%s10511 + $0x368] sm:$0xff]
        %v10622 = vld [vmem:[%s10511 + $0x370] sm:$0xff]
        %v10623 = vld [vmem:[%s10511 + $0x378] sm:$0xff]
        %v10624 = vld [vmem:[%s10511 + $0x380] sm:$0xff]
        %v10625 = vld [vmem:[%s10511 + $0x388] sm:$0xff]
        %v10626 = vld [vmem:[%s10511 + $0x390] sm:$0xff]
        %v10627 = vld [vmem:[%s10511 + $0x398] sm:$0xff]
        %v10628 = vld [vmem:[%s10511 + $0x3a0] sm:$0xff]
        %v10629 = vld [vmem:[%s10511 + $0x3a8] sm:$0xff]
        %v10630 = vld [vmem:[%s10511 + $0x3b0] sm:$0xff]
        %v10631 = vld [vmem:[%s10511 + $0x3b8] sm:$0xff]
        %v10632 = vld [vmem:[%s10511 + $0x3c0] sm:$0xff]
        %v10633 = vld [vmem:[%s10511 + $0x3c8] sm:$0xff]
        %v10634 = vld [vmem:[%s10511 + $0x3d0] sm:$0xff]
        %v10635 = vld [vmem:[%s10511 + $0x3d8] sm:$0xff]
        %v10636 = vld [vmem:[%s10511 + $0x3e0] sm:$0xff]
        %v10637 = vld [vmem:[%s10511 + $0x3e8] sm:$0xff]
        %v10638 = vld [vmem:[%s10511 + $0x3f0] sm:$0xff]
        %v10639 = vld [vmem:[%s10511 + $0x3f8] sm:$0xff]
        %v10640 = vld [vmem:[%s10511 + $0x400] sm:$0xff]
        %v10641 = vld [vmem:[%s10511 + $0x408] sm:$0xff]
        %v10642 = vld [vmem:[%s10511 + $0x410] sm:$0xff]
        %v10643 = vld [vmem:[%s10511 + $0x418] sm:$0xff]
        %v10644 = vld [vmem:[%s10511 + $0x420] sm:$0xff]
        %v10645 = vld [vmem:[%s10511 + $0x428] sm:$0xff]
        %v10646 = vld [vmem:[%s10511 + $0x430] sm:$0xff]
        %v10647 = vld [vmem:[%s10511 + $0x438] sm:$0xff]
        %v10648 = vld [vmem:[%s10511 + $0x440] sm:$0xff]
        %v10649 = vld [vmem:[%s10511 + $0x448] sm:$0xff]
        %v10650 = vld [vmem:[%s10511 + $0x450] sm:$0xff]
        %v10651 = vld [vmem:[%s10511 + $0x458] sm:$0xff]
        %v10652 = vld [vmem:[%s10511 + $0x460] sm:$0xff]
        %v10653 = vld [vmem:[%s10511 + $0x468] sm:$0xff]
        %v10654 = vld [vmem:[%s10511 + $0x470] sm:$0xff]
        %v10655 = vld [vmem:[%s10511 + $0x478] sm:$0xff]
        %v10656 = vld [vmem:[%s10511 + $0x480] sm:$0xff]
        %v10657 = vld [vmem:[%s10511 + $0x488] sm:$0xff]
        %v10658 = vld [vmem:[%s10511 + $0x490] sm:$0xff]
        %v10659 = vld [vmem:[%s10511 + $0x498] sm:$0xff]
        %v10660 = vld [vmem:[%s10511 + $0x4a0] sm:$0xff]
        %v10661 = vld [vmem:[%s10511 + $0x4a8] sm:$0xff]
        %v10662 = vld [vmem:[%s10511 + $0x4b0] sm:$0xff]
        %v10663 = vld [vmem:[%s10511 + $0x4b8] sm:$0xff]
        %v10664 = vld [vmem:[%s10511 + $0x4c0] sm:$0xff]
        %v10665 = vld [vmem:[%s10511 + $0x4c8] sm:$0xff]
        %v10666 = vld [vmem:[%s10511 + $0x4d0] sm:$0xff]
        %v10667 = vld [vmem:[%s10511 + $0x4d8] sm:$0xff]
        %v10668 = vld [vmem:[%s10511 + $0x4e0] sm:$0xff]
        %v10669 = vld [vmem:[%s10511 + $0x4e8] sm:$0xff]
        %v10670 = vld [vmem:[%s10511 + $0x4f0] sm:$0xff]
        %v10671 = vld [vmem:[%s10511 + $0x4f8] sm:$0xff]
        %v10672 = vld [vmem:[%s10511 + $0x500] sm:$0xff]
        %v10673 = vld [vmem:[%s10511 + $0x508] sm:$0xff]
        %v10674 = vld [vmem:[%s10511 + $0x510] sm:$0xff]
        %v10675 = vld [vmem:[%s10511 + $0x518] sm:$0xff]
        %v10676 = vld [vmem:[%s10511 + $0x520] sm:$0xff]
        %v10677 = vld [vmem:[%s10511 + $0x528] sm:$0xff]
        %v10678 = vld [vmem:[%s10511 + $0x530] sm:$0xff]
        %v10679 = vld [vmem:[%s10511 + $0x538] sm:$0xff]
        %v10680 = vld [vmem:[%s10511 + $0x540] sm:$0xff]
        %v10681 = vld [vmem:[%s10511 + $0x548] sm:$0xff]
        %v10682 = vld [vmem:[%s10511 + $0x550] sm:$0xff]
        %v10683 = vld [vmem:[%s10511 + $0x558] sm:$0xff]
        %v10684 = vld [vmem:[%s10511 + $0x560] sm:$0xff]
        %v10685 = vld [vmem:[%s10511 + $0x568] sm:$0xff]
        %v10686 = vld [vmem:[%s10511 + $0x570] sm:$0xff]
        %v10687 = vld [vmem:[%s10511 + $0x578] sm:$0xff]
        %v10688 = vrot.slane %v9274, 2
        %v10689 = vrot.slane %v9275, 2
        %v10690 = vrot.slane %v9276, 2
        %v10691 = vrot.slane %v9277, 2
        %v10692 = vrot.slane %v9278, 2
        %v10693 = vrot.slane %v9279, 2
        %v10694 = vrot.slane %v9280, 2
        %v10695 = vrot.slane %v9281, 2
        %v10696 = vrot.slane %v9282, 2
        %v10697 = vrot.slane %v9283, 2
        %v10698 = vrot.slane %v9284, 2
        %10710 = vmatprep.subr.mxu0 0.0
        %10711 = vmatpush1.msra.mxu0 %v10512
        %10712 = vmatprep.subr.mxu0 0.0
        %10713 = vmatpush1.msra.mxu0 %v10513
        %10714 = vmatprep.subr.mxu0 0.0
        %10715 = vmatpush1.msra.mxu0 %v10514
        %10716 = vmatprep.subr.mxu0 0.0
        %10717 = vmatpush1.msra.mxu0 %v10515
        %10718 = vmatprep.subr.mxu0 0.0
        %10719 = vmatpush1.msra.mxu0 %v10516
        %10720 = vmatprep.subr.mxu0 0.0
        %10721 = vmatpush1.msra.mxu0 %v10517
        %10722 = vmatprep.subr.mxu0 0.0
        %10723 = vmatpush1.msra.mxu0 %v10518
        %10724 = vmatprep.subr.mxu0 0.0
        %10725 = vmatpush1.msra.mxu0 %v10519
        %10726 = vmatprep.subr.mxu0 0.0
        %10727 = vmatpush1.msra.mxu0 %v10520
        %10728 = vmatprep.subr.mxu0 0.0
        %10729 = vmatpush1.msra.mxu0 %v10521
        %10730 = vmatprep.subr.mxu0 0.0
        %10731 = vmatpush1.msra.mxu0 %v10522
        %10732 = vmatprep.subr.mxu0 0.0
        %10733 = vmatpush1.msra.mxu0 %v10523
        %10734 = vmatprep.subr.mxu0 0.0
        %10735 = vmatpush1.msra.mxu0 %v10524
        %10736 = vmatprep.subr.mxu0 0.0
        %10737 = vmatpush1.msra.mxu0 %v10525
        %10738 = vmatprep.subr.mxu0 0.0
        %10739 = vmatpush1.msra.mxu0 %v10526
        %10740 = vmatprep.subr.mxu0 0.0
        %10741 = vmatpush1.msra.mxu0 %v10527
        %10742 = vmatprep.subr.mxu0 0.0
        %10743 = vmatpush1.msra.mxu0 %v10528
        %10744 = vmatprep.subr.mxu0 0.0
        %10745 = vmatpush1.msra.mxu0 %v10529
        %10746 = vmatprep.subr.mxu0 0.0
        %10747 = vmatpush1.msra.mxu0 %v10530
        %10748 = vmatprep.subr.mxu0 0.0
        %10749 = vmatpush1.msra.mxu0 %v10531
        %10750 = vmatprep.subr.mxu0 0.0
        %10751 = vmatpush1.msra.mxu0 %v10532
        %10752 = vmatprep.subr.mxu0 0.0
        %10753 = vmatpush1.msra.mxu0 %v10533
        %10754 = vmatprep.subr.mxu0 0.0
        %10755 = vmatpush1.msra.mxu0 %v10534
        %10756 = vmatprep.subr.mxu0 0.0
        %10757 = vmatpush1.msra.mxu0 %v10535
        %10758 = vmatprep.subr.mxu0 0.0
        %10759 = vmatpush1.msra.mxu0 %v10536
        %10760 = vmatprep.subr.mxu0 0.0
        %10761 = vmatpush1.msra.mxu0 %v10537
        %10762 = vmatprep.subr.mxu0 0.0
        %10763 = vmatpush1.msra.mxu0 %v10538
        %10764 = vmatprep.subr.mxu0 0.0
        %10765 = vmatpush1.msra.mxu0 %v10539
        %10766 = vmatprep.subr.mxu0 0.0
        %10767 = vmatpush1.msra.mxu0 %v10540
        %10768 = vmatprep.subr.mxu0 0.0
        %10769 = vmatpush1.msra.mxu0 %v10541
        %10770 = vmatprep.subr.mxu0 0.0
        %10771 = vmatpush1.msra.mxu0 %v10542
        %10772 = vmatprep.subr.mxu0 0.0
        %10773 = vmatpush1.msra.mxu0 %v10543
        %10774 = vmatprep.mubr.f32.mxu0 %v10689
        %10775 = vmatmul.mubr.f32.gmra.mrb[0].mxu0 %v10688
        %v10776 = vpop.f32.mrb[0].mxu0
        %v10777 = vadd.f32 0.0, %v10776
        %v10778 = vpop.f32.mrb[0].mxu0
        %10779 = vdwg.mxu0
        %10780 = vmatprep.subr.mxu0 0.0
        %10781 = vmatpush1.msra.mxu0 %v10544
        %10782 = vmatprep.subr.mxu0 0.0
        %10783 = vmatpush1.msra.mxu0 %v10545
        %10784 = vmatprep.subr.mxu0 0.0
        %10785 = vmatpush1.msra.mxu0 %v10546
        %10786 = vmatprep.subr.mxu0 0.0
        %10787 = vmatpush1.msra.mxu0 %v10547
        %10788 = vmatprep.subr.mxu0 0.0
        %10789 = vmatpush1.msra.mxu0 %v10548
        %10790 = vmatprep.subr.mxu0 0.0
        %10791 = vmatpush1.msra.mxu0 %v10549
        %10792 = vmatprep.subr.mxu0 0.0
        %10793 = vmatpush1.msra.mxu0 %v10550
        %10794 = vmatprep.subr.mxu0 0.0
        %10795 = vmatpush1.msra.mxu0 %v10551
        %10796 = vmatprep.subr.mxu0 0.0
        %10797 = vmatpush1.msra.mxu0 %v10552
        %10798 = vmatprep.subr.mxu0 0.0
        %10799 = vmatpush1.msra.mxu0 %v10553
        %10800 = vmatprep.subr.mxu0 0.0
        %10801 = vmatpush1.msra.mxu0 %v10554
        %10802 = vmatprep.subr.mxu0 0.0
        %10803 = vmatpush1.msra.mxu0 %v10555
        %10804 = vmatprep.subr.mxu0 0.0
        %10805 = vmatpush1.msra.mxu0 %v10556
        %10806 = vmatprep.subr.mxu0 0.0
        %10807 = vmatpush1.msra.mxu0 %v10557
        %10808 = vmatprep.subr.mxu0 0.0
        %10809 = vmatpush1.msra.mxu0 %v10558
        %10810 = vmatprep.subr.mxu0 0.0
        %10811 = vmatpush1.msra.mxu0 %v10559
        %10812 = vmatprep.subr.mxu0 0.0
        %10813 = vmatpush1.msra.mxu0 %v10560
        %10814 = vmatprep.subr.mxu0 0.0
        %10815 = vmatpush1.msra.mxu0 %v10561
        %10816 = vmatprep.subr.mxu0 0.0
        %10817 = vmatpush1.msra.mxu0 %v10562
        %10818 = vmatprep.subr.mxu0 0.0
        %10819 = vmatpush1.msra.mxu0 %v10563
        %10820 = vmatprep.subr.mxu0 0.0
        %10821 = vmatpush1.msra.mxu0 %v10564
        %10822 = vmatprep.subr.mxu0 0.0
        %10823 = vmatpush1.msra.mxu0 %v10565
        %10824 = vmatprep.subr.mxu0 0.0
        %10825 = vmatpush1.msra.mxu0 %v10566
        %10826 = vmatprep.subr.mxu0 0.0
        %10827 = vmatpush1.msra.mxu0 %v10567
        %10828 = vmatprep.subr.mxu0 0.0
        %10829 = vmatpush1.msra.mxu0 %v10568
        %10830 = vmatprep.subr.mxu0 0.0
        %10831 = vmatpush1.msra.mxu0 %v10569
        %10832 = vmatprep.subr.mxu0 0.0
        %10833 = vmatpush1.msra.mxu0 %v10570
        %10834 = vmatprep.subr.mxu0 0.0
        %10835 = vmatpush1.msra.mxu0 %v10571
        %10836 = vmatprep.subr.mxu0 0.0
        %10837 = vmatpush1.msra.mxu0 %v10572
        %10838 = vmatprep.subr.mxu0 0.0
        %10839 = vmatpush1.msra.mxu0 %v10573
        %10840 = vmatprep.subr.mxu0 0.0
        %10841 = vmatpush1.msra.mxu0 %v10574
        %10842 = vmatprep.subr.mxu0 0.0
        %10843 = vmatpush1.msra.mxu0 %v10575
        %10844 = vmatprep.mubr.f32.mxu0 %v10691
        %10845 = vmatmul.mubr.f32.gmra.mrb[0].mxu0 %v10690
        %v10846 = vpop.f32.mrb[0].mxu0
        %v10847 = vadd.f32 %v10777, %v10846
        %v10848 = vpop.f32.mrb[0].mxu0
        %10849 = vdwg.mxu0
        %10850 = vmatprep.subr.mxu0 0.0
        %10851 = vmatpush1.msra.mxu0 %v10576
        %10852 = vmatprep.subr.mxu0 0.0
        %10853 = vmatpush1.msra.mxu0 %v10577
        %10854 = vmatprep.subr.mxu0 0.0
        %10855 = vmatpush1.msra.mxu0 %v10578
        %10856 = vmatprep.subr.mxu0 0.0
        %10857 = vmatpush1.msra.mxu0 %v10579
        %10858 = vmatprep.subr.mxu0 0.0
        %10859 = vmatpush1.msra.mxu0 %v10580
        %10860 = vmatprep.subr.mxu0 0.0
        %10861 = vmatpush1.msra.mxu0 %v10581
        %10862 = vmatprep.subr.mxu0 0.0
        %10863 = vmatpush1.msra.mxu0 %v10582
        %10864 = vmatprep.subr.mxu0 0.0
        %10865 = vmatpush1.msra.mxu0 %v10583
        %10866 = vmatprep.subr.mxu0 0.0
        %10867 = vmatpush1.msra.mxu0 %v10584
        %10868 = vmatprep.subr.mxu0 0.0
        %10869 = vmatpush1.msra.mxu0 %v10585
        %10870 = vmatprep.subr.mxu0 0.0
        %10871 = vmatpush1.msra.mxu0 %v10586
        %10872 = vmatprep.subr.mxu0 0.0
        %10873 = vmatpush1.msra.mxu0 %v10587
        %10874 = vmatprep.subr.mxu0 0.0
        %10875 = vmatpush1.msra.mxu0 %v10588
        %10876 = vmatprep.subr.mxu0 0.0
        %10877 = vmatpush1.msra.mxu0 %v10589
        %10878 = vmatprep.subr.mxu0 0.0
        %10879 = vmatpush1.msra.mxu0 %v10590
        %10880 = vmatprep.subr.mxu0 0.0
        %10881 = vmatpush1.msra.mxu0 %v10591
        %10882 = vmatprep.subr.mxu0 0.0
        %10883 = vmatpush1.msra.mxu0 %v10592
        %10884 = vmatprep.subr.mxu0 0.0
        %10885 = vmatpush1.msra.mxu0 %v10593
        %10886 = vmatprep.subr.mxu0 0.0
        %10887 = vmatpush1.msra.mxu0 %v10594
        %10888 = vmatprep.subr.mxu0 0.0
        %10889 = vmatpush1.msra.mxu0 %v10595
        %10890 = vmatprep.subr.mxu0 0.0
        %10891 = vmatpush1.msra.mxu0 %v10596
        %10892 = vmatprep.subr.mxu0 0.0
        %10893 = vmatpush1.msra.mxu0 %v10597
        %10894 = vmatprep.subr.mxu0 0.0
        %10895 = vmatpush1.msra.mxu0 %v10598
        %10896 = vmatprep.subr.mxu0 0.0
        %10897 = vmatpush1.msra.mxu0 %v10599
        %10898 = vmatprep.subr.mxu0 0.0
        %10899 = vmatpush1.msra.mxu0 %v10600
        %10900 = vmatprep.subr.mxu0 0.0
        %10901 = vmatpush1.msra.mxu0 %v10601
        %10902 = vmatprep.subr.mxu0 0.0
        %10903 = vmatpush1.msra.mxu0 %v10602
        %10904 = vmatprep.subr.mxu0 0.0
        %10905 = vmatpush1.msra.mxu0 %v10603
        %10906 = vmatprep.subr.mxu0 0.0
        %10907 = vmatpush1.msra.mxu0 %v10604
        %10908 = vmatprep.subr.mxu0 0.0
        %10909 = vmatpush1.msra.mxu0 %v10605
        %10910 = vmatprep.subr.mxu0 0.0
        %10911 = vmatpush1.msra.mxu0 %v10606
        %10912 = vmatprep.subr.mxu0 0.0
        %10913 = vmatpush1.msra.mxu0 %v10607
        %10914 = vmatprep.mubr.f32.mxu0 %v10693
        %10915 = vmatmul.mubr.f32.gmra.mrb[0].mxu0 %v10692
        %v10916 = vpop.f32.mrb[0].mxu0
        %v10917 = vadd.f32 %v10847, %v10916
        %v10918 = vpop.f32.mrb[0].mxu0
        %10919 = vdwg.mxu0
        %10920 = vmatprep.subr.mxu0 0.0
        %10921 = vmatpush1.msra.mxu0 %v10608
        %10922 = vmatprep.subr.mxu0 0.0
        %10923 = vmatpush1.msra.mxu0 %v10609
        %10924 = vmatprep.subr.mxu0 0.0
        %10925 = vmatpush1.msra.mxu0 %v10610
        %10926 = vmatprep.subr.mxu0 0.0
        %10927 = vmatpush1.msra.mxu0 %v10611
        %10928 = vmatprep.subr.mxu0 0.0
        %10929 = vmatpush1.msra.mxu0 %v10612
        %10930 = vmatprep.subr.mxu0 0.0
        %10931 = vmatpush1.msra.mxu0 %v10613
        %10932 = vmatprep.subr.mxu0 0.0
        %10933 = vmatpush1.msra.mxu0 %v10614
        %10934 = vmatprep.subr.mxu0 0.0
        %10935 = vmatpush1.msra.mxu0 %v10615
        %10936 = vmatprep.subr.mxu0 0.0
        %10937 = vmatpush1.msra.mxu0 %v10616
        %10938 = vmatprep.subr.mxu0 0.0
        %10939 = vmatpush1.msra.mxu0 %v10617
        %10940 = vmatprep.subr.mxu0 0.0
        %10941 = vmatpush1.msra.mxu0 %v10618
        %10942 = vmatprep.subr.mxu0 0.0
        %10943 = vmatpush1.msra.mxu0 %v10619
        %10944 = vmatprep.subr.mxu0 0.0
        %10945 = vmatpush1.msra.mxu0 %v10620
        %10946 = vmatprep.subr.mxu0 0.0
        %10947 = vmatpush1.msra.mxu0 %v10621
        %10948 = vmatprep.subr.mxu0 0.0
        %10949 = vmatpush1.msra.mxu0 %v10622
        %10950 = vmatprep.subr.mxu0 0.0
        %10951 = vmatpush1.msra.mxu0 %v10623
        %10952 = vmatprep.subr.mxu0 0.0
        %10953 = vmatpush1.msra.mxu0 %v10624
        %10954 = vmatprep.subr.mxu0 0.0
        %10955 = vmatpush1.msra.mxu0 %v10625
        %10956 = vmatprep.subr.mxu0 0.0
        %10957 = vmatpush1.msra.mxu0 %v10626
        %10958 = vmatprep.subr.mxu0 0.0
        %10959 = vmatpush1.msra.mxu0 %v10627
        %10960 = vmatprep.subr.mxu0 0.0
        %10961 = vmatpush1.msra.mxu0 %v10628
        %10962 = vmatprep.subr.mxu0 0.0
        %10963 = vmatpush1.msra.mxu0 %v10629
        %10964 = vmatprep.subr.mxu0 0.0
        %10965 = vmatpush1.msra.mxu0 %v10630
        %10966 = vmatprep.subr.mxu0 0.0
        %10967 = vmatpush1.msra.mxu0 %v10631
        %10968 = vmatprep.subr.mxu0 0.0
        %10969 = vmatpush1.msra.mxu0 %v10632
        %10970 = vmatprep.subr.mxu0 0.0
        %10971 = vmatpush1.msra.mxu0 %v10633
        %10972 = vmatprep.subr.mxu0 0.0
        %10973 = vmatpush1.msra.mxu0 %v10634
        %10974 = vmatprep.subr.mxu0 0.0
        %10975 = vmatpush1.msra.mxu0 %v10635
        %10976 = vmatprep.subr.mxu0 0.0
        %10977 = vmatpush1.msra.mxu0 %v10636
        %10978 = vmatprep.subr.mxu0 0.0
        %10979 = vmatpush1.msra.mxu0 %v10637
        %10980 = vmatprep.subr.mxu0 0.0
        %10981 = vmatpush1.msra.mxu0 %v10638
        %10982 = vmatprep.subr.mxu0 0.0
        %10983 = vmatpush1.msra.mxu0 %v10639
        %10984 = vmatprep.mubr.f32.mxu0 %v10695
        %10985 = vmatmul.mubr.f32.gmra.mrb[0].mxu0 %v10694
        %v10986 = vpop.f32.mrb[0].mxu0
        %v10987 = vadd.f32 %v10917, %v10986
        %v10988 = vpop.f32.mrb[0].mxu0
        %10989 = vdwg.mxu0
        %10990 = vmatprep.subr.mxu0 0.0
        %10991 = vmatpush1.msra.mxu0 %v10640
        %10992 = vmatprep.subr.mxu0 0.0
        %10993 = vmatpush1.msra.mxu0 %v10641
        %10994 = vmatprep.subr.mxu0 0.0
        %10995 = vmatpush1.msra.mxu0 %v10642
        %10996 = vmatprep.subr.mxu0 0.0
        %10997 = vmatpush1.msra.mxu0 %v10643
        %10998 = vmatprep.subr.mxu0 0.0
        %10999 = vmatpush1.msra.mxu0 %v10644
        %11000 = vmatprep.subr.mxu0 0.0
        %11001 = vmatpush1.msra.mxu0 %v10645
        %11002 = vmatprep.subr.mxu0 0.0
        %11003 = vmatpush1.msra.mxu0 %v10646
        %11004 = vmatprep.subr.mxu0 0.0
        %11005 = vmatpush1.msra.mxu0 %v10647
        %11006 = vmatprep.subr.mxu0 0.0
        %11007 = vmatpush1.msra.mxu0 %v10648
        %11008 = vmatprep.subr.mxu0 0.0
        %11009 = vmatpush1.msra.mxu0 %v10649
        %11010 = vmatprep.subr.mxu0 0.0
        %11011 = vmatpush1.msra.mxu0 %v10650
        %11012 = vmatprep.subr.mxu0 0.0
        %11013 = vmatpush1.msra.mxu0 %v10651
        %11014 = vmatprep.subr.mxu0 0.0
        %11015 = vmatpush1.msra.mxu0 %v10652
        %11016 = vmatprep.subr.mxu0 0.0
        %11017 = vmatpush1.msra.mxu0 %v10653
        %11018 = vmatprep.subr.mxu0 0.0
        %11019 = vmatpush1.msra.mxu0 %v10654
        %11020 = vmatprep.subr.mxu0 0.0
        %11021 = vmatpush1.msra.mxu0 %v10655
        %11022 = vmatprep.subr.mxu0 0.0
        %11023 = vmatpush1.msra.mxu0 %v10656
        %11024 = vmatprep.subr.mxu0 0.0
        %11025 = vmatpush1.msra.mxu0 %v10657
        %11026 = vmatprep.subr.mxu0 0.0
        %11027 = vmatpush1.msra.mxu0 %v10658
        %11028 = vmatprep.subr.mxu0 0.0
        %11029 = vmatpush1.msra.mxu0 %v10659
        %11030 = vmatprep.subr.mxu0 0.0
        %11031 = vmatpush1.msra.mxu0 %v10660
        %11032 = vmatprep.subr.mxu0 0.0
        %11033 = vmatpush1.msra.mxu0 %v10661
        %11034 = vmatprep.subr.mxu0 0.0
        %11035 = vmatpush1.msra.mxu0 %v10662
        %11036 = vmatprep.subr.mxu0 0.0
        %11037 = vmatpush1.msra.mxu0 %v10663
        %11038 = vmatprep.subr.mxu0 0.0
        %11039 = vmatpush1.msra.mxu0 %v10664
        %11040 = vmatprep.subr.mxu0 0.0
        %11041 = vmatpush1.msra.mxu0 %v10665
        %11042 = vmatprep.subr.mxu0 0.0
        %11043 = vmatpush1.msra.mxu0 %v10666
        %11044 = vmatprep.subr.mxu0 0.0
        %11045 = vmatpush1.msra.mxu0 %v10667
        %11046 = vmatprep.subr.mxu0 0.0
        %11047 = vmatpush1.msra.mxu0 %v10668
        %11048 = vmatprep.subr.mxu0 0.0
        %11049 = vmatpush1.msra.mxu0 %v10669
        %11050 = vmatprep.subr.mxu0 0.0
        %11051 = vmatpush1.msra.mxu0 %v10670
        %11052 = vmatprep.subr.mxu0 0.0
        %11053 = vmatpush1.msra.mxu0 %v10671
        %11054 = vmatprep.mubr.f32.mxu0 %v10697
        %11055 = vmatmul.mubr.f32.gmra.mrb[0].mxu0 %v10696
        %v11056 = vpop.f32.mrb[0].mxu0
        %v11057 = vadd.f32 %v10987, %v11056
        %v11058 = vpop.f32.mrb[0].mxu0
        %11059 = vdwg.mxu0
        %11060 = vmatprep.subr.mxu0 0.0
        %11061 = vmatpush1.msra.mxu0 %v10672
        %11062 = vmatprep.subr.mxu0 0.0
        %11063 = vmatpush1.msra.mxu0 %v10673
        %11064 = vmatprep.subr.mxu0 0.0
        %11065 = vmatpush1.msra.mxu0 %v10674
        %11066 = vmatprep.subr.mxu0 0.0
        %11067 = vmatpush1.msra.mxu0 %v10675
        %11068 = vmatprep.subr.mxu0 0.0
        %11069 = vmatpush1.msra.mxu0 %v10676
        %11070 = vmatprep.subr.mxu0 0.0
        %11071 = vmatpush1.msra.mxu0 %v10677
        %11072 = vmatprep.subr.mxu0 0.0
        %11073 = vmatpush1.msra.mxu0 %v10678
        %11074 = vmatprep.subr.mxu0 0.0
        %11075 = vmatpush1.msra.mxu0 %v10679
        %11076 = vmatprep.subr.mxu0 0.0
        %11077 = vmatpush1.msra.mxu0 %v10680
        %11078 = vmatprep.subr.mxu0 0.0
        %11079 = vmatpush1.msra.mxu0 %v10681
        %11080 = vmatprep.subr.mxu0 0.0
        %11081 = vmatpush1.msra.mxu0 %v10682
        %11082 = vmatprep.subr.mxu0 0.0
        %11083 = vmatpush1.msra.mxu0 %v10683
        %11084 = vmatprep.subr.mxu0 0.0
        %11085 = vmatpush1.msra.mxu0 %v10684
        %11086 = vmatprep.subr.mxu0 0.0
        %11087 = vmatpush1.msra.mxu0 %v10685
        %11088 = vmatprep.subr.mxu0 0.0
        %11089 = vmatpush1.msra.mxu0 %v10686
        %11090 = vmatprep.subr.mxu0 0.0
        %11091 = vmatpush1.msra.mxu0 %v10687
        %11092 = vmatprep.subr.mxu0 0.0
        %11093 = vmatpush1.msra.mxu0 0.0
        %11094 = vmatprep.subr.mxu0 0.0
        %11095 = vmatpush1.msra.mxu0 0.0
        %11096 = vmatprep.subr.mxu0 0.0
        %11097 = vmatpush1.msra.mxu0 0.0
        %11098 = vmatprep.subr.mxu0 0.0
        %11099 = vmatpush1.msra.mxu0 0.0
        %11100 = vmatprep.subr.mxu0 0.0
        %11101 = vmatpush1.msra.mxu0 0.0
        %11102 = vmatprep.subr.mxu0 0.0
        %11103 = vmatpush1.msra.mxu0 0.0
        %11104 = vmatprep.subr.mxu0 0.0
        %11105 = vmatpush1.msra.mxu0 0.0
        %11106 = vmatprep.subr.mxu0 0.0
        %11107 = vmatpush1.msra.mxu0 0.0
        %11108 = vmatprep.subr.mxu0 0.0
        %11109 = vmatpush1.msra.mxu0 0.0
        %11110 = vmatprep.subr.mxu0 0.0
        %11111 = vmatpush1.msra.mxu0 0.0
        %11112 = vmatprep.subr.mxu0 0.0
        %11113 = vmatpush1.msra.mxu0 0.0
        %11114 = vmatprep.subr.mxu0 0.0
        %11115 = vmatpush1.msra.mxu0 0.0
        %11116 = vmatprep.subr.mxu0 0.0
        %11117 = vmatpush1.msra.mxu0 0.0
        %11118 = vmatprep.subr.mxu0 0.0
        %11119 = vmatpush1.msra.mxu0 0.0
        %11120 = vmatprep.subr.mxu0 0.0
        %11121 = vmatpush1.msra.mxu0 0.0
        %11122 = vmatprep.subr.mxu0 0.0
        %11123 = vmatpush1.msra.mxu0 0.0
        %11124 = vmatprep.mubr.f32.mxu0 0.0
        %11125 = vmatmul.mubr.f32.gmra.mrb[0].mxu0 %v10698
        %v11126 = vpop.f32.mrb[0].mxu0
        %v11127 = vadd.f32 %v11057, %v11126
        %v11128 = vpop.f32.mrb[0].mxu0
        %11129 = vdwg.mxu0
        %v11130 = vadd.f32 %v10508, %v11127
        %v11131 = vld [vmem:[%s6] sm:$0x1]
        %v11132 = vadd.f32 %v11130, %v11131
        %v11133 = vmax.f32 %v11132, 0.0
        %vm11134 = vcmask 90112
        %11135 = vst.msk [vmem:[%s297] sm:$0x1] %vm11134, %v11133
        %s11136 = sand.u32 %s203, 1
        %s11137 = scalar_lea.sflag [#allocation7], %s11136
        %s11138 = sand.u32 %s203, 1
        %s11139 = scalar_lea.vmem [#allocation6], %s11138
        // Predicated region
        $region53: #{tpu_custom_call.1} parent=51 // pred_check
          %p11140 = pneg %p213
        $region54: #{tpu_custom_call.1} parent=51 // pred_check_branch
          %11142 = sbr.rel (%p11140) target = $region56
        $region55: #{tpu_custom_call.1} parent=51 // pred_region
          %s11144 = ssub.s32 16, 16
          %11145 = vsyncadd %s11137, %s11144
          %s11146 = smul.addr %s22, 16
          %s11147 = scalar_lea.hbm %s8, %s11146
          %s11149 = sshll.u32 %s11139, 4
          %s11150 = int_to_ptr.vmem [resolvable:$true] %s11149
          %11152 = dma.vmem_to_hbm [thread:$0]  %s11150, 16, %s11147, %s11137
        $region56: #{tpu_custom_call.1} parent=51 // pred_fallthru
          _
      $region52: #{tpu_custom_call.1} parent=5 // pred_fallthru
        _
      %p11153 = scmp.le.s32.totalorder 2, %s17
      // Predicated region
      $region57: #{tpu_custom_call.1} parent=5 // pred_check
        %p11154 = pneg %p11153
      $region58: #{tpu_custom_call.1} parent=5 // pred_check_branch
        %11156 = sbr.rel (%p11154) target = $region60
      $region59: #{tpu_custom_call.1} parent=5 // pred_region
        %s11157 = ssub.s32 %s17, 2
        // Predicated region
        $region61: #{tpu_custom_call.1} parent=59 // pred_check
          %p11158 = pneg %p219
        $region62: #{tpu_custom_call.1} parent=59 // pred_check_branch
          %11160 = sbr.rel (%p11158) target = $region64
        $region63: #{tpu_custom_call.1} parent=59 // pred_region
          %s11161 = sand.u32 %s204, 1
          %s11162 = scalar_lea.sflag [#allocation7], %s11161
          %s11163 = sand.u32 %s204, 1
          %s11164 = scalar_lea.vmem [#allocation6], %s11163
          %11165 = dma.done %s11162, 16
        $region64: #{tpu_custom_call.1} parent=59 // pred_fallthru
          _
      $region60: #{tpu_custom_call.1} parent=5 // pred_fallthru
        _
    $region6: #{tpu_custom_call.1} parent=1 // loop_footer
      %s21 = sadd.s32 1, %s17
    $region7: #{tpu_custom_call.1} parent=1 // loop_footer_branch
      %16 = sbr.rel target = $region3
    $region8: #{tpu_custom_call.1} parent=1 // loop_exit
      _
    %11166 = vsyncpa [#allocation7], 1
    %s11167 = scalar_lea.sflag [#allocation7], 1
    %11168 = vsyncpa %s11167, 1

</llo_original>
